<compile_context>
chip_gen: v5e
topology: v5e:2x2
jax: 0.10.0
libtpu: 0.0.40
codegen_flags: <defaults>
</compile_context>

<pallas_src>
import jax
import jax.numpy as jnp
from jax.experimental import pallas as pl
from jax.experimental.pallas import tpu as pltpu


# ----------------------------------------------------------------------------
# Kernel 1: fused conv1 -> ReLU -> maxpool -> conv2 -> ReLU -> maxpool
# One image per grid step; batch axis is "parallel" (megacore / v7x 2xTC).
# ----------------------------------------------------------------------------
def fused_conv_kernel(p_ref, w1_ref, b1_ref, w2_ref, b2_ref, o_ref,
                      hpool1_ref, hpad_ref, hpool2_ref):
    # p_ref : (1, 2304, 9)  im2col LHS of the 48x48 image (row r = y*48 + x, col k = dy*3+dx)
    # w1_ref: (9, 32)   b1_ref: (1, 32)
    # w2_ref: (288, 64) b2_ref: (1, 64)    (row = (dy*3+dx)*32 + cin)
    # o_ref : (1, 12, 12, 64) bf16  (NHWC pooled conv2 output)

    # ---- conv1: single MXU dot, fused bias + ReLU --------------------------
    z1 = jnp.dot(p_ref[0], w1_ref[...], preferred_element_type=jnp.float32)   # (2304, 32)
    z1 = jnp.maximum(z1 + b1_ref[...], 0.0)

    # ---- maxpool1 2x2: H-pool in registers, W-pool via scratch + strided reads
    z1 = z1.reshape(24, 2, 48, 32)                       # rows r=y*48+x -> (yh, y&1, x, c)
    hpool1_ref[...] = jnp.maximum(z1[:, 0], z1[:, 1])    # pool over H -> (24, 48, 32)
    h1 = jnp.maximum(hpool1_ref[:, pl.ds(0, 24, 2), :],
                     hpool1_ref[:, pl.ds(1, 24, 2), :])  # pool over W -> (24, 24, 32)

    # ---- zero-halo SAME padding for conv2 (VMEM-only, ~0.4 MB of stores) ----
    hpad_ref[...] = jnp.zeros_like(hpad_ref)             # (26, 26, 32)
    hpad_ref[1:25, 1:25, :] = h1

    # ---- conv2: 9 taps, (576,32) @ (32,64) each, accumulated in registers ---
    acc = None
    k = 0
    for dy in range(3):
        for dx in range(3):
            lhs = hpad_ref[dy:dy + 24, dx:dx + 24, :].reshape(576, 32)
            part = jnp.dot(lhs, w2_ref[32 * k:32 * (k + 1), :],
                           preferred_element_type=jnp.float32)
            acc = part if acc is None else acc + part
            k += 1
    z2 = jnp.maximum(acc + b2_ref[...], 0.0)              # (576, 64), bias + ReLU

    # ---- maxpool2 2x2 -------------------------------------------------------
    z2 = z2.reshape(12, 2, 24, 64)                        # rows r=y*24+x -> (yh, y&1, x, c)
    hpool2_ref[...] = jnp.maximum(z2[:, 0], z2[:, 1])     # pool over H -> (12, 24, 64)
    h2 = jnp.maximum(hpool2_ref[:, pl.ds(0, 12, 2), :],
                     hpool2_ref[:, pl.ds(1, 12, 2), :])   # pool over W -> (12, 12, 64)

    # Single full-block bf16 store (fc1 input dtype), no per-column store loop.
    o_ref[0] = h2.astype(jnp.bfloat16)


def fused_convs(patches, w1, b1, w2, b2):
    N = patches.shape[0]
    return pl.pallas_call(
        fused_conv_kernel,
        out_shape=jax.ShapeDtypeStruct((N, 12, 12, 64), jnp.bfloat16),
        grid_spec=pltpu.PrefetchScalarGridSpec(
            num_scalar_prefetch=0,
            grid=(N,),
            in_specs=[
                pl.BlockSpec((1, 48 * 48, 9), lambda n: (n, 0, 0)),
                pl.BlockSpec((9, 32), lambda n: (0, 0)),
                pl.BlockSpec((1, 32), lambda n: (0, 0)),
                pl.BlockSpec((288, 64), lambda n: (0, 0)),
                pl.BlockSpec((1, 64), lambda n: (0, 0)),
            ],
            out_specs=pl.BlockSpec((1, 12, 12, 64), lambda n: (n, 0, 0, 0)),
            scratch_shapes=[
                pltpu.VMEM((24, 48, 32), jnp.float32),   # W-pool staging, conv1
                pltpu.VMEM((26, 26, 32), jnp.float32),   # zero-halo conv1 output
                pltpu.VMEM((12, 24, 64), jnp.float32),   # W-pool staging, conv2
            ],
        ),
        compiler_params=pltpu.CompilerParams(
            dimension_semantics=("parallel",),
            vmem_limit_bytes=32 * 1024 * 1024),
    )(patches, w1, b1, w2, b2)


# ----------------------------------------------------------------------------
# Kernel 2: MLP head.  fc1 (9216 -> 512) is tiled over batch (parallel) and K
# (arbitrary, bf16 weights + bf16 activations, f32 VMEM accumulator); ReLU,
# fc2 (512 -> 1) and sigmoid run on the last K step.
# ----------------------------------------------------------------------------
def mlp_head_kernel(x_ref, w1_ref, b1_ref, w2_ref, b2_ref, o_ref, acc_ref):
    k = pl.program_id(1)

    @pl.when(k == 0)
    def _():
        acc_ref[...] = jnp.zeros_like(acc_ref)

    acc_ref[...] += jnp.dot(x_ref[...], w1_ref[...],
                            preferred_element_type=jnp.float32)

    @pl.when(k == pl.num_programs(1) - 1)
    def _():
        h = jnp.maximum(acc_ref[...] + b1_ref[...], 0.0)                 # fc1 + ReLU
        y = jnp.dot(h, w2_ref[...], preferred_element_type=jnp.float32) + b2_ref[...]
        o_ref[...] = 1.0 / (1.0 + jnp.exp(-y))                           # sigmoid


def _pick_bm(n):
    if n <= 256:
        return n                       # block dim == full dim is always a valid BlockSpec
    for bm in (256, 128, 64, 32, 16, 8):
        if n % bm == 0:
            return bm
    return n


def mlp_head(x, w1, b1, w2, b2, *, tk=1152):
    N, K = x.shape
    Hd = w1.shape[1]
    bm = _pick_bm(N)
    assert K % tk == 0 and N % bm == 0
    return pl.pallas_call(
        mlp_head_kernel,
        out_shape=jax.ShapeDtypeStruct((N, 1), jnp.float32),
        grid_spec=pltpu.PrefetchScalarGridSpec(
            num_scalar_prefetch=0,
            grid=(N // bm, K // tk),
            in_specs=[
                pl.BlockSpec((bm, tk), lambda b, k: (b, k)),
                pl.BlockSpec((tk, Hd), lambda b, k: (k, 0)),
                pl.BlockSpec((1, Hd), lambda b, k: (0, 0)),
                pl.BlockSpec((Hd, 1), lambda b, k: (0, 0)),
                pl.BlockSpec((1, 1), lambda b, k: (0, 0)),
            ],
            out_specs=pl.BlockSpec((bm, 1), lambda b, k: (b, 0)),
            scratch_shapes=[pltpu.VMEM((bm, Hd), jnp.float32)],
        ),
        compiler_params=pltpu.CompilerParams(
            dimension_semantics=("parallel", "arbitrary"),
            vmem_limit_bytes=32 * 1024 * 1024),
    )(x, w1, b1, w2, b2)


# ----------------------------------------------------------------------------
# Full forward pass (glue in plain JAX)
# ----------------------------------------------------------------------------
def _conv1_im2col(x):
    # x: (N, 48, 48) single-channel image -> (N, 2304, 9), row r = y*48+x, col k = dy*3+dx.
    N = x.shape[0]
    xp = jnp.pad(x, ((0, 0), (1, 1), (1, 1)))
    cols = [xp[:, dy:dy + 48, dx:dx + 48].reshape(N, 48 * 48)
            for dy in range(3) for dx in range(3)]
    return jnp.stack(cols, axis=-1)


@jax.jit
def chatgpt_forward(x_nchw, p):
    N = x_nchw.shape[0]
    x = x_nchw.reshape(N, 48, 48).astype(jnp.float32)               # NCHW, C=1 -> squeeze
    patches = _conv1_im2col(x)                                      # (N, 2304, 9), ~83 KB/img
    h = fused_convs(patches, p["w_conv1"], p["b_conv1"],
                    p["w_conv2"], p["b_conv2"])                     # (N, 12, 12, 64) bf16
    flat = h.reshape(N, 12 * 12 * 64)                               # free collapse (NHWC order)
    return mlp_head(flat, p["w_fc1"], p["b_fc1"], p["w_fc2"], p["b_fc2"])


def init_params(key):
    ks = jax.random.split(key, 8)

    def u(k, shape, fan_in):
        bound = 1.0 / jnp.sqrt(jnp.float32(fan_in))
        return jax.random.uniform(k, shape, jnp.float32, -bound, bound)

    # Conv weights stored as (9*Cin, Cout), row k = (dy*3+dx)*Cin + cin
    # (== HWIO weight .reshape(9*Cin, Cout)).
    # w_fc1 rows are in NHWC flatten order (y, x, c); to import PyTorch weights
    # (NCHW flatten c*144 + y*12 + x) permute the rows accordingly.
    # w_fc1 is bf16 (HBM-bandwidth optimization; f32 accumulation in-kernel).
    return dict(
        w_conv1=u(ks[0], (9, 32), 9),
        b_conv1=u(ks[1], (1, 32), 9),
        w_conv2=u(ks[2], (9 * 32, 64), 32 * 9),
        b_conv2=u(ks[3], (1, 64), 32 * 9),
        w_fc1=u(ks[4], (64 * 12 * 12, 512), 64 * 12 * 12).astype(jnp.bfloat16),
        b_fc1=u(ks[5], (1, 512), 64 * 12 * 12),
        w_fc2=u(ks[6], (512, 1), 512),
        b_fc2=u(ks[7], (1, 1), 512),
    )


def reference_forward(x_nchw, p):
    # Pure-JAX reference (same weights / same bf16 fc1 math) for numerical sanity check.
    x = jnp.transpose(x_nchw, (0, 2, 3, 1)).astype(jnp.float32)     # (N, 48, 48, 1)
    N = x.shape[0]

    def block(h, w_hwio, b):
        y = jax.lax.conv_general_dilated(
            h, w_hwio, (1, 1), "SAME", dimension_numbers=("NHWC", "HWIO", "NHWC"))
        y = jnp.maximum(y + b.reshape(1, 1, 1, -1), 0.0)
        return jax.lax.reduce_window(y, -jnp.inf, jax.lax.max,
                                     (1, 2, 2, 1), (1, 2, 2, 1), "VALID")

    h = block(x, p["w_conv1"].reshape(3, 3, 1, 32), p["b_conv1"])
    h = block(h, p["w_conv2"].reshape(3, 3, 32, 64), p["b_conv2"])
    flat = h.reshape(N, 64 * 12 * 12)                               # NHWC flatten
    hfc = jnp.dot(flat.astype(jnp.bfloat16), p["w_fc1"],
                  preferred_element_type=jnp.float32) + p["b_fc1"]
    hfc = jnp.maximum(hfc, 0.0)
    y = hfc @ p["w_fc2"] + p["b_fc2"]
    return 1.0 / (1.0 + jnp.exp(-y))


if __name__ == "__main__":
    key = jax.random.PRNGKey(0)
    pkey, xkey = jax.random.split(key)
    params = init_params(pkey)
    # PyTorch-style NCHW input; spatial must be 48x48 (fc1 expects 64*12*12).
    x = jax.random.normal(xkey, (2, 1, 48, 48), jnp.float32)

    out = jax.block_until_ready(chatgpt_forward(x, params))
    ref = reference_forward(x, params)

    assert out.shape == (2, 1), out.shape
    assert bool(jnp.all(jnp.isfinite(out)))
    assert jnp.allclose(out, ref, atol=5e-3, rtol=5e-3), (out, ref)
    print("KERNEL_OK")
</pallas_src>

<mosaic_0001>
module attributes {stable_mosaic.version = 11 : i64} {
  func.func @fused_conv_kernel(%arg0: i32, %arg1: memref<1x2304x9xf32, #tpu.memory_space<vmem>>, %arg2: memref<9x32xf32, #tpu.memory_space<vmem>>, %arg3: memref<1x32xf32, #tpu.memory_space<vmem>>, %arg4: memref<288x64xf32, #tpu.memory_space<vmem>>, %arg5: memref<1x64xf32, #tpu.memory_space<vmem>>, %arg6: memref<1x12x12x64xbf16, #tpu.memory_space<vmem>>, %arg7: memref<24x48x32xf32, #tpu.memory_space<vmem>>, %arg8: memref<26x26x32xf32, #tpu.memory_space<vmem>>, %arg9: memref<12x24x64xf32, #tpu.memory_space<vmem>>) attributes {dimension_semantics = [#tpu.dimension_semantics<parallel>], iteration_bounds = array<i64: 2>, scalar_prefetch = 0 : i64, scratch_operands = 3 : i64, tpu.core_type = #tpu.core_type<tc>, window_params = [{transform_indices = @transform_0, window_bounds = array<i64: 1, 2304, 9>}, {pipeline_mode = #tpu.pipeline_mode<synchronous>, transform_indices = @transform_1, window_bounds = array<i64: 9, 32>}, {pipeline_mode = #tpu.pipeline_mode<synchronous>, transform_indices = @transform_2, window_bounds = array<i64: 1, 32>}, {pipeline_mode = #tpu.pipeline_mode<synchronous>, transform_indices = @transform_3, window_bounds = array<i64: 288, 64>}, {pipeline_mode = #tpu.pipeline_mode<synchronous>, transform_indices = @transform_4, window_bounds = array<i64: 1, 64>}, {transform_indices = @transform_5, window_bounds = array<i64: 1, 12, 12, 64>}]} {
    %c0 = arith.constant 0 : index
    %c0_0 = arith.constant 0 : index
    %c0_1 = arith.constant 0 : index
    %0 = vector.load %arg1[%c0, %c0_0, %c0_1] : memref<1x2304x9xf32, #tpu.memory_space<vmem>>, vector<1x2304x9xf32>
    %1 = vector.shape_cast %0 : vector<1x2304x9xf32> to vector<2304x9xf32>
    %c0_2 = arith.constant 0 : index
    %c0_3 = arith.constant 0 : index
    %2 = vector.load %arg2[%c0_2, %c0_3] : memref<9x32xf32, #tpu.memory_space<vmem>>, vector<9x32xf32>
    %cst = arith.constant dense<0.000000e+00> : vector<2304x32xf32>
    %3 = tpu.matmul %1, %2, %cst {dimension_numbers = #tpu.dot_dimension_numbers<[1], [0], [0], [1], [0, 0, 1, 1], [], []>} : vector<2304x9xf32>, vector<9x32xf32>, vector<2304x32xf32> -> vector<2304x32xf32>
    %c0_4 = arith.constant 0 : index
    %c0_5 = arith.constant 0 : index
    %4 = vector.load %arg3[%c0_4, %c0_5] : memref<1x32xf32, #tpu.memory_space<vmem>>, vector<1x32xf32>
    %5 = vector.broadcast %4 : vector<1x32xf32> to vector<2304x32xf32>
    %6 = arith.addf %3, %5 : vector<2304x32xf32>
    %cst_6 = arith.constant 0.000000e+00 : f32
    %7 = vector.broadcast %cst_6 : f32 to vector<2304x32xf32>
    %8 = arith.maximumf %6, %7 : vector<2304x32xf32>
    %9 = vector.shape_cast %8 : vector<2304x32xf32> to vector<24x2x48x32xf32>
    %10 = vector.extract_strided_slice %9 {offsets = [0, 0, 0, 0], sizes = [24, 1, 48, 32], strides = [1, 1, 1, 1]} : vector<24x2x48x32xf32> to vector<24x1x48x32xf32>
    %11 = vector.shape_cast %10 : vector<24x1x48x32xf32> to vector<24x48x32xf32>
    %12 = vector.extract_strided_slice %9 {offsets = [0, 1, 0, 0], sizes = [24, 1, 48, 32], strides = [1, 1, 1, 1]} : vector<24x2x48x32xf32> to vector<24x1x48x32xf32>
    %13 = vector.shape_cast %12 : vector<24x1x48x32xf32> to vector<24x48x32xf32>
    %14 = arith.maximumf %11, %13 : vector<24x48x32xf32>
    %c0_7 = arith.constant 0 : index
    %c0_8 = arith.constant 0 : index
    %c0_9 = arith.constant 0 : index
    %15 = vector.load %arg7[%c0_7, %c0_8, %c0_9] : memref<24x48x32xf32, #tpu.memory_space<vmem>>, vector<24x48x32xf32>
    tpu.vector_store %arg7[%c0_7, %c0_8, %c0_9], %14 {strides = array<i32>} : memref<24x48x32xf32, #tpu.memory_space<vmem>>, vector<24x48x32xf32>,
    %c0_10 = arith.constant 0 : index
    %c0_11 = arith.constant 0 : index
    %c0_12 = arith.constant 0 : index
    %16 = tpu.strided_load %arg7[%c0_10, %c0_11, %c0_12] {strides = array<i32: 1, 2, 1>} : memref<24x48x32xf32, #tpu.memory_space<vmem>>, vector<24x24x32xf32>
    %c0_13 = arith.constant 0 : index
    %c1 = arith.constant 1 : index
    %c0_14 = arith.constant 0 : index
    %17 = tpu.strided_load %arg7[%c0_13, %c1, %c0_14] {strides = array<i32: 1, 2, 1>} : memref<24x48x32xf32, #tpu.memory_space<vmem>>, vector<24x24x32xf32>
    %18 = arith.maximumf %16, %17 : vector<24x24x32xf32>
    %cst_15 = arith.constant 0.000000e+00 : f32
    %19 = vector.broadcast %cst_15 : f32 to vector<26x26x32xf32>
    %c0_16 = arith.constant 0 : index
    %c0_17 = arith.constant 0 : index
    %c0_18 = arith.constant 0 : index
    %20 = vector.load %arg8[%c0_16, %c0_17, %c0_18] : memref<26x26x32xf32, #tpu.memory_space<vmem>>, vector<26x26x32xf32>
    tpu.vector_store %arg8[%c0_16, %c0_17, %c0_18], %19 {strides = array<i32>} : memref<26x26x32xf32, #tpu.memory_space<vmem>>, vector<26x26x32xf32>,
    %c1_19 = arith.constant 1 : index
    %c1_20 = arith.constant 1 : index
    %c0_21 = arith.constant 0 : index
    %21 = vector.load %arg8[%c1_19, %c1_20, %c0_21] : memref<26x26x32xf32, #tpu.memory_space<vmem>>, vector<24x24x32xf32>
    tpu.vector_store %arg8[%c1_19, %c1_20, %c0_21], %18 {strides = array<i32>} : memref<26x26x32xf32, #tpu.memory_space<vmem>>, vector<24x24x32xf32>,
    %c0_22 = arith.constant 0 : index
    %c0_23 = arith.constant 0 : index
    %c0_24 = arith.constant 0 : index
    %22 = vector.load %arg8[%c0_22, %c0_23, %c0_24] : memref<26x26x32xf32, #tpu.memory_space<vmem>>, vector<24x24x32xf32>
    %23 = vector.shape_cast %22 : vector<24x24x32xf32> to vector<576x32xf32>
    %c0_25 = arith.constant 0 : index
    %c0_26 = arith.constant 0 : index
    %24 = vector.load %arg4[%c0_25, %c0_26] : memref<288x64xf32, #tpu.memory_space<vmem>>, vector<32x64xf32>
    %cst_27 = arith.constant dense<0.000000e+00> : vector<576x64xf32>
    %25 = tpu.matmul %23, %24, %cst_27 {dimension_numbers = #tpu.dot_dimension_numbers<[1], [0], [0], [1], [0, 0, 1, 1], [], []>} : vector<576x32xf32>, vector<32x64xf32>, vector<576x64xf32> -> vector<576x64xf32>
    %c0_28 = arith.constant 0 : index
    %c1_29 = arith.constant 1 : index
    %c0_30 = arith.constant 0 : index
    %26 = vector.load %arg8[%c0_28, %c1_29, %c0_30] : memref<26x26x32xf32, #tpu.memory_space<vmem>>, vector<24x24x32xf32>
    %27 = vector.shape_cast %26 : vector<24x24x32xf32> to vector<576x32xf32>
    %c32 = arith.constant 32 : index
    %c0_31 = arith.constant 0 : index
    %28 = vector.load %arg4[%c32, %c0_31] : memref<288x64xf32, #tpu.memory_space<vmem>>, vector<32x64xf32>
    %cst_32 = arith.constant dense<0.000000e+00> : vector<576x64xf32>
    %29 = tpu.matmul %27, %28, %cst_32 {dimension_numbers = #tpu.dot_dimension_numbers<[1], [0], [0], [1], [0, 0, 1, 1], [], []>} : vector<576x32xf32>, vector<32x64xf32>, vector<576x64xf32> -> vector<576x64xf32>
    %30 = arith.addf %25, %29 : vector<576x64xf32>
    %c0_33 = arith.constant 0 : index
    %c2 = arith.constant 2 : index
    %c0_34 = arith.constant 0 : index
    %31 = vector.load %arg8[%c0_33, %c2, %c0_34] : memref<26x26x32xf32, #tpu.memory_space<vmem>>, vector<24x24x32xf32>
    %32 = vector.shape_cast %31 : vector<24x24x32xf32> to vector<576x32xf32>
    %c64 = arith.constant 64 : index
    %c0_35 = arith.constant 0 : index
    %33 = vector.load %arg4[%c64, %c0_35] : memref<288x64xf32, #tpu.memory_space<vmem>>, vector<32x64xf32>
    %cst_36 = arith.constant dense<0.000000e+00> : vector<576x64xf32>
    %34 = tpu.matmul %32, %33, %cst_36 {dimension_numbers = #tpu.dot_dimension_numbers<[1], [0], [0], [1], [0, 0, 1, 1], [], []>} : vector<576x32xf32>, vector<32x64xf32>, vector<576x64xf32> -> vector<576x64xf32>
    %35 = arith.addf %30, %34 : vector<576x64xf32>
    %c1_37 = arith.constant 1 : index
    %c0_38 = arith.constant 0 : index
    %c0_39 = arith.constant 0 : index
    %36 = vector.load %arg8[%c1_37, %c0_38, %c0_39] : memref<26x26x32xf32, #tpu.memory_space<vmem>>, vector<24x24x32xf32>
    %37 = vector.shape_cast %36 : vector<24x24x32xf32> to vector<576x32xf32>
    %c96 = arith.constant 96 : index
    %c0_40 = arith.constant 0 : index
    %38 = vector.load %arg4[%c96, %c0_40] : memref<288x64xf32, #tpu.memory_space<vmem>>, vector<32x64xf32>
    %cst_41 = arith.constant dense<0.000000e+00> : vector<576x64xf32>
    %39 = tpu.matmul %37, %38, %cst_41 {dimension_numbers = #tpu.dot_dimension_numbers<[1], [0], [0], [1], [0, 0, 1, 1], [], []>} : vector<576x32xf32>, vector<32x64xf32>, vector<576x64xf32> -> vector<576x64xf32>
    %40 = arith.addf %35, %39 : vector<576x64xf32>
    %c1_42 = arith.constant 1 : index
    %c1_43 = arith.constant 1 : index
    %c0_44 = arith.constant 0 : index
    %41 = vector.load %arg8[%c1_42, %c1_43, %c0_44] : memref<26x26x32xf32, #tpu.memory_space<vmem>>, vector<24x24x32xf32>
    %42 = vector.shape_cast %41 : vector<24x24x32xf32> to vector<576x32xf32>
    %c128 = arith.constant 128 : index
    %c0_45 = arith.constant 0 : index
    %43 = vector.load %arg4[%c128, %c0_45] : memref<288x64xf32, #tpu.memory_space<vmem>>, vector<32x64xf32>
    %cst_46 = arith.constant dense<0.000000e+00> : vector<576x64xf32>
    %44 = tpu.matmul %42, %43, %cst_46 {dimension_numbers = #tpu.dot_dimension_numbers<[1], [0], [0], [1], [0, 0, 1, 1], [], []>} : vector<576x32xf32>, vector<32x64xf32>, vector<576x64xf32> -> vector<576x64xf32>
    %45 = arith.addf %40, %44 : vector<576x64xf32>
    %c1_47 = arith.constant 1 : index
    %c2_48 = arith.constant 2 : index
    %c0_49 = arith.constant 0 : index
    %46 = vector.load %arg8[%c1_47, %c2_48, %c0_49] : memref<26x26x32xf32, #tpu.memory_space<vmem>>, vector<24x24x32xf32>
    %47 = vector.shape_cast %46 : vector<24x24x32xf32> to vector<576x32xf32>
    %c160 = arith.constant 160 : index
    %c0_50 = arith.constant 0 : index
    %48 = vector.load %arg4[%c160, %c0_50] : memref<288x64xf32, #tpu.memory_space<vmem>>, vector<32x64xf32>
    %cst_51 = arith.constant dense<0.000000e+00> : vector<576x64xf32>
    %49 = tpu.matmul %47, %48, %cst_51 {dimension_numbers = #tpu.dot_dimension_numbers<[1], [0], [0], [1], [0, 0, 1, 1], [], []>} : vector<576x32xf32>, vector<32x64xf32>, vector<576x64xf32> -> vector<576x64xf32>
    %50 = arith.addf %45, %49 : vector<576x64xf32>
    %c2_52 = arith.constant 2 : index
    %c0_53 = arith.constant 0 : index
    %c0_54 = arith.constant 0 : index
    %51 = vector.load %arg8[%c2_52, %c0_53, %c0_54] : memref<26x26x32xf32, #tpu.memory_space<vmem>>, vector<24x24x32xf32>
    %52 = vector.shape_cast %51 : vector<24x24x32xf32> to vector<576x32xf32>
    %c192 = arith.constant 192 : index
    %c0_55 = arith.constant 0 : index
    %53 = vector.load %arg4[%c192, %c0_55] : memref<288x64xf32, #tpu.memory_space<vmem>>, vector<32x64xf32>
    %cst_56 = arith.constant dense<0.000000e+00> : vector<576x64xf32>
    %54 = tpu.matmul %52, %53, %cst_56 {dimension_numbers = #tpu.dot_dimension_numbers<[1], [0], [0], [1], [0, 0, 1, 1], [], []>} : vector<576x32xf32>, vector<32x64xf32>, vector<576x64xf32> -> vector<576x64xf32>
    %55 = arith.addf %50, %54 : vector<576x64xf32>
    %c2_57 = arith.constant 2 : index
    %c1_58 = arith.constant 1 : index
    %c0_59 = arith.constant 0 : index
    %56 = vector.load %arg8[%c2_57, %c1_58, %c0_59] : memref<26x26x32xf32, #tpu.memory_space<vmem>>, vector<24x24x32xf32>
    %57 = vector.shape_cast %56 : vector<24x24x32xf32> to vector<576x32xf32>
    %c224 = arith.constant 224 : index
    %c0_60 = arith.constant 0 : index
    %58 = vector.load %arg4[%c224, %c0_60] : memref<288x64xf32, #tpu.memory_space<vmem>>, vector<32x64xf32>
    %cst_61 = arith.constant dense<0.000000e+00> : vector<576x64xf32>
    %59 = tpu.matmul %57, %58, %cst_61 {dimension_numbers = #tpu.dot_dimension_numbers<[1], [0], [0], [1], [0, 0, 1, 1], [], []>} : vector<576x32xf32>, vector<32x64xf32>, vector<576x64xf32> -> vector<576x64xf32>
    %60 = arith.addf %55, %59 : vector<576x64xf32>
    %c2_62 = arith.constant 2 : index
    %c2_63 = arith.constant 2 : index
    %c0_64 = arith.constant 0 : index
    %61 = vector.load %arg8[%c2_62, %c2_63, %c0_64] : memref<26x26x32xf32, #tpu.memory_space<vmem>>, vector<24x24x32xf32>
    %62 = vector.shape_cast %61 : vector<24x24x32xf32> to vector<576x32xf32>
    %c256 = arith.constant 256 : index
    %c0_65 = arith.constant 0 : index
    %63 = vector.load %arg4[%c256, %c0_65] : memref<288x64xf32, #tpu.memory_space<vmem>>, vector<32x64xf32>
    %cst_66 = arith.constant dense<0.000000e+00> : vector<576x64xf32>
    %64 = tpu.matmul %62, %63, %cst_66 {dimension_numbers = #tpu.dot_dimension_numbers<[1], [0], [0], [1], [0, 0, 1, 1], [], []>} : vector<576x32xf32>, vector<32x64xf32>, vector<576x64xf32> -> vector<576x64xf32>
    %65 = arith.addf %60, %64 : vector<576x64xf32>
    %c0_67 = arith.constant 0 : index
    %c0_68 = arith.constant 0 : index
    %66 = vector.load %arg5[%c0_67, %c0_68] : memref<1x64xf32, #tpu.memory_space<vmem>>, vector<1x64xf32>
    %67 = vector.broadcast %66 : vector<1x64xf32> to vector<576x64xf32>
    %68 = arith.addf %65, %67 : vector<576x64xf32>
    %cst_69 = arith.constant 0.000000e+00 : f32
    %69 = vector.broadcast %cst_69 : f32 to vector<576x64xf32>
    %70 = arith.maximumf %68, %69 : vector<576x64xf32>
    %71 = vector.shape_cast %70 : vector<576x64xf32> to vector<12x2x24x64xf32>
    %72 = vector.extract_strided_slice %71 {offsets = [0, 0, 0, 0], sizes = [12, 1, 24, 64], strides = [1, 1, 1, 1]} : vector<12x2x24x64xf32> to vector<12x1x24x64xf32>
    %73 = vector.shape_cast %72 : vector<12x1x24x64xf32> to vector<12x24x64xf32>
    %74 = vector.extract_strided_slice %71 {offsets = [0, 1, 0, 0], sizes = [12, 1, 24, 64], strides = [1, 1, 1, 1]} : vector<12x2x24x64xf32> to vector<12x1x24x64xf32>
    %75 = vector.shape_cast %74 : vector<12x1x24x64xf32> to vector<12x24x64xf32>
    %76 = arith.maximumf %73, %75 : vector<12x24x64xf32>
    %c0_70 = arith.constant 0 : index
    %c0_71 = arith.constant 0 : index
    %c0_72 = arith.constant 0 : index
    %77 = vector.load %arg9[%c0_70, %c0_71, %c0_72] : memref<12x24x64xf32, #tpu.memory_space<vmem>>, vector<12x24x64xf32>
    tpu.vector_store %arg9[%c0_70, %c0_71, %c0_72], %76 {strides = array<i32>} : memref<12x24x64xf32, #tpu.memory_space<vmem>>, vector<12x24x64xf32>,
    %c0_73 = arith.constant 0 : index
    %c0_74 = arith.constant 0 : index
    %c0_75 = arith.constant 0 : index
    %78 = tpu.strided_load %arg9[%c0_73, %c0_74, %c0_75] {strides = array<i32: 1, 2, 1>} : memref<12x24x64xf32, #tpu.memory_space<vmem>>, vector<12x12x64xf32>
    %c0_76 = arith.constant 0 : index
    %c1_77 = arith.constant 1 : index
    %c0_78 = arith.constant 0 : index
    %79 = tpu.strided_load %arg9[%c0_76, %c1_77, %c0_78] {strides = array<i32: 1, 2, 1>} : memref<12x24x64xf32, #tpu.memory_space<vmem>>, vector<12x12x64xf32>
    %80 = arith.maximumf %78, %79 : vector<12x12x64xf32>
    %81 = arith.truncf %80 : vector<12x12x64xf32> to vector<12x12x64xbf16>
    %c0_79 = arith.constant 0 : index
    %c0_80 = arith.constant 0 : index
    %c0_81 = arith.constant 0 : index
    %c0_82 = arith.constant 0 : index
    %82 = vector.load %arg6[%c0_79, %c0_80, %c0_81, %c0_82] : memref<1x12x12x64xbf16, #tpu.memory_space<vmem>>, vector<1x12x12x64xbf16>
    %83 = vector.shape_cast %82 : vector<1x12x12x64xbf16> to vector<12x12x64xbf16>
    %84 = vector.shape_cast %81 : vector<12x12x64xbf16> to vector<1x12x12x64xbf16>
    tpu.vector_store %arg6[%c0_79, %c0_80, %c0_81, %c0_82], %84 {strides = array<i32>} : memref<1x12x12x64xbf16, #tpu.memory_space<vmem>>, vector<1x12x12x64xbf16>,
    return
  }
  func.func @transform_0(%arg0: i32) -> (i32, i32, i32) {
    %c0_i32 = arith.constant 0 : i32
    %c0_i32_0 = arith.constant 0 : i32
    %c0_i32_1 = arith.constant 0 : i32
    return %arg0, %c0_i32, %c0_i32_0 : i32, i32, i32
  }
  func.func @transform_1(%arg0: i32) -> (i32, i32) {
    %c0_i32 = arith.constant 0 : i32
    %c0_i32_0 = arith.constant 0 : i32
    %c0_i32_1 = arith.constant 0 : i32
    return %c0_i32, %c0_i32_0 : i32, i32
  }
  func.func @transform_2(%arg0: i32) -> (i32, i32) {
    %c0_i32 = arith.constant 0 : i32
    %c0_i32_0 = arith.constant 0 : i32
    %c0_i32_1 = arith.constant 0 : i32
    return %c0_i32, %c0_i32_0 : i32, i32
  }
  func.func @transform_3(%arg0: i32) -> (i32, i32) {
    %c0_i32 = arith.constant 0 : i32
    %c0_i32_0 = arith.constant 0 : i32
    %c0_i32_1 = arith.constant 0 : i32
    return %c0_i32, %c0_i32_0 : i32, i32
  }
  func.func @transform_4(%arg0: i32) -> (i32, i32) {
    %c0_i32 = arith.constant 0 : i32
    %c0_i32_0 = arith.constant 0 : i32
    %c0_i32_1 = arith.constant 0 : i32
    return %c0_i32, %c0_i32_0 : i32, i32
  }
  func.func @transform_5(%arg0: i32) -> (i32, i32, i32, i32) {
    %c0_i32 = arith.constant 0 : i32
    %c0_i32_0 = arith.constant 0 : i32
    %c0_i32_1 = arith.constant 0 : i32
    %c0_i32_2 = arith.constant 0 : i32
    return %arg0, %c0_i32, %c0_i32_0, %c0_i32_1 : i32, i32, i32, i32
  }
}

module attributes {stable_mosaic.version = 11 : i64} {
  func.func @mlp_head_kernel(%arg0: i32, %arg1: i32, %arg2: memref<2x1152xbf16, #tpu.memory_space<vmem>>, %arg3: memref<1152x512xbf16, #tpu.memory_space<vmem>>, %arg4: memref<1x512xf32, #tpu.memory_space<vmem>>, %arg5: memref<512x1xf32, #tpu.memory_space<vmem>>, %arg6: memref<1x1xf32, #tpu.memory_space<vmem>>, %arg7: memref<2x1xf32, #tpu.memory_space<vmem>>, %arg8: memref<2x512xf32, #tpu.memory_space<vmem>>) attributes {dimension_semantics = [#tpu.dimension_semantics<parallel>, #tpu.dimension_semantics<arbitrary>], iteration_bounds = array<i64: 1, 8>, scalar_prefetch = 0 : i64, scratch_operands = 1 : i64, tpu.core_type = #tpu.core_type<tc>, window_params = [{transform_indices = @transform_0, window_bounds = array<i64: 2, 1152>}, {transform_indices = @transform_1, window_bounds = array<i64: 1152, 512>}, {pipeline_mode = #tpu.pipeline_mode<synchronous>, transform_indices = @transform_2, window_bounds = array<i64: 1, 512>}, {pipeline_mode = #tpu.pipeline_mode<synchronous>, transform_indices = @transform_3, window_bounds = array<i64: 512, 1>}, {pipeline_mode = #tpu.pipeline_mode<synchronous>, transform_indices = @transform_4, window_bounds = array<i64: 1, 1>}, {transform_indices = @transform_5, window_bounds = array<i64: 2, 1>}]} {
    %c0_i32 = arith.constant 0 : i32
    %0 = arith.cmpi eq, %arg1, %c0_i32 : i32
    %1 = arith.extui %0 : i1 to i32
    %c0_i32_0 = arith.constant 0 : i32
    %2 = arith.cmpi ne, %1, %c0_i32_0 : i32
    scf.if %2 {
      %cst_9 = arith.constant 0.000000e+00 : f32
      %12 = vector.broadcast %cst_9 : f32 to vector<2x512xf32>
      %c0_10 = arith.constant 0 : index
      %c0_11 = arith.constant 0 : index
      %13 = vector.load %arg8[%c0_10, %c0_11] : memref<2x512xf32, #tpu.memory_space<vmem>>, vector<2x512xf32>
      tpu.vector_store %arg8[%c0_10, %c0_11], %12 {strides = array<i32>} : memref<2x512xf32, #tpu.memory_space<vmem>>, vector<2x512xf32>,
    } else {
    }
    %c0 = arith.constant 0 : index
    %c0_1 = arith.constant 0 : index
    %3 = vector.load %arg8[%c0, %c0_1] : memref<2x512xf32, #tpu.memory_space<vmem>>, vector<2x512xf32>
    %c0_2 = arith.constant 0 : index
    %c0_3 = arith.constant 0 : index
    %4 = vector.load %arg2[%c0_2, %c0_3] : memref<2x1152xbf16, #tpu.memory_space<vmem>>, vector<2x1152xbf16>
    %c0_4 = arith.constant 0 : index
    %c0_5 = arith.constant 0 : index
    %5 = vector.load %arg3[%c0_4, %c0_5] : memref<1152x512xbf16, #tpu.memory_space<vmem>>, vector<1152x512xbf16>
    %cst = arith.constant dense<0.000000e+00> : vector<2x512xf32>
    %6 = tpu.matmul %4, %5, %cst {dimension_numbers = #tpu.dot_dimension_numbers<[1], [0], [0], [1], [0, 0, 1, 1], [], []>} : vector<2x1152xbf16>, vector<1152x512xbf16>, vector<2x512xf32> -> vector<2x512xf32>
    %7 = arith.addf %3, %6 : vector<2x512xf32>
    %c0_6 = arith.constant 0 : index
    %c0_7 = arith.constant 0 : index
    %8 = vector.load %arg8[%c0_6, %c0_7] : memref<2x512xf32, #tpu.memory_space<vmem>>, vector<2x512xf32>
    tpu.vector_store %arg8[%c0_6, %c0_7], %7 {strides = array<i32>} : memref<2x512xf32, #tpu.memory_space<vmem>>, vector<2x512xf32>,
    %c7_i32 = arith.constant 7 : i32
    %9 = arith.cmpi eq, %arg1, %c7_i32 : i32
    %10 = arith.extui %9 : i1 to i32
    %c0_i32_8 = arith.constant 0 : i32
    %11 = arith.cmpi ne, %10, %c0_i32_8 : i32
    scf.if %11 {
      %c0_9 = arith.constant 0 : index
      %c0_10 = arith.constant 0 : index
      %12 = vector.load %arg8[%c0_9, %c0_10] : memref<2x512xf32, #tpu.memory_space<vmem>>, vector<2x512xf32>
      %c0_11 = arith.constant 0 : index
      %c0_12 = arith.constant 0 : index
      %13 = vector.load %arg4[%c0_11, %c0_12] : memref<1x512xf32, #tpu.memory_space<vmem>>, vector<1x512xf32>
      %14 = vector.broadcast %13 : vector<1x512xf32> to vector<2x512xf32>
      %15 = arith.addf %12, %14 : vector<2x512xf32>
      %cst_13 = arith.constant 0.000000e+00 : f32
      %16 = vector.broadcast %cst_13 : f32 to vector<2x512xf32>
      %17 = arith.maximumf %15, %16 : vector<2x512xf32>
      %c0_14 = arith.constant 0 : index
      %c0_15 = arith.constant 0 : index
      %18 = vector.load %arg5[%c0_14, %c0_15] : memref<512x1xf32, #tpu.memory_space<vmem>>, vector<512x1xf32>
      %cst_16 = arith.constant dense<0.000000e+00> : vector<2x1xf32>
      %19 = tpu.matmul %17, %18, %cst_16 {dimension_numbers = #tpu.dot_dimension_numbers<[1], [0], [0], [1], [0, 0, 1, 1], [], []>} : vector<2x512xf32>, vector<512x1xf32>, vector<2x1xf32> -> vector<2x1xf32>
      %c0_17 = arith.constant 0 : index
      %c0_18 = arith.constant 0 : index
      %20 = vector.load %arg6[%c0_17, %c0_18] : memref<1x1xf32, #tpu.memory_space<vmem>>, vector<1x1xf32>
      %21 = vector.broadcast %20 : vector<1x1xf32> to vector<2x1xf32>
      %22 = arith.addf %19, %21 : vector<2x1xf32>
      %cst_19 = arith.constant 0.000000e+00 : f32
      %23 = vector.broadcast %cst_19 : f32 to vector<2x1xf32>
      %24 = arith.subf %23, %22 : vector<2x1xf32>
      %25 = math.exp %24 : vector<2x1xf32>
      %cst_20 = arith.constant 1.000000e+00 : f32
      %26 = vector.broadcast %cst_20 : f32 to vector<2x1xf32>
      %27 = arith.addf %26, %25 : vector<2x1xf32>
      %cst_21 = arith.constant 1.000000e+00 : f32
      %28 = vector.broadcast %cst_21 : f32 to vector<2x1xf32>
      %29 = arith.divf %28, %27 : vector<2x1xf32>
      %c0_22 = arith.constant 0 : index
      %c0_23 = arith.constant 0 : index
      %30 = vector.load %arg7[%c0_22, %c0_23] : memref<2x1xf32, #tpu.memory_space<vmem>>, vector<2x1xf32>
      tpu.vector_store %arg7[%c0_22, %c0_23], %29 {strides = array<i32>} : memref<2x1xf32, #tpu.memory_space<vmem>>, vector<2x1xf32>,
    } else {
    }
    return
  }
  func.func @transform_0(%arg0: i32, %arg1: i32) -> (i32, i32) {
    %c0_i32 = arith.constant 0 : i32
    return %arg0, %arg1 : i32, i32
  }
  func.func @transform_1(%arg0: i32, %arg1: i32) -> (i32, i32) {
    %c0_i32 = arith.constant 0 : i32
    %c0_i32_0 = arith.constant 0 : i32
    return %arg1, %c0_i32 : i32, i32
  }
  func.func @transform_2(%arg0: i32, %arg1: i32) -> (i32, i32) {
    %c0_i32 = arith.constant 0 : i32
    %c0_i32_0 = arith.constant 0 : i32
    %c0_i32_1 = arith.constant 0 : i32
    return %c0_i32, %c0_i32_0 : i32, i32
  }
  func.func @transform_3(%arg0: i32, %arg1: i32) -> (i32, i32) {
    %c0_i32 = arith.constant 0 : i32
    %c0_i32_0 = arith.constant 0 : i32
    %c0_i32_1 = arith.constant 0 : i32
    return %c0_i32, %c0_i32_0 : i32, i32
  }
  func.func @transform_4(%arg0: i32, %arg1: i32) -> (i32, i32) {
    %c0_i32 = arith.constant 0 : i32
    %c0_i32_0 = arith.constant 0 : i32
    %c0_i32_1 = arith.constant 0 : i32
    return %c0_i32, %c0_i32_0 : i32, i32
  }
  func.func @transform_5(%arg0: i32, %arg1: i32) -> (i32, i32) {
    %c0_i32 = arith.constant 0 : i32
    %c0_i32_0 = arith.constant 0 : i32
    return %arg0, %c0_i32 : i32, i32
  }
}

</mosaic_0001>

<llo_original>
// kernel: chatgpt_forward.3
$region0: #{chatgpt_forward.3}
  #allocation0 [shape = 'u32[]', space=smem, size = 0x4, offset = 0x4, fixed_abs, tag = 'smem constant byte address 0x4 - core index']
  #allocation1 [shape = 'u32[72,128]{1,0:T(1,128)}', space=vmem, size = 0x9000, scoped, tag = 'internal scratch']
  #allocation2 [shape = 'f32[2,512]{1,0:T(2,128)}', space=vmem, size = 0x1000, scoped, tag = 'scratch operand']
  #allocation3 [shape = 'f32[1,1]{1,0:T(1,128)S(1)}', space=vmem, size = 0x200, scoped, tag = 'scoped memory for chatgpt_forward.3']
  %s0 = inlined_call_operand.vmem [shape: bf16[2,9216], index: 0, kind: input, shape index: {}]
  %s1 = inlined_call_operand.hbm [shape: bf16[9216,512], index: 1, kind: input, shape index: {}]
  %s2 = inlined_call_operand.hbm [shape: f32[1,512], index: 2, kind: input, shape index: {}]
  %s3 = inlined_call_operand.vmem [shape: f32[512,1], index: 3, kind: input, shape index: {}]
  %s4 = inlined_call_operand.<no memory space> [shape: f32[1,1], index: 4, kind: input, shape index: {}]
  %s5 = inlined_call_operand.vmem [shape: f32[2,1], index: 5, kind: output, shape index: {}]
  %s6 = sld [smem:[#allocation0]]
  $region69: #{chatgpt_forward.3} parent=0
    _
  %s8 = ssub.s32 1, %s6
  %s9 = scalar_select 0, %s8, %s6
  %v10 = vstv %s4
  %11 = vst [vmem:[#allocation3] sm:$0x1] %v10
  $region1: #{chatgpt_forward.3} parent=0
    #allocation4 [shape = 'u8[2359296]{0}', space=vmem, size = 0x240000, scoped, tag = 'input window, operand 1']
    #allocation5 [shape = 's32[2]{0}', space=sflag, size = 0x8, scoped, tag = 'scoped memory for chatgpt_forward.3']
    #allocation6 [shape = 'u8[2048]{0}', space=vmem, size = 0x800, scoped, tag = 'input window, operand 2, single buffered']
    #allocation7 [shape = 's32[1]{0}', space=sflag, size = 0x4, scoped, tag = 'scoped memory for chatgpt_forward.3']
    %12 = vsyncpa [#allocation5], 0
    %s13 = scalar_lea.sflag [#allocation5], 1
    %14 = vsyncpa %s13, 0
    %15 = vsyncpa [#allocation7], 0
    loop: start=0, step=1, limit=10
    $region2: #{chatgpt_forward.3} parent=1 // loop_pre_header
      _
    $region3: #{chatgpt_forward.3} parent=1 // loop_header
      %s17 = sphi 0, %s21
      %p18 = scmp.ge.s32.totalorder %s17, 10
      %s24 = sphi 0, %s36
      %s25 = sphi 0, %s32
      %s26 = sphi 0, %s24
      %s27 = sphi 0, %s25
      %s28 = sphi 0, %s26
      %s29 = sphi 0, %s27
      %s41 = sphi 0, %s43
      %s44 = sphi 0, %s41
      %s45 = sphi 0, %s44
      %s61 = sphi 0, %s45
      %s67 = sphi 0, %s69
      %s70 = sphi 0, %s67
      %s71 = sphi 0, %s70
      %s87 = sphi 0, %s71
      %s91 = sphi 0, %s91
      %s93 = sphi 0, %s91
      %s94 = sphi 0, %s93
      %s108 = sphi 0, %s94
      %s112 = sphi 0, %s112
      %s114 = sphi 0, %s112
      %s115 = sphi 0, %s114
      %s129 = sphi 0, %s115
      %s133 = sphi 0, %s133
      %s135 = sphi 0, %s133
      %s136 = sphi 0, %s135
      %s150 = sphi 0, %s136
      %s156 = sphi 0, %s158
      %s159 = sphi 0, %s156
      %s160 = sphi 0, %s159
      %s176 = sphi 0, %s160
    $region4: #{chatgpt_forward.3} parent=1 // loop_header_branch
      %20 = sbr.rel (%p18) target = $region8
    $region5: #{chatgpt_forward.3} parent=1 // loop_body
      %s22 = ssub.s32 %s17, 1
      %s23 = ssub.s32 %s17, 2
      %s30 = sadd.s32 1, %s25
      %p31 = scmp.ge.s32.totalorder %s30, 8
      %s32 = scalar_select %p31, 0, %s30
      %s33 = sadd.s32 1, %s24
      %s34 = scalar_select %p31, %s33, %s24
      %p35 = scmp.ge.s32.totalorder %s34, 1
      %s36 = scalar_select %p35, 0, %s34
      %s37 = ssub.s32 %s24, %s36
      %s38 = ssub.s32 %s25, %s32
      %s39 = sor.u32 %s37, %s38
      %p40 = scmp.eq.s32.totalorder %s39, 0
      %s42 = sadd.s32 %s41, 1
      %s43 = scalar_select %p40, %s41, %s42
      %p46 = pneg %p40
      %p47 = scmp.eq.s32.totalorder %s17, 7
      %p48 = por %p46, %p47
      %p49 = scmp.ne.s32.totalorder %s41, %s44
      %p50 = scmp.eq.s32.totalorder %s17, 0
      %p51 = por %p49, %p50
      %p52 = scmp.ne.s32.totalorder %s41, %s44
      %p53 = scmp.eq.s32.totalorder %s22, 7
      %p54 = por %p52, %p53
      %p55 = scmp.ne.s32.totalorder %s44, %s45
      %p56 = scmp.eq.s32.totalorder %s22, 0
      %p57 = por %p55, %p56
      %p58 = scmp.ne.s32.totalorder %s44, %s45
      %p59 = scmp.eq.s32.totalorder %s23, 7
      %p60 = por %p58, %p59
      %p62 = scmp.ne.s32.totalorder %s45, %s61
      %p63 = scmp.eq.s32.totalorder %s23, 0
      %p64 = por %p62, %p63
      %s65 = ssub.s32 %s25, %s32
      %p66 = scmp.eq.s32.totalorder %s65, 0
      %s68 = sadd.s32 %s67, 1
      %s69 = scalar_select %p66, %s67, %s68
      %p72 = pneg %p66
      %p73 = scmp.eq.s32.totalorder %s17, 7
      %p74 = por %p72, %p73
      %p75 = scmp.ne.s32.totalorder %s67, %s70
      %p76 = scmp.eq.s32.totalorder %s17, 0
      %p77 = por %p75, %p76
      %p78 = scmp.ne.s32.totalorder %s67, %s70
      %p79 = scmp.eq.s32.totalorder %s22, 7
      %p80 = por %p78, %p79
      %p81 = scmp.ne.s32.totalorder %s70, %s71
      %p82 = scmp.eq.s32.totalorder %s22, 0
      %p83 = por %p81, %p82
      %p84 = scmp.ne.s32.totalorder %s70, %s71
      %p85 = scmp.eq.s32.totalorder %s23, 7
      %p86 = por %p84, %p85
      %p88 = scmp.ne.s32.totalorder %s71, %s87
      %p89 = scmp.eq.s32.totalorder %s23, 0
      %p90 = por %p88, %p89
      %s92 = sadd.s32 %s91, 1
      %p95 = scmp.eq.s32.totalorder %s17, 7
      %p96 = scmp.ne.s32.totalorder %s91, %s93
      %p97 = scmp.eq.s32.totalorder %s17, 0
      %p98 = por %p96, %p97
      %p99 = scmp.ne.s32.totalorder %s91, %s93
      %p100 = scmp.eq.s32.totalorder %s22, 7
      %p101 = por %p99, %p100
      %p102 = scmp.ne.s32.totalorder %s93, %s94
      %p103 = scmp.eq.s32.totalorder %s22, 0
      %p104 = por %p102, %p103
      %p105 = scmp.ne.s32.totalorder %s93, %s94
      %p106 = scmp.eq.s32.totalorder %s23, 7
      %p107 = por %p105, %p106
      %p109 = scmp.ne.s32.totalorder %s94, %s108
      %p110 = scmp.eq.s32.totalorder %s23, 0
      %p111 = por %p109, %p110
      %s113 = sadd.s32 %s112, 1
      %p116 = scmp.eq.s32.totalorder %s17, 7
      %p117 = scmp.ne.s32.totalorder %s112, %s114
      %p118 = scmp.eq.s32.totalorder %s17, 0
      %p119 = por %p117, %p118
      %p120 = scmp.ne.s32.totalorder %s112, %s114
      %p121 = scmp.eq.s32.totalorder %s22, 7
      %p122 = por %p120, %p121
      %p123 = scmp.ne.s32.totalorder %s114, %s115
      %p124 = scmp.eq.s32.totalorder %s22, 0
      %p125 = por %p123, %p124
      %p126 = scmp.ne.s32.totalorder %s114, %s115
      %p127 = scmp.eq.s32.totalorder %s23, 7
      %p128 = por %p126, %p127
      %p130 = scmp.ne.s32.totalorder %s115, %s129
      %p131 = scmp.eq.s32.totalorder %s23, 0
      %p132 = por %p130, %p131
      %s134 = sadd.s32 %s133, 1
      %p137 = scmp.eq.s32.totalorder %s17, 7
      %p138 = scmp.ne.s32.totalorder %s133, %s135
      %p139 = scmp.eq.s32.totalorder %s17, 0
      %p140 = por %p138, %p139
      %p141 = scmp.ne.s32.totalorder %s133, %s135
      %p142 = scmp.eq.s32.totalorder %s22, 7
      %p143 = por %p141, %p142
      %p144 = scmp.ne.s32.totalorder %s135, %s136
      %p145 = scmp.eq.s32.totalorder %s22, 0
      %p146 = por %p144, %p145
      %p147 = scmp.ne.s32.totalorder %s135, %s136
      %p148 = scmp.eq.s32.totalorder %s23, 7
      %p149 = por %p147, %p148
      %p151 = scmp.ne.s32.totalorder %s136, %s150
      %p152 = scmp.eq.s32.totalorder %s23, 0
      %p153 = por %p151, %p152
      %s154 = ssub.s32 %s24, %s36
      %p155 = scmp.eq.s32.totalorder %s154, 0
      %s157 = sadd.s32 %s156, 1
      %s158 = scalar_select %p155, %s156, %s157
      %p161 = pneg %p155
      %p162 = scmp.eq.s32.totalorder %s17, 7
      %p163 = por %p161, %p162
      %p164 = scmp.ne.s32.totalorder %s156, %s159
      %p165 = scmp.eq.s32.totalorder %s17, 0
      %p166 = por %p164, %p165
      %p167 = scmp.ne.s32.totalorder %s156, %s159
      %p168 = scmp.eq.s32.totalorder %s22, 7
      %p169 = por %p167, %p168
      %p170 = scmp.ne.s32.totalorder %s159, %s160
      %p171 = scmp.eq.s32.totalorder %s22, 0
      %p172 = por %p170, %p171
      %p173 = scmp.ne.s32.totalorder %s159, %s160
      %p174 = scmp.eq.s32.totalorder %s23, 7
      %p175 = por %p173, %p174
      %p177 = scmp.ne.s32.totalorder %s160, %s176
      %p178 = scmp.eq.s32.totalorder %s23, 0
      %p179 = por %p177, %p178
      %p180 = scmp.le.s32.totalorder 1, %s17
      %p181 = scmp.lt.s32.totalorder %s17, 9
      %p182 = pnand %p180, %p181
      %p183 = pneg %p182
      // Predicated region
      $region9: #{chatgpt_forward.3} parent=5 // pred_check
        _
      $region10: #{chatgpt_forward.3} parent=5 // pred_check_branch
        %185 = sbr.rel (%p182) target = $region12
      $region11: #{chatgpt_forward.3} parent=5 // pred_region
        %s186 = ssub.s32 %s17, 1
        // Predicated region
        $region13: #{chatgpt_forward.3} parent=11 // pred_check
          %p187 = pneg %p104
        $region14: #{chatgpt_forward.3} parent=11 // pred_check_branch
          %189 = sbr.rel (%p187) target = $region16
        $region15: #{chatgpt_forward.3} parent=11 // pred_region
          %191 = vsyncadd [#allocation7], 0
          %s193 = sshll.u32 %s2, 4
          %s194 = int_to_ptr.hbm [resolvable:$true] %s193
          %s195 = sshll.u32 [#allocation6], 4
          %s196 = int_to_ptr.vmem [resolvable:$true] %s195
          %198 = dma.hbm_to_vmem [thread:$0]  %s194, 64, %s196, [#allocation7]
        $region16: #{chatgpt_forward.3} parent=11 // pred_fallthru
          _
        // Predicated region
        $region17: #{chatgpt_forward.3} parent=11 // pred_check
          %p199 = pneg %p125
        $region18: #{chatgpt_forward.3} parent=11 // pred_check_branch
          %201 = sbr.rel (%p199) target = $region20
        $region19: #{chatgpt_forward.3} parent=11 // pred_region
          _
        $region20: #{chatgpt_forward.3} parent=11 // pred_fallthru
          _
        // Predicated region
        $region21: #{chatgpt_forward.3} parent=11 // pred_check
          %p202 = pneg %p146
        $region22: #{chatgpt_forward.3} parent=11 // pred_check_branch
          %204 = sbr.rel (%p202) target = $region24
        $region23: #{chatgpt_forward.3} parent=11 // pred_region
          _
        $region24: #{chatgpt_forward.3} parent=11 // pred_fallthru
          _
      $region12: #{chatgpt_forward.3} parent=5 // pred_fallthru
        _
      %p205 = scmp.lt.s32.totalorder %s17, 8
      // Predicated region
      $region25: #{chatgpt_forward.3} parent=5 // pred_check
        %p206 = pneg %p205
      $region26: #{chatgpt_forward.3} parent=5 // pred_check_branch
        %208 = sbr.rel (%p206) target = $region28
      $region27: #{chatgpt_forward.3} parent=5 // pred_region
        // Predicated region
        $region29: #{chatgpt_forward.3} parent=27 // pred_check
          %p209 = pneg %p51
        $region30: #{chatgpt_forward.3} parent=27 // pred_check_branch
          %211 = sbr.rel (%p209) target = $region32
        $region31: #{chatgpt_forward.3} parent=27 // pred_region
          %s212 = smul.u32 9, %s25
          %p213 = scmp.lt.s32.totalorder %s24, 0
          %s214 = scalar_select %p213, %s24, 0
          %p215 = scmp.lt.s32.totalorder %s212, 71
          %s216 = scalar_select %p215, %s212, 71
          %s217 = smul.addr %s214, 72
          %s218 = sadd.s32 %s216, %s217
          %s219 = scalar_lea.vmem %s0, %s218
          %s220 = smul.u32 9, %s25
        $region32: #{chatgpt_forward.3} parent=27 // pred_fallthru
          _
        // Predicated region
        $region33: #{chatgpt_forward.3} parent=27 // pred_check
          %p221 = pneg %p77
        $region34: #{chatgpt_forward.3} parent=27 // pred_check_branch
          %223 = sbr.rel (%p221) target = $region36
        $region35: #{chatgpt_forward.3} parent=27 // pred_region
          %s224 = sand.u32 %s67, 1
          %s225 = scalar_lea.sflag [#allocation5], %s224
          %s226 = sand.u32 %s67, 1
          %s227 = smul.addr %s226, 2304
          %s228 = scalar_lea.vmem [#allocation4], %s227
          %s229 = smul.u32 144, %s25
          %231 = vsyncadd %s225, 0
          %s232 = smul.addr %s229, 4
          %s233 = smul.addr %s232, 4
          %s234 = scalar_lea.hbm %s1, %s233
          %s235 = sshll.u32 %s234, 4
          %s236 = int_to_ptr.hbm [resolvable:$true] %s235
          %s237 = sshll.u32 %s228, 4
          %s238 = int_to_ptr.vmem [resolvable:$true] %s237
          %243 = dma.hbm_to_vmem [thread:$0]  %s236, 36864, %s238, %s225, 256, 256, 16
        $region36: #{chatgpt_forward.3} parent=27 // pred_fallthru
          _
      $region28: #{chatgpt_forward.3} parent=5 // pred_fallthru
        _
      %p244 = scmp.le.s32.totalorder 1, %s17
      %p245 = scmp.lt.s32.totalorder %s17, 9
      %p246 = pnand %p244, %p245
      %p247 = pneg %p246
      // Predicated region
      $region37: #{chatgpt_forward.3} parent=5 // pred_check
        _
      $region38: #{chatgpt_forward.3} parent=5 // pred_check_branch
        %249 = sbr.rel (%p246) target = $region40
      $region39: #{chatgpt_forward.3} parent=5 // pred_region
        %s250 = ssub.s32 %s17, 1
        %s251 = sand.u32 %s70, 1
        %s252 = scalar_lea.sflag [#allocation5], %s251
        %s253 = sand.u32 %s70, 1
        %s254 = smul.addr %s253, 2304
        %s255 = scalar_lea.vmem [#allocation4], %s254
        // Predicated region
        $region41: #{chatgpt_forward.3} parent=39 // pred_check
          %p256 = pneg %p83
        $region42: #{chatgpt_forward.3} parent=39 // pred_check_branch
          %258 = sbr.rel (%p256) target = $region44
        $region43: #{chatgpt_forward.3} parent=39 // pred_region
          %260 = dma.done %s252, 36864
        $region44: #{chatgpt_forward.3} parent=39 // pred_fallthru
          _
        // Predicated region
        $region45: #{chatgpt_forward.3} parent=39 // pred_check
          %p261 = pneg %p104
        $region46: #{chatgpt_forward.3} parent=39 // pred_check_branch
          %263 = sbr.rel (%p261) target = $region48
        $region47: #{chatgpt_forward.3} parent=39 // pred_region
          %265 = dma.done [#allocation7], 64
        $region48: #{chatgpt_forward.3} parent=39 // pred_fallthru
          _
        %s266 = smul.u32 9, %s27
        %p267 = scmp.lt.s32.totalorder %s26, 0
        %s268 = scalar_select %p267, %s26, 0
        %p269 = scmp.lt.s32.totalorder %s266, 71
        %s270 = scalar_select %p269, %s266, 71
        %s271 = smul.addr %s268, 72
        %s272 = sadd.s32 %s270, %s271
        %s273 = scalar_lea.vmem %s0, %s272
        %p274 = pneg %p57
        %p275 = pneg %p54
        %s276 = sand.u32 %s70, 1
        %s277 = scalar_lea.sflag [#allocation5], %s276
        %s278 = sand.u32 %s70, 1
        %s279 = smul.addr %s278, 2304
        %s280 = scalar_lea.vmem [#allocation4], %s279
        %p281 = pneg %p83
        %p282 = pneg %p80
        %p283 = pneg %p104
        %p284 = pneg %p101
        %p285 = pneg %p125
        %p286 = pneg %p122
        %p287 = pneg %p146
        %p288 = pneg %p143
        %p289 = pneg %p172
        %p290 = pneg %p169
        %p291 = scmp.lt.s32.totalorder %s26, 0
        %s292 = scalar_select %p291, %s26, 0
        %s293 = smul.addr %s292, 2
        %s294 = scalar_lea.vmem %s5, %s293
        %s295 = smul.u32 9, %s27
        %p296 = scmp.lt.s32.totalorder %s26, 0
        %s297 = scalar_select %p296, %s26, 0
        %p298 = scmp.lt.s32.totalorder %s295, 71
        %s299 = scalar_select %p298, %s295, 71
        %s300 = smul.addr %s297, 72
        %s301 = sadd.s32 %s299, %s300
        %s302 = scalar_lea.vmem %s0, %s301
        %s303 = smul.u32 9, %s27
        %s304 = smul.u32 144, %s27
        %p305 = scmp.lt.s32.totalorder %s26, 0
        %s306 = scalar_select %p305, %s26, 0
        %s307 = smul.addr %s306, 2
        %s308 = scalar_lea.vmem %s5, %s307
        %p309 = scmp.eq.s32.totalorder %s27, 0
        // Predicated region
        $region49: #{chatgpt_forward.3} parent=39 // pred_check
          %p310 = pneg %p309
        $region50: #{chatgpt_forward.3} parent=39 // pred_check_branch
          %312 = sbr.rel (%p310) target = $region52
        $region51: #{chatgpt_forward.3} parent=39 // pred_region
          %313 = vst [vmem:[#allocation2] sm:$0xff] 0.0
        $region52: #{chatgpt_forward.3} parent=39 // pred_fallthru
          _
        %v314 = vld [vmem:[#allocation2] sm:$0xff]
        %v315 = vld [vmem:[%s302] sm:$0xff]
        %v316 = vld [vmem:[%s302 + $0x8] sm:$0x1]
        %v317 = vld [vmem:[%s255] sm:$0xff]
        %v318 = vld [vmem:[%s255 + $0x8] sm:$0xff]
        %v319 = vld [vmem:[%s255 + $0x10] sm:$0xff]
        %v320 = vld [vmem:[%s255 + $0x18] sm:$0xff]
        %v321 = vld [vmem:[%s255 + $0x20] sm:$0xff]
        %v322 = vld [vmem:[%s255 + $0x28] sm:$0xff]
        %v323 = vld [vmem:[%s255 + $0x30] sm:$0xff]
        %v324 = vld [vmem:[%s255 + $0x38] sm:$0xff]
        %v325 = vld [vmem:[%s255 + $0x40] sm:$0xff]
        %v326 = vld [vmem:[%s255 + $0x48] sm:$0xff]
        %v327 = vld [vmem:[%s255 + $0x50] sm:$0xff]
        %v328 = vld [vmem:[%s255 + $0x58] sm:$0xff]
        %v329 = vld [vmem:[%s255 + $0x60] sm:$0xff]
        %v330 = vld [vmem:[%s255 + $0x68] sm:$0xff]
        %v331 = vld [vmem:[%s255 + $0x70] sm:$0xff]
        %v332 = vld [vmem:[%s255 + $0x78] sm:$0xff]
        %v333 = vld [vmem:[%s255 + $0x80] sm:$0xff]
        %v334 = vld [vmem:[%s255 + $0x88] sm:$0xff]
        %v335 = vld [vmem:[%s255 + $0x90] sm:$0xff]
        %v336 = vld [vmem:[%s255 + $0x98] sm:$0xff]
        %v337 = vld [vmem:[%s255 + $0xa0] sm:$0xff]
        %v338 = vld [vmem:[%s255 + $0xa8] sm:$0xff]
        %v339 = vld [vmem:[%s255 + $0xb0] sm:$0xff]
        %v340 = vld [vmem:[%s255 + $0xb8] sm:$0xff]
        %v341 = vld [vmem:[%s255 + $0xc0] sm:$0xff]
        %v342 = vld [vmem:[%s255 + $0xc8] sm:$0xff]
        %v343 = vld [vmem:[%s255 + $0xd0] sm:$0xff]
        %v344 = vld [vmem:[%s255 + $0xd8] sm:$0xff]
        %v345 = vld [vmem:[%s255 + $0xe0] sm:$0xff]
        %v346 = vld [vmem:[%s255 + $0xe8] sm:$0xff]
        %v347 = vld [vmem:[%s255 + $0xf0] sm:$0xff]
        %v348 = vld [vmem:[%s255 + $0xf8] sm:$0xff]
        %v349 = vld [vmem:[%s255 + $0x100] sm:$0xff]
        %v350 = vld [vmem:[%s255 + $0x108] sm:$0xff]
        %v351 = vld [vmem:[%s255 + $0x110] sm:$0xff]
        %v352 = vld [vmem:[%s255 + $0x118] sm:$0xff]
        %v353 = vld [vmem:[%s255 + $0x120] sm:$0xff]
        %v354 = vld [vmem:[%s255 + $0x128] sm:$0xff]
        %v355 = vld [vmem:[%s255 + $0x130] sm:$0xff]
        %v356 = vld [vmem:[%s255 + $0x138] sm:$0xff]
        %v357 = vld [vmem:[%s255 + $0x140] sm:$0xff]
        %v358 = vld [vmem:[%s255 + $0x148] sm:$0xff]
        %v359 = vld [vmem:[%s255 + $0x150] sm:$0xff]
        %v360 = vld [vmem:[%s255 + $0x158] sm:$0xff]
        %v361 = vld [vmem:[%s255 + $0x160] sm:$0xff]
        %v362 = vld [vmem:[%s255 + $0x168] sm:$0xff]
        %v363 = vld [vmem:[%s255 + $0x170] sm:$0xff]
        %v364 = vld [vmem:[%s255 + $0x178] sm:$0xff]
        %v365 = vld [vmem:[%s255 + $0x180] sm:$0xff]
        %v366 = vld [vmem:[%s255 + $0x188] sm:$0xff]
        %v367 = vld [vmem:[%s255 + $0x190] sm:$0xff]
        %v368 = vld [vmem:[%s255 + $0x198] sm:$0xff]
        %v369 = vld [vmem:[%s255 + $0x1a0] sm:$0xff]
        %v370 = vld [vmem:[%s255 + $0x1a8] sm:$0xff]
        %v371 = vld [vmem:[%s255 + $0x1b0] sm:$0xff]
        %v372 = vld [vmem:[%s255 + $0x1b8] sm:$0xff]
        %v373 = vld [vmem:[%s255 + $0x1c0] sm:$0xff]
        %v374 = vld [vmem:[%s255 + $0x1c8] sm:$0xff]
        %v375 = vld [vmem:[%s255 + $0x1d0] sm:$0xff]
        %v376 = vld [vmem:[%s255 + $0x1d8] sm:$0xff]
        %v377 = vld [vmem:[%s255 + $0x1e0] sm:$0xff]
        %v378 = vld [vmem:[%s255 + $0x1e8] sm:$0xff]
        %v379 = vld [vmem:[%s255 + $0x1f0] sm:$0xff]
        %v380 = vld [vmem:[%s255 + $0x1f8] sm:$0xff]
        %v381 = vld [vmem:[%s255 + $0x200] sm:$0xff]
        %v382 = vld [vmem:[%s255 + $0x208] sm:$0xff]
        %v383 = vld [vmem:[%s255 + $0x210] sm:$0xff]
        %v384 = vld [vmem:[%s255 + $0x218] sm:$0xff]
        %v385 = vld [vmem:[%s255 + $0x220] sm:$0xff]
        %v386 = vld [vmem:[%s255 + $0x228] sm:$0xff]
        %v387 = vld [vmem:[%s255 + $0x230] sm:$0xff]
        %v388 = vld [vmem:[%s255 + $0x238] sm:$0xff]
        %v389 = vld [vmem:[%s255 + $0x240] sm:$0xff]
        %v390 = vld [vmem:[%s255 + $0x248] sm:$0xff]
        %v391 = vld [vmem:[%s255 + $0x250] sm:$0xff]
        %v392 = vld [vmem:[%s255 + $0x258] sm:$0xff]
        %v393 = vld [vmem:[%s255 + $0x260] sm:$0xff]
        %v394 = vld [vmem:[%s255 + $0x268] sm:$0xff]
        %v395 = vld [vmem:[%s255 + $0x270] sm:$0xff]
        %v396 = vld [vmem:[%s255 + $0x278] sm:$0xff]
        %v397 = vld [vmem:[%s255 + $0x280] sm:$0xff]
        %v398 = vld [vmem:[%s255 + $0x288] sm:$0xff]
        %v399 = vld [vmem:[%s255 + $0x290] sm:$0xff]
        %v400 = vld [vmem:[%s255 + $0x298] sm:$0xff]
        %v401 = vld [vmem:[%s255 + $0x2a0] sm:$0xff]
        %v402 = vld [vmem:[%s255 + $0x2a8] sm:$0xff]
        %v403 = vld [vmem:[%s255 + $0x2b0] sm:$0xff]
        %v404 = vld [vmem:[%s255 + $0x2b8] sm:$0xff]
        %v405 = vld [vmem:[%s255 + $0x2c0] sm:$0xff]
        %v406 = vld [vmem:[%s255 + $0x2c8] sm:$0xff]
        %v407 = vld [vmem:[%s255 + $0x2d0] sm:$0xff]
        %v408 = vld [vmem:[%s255 + $0x2d8] sm:$0xff]
        %v409 = vld [vmem:[%s255 + $0x2e0] sm:$0xff]
        %v410 = vld [vmem:[%s255 + $0x2e8] sm:$0xff]
        %v411 = vld [vmem:[%s255 + $0x2f0] sm:$0xff]
        %v412 = vld [vmem:[%s255 + $0x2f8] sm:$0xff]
        %v413 = vld [vmem:[%s255 + $0x300] sm:$0xff]
        %v414 = vld [vmem:[%s255 + $0x308] sm:$0xff]
        %v415 = vld [vmem:[%s255 + $0x310] sm:$0xff]
        %v416 = vld [vmem:[%s255 + $0x318] sm:$0xff]
        %v417 = vld [vmem:[%s255 + $0x320] sm:$0xff]
        %v418 = vld [vmem:[%s255 + $0x328] sm:$0xff]
        %v419 = vld [vmem:[%s255 + $0x330] sm:$0xff]
        %v420 = vld [vmem:[%s255 + $0x338] sm:$0xff]
        %v421 = vld [vmem:[%s255 + $0x340] sm:$0xff]
        %v422 = vld [vmem:[%s255 + $0x348] sm:$0xff]
        %v423 = vld [vmem:[%s255 + $0x350] sm:$0xff]
        %v424 = vld [vmem:[%s255 + $0x358] sm:$0xff]
        %v425 = vld [vmem:[%s255 + $0x360] sm:$0xff]
        %v426 = vld [vmem:[%s255 + $0x368] sm:$0xff]
        %v427 = vld [vmem:[%s255 + $0x370] sm:$0xff]
        %v428 = vld [vmem:[%s255 + $0x378] sm:$0xff]
        %v429 = vld [vmem:[%s255 + $0x380] sm:$0xff]
        %v430 = vld [vmem:[%s255 + $0x388] sm:$0xff]
        %v431 = vld [vmem:[%s255 + $0x390] sm:$0xff]
        %v432 = vld [vmem:[%s255 + $0x398] sm:$0xff]
        %v433 = vld [vmem:[%s255 + $0x3a0] sm:$0xff]
        %v434 = vld [vmem:[%s255 + $0x3a8] sm:$0xff]
        %v435 = vld [vmem:[%s255 + $0x3b0] sm:$0xff]
        %v436 = vld [vmem:[%s255 + $0x3b8] sm:$0xff]
        %v437 = vld [vmem:[%s255 + $0x3c0] sm:$0xff]
        %v438 = vld [vmem:[%s255 + $0x3c8] sm:$0xff]
        %v439 = vld [vmem:[%s255 + $0x3d0] sm:$0xff]
        %v440 = vld [vmem:[%s255 + $0x3d8] sm:$0xff]
        %v441 = vld [vmem:[%s255 + $0x3e0] sm:$0xff]
        %v442 = vld [vmem:[%s255 + $0x3e8] sm:$0xff]
        %v443 = vld [vmem:[%s255 + $0x3f0] sm:$0xff]
        %v444 = vld [vmem:[%s255 + $0x3f8] sm:$0xff]
        %v445 = vld [vmem:[%s255 + $0x400] sm:$0xff]
        %v446 = vld [vmem:[%s255 + $0x408] sm:$0xff]
        %v447 = vld [vmem:[%s255 + $0x410] sm:$0xff]
        %v448 = vld [vmem:[%s255 + $0x418] sm:$0xff]
        %v449 = vld [vmem:[%s255 + $0x420] sm:$0xff]
        %v450 = vld [vmem:[%s255 + $0x428] sm:$0xff]
        %v451 = vld [vmem:[%s255 + $0x430] sm:$0xff]
        %v452 = vld [vmem:[%s255 + $0x438] sm:$0xff]
        %v453 = vld [vmem:[%s255 + $0x440] sm:$0xff]
        %v454 = vld [vmem:[%s255 + $0x448] sm:$0xff]
        %v455 = vld [vmem:[%s255 + $0x450] sm:$0xff]
        %v456 = vld [vmem:[%s255 + $0x458] sm:$0xff]
        %v457 = vld [vmem:[%s255 + $0x460] sm:$0xff]
        %v458 = vld [vmem:[%s255 + $0x468] sm:$0xff]
        %v459 = vld [vmem:[%s255 + $0x470] sm:$0xff]
        %v460 = vld [vmem:[%s255 + $0x478] sm:$0xff]
        %v461 = vld [vmem:[%s255 + $0x480] sm:$0xff]
        %v462 = vld [vmem:[%s255 + $0x488] sm:$0xff]
        %v463 = vld [vmem:[%s255 + $0x490] sm:$0xff]
        %v464 = vld [vmem:[%s255 + $0x498] sm:$0xff]
        %v465 = vld [vmem:[%s255 + $0x4a0] sm:$0xff]
        %v466 = vld [vmem:[%s255 + $0x4a8] sm:$0xff]
        %v467 = vld [vmem:[%s255 + $0x4b0] sm:$0xff]
        %v468 = vld [vmem:[%s255 + $0x4b8] sm:$0xff]
        %v469 = vld [vmem:[%s255 + $0x4c0] sm:$0xff]
        %v470 = vld [vmem:[%s255 + $0x4c8] sm:$0xff]
        %v471 = vld [vmem:[%s255 + $0x4d0] sm:$0xff]
        %v472 = vld [vmem:[%s255 + $0x4d8] sm:$0xff]
        %v473 = vld [vmem:[%s255 + $0x4e0] sm:$0xff]
        %v474 = vld [vmem:[%s255 + $0x4e8] sm:$0xff]
        %v475 = vld [vmem:[%s255 + $0x4f0] sm:$0xff]
        %v476 = vld [vmem:[%s255 + $0x4f8] sm:$0xff]
        %v477 = vld [vmem:[%s255 + $0x500] sm:$0xff]
        %v478 = vld [vmem:[%s255 + $0x508] sm:$0xff]
        %v479 = vld [vmem:[%s255 + $0x510] sm:$0xff]
        %v480 = vld [vmem:[%s255 + $0x518] sm:$0xff]
        %v481 = vld [vmem:[%s255 + $0x520] sm:$0xff]
        %v482 = vld [vmem:[%s255 + $0x528] sm:$0xff]
        %v483 = vld [vmem:[%s255 + $0x530] sm:$0xff]
        %v484 = vld [vmem:[%s255 + $0x538] sm:$0xff]
        %v485 = vld [vmem:[%s255 + $0x540] sm:$0xff]
        %v486 = vld [vmem:[%s255 + $0x548] sm:$0xff]
        %v487 = vld [vmem:[%s255 + $0x550] sm:$0xff]
        %v488 = vld [vmem:[%s255 + $0x558] sm:$0xff]
        %v489 = vld [vmem:[%s255 + $0x560] sm:$0xff]
        %v490 = vld [vmem:[%s255 + $0x568] sm:$0xff]
        %v491 = vld [vmem:[%s255 + $0x570] sm:$0xff]
        %v492 = vld [vmem:[%s255 + $0x578] sm:$0xff]
        %v493 = vld [vmem:[%s255 + $0x580] sm:$0xff]
        %v494 = vld [vmem:[%s255 + $0x588] sm:$0xff]
        %v495 = vld [vmem:[%s255 + $0x590] sm:$0xff]
        %v496 = vld [vmem:[%s255 + $0x598] sm:$0xff]
        %v497 = vld [vmem:[%s255 + $0x5a0] sm:$0xff]
        %v498 = vld [vmem:[%s255 + $0x5a8] sm:$0xff]
        %v499 = vld [vmem:[%s255 + $0x5b0] sm:$0xff]
        %v500 = vld [vmem:[%s255 + $0x5b8] sm:$0xff]
        %v501 = vld [vmem:[%s255 + $0x5c0] sm:$0xff]
        %v502 = vld [vmem:[%s255 + $0x5c8] sm:$0xff]
        %v503 = vld [vmem:[%s255 + $0x5d0] sm:$0xff]
        %v504 = vld [vmem:[%s255 + $0x5d8] sm:$0xff]
        %v505 = vld [vmem:[%s255 + $0x5e0] sm:$0xff]
        %v506 = vld [vmem:[%s255 + $0x5e8] sm:$0xff]
        %v507 = vld [vmem:[%s255 + $0x5f0] sm:$0xff]
        %v508 = vld [vmem:[%s255 + $0x5f8] sm:$0xff]
        %v509 = vld [vmem:[%s255 + $0x600] sm:$0xff]
        %v510 = vld [vmem:[%s255 + $0x608] sm:$0xff]
        %v511 = vld [vmem:[%s255 + $0x610] sm:$0xff]
        %v512 = vld [vmem:[%s255 + $0x618] sm:$0xff]
        %v513 = vld [vmem:[%s255 + $0x620] sm:$0xff]
        %v514 = vld [vmem:[%s255 + $0x628] sm:$0xff]
        %v515 = vld [vmem:[%s255 + $0x630] sm:$0xff]
        %v516 = vld [vmem:[%s255 + $0x638] sm:$0xff]
        %v517 = vld [vmem:[%s255 + $0x640] sm:$0xff]
        %v518 = vld [vmem:[%s255 + $0x648] sm:$0xff]
        %v519 = vld [vmem:[%s255 + $0x650] sm:$0xff]
        %v520 = vld [vmem:[%s255 + $0x658] sm:$0xff]
        %v521 = vld [vmem:[%s255 + $0x660] sm:$0xff]
        %v522 = vld [vmem:[%s255 + $0x668] sm:$0xff]
        %v523 = vld [vmem:[%s255 + $0x670] sm:$0xff]
        %v524 = vld [vmem:[%s255 + $0x678] sm:$0xff]
        %v525 = vld [vmem:[%s255 + $0x680] sm:$0xff]
        %v526 = vld [vmem:[%s255 + $0x688] sm:$0xff]
        %v527 = vld [vmem:[%s255 + $0x690] sm:$0xff]
        %v528 = vld [vmem:[%s255 + $0x698] sm:$0xff]
        %v529 = vld [vmem:[%s255 + $0x6a0] sm:$0xff]
        %v530 = vld [vmem:[%s255 + $0x6a8] sm:$0xff]
        %v531 = vld [vmem:[%s255 + $0x6b0] sm:$0xff]
        %v532 = vld [vmem:[%s255 + $0x6b8] sm:$0xff]
        %v533 = vld [vmem:[%s255 + $0x6c0] sm:$0xff]
        %v534 = vld [vmem:[%s255 + $0x6c8] sm:$0xff]
        %v535 = vld [vmem:[%s255 + $0x6d0] sm:$0xff]
        %v536 = vld [vmem:[%s255 + $0x6d8] sm:$0xff]
        %v537 = vld [vmem:[%s255 + $0x6e0] sm:$0xff]
        %v538 = vld [vmem:[%s255 + $0x6e8] sm:$0xff]
        %v539 = vld [vmem:[%s255 + $0x6f0] sm:$0xff]
        %v540 = vld [vmem:[%s255 + $0x6f8] sm:$0xff]
        %v541 = vld [vmem:[%s255 + $0x700] sm:$0xff]
        %v542 = vld [vmem:[%s255 + $0x708] sm:$0xff]
        %v543 = vld [vmem:[%s255 + $0x710] sm:$0xff]
        %v544 = vld [vmem:[%s255 + $0x718] sm:$0xff]
        %v545 = vld [vmem:[%s255 + $0x720] sm:$0xff]
        %v546 = vld [vmem:[%s255 + $0x728] sm:$0xff]
        %v547 = vld [vmem:[%s255 + $0x730] sm:$0xff]
        %v548 = vld [vmem:[%s255 + $0x738] sm:$0xff]
        %v549 = vld [vmem:[%s255 + $0x740] sm:$0xff]
        %v550 = vld [vmem:[%s255 + $0x748] sm:$0xff]
        %v551 = vld [vmem:[%s255 + $0x750] sm:$0xff]
        %v552 = vld [vmem:[%s255 + $0x758] sm:$0xff]
        %v553 = vld [vmem:[%s255 + $0x760] sm:$0xff]
        %v554 = vld [vmem:[%s255 + $0x768] sm:$0xff]
        %v555 = vld [vmem:[%s255 + $0x770] sm:$0xff]
        %v556 = vld [vmem:[%s255 + $0x778] sm:$0xff]
        %v557 = vld [vmem:[%s255 + $0x780] sm:$0xff]
        %v558 = vld [vmem:[%s255 + $0x788] sm:$0xff]
        %v559 = vld [vmem:[%s255 + $0x790] sm:$0xff]
        %v560 = vld [vmem:[%s255 + $0x798] sm:$0xff]
        %v561 = vld [vmem:[%s255 + $0x7a0] sm:$0xff]
        %v562 = vld [vmem:[%s255 + $0x7a8] sm:$0xff]
        %v563 = vld [vmem:[%s255 + $0x7b0] sm:$0xff]
        %v564 = vld [vmem:[%s255 + $0x7b8] sm:$0xff]
        %v565 = vld [vmem:[%s255 + $0x7c0] sm:$0xff]
        %v566 = vld [vmem:[%s255 + $0x7c8] sm:$0xff]
        %v567 = vld [vmem:[%s255 + $0x7d0] sm:$0xff]
        %v568 = vld [vmem:[%s255 + $0x7d8] sm:$0xff]
        %v569 = vld [vmem:[%s255 + $0x7e0] sm:$0xff]
        %v570 = vld [vmem:[%s255 + $0x7e8] sm:$0xff]
        %v571 = vld [vmem:[%s255 + $0x7f0] sm:$0xff]
        %v572 = vld [vmem:[%s255 + $0x7f8] sm:$0xff]
        %v573 = vld [vmem:[%s255 + $0x800] sm:$0xff]
        %v574 = vld [vmem:[%s255 + $0x808] sm:$0xff]
        %v575 = vld [vmem:[%s255 + $0x810] sm:$0xff]
        %v576 = vld [vmem:[%s255 + $0x818] sm:$0xff]
        %v577 = vld [vmem:[%s255 + $0x820] sm:$0xff]
        %v578 = vld [vmem:[%s255 + $0x828] sm:$0xff]
        %v579 = vld [vmem:[%s255 + $0x830] sm:$0xff]
        %v580 = vld [vmem:[%s255 + $0x838] sm:$0xff]
        %v581 = vld [vmem:[%s255 + $0x840] sm:$0xff]
        %v582 = vld [vmem:[%s255 + $0x848] sm:$0xff]
        %v583 = vld [vmem:[%s255 + $0x850] sm:$0xff]
        %v584 = vld [vmem:[%s255 + $0x858] sm:$0xff]
        %v585 = vld [vmem:[%s255 + $0x860] sm:$0xff]
        %v586 = vld [vmem:[%s255 + $0x868] sm:$0xff]
        %v587 = vld [vmem:[%s255 + $0x870] sm:$0xff]
        %v588 = vld [vmem:[%s255 + $0x878] sm:$0xff]
        %v589 = vld [vmem:[%s255 + $0x880] sm:$0xff]
        %v590 = vld [vmem:[%s255 + $0x888] sm:$0xff]
        %v591 = vld [vmem:[%s255 + $0x890] sm:$0xff]
        %v592 = vld [vmem:[%s255 + $0x898] sm:$0xff]
        %v593 = vld [vmem:[%s255 + $0x8a0] sm:$0xff]
        %v594 = vld [vmem:[%s255 + $0x8a8] sm:$0xff]
        %v595 = vld [vmem:[%s255 + $0x8b0] sm:$0xff]
        %v596 = vld [vmem:[%s255 + $0x8b8] sm:$0xff]
        %v597 = vld [vmem:[%s255 + $0x8c0] sm:$0xff]
        %v598 = vld [vmem:[%s255 + $0x8c8] sm:$0xff]
        %v599 = vld [vmem:[%s255 + $0x8d0] sm:$0xff]
        %v600 = vld [vmem:[%s255 + $0x8d8] sm:$0xff]
        %v601 = vld [vmem:[%s255 + $0x8e0] sm:$0xff]
        %v602 = vld [vmem:[%s255 + $0x8e8] sm:$0xff]
        %v603 = vld [vmem:[%s255 + $0x8f0] sm:$0xff]
        %v604 = vld [vmem:[%s255 + $0x8f8] sm:$0xff]
        %606 = vst [vmem:[#allocation1] ss:$9 sm:$0xff] %v315
        %v607 = vld [vmem:[#allocation1] sm:$0xff]
        %v608 = vld [vmem:[#allocation1 + $0x9] sm:$0xff]
        %v609 = vld [vmem:[#allocation1 + $0x12] sm:$0xff]
        %v610 = vld [vmem:[#allocation1 + $0x1b] sm:$0xff]
        %v611 = vld [vmem:[#allocation1 + $0x24] sm:$0xff]
        %v612 = vld [vmem:[#allocation1 + $0x2d] sm:$0xff]
        %v613 = vld [vmem:[#allocation1 + $0x36] sm:$0xff]
        %v614 = vld [vmem:[#allocation1 + $0x3f] sm:$0xff]
        %616 = vst [vmem:[#allocation1] ss:$9 sm:$0xff] %v316
        %v617 = vld [vmem:[#allocation1] sm:$0xff]
        %v915 = vunpack.c.l.b16 %v317
        %v916 = vunpack.c.h.b16 %v317
        %v917 = vunpack.c.l.b16 %v318
        %v918 = vunpack.c.h.b16 %v318
        %v919 = vunpack.c.l.b16 %v319
        %v920 = vunpack.c.h.b16 %v319
        %v921 = vunpack.c.l.b16 %v320
        %v922 = vunpack.c.h.b16 %v320
        %v923 = vunpack.c.l.b16 %v321
        %v924 = vunpack.c.h.b16 %v321
        %v925 = vunpack.c.l.b16 %v322
        %v926 = vunpack.c.h.b16 %v322
        %v927 = vunpack.c.l.b16 %v323
        %v928 = vunpack.c.h.b16 %v323
        %v929 = vunpack.c.l.b16 %v324
        %v930 = vunpack.c.h.b16 %v324
        %v931 = vunpack.c.l.b16 %v325
        %v932 = vunpack.c.h.b16 %v325
        %v933 = vunpack.c.l.b16 %v326
        %v934 = vunpack.c.h.b16 %v326
        %v935 = vunpack.c.l.b16 %v327
        %v936 = vunpack.c.h.b16 %v327
        %v937 = vunpack.c.l.b16 %v328
        %v938 = vunpack.c.h.b16 %v328
        %v939 = vunpack.c.l.b16 %v329
        %v940 = vunpack.c.h.b16 %v329
        %v941 = vunpack.c.l.b16 %v330
        %v942 = vunpack.c.h.b16 %v330
        %v943 = vunpack.c.l.b16 %v331
        %v944 = vunpack.c.h.b16 %v331
        %v945 = vunpack.c.l.b16 %v332
        %v946 = vunpack.c.h.b16 %v332
        %v947 = vunpack.c.l.b16 %v333
        %v948 = vunpack.c.h.b16 %v333
        %v949 = vunpack.c.l.b16 %v334
        %v950 = vunpack.c.h.b16 %v334
        %v951 = vunpack.c.l.b16 %v335
        %v952 = vunpack.c.h.b16 %v335
        %v953 = vunpack.c.l.b16 %v336
        %v954 = vunpack.c.h.b16 %v336
        %v955 = vunpack.c.l.b16 %v337
        %v956 = vunpack.c.h.b16 %v337
        %v957 = vunpack.c.l.b16 %v338
        %v958 = vunpack.c.h.b16 %v338
        %v959 = vunpack.c.l.b16 %v339
        %v960 = vunpack.c.h.b16 %v339
        %v961 = vunpack.c.l.b16 %v340
        %v962 = vunpack.c.h.b16 %v340
        %v963 = vunpack.c.l.b16 %v341
        %v964 = vunpack.c.h.b16 %v341
        %v965 = vunpack.c.l.b16 %v342
        %v966 = vunpack.c.h.b16 %v342
        %v967 = vunpack.c.l.b16 %v343
        %v968 = vunpack.c.h.b16 %v343
        %v969 = vunpack.c.l.b16 %v344
        %v970 = vunpack.c.h.b16 %v344
        %v971 = vunpack.c.l.b16 %v345
        %v972 = vunpack.c.h.b16 %v345
        %v973 = vunpack.c.l.b16 %v346
        %v974 = vunpack.c.h.b16 %v346
        %v975 = vunpack.c.l.b16 %v347
        %v976 = vunpack.c.h.b16 %v347
        %v977 = vunpack.c.l.b16 %v348
        %v978 = vunpack.c.h.b16 %v348
        %v979 = vunpack.c.l.b16 %v349
        %v980 = vunpack.c.h.b16 %v349
        %v981 = vunpack.c.l.b16 %v350
        %v982 = vunpack.c.h.b16 %v350
        %v983 = vunpack.c.l.b16 %v351
        %v984 = vunpack.c.h.b16 %v351
        %v985 = vunpack.c.l.b16 %v352
        %v986 = vunpack.c.h.b16 %v352
        %v987 = vunpack.c.l.b16 %v353
        %v988 = vunpack.c.h.b16 %v353
        %v989 = vunpack.c.l.b16 %v354
        %v990 = vunpack.c.h.b16 %v354
        %v991 = vunpack.c.l.b16 %v355
        %v992 = vunpack.c.h.b16 %v355
        %v993 = vunpack.c.l.b16 %v356
        %v994 = vunpack.c.h.b16 %v356
        %v995 = vunpack.c.l.b16 %v357
        %v996 = vunpack.c.h.b16 %v357
        %v997 = vunpack.c.l.b16 %v358
        %v998 = vunpack.c.h.b16 %v358
        %v999 = vunpack.c.l.b16 %v359
        %v1000 = vunpack.c.h.b16 %v359
        %v1001 = vunpack.c.l.b16 %v360
        %v1002 = vunpack.c.h.b16 %v360
        %v1003 = vunpack.c.l.b16 %v361
        %v1004 = vunpack.c.h.b16 %v361
        %v1005 = vunpack.c.l.b16 %v362
        %v1006 = vunpack.c.h.b16 %v362
        %v1007 = vunpack.c.l.b16 %v363
        %v1008 = vunpack.c.h.b16 %v363
        %v1009 = vunpack.c.l.b16 %v364
        %v1010 = vunpack.c.h.b16 %v364
        %v1011 = vunpack.c.l.b16 %v365
        %v1012 = vunpack.c.h.b16 %v365
        %v1013 = vunpack.c.l.b16 %v366
        %v1014 = vunpack.c.h.b16 %v366
        %v1015 = vunpack.c.l.b16 %v367
        %v1016 = vunpack.c.h.b16 %v367
        %v1017 = vunpack.c.l.b16 %v368
        %v1018 = vunpack.c.h.b16 %v368
        %v1019 = vunpack.c.l.b16 %v369
        %v1020 = vunpack.c.h.b16 %v369
        %v1021 = vunpack.c.l.b16 %v370
        %v1022 = vunpack.c.h.b16 %v370
        %v1023 = vunpack.c.l.b16 %v371
        %v1024 = vunpack.c.h.b16 %v371
        %v1025 = vunpack.c.l.b16 %v372
        %v1026 = vunpack.c.h.b16 %v372
        %v1027 = vunpack.c.l.b16 %v373
        %v1028 = vunpack.c.h.b16 %v373
        %v1029 = vunpack.c.l.b16 %v374
        %v1030 = vunpack.c.h.b16 %v374
        %v1031 = vunpack.c.l.b16 %v375
        %v1032 = vunpack.c.h.b16 %v375
        %v1033 = vunpack.c.l.b16 %v376
        %v1034 = vunpack.c.h.b16 %v376
        %v1035 = vunpack.c.l.b16 %v377
        %v1036 = vunpack.c.h.b16 %v377
        %v1037 = vunpack.c.l.b16 %v378
        %v1038 = vunpack.c.h.b16 %v378
        %v1039 = vunpack.c.l.b16 %v379
        %v1040 = vunpack.c.h.b16 %v379
        %v1041 = vunpack.c.l.b16 %v380
        %v1042 = vunpack.c.h.b16 %v380
        %v1043 = vunpack.c.l.b16 %v381
        %v1044 = vunpack.c.h.b16 %v381
        %v1045 = vunpack.c.l.b16 %v382
        %v1046 = vunpack.c.h.b16 %v382
        %v1047 = vunpack.c.l.b16 %v383
        %v1048 = vunpack.c.h.b16 %v383
        %v1049 = vunpack.c.l.b16 %v384
        %v1050 = vunpack.c.h.b16 %v384
        %v1051 = vunpack.c.l.b16 %v385
        %v1052 = vunpack.c.h.b16 %v385
        %v1053 = vunpack.c.l.b16 %v386
        %v1054 = vunpack.c.h.b16 %v386
        %v1055 = vunpack.c.l.b16 %v387
        %v1056 = vunpack.c.h.b16 %v387
        %v1057 = vunpack.c.l.b16 %v388
        %v1058 = vunpack.c.h.b16 %v388
        %v1059 = vunpack.c.l.b16 %v389
        %v1060 = vunpack.c.h.b16 %v389
        %v1061 = vunpack.c.l.b16 %v390
        %v1062 = vunpack.c.h.b16 %v390
        %v1063 = vunpack.c.l.b16 %v391
        %v1064 = vunpack.c.h.b16 %v391
        %v1065 = vunpack.c.l.b16 %v392
        %v1066 = vunpack.c.h.b16 %v392
        %v1067 = vunpack.c.l.b16 %v393
        %v1068 = vunpack.c.h.b16 %v393
        %v1069 = vunpack.c.l.b16 %v394
        %v1070 = vunpack.c.h.b16 %v394
        %v1071 = vunpack.c.l.b16 %v395
        %v1072 = vunpack.c.h.b16 %v395
        %v1073 = vunpack.c.l.b16 %v396
        %v1074 = vunpack.c.h.b16 %v396
        %v1075 = vunpack.c.l.b16 %v397
        %v1076 = vunpack.c.h.b16 %v397
        %v1077 = vunpack.c.l.b16 %v398
        %v1078 = vunpack.c.h.b16 %v398
        %v1079 = vunpack.c.l.b16 %v399
        %v1080 = vunpack.c.h.b16 %v399
        %v1081 = vunpack.c.l.b16 %v400
        %v1082 = vunpack.c.h.b16 %v400
        %v1083 = vunpack.c.l.b16 %v401
        %v1084 = vunpack.c.h.b16 %v401
        %v1085 = vunpack.c.l.b16 %v402
        %v1086 = vunpack.c.h.b16 %v402
        %v1087 = vunpack.c.l.b16 %v403
        %v1088 = vunpack.c.h.b16 %v403
        %v1089 = vunpack.c.l.b16 %v404
        %v1090 = vunpack.c.h.b16 %v404
        %v1091 = vunpack.c.l.b16 %v405
        %v1092 = vunpack.c.h.b16 %v405
        %v1093 = vunpack.c.l.b16 %v406
        %v1094 = vunpack.c.h.b16 %v406
        %v1095 = vunpack.c.l.b16 %v407
        %v1096 = vunpack.c.h.b16 %v407
        %v1097 = vunpack.c.l.b16 %v408
        %v1098 = vunpack.c.h.b16 %v408
        %v1099 = vunpack.c.l.b16 %v409
        %v1100 = vunpack.c.h.b16 %v409
        %v1101 = vunpack.c.l.b16 %v410
        %v1102 = vunpack.c.h.b16 %v410
        %v1103 = vunpack.c.l.b16 %v411
        %v1104 = vunpack.c.h.b16 %v411
        %v1105 = vunpack.c.l.b16 %v412
        %v1106 = vunpack.c.h.b16 %v412
        %v1107 = vunpack.c.l.b16 %v413
        %v1108 = vunpack.c.h.b16 %v413
        %v1109 = vunpack.c.l.b16 %v414
        %v1110 = vunpack.c.h.b16 %v414
        %v1111 = vunpack.c.l.b16 %v415
        %v1112 = vunpack.c.h.b16 %v415
        %v1113 = vunpack.c.l.b16 %v416
        %v1114 = vunpack.c.h.b16 %v416
        %v1115 = vunpack.c.l.b16 %v417
        %v1116 = vunpack.c.h.b16 %v417
        %v1117 = vunpack.c.l.b16 %v418
        %v1118 = vunpack.c.h.b16 %v418
        %v1119 = vunpack.c.l.b16 %v419
        %v1120 = vunpack.c.h.b16 %v419
        %v1121 = vunpack.c.l.b16 %v420
        %v1122 = vunpack.c.h.b16 %v420
        %v1123 = vunpack.c.l.b16 %v421
        %v1124 = vunpack.c.h.b16 %v421
        %v1125 = vunpack.c.l.b16 %v422
        %v1126 = vunpack.c.h.b16 %v422
        %v1127 = vunpack.c.l.b16 %v423
        %v1128 = vunpack.c.h.b16 %v423
        %v1129 = vunpack.c.l.b16 %v424
        %v1130 = vunpack.c.h.b16 %v424
        %v1131 = vunpack.c.l.b16 %v425
        %v1132 = vunpack.c.h.b16 %v425
        %v1133 = vunpack.c.l.b16 %v426
        %v1134 = vunpack.c.h.b16 %v426
        %v1135 = vunpack.c.l.b16 %v427
        %v1136 = vunpack.c.h.b16 %v427
        %v1137 = vunpack.c.l.b16 %v428
        %v1138 = vunpack.c.h.b16 %v428
        %v1139 = vunpack.c.l.b16 %v429
        %v1140 = vunpack.c.h.b16 %v429
        %v1141 = vunpack.c.l.b16 %v430
        %v1142 = vunpack.c.h.b16 %v430
        %v1143 = vunpack.c.l.b16 %v431
        %v1144 = vunpack.c.h.b16 %v431
        %v1145 = vunpack.c.l.b16 %v432
        %v1146 = vunpack.c.h.b16 %v432
        %v1147 = vunpack.c.l.b16 %v433
        %v1148 = vunpack.c.h.b16 %v433
        %v1149 = vunpack.c.l.b16 %v434
        %v1150 = vunpack.c.h.b16 %v434
        %v1151 = vunpack.c.l.b16 %v435
        %v1152 = vunpack.c.h.b16 %v435
        %v1153 = vunpack.c.l.b16 %v436
        %v1154 = vunpack.c.h.b16 %v436
        %v1155 = vunpack.c.l.b16 %v437
        %v1156 = vunpack.c.h.b16 %v437
        %v1157 = vunpack.c.l.b16 %v438
        %v1158 = vunpack.c.h.b16 %v438
        %v1159 = vunpack.c.l.b16 %v439
        %v1160 = vunpack.c.h.b16 %v439
        %v1161 = vunpack.c.l.b16 %v440
        %v1162 = vunpack.c.h.b16 %v440
        %v1163 = vunpack.c.l.b16 %v441
        %v1164 = vunpack.c.h.b16 %v441
        %v1165 = vunpack.c.l.b16 %v442
        %v1166 = vunpack.c.h.b16 %v442
        %v1167 = vunpack.c.l.b16 %v443
        %v1168 = vunpack.c.h.b16 %v443
        %v1169 = vunpack.c.l.b16 %v444
        %v1170 = vunpack.c.h.b16 %v444
        %v1171 = vunpack.c.l.b16 %v445
        %v1172 = vunpack.c.h.b16 %v445
        %v1173 = vunpack.c.l.b16 %v446
        %v1174 = vunpack.c.h.b16 %v446
        %v1175 = vunpack.c.l.b16 %v447
        %v1176 = vunpack.c.h.b16 %v447
        %v1177 = vunpack.c.l.b16 %v448
        %v1178 = vunpack.c.h.b16 %v448
        %v1179 = vunpack.c.l.b16 %v449
        %v1180 = vunpack.c.h.b16 %v449
        %v1181 = vunpack.c.l.b16 %v450
        %v1182 = vunpack.c.h.b16 %v450
        %v1183 = vunpack.c.l.b16 %v451
        %v1184 = vunpack.c.h.b16 %v451
        %v1185 = vunpack.c.l.b16 %v452
        %v1186 = vunpack.c.h.b16 %v452
        %v1187 = vunpack.c.l.b16 %v453
        %v1188 = vunpack.c.h.b16 %v453
        %v1189 = vunpack.c.l.b16 %v454
        %v1190 = vunpack.c.h.b16 %v454
        %v1191 = vunpack.c.l.b16 %v455
        %v1192 = vunpack.c.h.b16 %v455
        %v1193 = vunpack.c.l.b16 %v456
        %v1194 = vunpack.c.h.b16 %v456
        %v1195 = vunpack.c.l.b16 %v457
        %v1196 = vunpack.c.h.b16 %v457
        %v1197 = vunpack.c.l.b16 %v458
        %v1198 = vunpack.c.h.b16 %v458
        %v1199 = vunpack.c.l.b16 %v459
        %v1200 = vunpack.c.h.b16 %v459
        %v1201 = vunpack.c.l.b16 %v460
        %v1202 = vunpack.c.h.b16 %v460
        %v1203 = vunpack.c.l.b16 %v461
        %v1204 = vunpack.c.h.b16 %v461
        %v1205 = vunpack.c.l.b16 %v462
        %v1206 = vunpack.c.h.b16 %v462
        %v1207 = vunpack.c.l.b16 %v463
        %v1208 = vunpack.c.h.b16 %v463
        %v1209 = vunpack.c.l.b16 %v464
        %v1210 = vunpack.c.h.b16 %v464
        %v1211 = vunpack.c.l.b16 %v465
        %v1212 = vunpack.c.h.b16 %v465
        %v1213 = vunpack.c.l.b16 %v466
        %v1214 = vunpack.c.h.b16 %v466
        %v1215 = vunpack.c.l.b16 %v467
        %v1216 = vunpack.c.h.b16 %v467
        %v1217 = vunpack.c.l.b16 %v468
        %v1218 = vunpack.c.h.b16 %v468
        %v1219 = vunpack.c.l.b16 %v469
        %v1220 = vunpack.c.h.b16 %v469
        %v1221 = vunpack.c.l.b16 %v470
        %v1222 = vunpack.c.h.b16 %v470
        %v1223 = vunpack.c.l.b16 %v471
        %v1224 = vunpack.c.h.b16 %v471
        %v1225 = vunpack.c.l.b16 %v472
        %v1226 = vunpack.c.h.b16 %v472
        %v1227 = vunpack.c.l.b16 %v473
        %v1228 = vunpack.c.h.b16 %v473
        %v1229 = vunpack.c.l.b16 %v474
        %v1230 = vunpack.c.h.b16 %v474
        %v1231 = vunpack.c.l.b16 %v475
        %v1232 = vunpack.c.h.b16 %v475
        %v1233 = vunpack.c.l.b16 %v476
        %v1234 = vunpack.c.h.b16 %v476
        %v1235 = vunpack.c.l.b16 %v477
        %v1236 = vunpack.c.h.b16 %v477
        %v1237 = vunpack.c.l.b16 %v478
        %v1238 = vunpack.c.h.b16 %v478
        %v1239 = vunpack.c.l.b16 %v479
        %v1240 = vunpack.c.h.b16 %v479
        %v1241 = vunpack.c.l.b16 %v480
        %v1242 = vunpack.c.h.b16 %v480
        %v1243 = vunpack.c.l.b16 %v481
        %v1244 = vunpack.c.h.b16 %v481
        %v1245 = vunpack.c.l.b16 %v482
        %v1246 = vunpack.c.h.b16 %v482
        %v1247 = vunpack.c.l.b16 %v483
        %v1248 = vunpack.c.h.b16 %v483
        %v1249 = vunpack.c.l.b16 %v484
        %v1250 = vunpack.c.h.b16 %v484
        %v1251 = vunpack.c.l.b16 %v485
        %v1252 = vunpack.c.h.b16 %v485
        %v1253 = vunpack.c.l.b16 %v486
        %v1254 = vunpack.c.h.b16 %v486
        %v1255 = vunpack.c.l.b16 %v487
        %v1256 = vunpack.c.h.b16 %v487
        %v1257 = vunpack.c.l.b16 %v488
        %v1258 = vunpack.c.h.b16 %v488
        %v1259 = vunpack.c.l.b16 %v489
        %v1260 = vunpack.c.h.b16 %v489
        %v1261 = vunpack.c.l.b16 %v490
        %v1262 = vunpack.c.h.b16 %v490
        %v1263 = vunpack.c.l.b16 %v491
        %v1264 = vunpack.c.h.b16 %v491
        %v1265 = vunpack.c.l.b16 %v492
        %v1266 = vunpack.c.h.b16 %v492
        %v1267 = vunpack.c.l.b16 %v493
        %v1268 = vunpack.c.h.b16 %v493
        %v1269 = vunpack.c.l.b16 %v494
        %v1270 = vunpack.c.h.b16 %v494
        %v1271 = vunpack.c.l.b16 %v495
        %v1272 = vunpack.c.h.b16 %v495
        %v1273 = vunpack.c.l.b16 %v496
        %v1274 = vunpack.c.h.b16 %v496
        %v1275 = vunpack.c.l.b16 %v497
        %v1276 = vunpack.c.h.b16 %v497
        %v1277 = vunpack.c.l.b16 %v498
        %v1278 = vunpack.c.h.b16 %v498
        %v1279 = vunpack.c.l.b16 %v499
        %v1280 = vunpack.c.h.b16 %v499
        %v1281 = vunpack.c.l.b16 %v500
        %v1282 = vunpack.c.h.b16 %v500
        %v1283 = vunpack.c.l.b16 %v501
        %v1284 = vunpack.c.h.b16 %v501
        %v1285 = vunpack.c.l.b16 %v502
        %v1286 = vunpack.c.h.b16 %v502
        %v1287 = vunpack.c.l.b16 %v503
        %v1288 = vunpack.c.h.b16 %v503
        %v1289 = vunpack.c.l.b16 %v504
        %v1290 = vunpack.c.h.b16 %v504
        %v1291 = vunpack.c.l.b16 %v505
        %v1292 = vunpack.c.h.b16 %v505
        %v1293 = vunpack.c.l.b16 %v506
        %v1294 = vunpack.c.h.b16 %v506
        %v1295 = vunpack.c.l.b16 %v507
        %v1296 = vunpack.c.h.b16 %v507
        %v1297 = vunpack.c.l.b16 %v508
        %v1298 = vunpack.c.h.b16 %v508
        %v1299 = vunpack.c.l.b16 %v509
        %v1300 = vunpack.c.h.b16 %v509
        %v1301 = vunpack.c.l.b16 %v510
        %v1302 = vunpack.c.h.b16 %v510
        %v1303 = vunpack.c.l.b16 %v511
        %v1304 = vunpack.c.h.b16 %v511
        %v1305 = vunpack.c.l.b16 %v512
        %v1306 = vunpack.c.h.b16 %v512
        %v1307 = vunpack.c.l.b16 %v513
        %v1308 = vunpack.c.h.b16 %v513
        %v1309 = vunpack.c.l.b16 %v514
        %v1310 = vunpack.c.h.b16 %v514
        %v1311 = vunpack.c.l.b16 %v515
        %v1312 = vunpack.c.h.b16 %v515
        %v1313 = vunpack.c.l.b16 %v516
        %v1314 = vunpack.c.h.b16 %v516
        %v1315 = vunpack.c.l.b16 %v517
        %v1316 = vunpack.c.h.b16 %v517
        %v1317 = vunpack.c.l.b16 %v518
        %v1318 = vunpack.c.h.b16 %v518
        %v1319 = vunpack.c.l.b16 %v519
        %v1320 = vunpack.c.h.b16 %v519
        %v1321 = vunpack.c.l.b16 %v520
        %v1322 = vunpack.c.h.b16 %v520
        %v1323 = vunpack.c.l.b16 %v521
        %v1324 = vunpack.c.h.b16 %v521
        %v1325 = vunpack.c.l.b16 %v522
        %v1326 = vunpack.c.h.b16 %v522
        %v1327 = vunpack.c.l.b16 %v523
        %v1328 = vunpack.c.h.b16 %v523
        %v1329 = vunpack.c.l.b16 %v524
        %v1330 = vunpack.c.h.b16 %v524
        %v1331 = vunpack.c.l.b16 %v525
        %v1332 = vunpack.c.h.b16 %v525
        %v1333 = vunpack.c.l.b16 %v526
        %v1334 = vunpack.c.h.b16 %v526
        %v1335 = vunpack.c.l.b16 %v527
        %v1336 = vunpack.c.h.b16 %v527
        %v1337 = vunpack.c.l.b16 %v528
        %v1338 = vunpack.c.h.b16 %v528
        %v1339 = vunpack.c.l.b16 %v529
        %v1340 = vunpack.c.h.b16 %v529
        %v1341 = vunpack.c.l.b16 %v530
        %v1342 = vunpack.c.h.b16 %v530
        %v1343 = vunpack.c.l.b16 %v531
        %v1344 = vunpack.c.h.b16 %v531
        %v1345 = vunpack.c.l.b16 %v532
        %v1346 = vunpack.c.h.b16 %v532
        %v1347 = vunpack.c.l.b16 %v533
        %v1348 = vunpack.c.h.b16 %v533
        %v1349 = vunpack.c.l.b16 %v534
        %v1350 = vunpack.c.h.b16 %v534
        %v1351 = vunpack.c.l.b16 %v535
        %v1352 = vunpack.c.h.b16 %v535
        %v1353 = vunpack.c.l.b16 %v536
        %v1354 = vunpack.c.h.b16 %v536
        %v1355 = vunpack.c.l.b16 %v537
        %v1356 = vunpack.c.h.b16 %v537
        %v1357 = vunpack.c.l.b16 %v538
        %v1358 = vunpack.c.h.b16 %v538
        %v1359 = vunpack.c.l.b16 %v539
        %v1360 = vunpack.c.h.b16 %v539
        %v1361 = vunpack.c.l.b16 %v540
        %v1362 = vunpack.c.h.b16 %v540
        %v1363 = vunpack.c.l.b16 %v541
        %v1364 = vunpack.c.h.b16 %v541
        %v1365 = vunpack.c.l.b16 %v542
        %v1366 = vunpack.c.h.b16 %v542
        %v1367 = vunpack.c.l.b16 %v543
        %v1368 = vunpack.c.h.b16 %v543
        %v1369 = vunpack.c.l.b16 %v544
        %v1370 = vunpack.c.h.b16 %v544
        %v1371 = vunpack.c.l.b16 %v545
        %v1372 = vunpack.c.h.b16 %v545
        %v1373 = vunpack.c.l.b16 %v546
        %v1374 = vunpack.c.h.b16 %v546
        %v1375 = vunpack.c.l.b16 %v547
        %v1376 = vunpack.c.h.b16 %v547
        %v1377 = vunpack.c.l.b16 %v548
        %v1378 = vunpack.c.h.b16 %v548
        %v1379 = vunpack.c.l.b16 %v549
        %v1380 = vunpack.c.h.b16 %v549
        %v1381 = vunpack.c.l.b16 %v550
        %v1382 = vunpack.c.h.b16 %v550
        %v1383 = vunpack.c.l.b16 %v551
        %v1384 = vunpack.c.h.b16 %v551
        %v1385 = vunpack.c.l.b16 %v552
        %v1386 = vunpack.c.h.b16 %v552
        %v1387 = vunpack.c.l.b16 %v553
        %v1388 = vunpack.c.h.b16 %v553
        %v1389 = vunpack.c.l.b16 %v554
        %v1390 = vunpack.c.h.b16 %v554
        %v1391 = vunpack.c.l.b16 %v555
        %v1392 = vunpack.c.h.b16 %v555
        %v1393 = vunpack.c.l.b16 %v556
        %v1394 = vunpack.c.h.b16 %v556
        %v1395 = vunpack.c.l.b16 %v557
        %v1396 = vunpack.c.h.b16 %v557
        %v1397 = vunpack.c.l.b16 %v558
        %v1398 = vunpack.c.h.b16 %v558
        %v1399 = vunpack.c.l.b16 %v559
        %v1400 = vunpack.c.h.b16 %v559
        %v1401 = vunpack.c.l.b16 %v560
        %v1402 = vunpack.c.h.b16 %v560
        %v1403 = vunpack.c.l.b16 %v561
        %v1404 = vunpack.c.h.b16 %v561
        %v1405 = vunpack.c.l.b16 %v562
        %v1406 = vunpack.c.h.b16 %v562
        %v1407 = vunpack.c.l.b16 %v563
        %v1408 = vunpack.c.h.b16 %v563
        %v1409 = vunpack.c.l.b16 %v564
        %v1410 = vunpack.c.h.b16 %v564
        %v1411 = vunpack.c.l.b16 %v565
        %v1412 = vunpack.c.h.b16 %v565
        %v1413 = vunpack.c.l.b16 %v566
        %v1414 = vunpack.c.h.b16 %v566
        %v1415 = vunpack.c.l.b16 %v567
        %v1416 = vunpack.c.h.b16 %v567
        %v1417 = vunpack.c.l.b16 %v568
        %v1418 = vunpack.c.h.b16 %v568
        %v1419 = vunpack.c.l.b16 %v569
        %v1420 = vunpack.c.h.b16 %v569
        %v1421 = vunpack.c.l.b16 %v570
        %v1422 = vunpack.c.h.b16 %v570
        %v1423 = vunpack.c.l.b16 %v571
        %v1424 = vunpack.c.h.b16 %v571
        %v1425 = vunpack.c.l.b16 %v572
        %v1426 = vunpack.c.h.b16 %v572
        %v1427 = vunpack.c.l.b16 %v573
        %v1428 = vunpack.c.h.b16 %v573
        %v1429 = vunpack.c.l.b16 %v574
        %v1430 = vunpack.c.h.b16 %v574
        %v1431 = vunpack.c.l.b16 %v575
        %v1432 = vunpack.c.h.b16 %v575
        %v1433 = vunpack.c.l.b16 %v576
        %v1434 = vunpack.c.h.b16 %v576
        %v1435 = vunpack.c.l.b16 %v577
        %v1436 = vunpack.c.h.b16 %v577
        %v1437 = vunpack.c.l.b16 %v578
        %v1438 = vunpack.c.h.b16 %v578
        %v1439 = vunpack.c.l.b16 %v579
        %v1440 = vunpack.c.h.b16 %v579
        %v1441 = vunpack.c.l.b16 %v580
        %v1442 = vunpack.c.h.b16 %v580
        %v1443 = vunpack.c.l.b16 %v581
        %v1444 = vunpack.c.h.b16 %v581
        %v1445 = vunpack.c.l.b16 %v582
        %v1446 = vunpack.c.h.b16 %v582
        %v1447 = vunpack.c.l.b16 %v583
        %v1448 = vunpack.c.h.b16 %v583
        %v1449 = vunpack.c.l.b16 %v584
        %v1450 = vunpack.c.h.b16 %v584
        %v1451 = vunpack.c.l.b16 %v585
        %v1452 = vunpack.c.h.b16 %v585
        %v1453 = vunpack.c.l.b16 %v586
        %v1454 = vunpack.c.h.b16 %v586
        %v1455 = vunpack.c.l.b16 %v587
        %v1456 = vunpack.c.h.b16 %v587
        %v1457 = vunpack.c.l.b16 %v588
        %v1458 = vunpack.c.h.b16 %v588
        %v1459 = vunpack.c.l.b16 %v589
        %v1460 = vunpack.c.h.b16 %v589
        %v1461 = vunpack.c.l.b16 %v590
        %v1462 = vunpack.c.h.b16 %v590
        %v1463 = vunpack.c.l.b16 %v591
        %v1464 = vunpack.c.h.b16 %v591
        %v1465 = vunpack.c.l.b16 %v592
        %v1466 = vunpack.c.h.b16 %v592
        %v1467 = vunpack.c.l.b16 %v593
        %v1468 = vunpack.c.h.b16 %v593
        %v1469 = vunpack.c.l.b16 %v594
        %v1470 = vunpack.c.h.b16 %v594
        %v1471 = vunpack.c.l.b16 %v595
        %v1472 = vunpack.c.h.b16 %v595
        %v1473 = vunpack.c.l.b16 %v596
        %v1474 = vunpack.c.h.b16 %v596
        %v1475 = vunpack.c.l.b16 %v597
        %v1476 = vunpack.c.h.b16 %v597
        %v1477 = vunpack.c.l.b16 %v598
        %v1478 = vunpack.c.h.b16 %v598
        %v1479 = vunpack.c.l.b16 %v599
        %v1480 = vunpack.c.h.b16 %v599
        %v1481 = vunpack.c.l.b16 %v600
        %v1482 = vunpack.c.h.b16 %v600
        %v1483 = vunpack.c.l.b16 %v601
        %v1484 = vunpack.c.h.b16 %v601
        %v1485 = vunpack.c.l.b16 %v602
        %v1486 = vunpack.c.h.b16 %v602
        %v1487 = vunpack.c.l.b16 %v603
        %v1488 = vunpack.c.h.b16 %v603
        %v1489 = vunpack.c.l.b16 %v604
        %v1490 = vunpack.c.h.b16 %v604
        %v1491 = vpack.c.b16 %v919, %v915
        %v1492 = vpack.c.b16 %v920, %v916
        %v1493 = vpack.c.b16 %v921, %v917
        %v1494 = vpack.c.b16 %v922, %v918
        %v1495 = vpack.c.b16 %v927, %v923
        %v1496 = vpack.c.b16 %v928, %v924
        %v1497 = vpack.c.b16 %v929, %v925
        %v1498 = vpack.c.b16 %v930, %v926
        %v1499 = vpack.c.b16 %v935, %v931
        %v1500 = vpack.c.b16 %v936, %v932
        %v1501 = vpack.c.b16 %v937, %v933
        %v1502 = vpack.c.b16 %v938, %v934
        %v1503 = vpack.c.b16 %v943, %v939
        %v1504 = vpack.c.b16 %v944, %v940
        %v1505 = vpack.c.b16 %v945, %v941
        %v1506 = vpack.c.b16 %v946, %v942
        %v1507 = vpack.c.b16 %v951, %v947
        %v1508 = vpack.c.b16 %v952, %v948
        %v1509 = vpack.c.b16 %v953, %v949
        %v1510 = vpack.c.b16 %v954, %v950
        %v1511 = vpack.c.b16 %v959, %v955
        %v1512 = vpack.c.b16 %v960, %v956
        %v1513 = vpack.c.b16 %v961, %v957
        %v1514 = vpack.c.b16 %v962, %v958
        %v1515 = vpack.c.b16 %v967, %v963
        %v1516 = vpack.c.b16 %v968, %v964
        %v1517 = vpack.c.b16 %v969, %v965
        %v1518 = vpack.c.b16 %v970, %v966
        %v1519 = vpack.c.b16 %v975, %v971
        %v1520 = vpack.c.b16 %v976, %v972
        %v1521 = vpack.c.b16 %v977, %v973
        %v1522 = vpack.c.b16 %v978, %v974
        %v1523 = vpack.c.b16 %v983, %v979
        %v1524 = vpack.c.b16 %v984, %v980
        %v1525 = vpack.c.b16 %v985, %v981
        %v1526 = vpack.c.b16 %v986, %v982
        %v1527 = vpack.c.b16 %v991, %v987
        %v1528 = vpack.c.b16 %v992, %v988
        %v1529 = vpack.c.b16 %v993, %v989
        %v1530 = vpack.c.b16 %v994, %v990
        %v1531 = vpack.c.b16 %v999, %v995
        %v1532 = vpack.c.b16 %v1000, %v996
        %v1533 = vpack.c.b16 %v1001, %v997
        %v1534 = vpack.c.b16 %v1002, %v998
        %v1535 = vpack.c.b16 %v1007, %v1003
        %v1536 = vpack.c.b16 %v1008, %v1004
        %v1537 = vpack.c.b16 %v1009, %v1005
        %v1538 = vpack.c.b16 %v1010, %v1006
        %v1539 = vpack.c.b16 %v1015, %v1011
        %v1540 = vpack.c.b16 %v1016, %v1012
        %v1541 = vpack.c.b16 %v1017, %v1013
        %v1542 = vpack.c.b16 %v1018, %v1014
        %v1543 = vpack.c.b16 %v1023, %v1019
        %v1544 = vpack.c.b16 %v1024, %v1020
        %v1545 = vpack.c.b16 %v1025, %v1021
        %v1546 = vpack.c.b16 %v1026, %v1022
        %v1547 = vpack.c.b16 %v1031, %v1027
        %v1548 = vpack.c.b16 %v1032, %v1028
        %v1549 = vpack.c.b16 %v1033, %v1029
        %v1550 = vpack.c.b16 %v1034, %v1030
        %v1551 = vpack.c.b16 %v1039, %v1035
        %v1552 = vpack.c.b16 %v1040, %v1036
        %v1553 = vpack.c.b16 %v1041, %v1037
        %v1554 = vpack.c.b16 %v1042, %v1038
        %v1555 = vpack.c.b16 %v1047, %v1043
        %v1556 = vpack.c.b16 %v1048, %v1044
        %v1557 = vpack.c.b16 %v1049, %v1045
        %v1558 = vpack.c.b16 %v1050, %v1046
        %v1559 = vpack.c.b16 %v1055, %v1051
        %v1560 = vpack.c.b16 %v1056, %v1052
        %v1561 = vpack.c.b16 %v1057, %v1053
        %v1562 = vpack.c.b16 %v1058, %v1054
        %v1563 = vpack.c.b16 %v1063, %v1059
        %v1564 = vpack.c.b16 %v1064, %v1060
        %v1565 = vpack.c.b16 %v1065, %v1061
        %v1566 = vpack.c.b16 %v1066, %v1062
        %v1567 = vpack.c.b16 %v1071, %v1067
        %v1568 = vpack.c.b16 %v1072, %v1068
        %v1569 = vpack.c.b16 %v1073, %v1069
        %v1570 = vpack.c.b16 %v1074, %v1070
        %v1571 = vpack.c.b16 %v1079, %v1075
        %v1572 = vpack.c.b16 %v1080, %v1076
        %v1573 = vpack.c.b16 %v1081, %v1077
        %v1574 = vpack.c.b16 %v1082, %v1078
        %v1575 = vpack.c.b16 %v1087, %v1083
        %v1576 = vpack.c.b16 %v1088, %v1084
        %v1577 = vpack.c.b16 %v1089, %v1085
        %v1578 = vpack.c.b16 %v1090, %v1086
        %v1579 = vpack.c.b16 %v1095, %v1091
        %v1580 = vpack.c.b16 %v1096, %v1092
        %v1581 = vpack.c.b16 %v1097, %v1093
        %v1582 = vpack.c.b16 %v1098, %v1094
        %v1583 = vpack.c.b16 %v1103, %v1099
        %v1584 = vpack.c.b16 %v1104, %v1100
        %v1585 = vpack.c.b16 %v1105, %v1101
        %v1586 = vpack.c.b16 %v1106, %v1102
        %v1587 = vpack.c.b16 %v1111, %v1107
        %v1588 = vpack.c.b16 %v1112, %v1108
        %v1589 = vpack.c.b16 %v1113, %v1109
        %v1590 = vpack.c.b16 %v1114, %v1110
        %v1591 = vpack.c.b16 %v1119, %v1115
        %v1592 = vpack.c.b16 %v1120, %v1116
        %v1593 = vpack.c.b16 %v1121, %v1117
        %v1594 = vpack.c.b16 %v1122, %v1118
        %v1595 = vpack.c.b16 %v1127, %v1123
        %v1596 = vpack.c.b16 %v1128, %v1124
        %v1597 = vpack.c.b16 %v1129, %v1125
        %v1598 = vpack.c.b16 %v1130, %v1126
        %v1599 = vpack.c.b16 %v1135, %v1131
        %v1600 = vpack.c.b16 %v1136, %v1132
        %v1601 = vpack.c.b16 %v1137, %v1133
        %v1602 = vpack.c.b16 %v1138, %v1134
        %v1603 = vpack.c.b16 %v1143, %v1139
        %v1604 = vpack.c.b16 %v1144, %v1140
        %v1605 = vpack.c.b16 %v1145, %v1141
        %v1606 = vpack.c.b16 %v1146, %v1142
        %v1607 = vpack.c.b16 %v1151, %v1147
        %v1608 = vpack.c.b16 %v1152, %v1148
        %v1609 = vpack.c.b16 %v1153, %v1149
        %v1610 = vpack.c.b16 %v1154, %v1150
        %v1611 = vpack.c.b16 %v1159, %v1155
        %v1612 = vpack.c.b16 %v1160, %v1156
        %v1613 = vpack.c.b16 %v1161, %v1157
        %v1614 = vpack.c.b16 %v1162, %v1158
        %v1615 = vpack.c.b16 %v1167, %v1163
        %v1616 = vpack.c.b16 %v1168, %v1164
        %v1617 = vpack.c.b16 %v1169, %v1165
        %v1618 = vpack.c.b16 %v1170, %v1166
        %v1619 = vpack.c.b16 %v1175, %v1171
        %v1620 = vpack.c.b16 %v1176, %v1172
        %v1621 = vpack.c.b16 %v1177, %v1173
        %v1622 = vpack.c.b16 %v1178, %v1174
        %v1623 = vpack.c.b16 %v1183, %v1179
        %v1624 = vpack.c.b16 %v1184, %v1180
        %v1625 = vpack.c.b16 %v1185, %v1181
        %v1626 = vpack.c.b16 %v1186, %v1182
        %v1627 = vpack.c.b16 %v1191, %v1187
        %v1628 = vpack.c.b16 %v1192, %v1188
        %v1629 = vpack.c.b16 %v1193, %v1189
        %v1630 = vpack.c.b16 %v1194, %v1190
        %v1631 = vpack.c.b16 %v1199, %v1195
        %v1632 = vpack.c.b16 %v1200, %v1196
        %v1633 = vpack.c.b16 %v1201, %v1197
        %v1634 = vpack.c.b16 %v1202, %v1198
        %v1635 = vpack.c.b16 %v1207, %v1203
        %v1636 = vpack.c.b16 %v1208, %v1204
        %v1637 = vpack.c.b16 %v1209, %v1205
        %v1638 = vpack.c.b16 %v1210, %v1206
        %v1639 = vpack.c.b16 %v1215, %v1211
        %v1640 = vpack.c.b16 %v1216, %v1212
        %v1641 = vpack.c.b16 %v1217, %v1213
        %v1642 = vpack.c.b16 %v1218, %v1214
        %v1643 = vpack.c.b16 %v1223, %v1219
        %v1644 = vpack.c.b16 %v1224, %v1220
        %v1645 = vpack.c.b16 %v1225, %v1221
        %v1646 = vpack.c.b16 %v1226, %v1222
        %v1647 = vpack.c.b16 %v1231, %v1227
        %v1648 = vpack.c.b16 %v1232, %v1228
        %v1649 = vpack.c.b16 %v1233, %v1229
        %v1650 = vpack.c.b16 %v1234, %v1230
        %v1651 = vpack.c.b16 %v1239, %v1235
        %v1652 = vpack.c.b16 %v1240, %v1236
        %v1653 = vpack.c.b16 %v1241, %v1237
        %v1654 = vpack.c.b16 %v1242, %v1238
        %v1655 = vpack.c.b16 %v1247, %v1243
        %v1656 = vpack.c.b16 %v1248, %v1244
        %v1657 = vpack.c.b16 %v1249, %v1245
        %v1658 = vpack.c.b16 %v1250, %v1246
        %v1659 = vpack.c.b16 %v1255, %v1251
        %v1660 = vpack.c.b16 %v1256, %v1252
        %v1661 = vpack.c.b16 %v1257, %v1253
        %v1662 = vpack.c.b16 %v1258, %v1254
        %v1663 = vpack.c.b16 %v1263, %v1259
        %v1664 = vpack.c.b16 %v1264, %v1260
        %v1665 = vpack.c.b16 %v1265, %v1261
        %v1666 = vpack.c.b16 %v1266, %v1262
        %v1667 = vpack.c.b16 %v1271, %v1267
        %v1668 = vpack.c.b16 %v1272, %v1268
        %v1669 = vpack.c.b16 %v1273, %v1269
        %v1670 = vpack.c.b16 %v1274, %v1270
        %v1671 = vpack.c.b16 %v1279, %v1275
        %v1672 = vpack.c.b16 %v1280, %v1276
        %v1673 = vpack.c.b16 %v1281, %v1277
        %v1674 = vpack.c.b16 %v1282, %v1278
        %v1675 = vpack.c.b16 %v1287, %v1283
        %v1676 = vpack.c.b16 %v1288, %v1284
        %v1677 = vpack.c.b16 %v1289, %v1285
        %v1678 = vpack.c.b16 %v1290, %v1286
        %v1679 = vpack.c.b16 %v1295, %v1291
        %v1680 = vpack.c.b16 %v1296, %v1292
        %v1681 = vpack.c.b16 %v1297, %v1293
        %v1682 = vpack.c.b16 %v1298, %v1294
        %v1683 = vpack.c.b16 %v1303, %v1299
        %v1684 = vpack.c.b16 %v1304, %v1300
        %v1685 = vpack.c.b16 %v1305, %v1301
        %v1686 = vpack.c.b16 %v1306, %v1302
        %v1687 = vpack.c.b16 %v1311, %v1307
        %v1688 = vpack.c.b16 %v1312, %v1308
        %v1689 = vpack.c.b16 %v1313, %v1309
        %v1690 = vpack.c.b16 %v1314, %v1310
        %v1691 = vpack.c.b16 %v1319, %v1315
        %v1692 = vpack.c.b16 %v1320, %v1316
        %v1693 = vpack.c.b16 %v1321, %v1317
        %v1694 = vpack.c.b16 %v1322, %v1318
        %v1695 = vpack.c.b16 %v1327, %v1323
        %v1696 = vpack.c.b16 %v1328, %v1324
        %v1697 = vpack.c.b16 %v1329, %v1325
        %v1698 = vpack.c.b16 %v1330, %v1326
        %v1699 = vpack.c.b16 %v1335, %v1331
        %v1700 = vpack.c.b16 %v1336, %v1332
        %v1701 = vpack.c.b16 %v1337, %v1333
        %v1702 = vpack.c.b16 %v1338, %v1334
        %v1703 = vpack.c.b16 %v1343, %v1339
        %v1704 = vpack.c.b16 %v1344, %v1340
        %v1705 = vpack.c.b16 %v1345, %v1341
        %v1706 = vpack.c.b16 %v1346, %v1342
        %v1707 = vpack.c.b16 %v1351, %v1347
        %v1708 = vpack.c.b16 %v1352, %v1348
        %v1709 = vpack.c.b16 %v1353, %v1349
        %v1710 = vpack.c.b16 %v1354, %v1350
        %v1711 = vpack.c.b16 %v1359, %v1355
        %v1712 = vpack.c.b16 %v1360, %v1356
        %v1713 = vpack.c.b16 %v1361, %v1357
        %v1714 = vpack.c.b16 %v1362, %v1358
        %v1715 = vpack.c.b16 %v1367, %v1363
        %v1716 = vpack.c.b16 %v1368, %v1364
        %v1717 = vpack.c.b16 %v1369, %v1365
        %v1718 = vpack.c.b16 %v1370, %v1366
        %v1719 = vpack.c.b16 %v1375, %v1371
        %v1720 = vpack.c.b16 %v1376, %v1372
        %v1721 = vpack.c.b16 %v1377, %v1373
        %v1722 = vpack.c.b16 %v1378, %v1374
        %v1723 = vpack.c.b16 %v1383, %v1379
        %v1724 = vpack.c.b16 %v1384, %v1380
        %v1725 = vpack.c.b16 %v1385, %v1381
        %v1726 = vpack.c.b16 %v1386, %v1382
        %v1727 = vpack.c.b16 %v1391, %v1387
        %v1728 = vpack.c.b16 %v1392, %v1388
        %v1729 = vpack.c.b16 %v1393, %v1389
        %v1730 = vpack.c.b16 %v1394, %v1390
        %v1731 = vpack.c.b16 %v1399, %v1395
        %v1732 = vpack.c.b16 %v1400, %v1396
        %v1733 = vpack.c.b16 %v1401, %v1397
        %v1734 = vpack.c.b16 %v1402, %v1398
        %v1735 = vpack.c.b16 %v1407, %v1403
        %v1736 = vpack.c.b16 %v1408, %v1404
        %v1737 = vpack.c.b16 %v1409, %v1405
        %v1738 = vpack.c.b16 %v1410, %v1406
        %v1739 = vpack.c.b16 %v1415, %v1411
        %v1740 = vpack.c.b16 %v1416, %v1412
        %v1741 = vpack.c.b16 %v1417, %v1413
        %v1742 = vpack.c.b16 %v1418, %v1414
        %v1743 = vpack.c.b16 %v1423, %v1419
        %v1744 = vpack.c.b16 %v1424, %v1420
        %v1745 = vpack.c.b16 %v1425, %v1421
        %v1746 = vpack.c.b16 %v1426, %v1422
        %v1747 = vpack.c.b16 %v1431, %v1427
        %v1748 = vpack.c.b16 %v1432, %v1428
        %v1749 = vpack.c.b16 %v1433, %v1429
        %v1750 = vpack.c.b16 %v1434, %v1430
        %v1751 = vpack.c.b16 %v1439, %v1435
        %v1752 = vpack.c.b16 %v1440, %v1436
        %v1753 = vpack.c.b16 %v1441, %v1437
        %v1754 = vpack.c.b16 %v1442, %v1438
        %v1755 = vpack.c.b16 %v1447, %v1443
        %v1756 = vpack.c.b16 %v1448, %v1444
        %v1757 = vpack.c.b16 %v1449, %v1445
        %v1758 = vpack.c.b16 %v1450, %v1446
        %v1759 = vpack.c.b16 %v1455, %v1451
        %v1760 = vpack.c.b16 %v1456, %v1452
        %v1761 = vpack.c.b16 %v1457, %v1453
        %v1762 = vpack.c.b16 %v1458, %v1454
        %v1763 = vpack.c.b16 %v1463, %v1459
        %v1764 = vpack.c.b16 %v1464, %v1460
        %v1765 = vpack.c.b16 %v1465, %v1461
        %v1766 = vpack.c.b16 %v1466, %v1462
        %v1767 = vpack.c.b16 %v1471, %v1467
        %v1768 = vpack.c.b16 %v1472, %v1468
        %v1769 = vpack.c.b16 %v1473, %v1469
        %v1770 = vpack.c.b16 %v1474, %v1470
        %v1771 = vpack.c.b16 %v1479, %v1475
        %v1772 = vpack.c.b16 %v1480, %v1476
        %v1773 = vpack.c.b16 %v1481, %v1477
        %v1774 = vpack.c.b16 %v1482, %v1478
        %v1775 = vpack.c.b16 %v1487, %v1483
        %v1776 = vpack.c.b16 %v1488, %v1484
        %v1777 = vpack.c.b16 %v1489, %v1485
        %v1778 = vpack.c.b16 %v1490, %v1486
        %2067 = vmatpush.bf16.msra.mxu0 %v1519
        %2068 = vmatpush.bf16.msra.mxu0 %v1515
        %2069 = vmatpush.bf16.msra.mxu0 %v1511
        %2070 = vmatpush.bf16.msra.mxu0 %v1507
        %2071 = vmatpush.bf16.msra.mxu0 %v1503
        %2072 = vmatpush.bf16.msra.mxu0 %v1499
        %2073 = vmatpush.bf16.msra.mxu0 %v1495
        %2074 = vmatpush.bf16.msra.mxu0 %v1491
        %2075 = vmatmul.bf16.gmra.mxu0 %v607
        %v2076 = vpop.f32.mrf.mxu0
        %v2077 = vadd.f32 0.0, %v2076
        %v2078 = vpop.f32.mrf.mxu0
        %2079 = vdwg.mxu0
        %2080 = vmatpush.bf16.msra.mxu0 %v1551
        %2081 = vmatpush.bf16.msra.mxu0 %v1547
        %2082 = vmatpush.bf16.msra.mxu0 %v1543
        %2083 = vmatpush.bf16.msra.mxu0 %v1539
        %2084 = vmatpush.bf16.msra.mxu0 %v1535
        %2085 = vmatpush.bf16.msra.mxu0 %v1531
        %2086 = vmatpush.bf16.msra.mxu0 %v1527
        %2087 = vmatpush.bf16.msra.mxu0 %v1523
        %2088 = vmatmul.bf16.gmra.mxu0 %v608
        %v2089 = vpop.f32.mrf.mxu0
        %v2090 = vadd.f32 %v2077, %v2089
        %v2091 = vpop.f32.mrf.mxu0
        %2092 = vdwg.mxu0
        %2093 = vmatpush.bf16.msra.mxu0 %v1583
        %2094 = vmatpush.bf16.msra.mxu0 %v1579
        %2095 = vmatpush.bf16.msra.mxu0 %v1575
        %2096 = vmatpush.bf16.msra.mxu0 %v1571
        %2097 = vmatpush.bf16.msra.mxu0 %v1567
        %2098 = vmatpush.bf16.msra.mxu0 %v1563
        %2099 = vmatpush.bf16.msra.mxu0 %v1559
        %2100 = vmatpush.bf16.msra.mxu0 %v1555
        %2101 = vmatmul.bf16.gmra.mxu0 %v609
        %v2102 = vpop.f32.mrf.mxu0
        %v2103 = vadd.f32 %v2090, %v2102
        %v2104 = vpop.f32.mrf.mxu0
        %2105 = vdwg.mxu0
        %2106 = vmatpush.bf16.msra.mxu0 %v1615
        %2107 = vmatpush.bf16.msra.mxu0 %v1611
        %2108 = vmatpush.bf16.msra.mxu0 %v1607
        %2109 = vmatpush.bf16.msra.mxu0 %v1603
        %2110 = vmatpush.bf16.msra.mxu0 %v1599
        %2111 = vmatpush.bf16.msra.mxu0 %v1595
        %2112 = vmatpush.bf16.msra.mxu0 %v1591
        %2113 = vmatpush.bf16.msra.mxu0 %v1587
        %2114 = vmatmul.bf16.gmra.mxu0 %v610
        %v2115 = vpop.f32.mrf.mxu0
        %v2116 = vadd.f32 %v2103, %v2115
        %v2117 = vpop.f32.mrf.mxu0
        %2118 = vdwg.mxu0
        %2119 = vmatpush.bf16.msra.mxu0 %v1647
        %2120 = vmatpush.bf16.msra.mxu0 %v1643
        %2121 = vmatpush.bf16.msra.mxu0 %v1639
        %2122 = vmatpush.bf16.msra.mxu0 %v1635
        %2123 = vmatpush.bf16.msra.mxu0 %v1631
        %2124 = vmatpush.bf16.msra.mxu0 %v1627
        %2125 = vmatpush.bf16.msra.mxu0 %v1623
        %2126 = vmatpush.bf16.msra.mxu0 %v1619
        %2127 = vmatmul.bf16.gmra.mxu0 %v611
        %v2128 = vpop.f32.mrf.mxu0
        %v2129 = vadd.f32 %v2116, %v2128
        %v2130 = vpop.f32.mrf.mxu0
        %2131 = vdwg.mxu0
        %2132 = vmatpush.bf16.msra.mxu0 %v1679
        %2133 = vmatpush.bf16.msra.mxu0 %v1675
        %2134 = vmatpush.bf16.msra.mxu0 %v1671
        %2135 = vmatpush.bf16.msra.mxu0 %v1667
        %2136 = vmatpush.bf16.msra.mxu0 %v1663
        %2137 = vmatpush.bf16.msra.mxu0 %v1659
        %2138 = vmatpush.bf16.msra.mxu0 %v1655
        %2139 = vmatpush.bf16.msra.mxu0 %v1651
        %2140 = vmatmul.bf16.gmra.mxu0 %v612
        %v2141 = vpop.f32.mrf.mxu0
        %v2142 = vadd.f32 %v2129, %v2141
        %v2143 = vpop.f32.mrf.mxu0
        %2144 = vdwg.mxu0
        %2145 = vmatpush.bf16.msra.mxu0 %v1711
        %2146 = vmatpush.bf16.msra.mxu0 %v1707
        %2147 = vmatpush.bf16.msra.mxu0 %v1703
        %2148 = vmatpush.bf16.msra.mxu0 %v1699
        %2149 = vmatpush.bf16.msra.mxu0 %v1695
        %2150 = vmatpush.bf16.msra.mxu0 %v1691
        %2151 = vmatpush.bf16.msra.mxu0 %v1687
        %2152 = vmatpush.bf16.msra.mxu0 %v1683
        %2153 = vmatmul.bf16.gmra.mxu0 %v613
        %v2154 = vpop.f32.mrf.mxu0
        %v2155 = vadd.f32 %v2142, %v2154
        %v2156 = vpop.f32.mrf.mxu0
        %2157 = vdwg.mxu0
        %2158 = vmatpush.bf16.msra.mxu0 %v1743
        %2159 = vmatpush.bf16.msra.mxu0 %v1739
        %2160 = vmatpush.bf16.msra.mxu0 %v1735
        %2161 = vmatpush.bf16.msra.mxu0 %v1731
        %2162 = vmatpush.bf16.msra.mxu0 %v1727
        %2163 = vmatpush.bf16.msra.mxu0 %v1723
        %2164 = vmatpush.bf16.msra.mxu0 %v1719
        %2165 = vmatpush.bf16.msra.mxu0 %v1715
        %2166 = vmatmul.bf16.gmra.mxu0 %v614
        %v2167 = vpop.f32.mrf.mxu0
        %v2168 = vadd.f32 %v2155, %v2167
        %v2169 = vpop.f32.mrf.mxu0
        %2170 = vdwg.mxu0
        %2171 = vmatpush.bf16.msra.mxu0 %v1775
        %2172 = vmatpush.bf16.msra.mxu0 %v1771
        %2173 = vmatpush.bf16.msra.mxu0 %v1767
        %2174 = vmatpush.bf16.msra.mxu0 %v1763
        %2175 = vmatpush.bf16.msra.mxu0 %v1759
        %2176 = vmatpush.bf16.msra.mxu0 %v1755
        %2177 = vmatpush.bf16.msra.mxu0 %v1751
        %2178 = vmatpush.bf16.msra.mxu0 %v1747
        %2179 = vmatmul.bf16.gmra.mxu0 %v617
        %v2180 = vpop.f32.mrf.mxu0
        %v2181 = vadd.f32 %v2168, %v2180
        %v2182 = vpop.f32.mrf.mxu0
        %2183 = vdwg.mxu0
        %2184 = vmatpush.bf16.msra.mxu0 %v1520
        %2185 = vmatpush.bf16.msra.mxu0 %v1516
        %2186 = vmatpush.bf16.msra.mxu0 %v1512
        %2187 = vmatpush.bf16.msra.mxu0 %v1508
        %2188 = vmatpush.bf16.msra.mxu0 %v1504
        %2189 = vmatpush.bf16.msra.mxu0 %v1500
        %2190 = vmatpush.bf16.msra.mxu0 %v1496
        %2191 = vmatpush.bf16.msra.mxu0 %v1492
        %2192 = vmatmul.bf16.gmra.mxu0 %v607
        %v2193 = vpop.f32.mrf.mxu0
        %v2194 = vadd.f32 0.0, %v2193
        %v2195 = vpop.f32.mrf.mxu0
        %2196 = vdwg.mxu0
        %2197 = vmatpush.bf16.msra.mxu0 %v1552
        %2198 = vmatpush.bf16.msra.mxu0 %v1548
        %2199 = vmatpush.bf16.msra.mxu0 %v1544
        %2200 = vmatpush.bf16.msra.mxu0 %v1540
        %2201 = vmatpush.bf16.msra.mxu0 %v1536
        %2202 = vmatpush.bf16.msra.mxu0 %v1532
        %2203 = vmatpush.bf16.msra.mxu0 %v1528
        %2204 = vmatpush.bf16.msra.mxu0 %v1524
        %2205 = vmatmul.bf16.gmra.mxu0 %v608
        %v2206 = vpop.f32.mrf.mxu0
        %v2207 = vadd.f32 %v2194, %v2206
        %v2208 = vpop.f32.mrf.mxu0
        %2209 = vdwg.mxu0
        %2210 = vmatpush.bf16.msra.mxu0 %v1584
        %2211 = vmatpush.bf16.msra.mxu0 %v1580
        %2212 = vmatpush.bf16.msra.mxu0 %v1576
        %2213 = vmatpush.bf16.msra.mxu0 %v1572
        %2214 = vmatpush.bf16.msra.mxu0 %v1568
        %2215 = vmatpush.bf16.msra.mxu0 %v1564
        %2216 = vmatpush.bf16.msra.mxu0 %v1560
        %2217 = vmatpush.bf16.msra.mxu0 %v1556
        %2218 = vmatmul.bf16.gmra.mxu0 %v609
        %v2219 = vpop.f32.mrf.mxu0
        %v2220 = vadd.f32 %v2207, %v2219
        %v2221 = vpop.f32.mrf.mxu0
        %2222 = vdwg.mxu0
        %2223 = vmatpush.bf16.msra.mxu0 %v1616
        %2224 = vmatpush.bf16.msra.mxu0 %v1612
        %2225 = vmatpush.bf16.msra.mxu0 %v1608
        %2226 = vmatpush.bf16.msra.mxu0 %v1604
        %2227 = vmatpush.bf16.msra.mxu0 %v1600
        %2228 = vmatpush.bf16.msra.mxu0 %v1596
        %2229 = vmatpush.bf16.msra.mxu0 %v1592
        %2230 = vmatpush.bf16.msra.mxu0 %v1588
        %2231 = vmatmul.bf16.gmra.mxu0 %v610
        %v2232 = vpop.f32.mrf.mxu0
        %v2233 = vadd.f32 %v2220, %v2232
        %v2234 = vpop.f32.mrf.mxu0
        %2235 = vdwg.mxu0
        %2236 = vmatpush.bf16.msra.mxu0 %v1648
        %2237 = vmatpush.bf16.msra.mxu0 %v1644
        %2238 = vmatpush.bf16.msra.mxu0 %v1640
        %2239 = vmatpush.bf16.msra.mxu0 %v1636
        %2240 = vmatpush.bf16.msra.mxu0 %v1632
        %2241 = vmatpush.bf16.msra.mxu0 %v1628
        %2242 = vmatpush.bf16.msra.mxu0 %v1624
        %2243 = vmatpush.bf16.msra.mxu0 %v1620
        %2244 = vmatmul.bf16.gmra.mxu0 %v611
        %v2245 = vpop.f32.mrf.mxu0
        %v2246 = vadd.f32 %v2233, %v2245
        %v2247 = vpop.f32.mrf.mxu0
        %2248 = vdwg.mxu0
        %2249 = vmatpush.bf16.msra.mxu0 %v1680
        %2250 = vmatpush.bf16.msra.mxu0 %v1676
        %2251 = vmatpush.bf16.msra.mxu0 %v1672
        %2252 = vmatpush.bf16.msra.mxu0 %v1668
        %2253 = vmatpush.bf16.msra.mxu0 %v1664
        %2254 = vmatpush.bf16.msra.mxu0 %v1660
        %2255 = vmatpush.bf16.msra.mxu0 %v1656
        %2256 = vmatpush.bf16.msra.mxu0 %v1652
        %2257 = vmatmul.bf16.gmra.mxu0 %v612
        %v2258 = vpop.f32.mrf.mxu0
        %v2259 = vadd.f32 %v2246, %v2258
        %v2260 = vpop.f32.mrf.mxu0
        %2261 = vdwg.mxu0
        %2262 = vmatpush.bf16.msra.mxu0 %v1712
        %2263 = vmatpush.bf16.msra.mxu0 %v1708
        %2264 = vmatpush.bf16.msra.mxu0 %v1704
        %2265 = vmatpush.bf16.msra.mxu0 %v1700
        %2266 = vmatpush.bf16.msra.mxu0 %v1696
        %2267 = vmatpush.bf16.msra.mxu0 %v1692
        %2268 = vmatpush.bf16.msra.mxu0 %v1688
        %2269 = vmatpush.bf16.msra.mxu0 %v1684
        %2270 = vmatmul.bf16.gmra.mxu0 %v613
        %v2271 = vpop.f32.mrf.mxu0
        %v2272 = vadd.f32 %v2259, %v2271
        %v2273 = vpop.f32.mrf.mxu0
        %2274 = vdwg.mxu0
        %2275 = vmatpush.bf16.msra.mxu0 %v1744
        %2276 = vmatpush.bf16.msra.mxu0 %v1740
        %2277 = vmatpush.bf16.msra.mxu0 %v1736
        %2278 = vmatpush.bf16.msra.mxu0 %v1732
        %2279 = vmatpush.bf16.msra.mxu0 %v1728
        %2280 = vmatpush.bf16.msra.mxu0 %v1724
        %2281 = vmatpush.bf16.msra.mxu0 %v1720
        %2282 = vmatpush.bf16.msra.mxu0 %v1716
        %2283 = vmatmul.bf16.gmra.mxu0 %v614
        %v2284 = vpop.f32.mrf.mxu0
        %v2285 = vadd.f32 %v2272, %v2284
        %v2286 = vpop.f32.mrf.mxu0
        %2287 = vdwg.mxu0
        %2288 = vmatpush.bf16.msra.mxu0 %v1776
        %2289 = vmatpush.bf16.msra.mxu0 %v1772
        %2290 = vmatpush.bf16.msra.mxu0 %v1768
        %2291 = vmatpush.bf16.msra.mxu0 %v1764
        %2292 = vmatpush.bf16.msra.mxu0 %v1760
        %2293 = vmatpush.bf16.msra.mxu0 %v1756
        %2294 = vmatpush.bf16.msra.mxu0 %v1752
        %2295 = vmatpush.bf16.msra.mxu0 %v1748
        %2296 = vmatmul.bf16.gmra.mxu0 %v617
        %v2297 = vpop.f32.mrf.mxu0
        %v2298 = vadd.f32 %v2285, %v2297
        %v2299 = vpop.f32.mrf.mxu0
        %2300 = vdwg.mxu0
        %2301 = vmatpush.bf16.msra.mxu0 %v1521
        %2302 = vmatpush.bf16.msra.mxu0 %v1517
        %2303 = vmatpush.bf16.msra.mxu0 %v1513
        %2304 = vmatpush.bf16.msra.mxu0 %v1509
        %2305 = vmatpush.bf16.msra.mxu0 %v1505
        %2306 = vmatpush.bf16.msra.mxu0 %v1501
        %2307 = vmatpush.bf16.msra.mxu0 %v1497
        %2308 = vmatpush.bf16.msra.mxu0 %v1493
        %2309 = vmatmul.bf16.gmra.mxu0 %v607
        %v2310 = vpop.f32.mrf.mxu0
        %v2311 = vadd.f32 0.0, %v2310
        %v2312 = vpop.f32.mrf.mxu0
        %2313 = vdwg.mxu0
        %2314 = vmatpush.bf16.msra.mxu0 %v1553
        %2315 = vmatpush.bf16.msra.mxu0 %v1549
        %2316 = vmatpush.bf16.msra.mxu0 %v1545
        %2317 = vmatpush.bf16.msra.mxu0 %v1541
        %2318 = vmatpush.bf16.msra.mxu0 %v1537
        %2319 = vmatpush.bf16.msra.mxu0 %v1533
        %2320 = vmatpush.bf16.msra.mxu0 %v1529
        %2321 = vmatpush.bf16.msra.mxu0 %v1525
        %2322 = vmatmul.bf16.gmra.mxu0 %v608
        %v2323 = vpop.f32.mrf.mxu0
        %v2324 = vadd.f32 %v2311, %v2323
        %v2325 = vpop.f32.mrf.mxu0
        %2326 = vdwg.mxu0
        %2327 = vmatpush.bf16.msra.mxu0 %v1585
        %2328 = vmatpush.bf16.msra.mxu0 %v1581
        %2329 = vmatpush.bf16.msra.mxu0 %v1577
        %2330 = vmatpush.bf16.msra.mxu0 %v1573
        %2331 = vmatpush.bf16.msra.mxu0 %v1569
        %2332 = vmatpush.bf16.msra.mxu0 %v1565
        %2333 = vmatpush.bf16.msra.mxu0 %v1561
        %2334 = vmatpush.bf16.msra.mxu0 %v1557
        %2335 = vmatmul.bf16.gmra.mxu0 %v609
        %v2336 = vpop.f32.mrf.mxu0
        %v2337 = vadd.f32 %v2324, %v2336
        %v2338 = vpop.f32.mrf.mxu0
        %2339 = vdwg.mxu0
        %2340 = vmatpush.bf16.msra.mxu0 %v1617
        %2341 = vmatpush.bf16.msra.mxu0 %v1613
        %2342 = vmatpush.bf16.msra.mxu0 %v1609
        %2343 = vmatpush.bf16.msra.mxu0 %v1605
        %2344 = vmatpush.bf16.msra.mxu0 %v1601
        %2345 = vmatpush.bf16.msra.mxu0 %v1597
        %2346 = vmatpush.bf16.msra.mxu0 %v1593
        %2347 = vmatpush.bf16.msra.mxu0 %v1589
        %2348 = vmatmul.bf16.gmra.mxu0 %v610
        %v2349 = vpop.f32.mrf.mxu0
        %v2350 = vadd.f32 %v2337, %v2349
        %v2351 = vpop.f32.mrf.mxu0
        %2352 = vdwg.mxu0
        %2353 = vmatpush.bf16.msra.mxu0 %v1649
        %2354 = vmatpush.bf16.msra.mxu0 %v1645
        %2355 = vmatpush.bf16.msra.mxu0 %v1641
        %2356 = vmatpush.bf16.msra.mxu0 %v1637
        %2357 = vmatpush.bf16.msra.mxu0 %v1633
        %2358 = vmatpush.bf16.msra.mxu0 %v1629
        %2359 = vmatpush.bf16.msra.mxu0 %v1625
        %2360 = vmatpush.bf16.msra.mxu0 %v1621
        %2361 = vmatmul.bf16.gmra.mxu0 %v611
        %v2362 = vpop.f32.mrf.mxu0
        %v2363 = vadd.f32 %v2350, %v2362
        %v2364 = vpop.f32.mrf.mxu0
        %2365 = vdwg.mxu0
        %2366 = vmatpush.bf16.msra.mxu0 %v1681
        %2367 = vmatpush.bf16.msra.mxu0 %v1677
        %2368 = vmatpush.bf16.msra.mxu0 %v1673
        %2369 = vmatpush.bf16.msra.mxu0 %v1669
        %2370 = vmatpush.bf16.msra.mxu0 %v1665
        %2371 = vmatpush.bf16.msra.mxu0 %v1661
        %2372 = vmatpush.bf16.msra.mxu0 %v1657
        %2373 = vmatpush.bf16.msra.mxu0 %v1653
        %2374 = vmatmul.bf16.gmra.mxu0 %v612
        %v2375 = vpop.f32.mrf.mxu0
        %v2376 = vadd.f32 %v2363, %v2375
        %v2377 = vpop.f32.mrf.mxu0
        %2378 = vdwg.mxu0
        %2379 = vmatpush.bf16.msra.mxu0 %v1713
        %2380 = vmatpush.bf16.msra.mxu0 %v1709
        %2381 = vmatpush.bf16.msra.mxu0 %v1705
        %2382 = vmatpush.bf16.msra.mxu0 %v1701
        %2383 = vmatpush.bf16.msra.mxu0 %v1697
        %2384 = vmatpush.bf16.msra.mxu0 %v1693
        %2385 = vmatpush.bf16.msra.mxu0 %v1689
        %2386 = vmatpush.bf16.msra.mxu0 %v1685
        %2387 = vmatmul.bf16.gmra.mxu0 %v613
        %v2388 = vpop.f32.mrf.mxu0
        %v2389 = vadd.f32 %v2376, %v2388
        %v2390 = vpop.f32.mrf.mxu0
        %2391 = vdwg.mxu0
        %2392 = vmatpush.bf16.msra.mxu0 %v1745
        %2393 = vmatpush.bf16.msra.mxu0 %v1741
        %2394 = vmatpush.bf16.msra.mxu0 %v1737
        %2395 = vmatpush.bf16.msra.mxu0 %v1733
        %2396 = vmatpush.bf16.msra.mxu0 %v1729
        %2397 = vmatpush.bf16.msra.mxu0 %v1725
        %2398 = vmatpush.bf16.msra.mxu0 %v1721
        %2399 = vmatpush.bf16.msra.mxu0 %v1717
        %2400 = vmatmul.bf16.gmra.mxu0 %v614
        %v2401 = vpop.f32.mrf.mxu0
        %v2402 = vadd.f32 %v2389, %v2401
        %v2403 = vpop.f32.mrf.mxu0
        %2404 = vdwg.mxu0
        %2405 = vmatpush.bf16.msra.mxu0 %v1777
        %2406 = vmatpush.bf16.msra.mxu0 %v1773
        %2407 = vmatpush.bf16.msra.mxu0 %v1769
        %2408 = vmatpush.bf16.msra.mxu0 %v1765
        %2409 = vmatpush.bf16.msra.mxu0 %v1761
        %2410 = vmatpush.bf16.msra.mxu0 %v1757
        %2411 = vmatpush.bf16.msra.mxu0 %v1753
        %2412 = vmatpush.bf16.msra.mxu0 %v1749
        %2413 = vmatmul.bf16.gmra.mxu0 %v617
        %v2414 = vpop.f32.mrf.mxu0
        %v2415 = vadd.f32 %v2402, %v2414
        %v2416 = vpop.f32.mrf.mxu0
        %2417 = vdwg.mxu0
        %2418 = vmatpush.bf16.msra.mxu0 %v1522
        %2419 = vmatpush.bf16.msra.mxu0 %v1518
        %2420 = vmatpush.bf16.msra.mxu0 %v1514
        %2421 = vmatpush.bf16.msra.mxu0 %v1510
        %2422 = vmatpush.bf16.msra.mxu0 %v1506
        %2423 = vmatpush.bf16.msra.mxu0 %v1502
        %2424 = vmatpush.bf16.msra.mxu0 %v1498
        %2425 = vmatpush.bf16.msra.mxu0 %v1494
        %2426 = vmatmul.bf16.gmra.mxu0 %v607
        %v2427 = vpop.f32.mrf.mxu0
        %v2428 = vadd.f32 0.0, %v2427
        %v2429 = vpop.f32.mrf.mxu0
        %2430 = vdwg.mxu0
        %2431 = vmatpush.bf16.msra.mxu0 %v1554
        %2432 = vmatpush.bf16.msra.mxu0 %v1550
        %2433 = vmatpush.bf16.msra.mxu0 %v1546
        %2434 = vmatpush.bf16.msra.mxu0 %v1542
        %2435 = vmatpush.bf16.msra.mxu0 %v1538
        %2436 = vmatpush.bf16.msra.mxu0 %v1534
        %2437 = vmatpush.bf16.msra.mxu0 %v1530
        %2438 = vmatpush.bf16.msra.mxu0 %v1526
        %2439 = vmatmul.bf16.gmra.mxu0 %v608
        %v2440 = vpop.f32.mrf.mxu0
        %v2441 = vadd.f32 %v2428, %v2440
        %v2442 = vpop.f32.mrf.mxu0
        %2443 = vdwg.mxu0
        %2444 = vmatpush.bf16.msra.mxu0 %v1586
        %2445 = vmatpush.bf16.msra.mxu0 %v1582
        %2446 = vmatpush.bf16.msra.mxu0 %v1578
        %2447 = vmatpush.bf16.msra.mxu0 %v1574
        %2448 = vmatpush.bf16.msra.mxu0 %v1570
        %2449 = vmatpush.bf16.msra.mxu0 %v1566
        %2450 = vmatpush.bf16.msra.mxu0 %v1562
        %2451 = vmatpush.bf16.msra.mxu0 %v1558
        %2452 = vmatmul.bf16.gmra.mxu0 %v609
        %v2453 = vpop.f32.mrf.mxu0
        %v2454 = vadd.f32 %v2441, %v2453
        %v2455 = vpop.f32.mrf.mxu0
        %2456 = vdwg.mxu0
        %2457 = vmatpush.bf16.msra.mxu0 %v1618
        %2458 = vmatpush.bf16.msra.mxu0 %v1614
        %2459 = vmatpush.bf16.msra.mxu0 %v1610
        %2460 = vmatpush.bf16.msra.mxu0 %v1606
        %2461 = vmatpush.bf16.msra.mxu0 %v1602
        %2462 = vmatpush.bf16.msra.mxu0 %v1598
        %2463 = vmatpush.bf16.msra.mxu0 %v1594
        %2464 = vmatpush.bf16.msra.mxu0 %v1590
        %2465 = vmatmul.bf16.gmra.mxu0 %v610
        %v2466 = vpop.f32.mrf.mxu0
        %v2467 = vadd.f32 %v2454, %v2466
        %v2468 = vpop.f32.mrf.mxu0
        %2469 = vdwg.mxu0
        %2470 = vmatpush.bf16.msra.mxu0 %v1650
        %2471 = vmatpush.bf16.msra.mxu0 %v1646
        %2472 = vmatpush.bf16.msra.mxu0 %v1642
        %2473 = vmatpush.bf16.msra.mxu0 %v1638
        %2474 = vmatpush.bf16.msra.mxu0 %v1634
        %2475 = vmatpush.bf16.msra.mxu0 %v1630
        %2476 = vmatpush.bf16.msra.mxu0 %v1626
        %2477 = vmatpush.bf16.msra.mxu0 %v1622
        %2478 = vmatmul.bf16.gmra.mxu0 %v611
        %v2479 = vpop.f32.mrf.mxu0
        %v2480 = vadd.f32 %v2467, %v2479
        %v2481 = vpop.f32.mrf.mxu0
        %2482 = vdwg.mxu0
        %2483 = vmatpush.bf16.msra.mxu0 %v1682
        %2484 = vmatpush.bf16.msra.mxu0 %v1678
        %2485 = vmatpush.bf16.msra.mxu0 %v1674
        %2486 = vmatpush.bf16.msra.mxu0 %v1670
        %2487 = vmatpush.bf16.msra.mxu0 %v1666
        %2488 = vmatpush.bf16.msra.mxu0 %v1662
        %2489 = vmatpush.bf16.msra.mxu0 %v1658
        %2490 = vmatpush.bf16.msra.mxu0 %v1654
        %2491 = vmatmul.bf16.gmra.mxu0 %v612
        %v2492 = vpop.f32.mrf.mxu0
        %v2493 = vadd.f32 %v2480, %v2492
        %v2494 = vpop.f32.mrf.mxu0
        %2495 = vdwg.mxu0
        %2496 = vmatpush.bf16.msra.mxu0 %v1714
        %2497 = vmatpush.bf16.msra.mxu0 %v1710
        %2498 = vmatpush.bf16.msra.mxu0 %v1706
        %2499 = vmatpush.bf16.msra.mxu0 %v1702
        %2500 = vmatpush.bf16.msra.mxu0 %v1698
        %2501 = vmatpush.bf16.msra.mxu0 %v1694
        %2502 = vmatpush.bf16.msra.mxu0 %v1690
        %2503 = vmatpush.bf16.msra.mxu0 %v1686
        %2504 = vmatmul.bf16.gmra.mxu0 %v613
        %v2505 = vpop.f32.mrf.mxu0
        %v2506 = vadd.f32 %v2493, %v2505
        %v2507 = vpop.f32.mrf.mxu0
        %2508 = vdwg.mxu0
        %2509 = vmatpush.bf16.msra.mxu0 %v1746
        %2510 = vmatpush.bf16.msra.mxu0 %v1742
        %2511 = vmatpush.bf16.msra.mxu0 %v1738
        %2512 = vmatpush.bf16.msra.mxu0 %v1734
        %2513 = vmatpush.bf16.msra.mxu0 %v1730
        %2514 = vmatpush.bf16.msra.mxu0 %v1726
        %2515 = vmatpush.bf16.msra.mxu0 %v1722
        %2516 = vmatpush.bf16.msra.mxu0 %v1718
        %2517 = vmatmul.bf16.gmra.mxu0 %v614
        %v2518 = vpop.f32.mrf.mxu0
        %v2519 = vadd.f32 %v2506, %v2518
        %v2520 = vpop.f32.mrf.mxu0
        %2521 = vdwg.mxu0
        %2522 = vmatpush.bf16.msra.mxu0 %v1778
        %2523 = vmatpush.bf16.msra.mxu0 %v1774
        %2524 = vmatpush.bf16.msra.mxu0 %v1770
        %2525 = vmatpush.bf16.msra.mxu0 %v1766
        %2526 = vmatpush.bf16.msra.mxu0 %v1762
        %2527 = vmatpush.bf16.msra.mxu0 %v1758
        %2528 = vmatpush.bf16.msra.mxu0 %v1754
        %2529 = vmatpush.bf16.msra.mxu0 %v1750
        %2530 = vmatmul.bf16.gmra.mxu0 %v617
        %v2531 = vpop.f32.mrf.mxu0
        %v2532 = vadd.f32 %v2519, %v2531
        %v2533 = vpop.f32.mrf.mxu0
        %2534 = vdwg.mxu0
        %v2539 = vrot.slane %v2298, 6
        %v2540 = vrot.slane %v2415, 4
        %v2541 = vrot.slane %v2532, 2
        %vm2542 = vcmask 1041408
        %v2543 = vsel %vm2542, %v2181, %v2539
        %vm2544 = vcmask 1045508
        %v2545 = vsel %vm2544, %v2540, %v2541
        %vm2546 = vcmask 1043456
        %v2547 = vsel %vm2546, %v2543, %v2545
        %v2549 = vadd.f32 %v314, %v2547
        %2550 = vst [vmem:[#allocation2] sm:$0xff] %v2549
        %p2551 = scmp.eq.s32.totalorder %s27, 7
        // Predicated region
        $region53: #{chatgpt_forward.3} parent=39 // pred_check
          %p2552 = pneg %p2551
        $region54: #{chatgpt_forward.3} parent=39 // pred_check_branch
          %2554 = sbr.rel (%p2552) target = $region56
        $region55: #{chatgpt_forward.3} parent=39 // pred_region
          %v2555 = vld [vmem:[#allocation2] sm:$0xff]
          %v2556 = vld [vmem:[#allocation6] sm:$0xf]
          %v2558 = vperm.slane %v2556, 0
          %v2559 = vperm.slane %v2556, 1
          %v2560 = vperm.slane %v2556, 2
          %v2561 = vperm.slane %v2556, 3
          %v2562 = vrot.slane %v2559, 6
          %v2563 = vrot.slane %v2560, 4
          %v2564 = vrot.slane %v2561, 2
          %v2565 = vsel %vm2542, %v2558, %v2562
          %v2566 = vsel %vm2544, %v2563, %v2564
          %v2567 = vsel %vm2546, %v2565, %v2566
          %v2569 = vadd.f32 %v2555, %v2567
          %v2570 = vmax.f32 %v2569, 0.0
          %v2571 = vld [vmem:[%s3] sm:$0xff]
          %v2572 = vld [vmem:[%s3 + $0x8] sm:$0xff]
          %v2573 = vld [vmem:[%s3 + $0x10] sm:$0xff]
          %v2574 = vld [vmem:[%s3 + $0x18] sm:$0xff]
          %v2575 = vld [vmem:[%s3 + $0x20] sm:$0xff]
          %v2576 = vld [vmem:[%s3 + $0x28] sm:$0xff]
          %v2577 = vld [vmem:[%s3 + $0x30] sm:$0xff]
          %v2578 = vld [vmem:[%s3 + $0x38] sm:$0xff]
          %v2579 = vld [vmem:[%s3 + $0x40] sm:$0xff]
          %v2580 = vld [vmem:[%s3 + $0x48] sm:$0xff]
          %v2581 = vld [vmem:[%s3 + $0x50] sm:$0xff]
          %v2582 = vld [vmem:[%s3 + $0x58] sm:$0xff]
          %v2583 = vld [vmem:[%s3 + $0x60] sm:$0xff]
          %v2584 = vld [vmem:[%s3 + $0x68] sm:$0xff]
          %v2585 = vld [vmem:[%s3 + $0x70] sm:$0xff]
          %v2586 = vld [vmem:[%s3 + $0x78] sm:$0xff]
          %v2587 = vld [vmem:[%s3 + $0x80] sm:$0xff]
          %v2588 = vld [vmem:[%s3 + $0x88] sm:$0xff]
          %v2589 = vld [vmem:[%s3 + $0x90] sm:$0xff]
          %v2590 = vld [vmem:[%s3 + $0x98] sm:$0xff]
          %v2591 = vld [vmem:[%s3 + $0xa0] sm:$0xff]
          %v2592 = vld [vmem:[%s3 + $0xa8] sm:$0xff]
          %v2593 = vld [vmem:[%s3 + $0xb0] sm:$0xff]
          %v2594 = vld [vmem:[%s3 + $0xb8] sm:$0xff]
          %v2595 = vld [vmem:[%s3 + $0xc0] sm:$0xff]
          %v2596 = vld [vmem:[%s3 + $0xc8] sm:$0xff]
          %v2597 = vld [vmem:[%s3 + $0xd0] sm:$0xff]
          %v2598 = vld [vmem:[%s3 + $0xd8] sm:$0xff]
          %v2599 = vld [vmem:[%s3 + $0xe0] sm:$0xff]
          %v2600 = vld [vmem:[%s3 + $0xe8] sm:$0xff]
          %v2601 = vld [vmem:[%s3 + $0xf0] sm:$0xff]
          %v2602 = vld [vmem:[%s3 + $0xf8] sm:$0xff]
          %v2603 = vld [vmem:[%s3 + $0x100] sm:$0xff]
          %v2604 = vld [vmem:[%s3 + $0x108] sm:$0xff]
          %v2605 = vld [vmem:[%s3 + $0x110] sm:$0xff]
          %v2606 = vld [vmem:[%s3 + $0x118] sm:$0xff]
          %v2607 = vld [vmem:[%s3 + $0x120] sm:$0xff]
          %v2608 = vld [vmem:[%s3 + $0x128] sm:$0xff]
          %v2609 = vld [vmem:[%s3 + $0x130] sm:$0xff]
          %v2610 = vld [vmem:[%s3 + $0x138] sm:$0xff]
          %v2611 = vld [vmem:[%s3 + $0x140] sm:$0xff]
          %v2612 = vld [vmem:[%s3 + $0x148] sm:$0xff]
          %v2613 = vld [vmem:[%s3 + $0x150] sm:$0xff]
          %v2614 = vld [vmem:[%s3 + $0x158] sm:$0xff]
          %v2615 = vld [vmem:[%s3 + $0x160] sm:$0xff]
          %v2616 = vld [vmem:[%s3 + $0x168] sm:$0xff]
          %v2617 = vld [vmem:[%s3 + $0x170] sm:$0xff]
          %v2618 = vld [vmem:[%s3 + $0x178] sm:$0xff]
          %v2619 = vld [vmem:[%s3 + $0x180] sm:$0xff]
          %v2620 = vld [vmem:[%s3 + $0x188] sm:$0xff]
          %v2621 = vld [vmem:[%s3 + $0x190] sm:$0xff]
          %v2622 = vld [vmem:[%s3 + $0x198] sm:$0xff]
          %v2623 = vld [vmem:[%s3 + $0x1a0] sm:$0xff]
          %v2624 = vld [vmem:[%s3 + $0x1a8] sm:$0xff]
          %v2625 = vld [vmem:[%s3 + $0x1b0] sm:$0xff]
          %v2626 = vld [vmem:[%s3 + $0x1b8] sm:$0xff]
          %v2627 = vld [vmem:[%s3 + $0x1c0] sm:$0xff]
          %v2628 = vld [vmem:[%s3 + $0x1c8] sm:$0xff]
          %v2629 = vld [vmem:[%s3 + $0x1d0] sm:$0xff]
          %v2630 = vld [vmem:[%s3 + $0x1d8] sm:$0xff]
          %v2631 = vld [vmem:[%s3 + $0x1e0] sm:$0xff]
          %v2632 = vld [vmem:[%s3 + $0x1e8] sm:$0xff]
          %v2633 = vld [vmem:[%s3 + $0x1f0] sm:$0xff]
          %v2634 = vld [vmem:[%s3 + $0x1f8] sm:$0xff]
          %v2635 = vld [vmem:[#allocation3] sm:$0x1]
          %v2637 = vperm.slane %v2635, 0
          %2640 = vst [vmem:[#allocation1] ss:$4 sm:$0xff] %v2570
          %v2641 = vld.sshfl [vmem:[#allocation1] sm:$0xff pattern:$0x73625140]
          %v2642 = vld.sshfl [vmem:[#allocation1 + $0x8] sm:$0xff pattern:$0x73625140]
          %v2643 = vld.sshfl [vmem:[#allocation1 + $0x10] sm:$0xff pattern:$0x73625140]
          %v2644 = vld.sshfl [vmem:[#allocation1 + $0x18] sm:$0xff pattern:$0x73625140]
          %2649 = vmatpush.msra.mxu0 %v2586
          %2650 = vmatpush.msra.mxu0 %v2585
          %2651 = vmatpush.msra.mxu0 %v2584
          %2652 = vmatpush.msra.mxu0 %v2583
          %2653 = vmatpush.msra.mxu0 %v2582
          %2654 = vmatpush.msra.mxu0 %v2581
          %2655 = vmatpush.msra.mxu0 %v2580
          %2656 = vmatpush.msra.mxu0 %v2579
          %2657 = vmatpush.msra.mxu0 %v2578
          %2658 = vmatpush.msra.mxu0 %v2577
          %2659 = vmatpush.msra.mxu0 %v2576
          %2660 = vmatpush.msra.mxu0 %v2575
          %2661 = vmatpush.msra.mxu0 %v2574
          %2662 = vmatpush.msra.mxu0 %v2573
          %2663 = vmatpush.msra.mxu0 %v2572
          %2664 = vmatpush.msra.mxu0 %v2571
          %2665 = vmatmul.f32.gmra.mxu0 %v2641
          %v2666 = vpop.f32.mrf.mxu0
          %v2667 = vadd.f32 %v2637, %v2666
          %2668 = vdwg.mxu0
          %2669 = vmatpush.msra.mxu0 %v2602
          %2670 = vmatpush.msra.mxu0 %v2601
          %2671 = vmatpush.msra.mxu0 %v2600
          %2672 = vmatpush.msra.mxu0 %v2599
          %2673 = vmatpush.msra.mxu0 %v2598
          %2674 = vmatpush.msra.mxu0 %v2597
          %2675 = vmatpush.msra.mxu0 %v2596
          %2676 = vmatpush.msra.mxu0 %v2595
          %2677 = vmatpush.msra.mxu0 %v2594
          %2678 = vmatpush.msra.mxu0 %v2593
          %2679 = vmatpush.msra.mxu0 %v2592
          %2680 = vmatpush.msra.mxu0 %v2591
          %2681 = vmatpush.msra.mxu0 %v2590
          %2682 = vmatpush.msra.mxu0 %v2589
          %2683 = vmatpush.msra.mxu0 %v2588
          %2684 = vmatpush.msra.mxu0 %v2587
          %2685 = vmatmul.f32.gmra.mxu0 %v2642
          %v2686 = vpop.f32.mrf.mxu0
          %v2687 = vadd.f32 %v2667, %v2686
          %2688 = vdwg.mxu0
          %2689 = vmatpush.msra.mxu0 %v2618
          %2690 = vmatpush.msra.mxu0 %v2617
          %2691 = vmatpush.msra.mxu0 %v2616
          %2692 = vmatpush.msra.mxu0 %v2615
          %2693 = vmatpush.msra.mxu0 %v2614
          %2694 = vmatpush.msra.mxu0 %v2613
          %2695 = vmatpush.msra.mxu0 %v2612
          %2696 = vmatpush.msra.mxu0 %v2611
          %2697 = vmatpush.msra.mxu0 %v2610
          %2698 = vmatpush.msra.mxu0 %v2609
          %2699 = vmatpush.msra.mxu0 %v2608
          %2700 = vmatpush.msra.mxu0 %v2607
          %2701 = vmatpush.msra.mxu0 %v2606
          %2702 = vmatpush.msra.mxu0 %v2605
          %2703 = vmatpush.msra.mxu0 %v2604
          %2704 = vmatpush.msra.mxu0 %v2603
          %2705 = vmatmul.f32.gmra.mxu0 %v2643
          %v2706 = vpop.f32.mrf.mxu0
          %v2707 = vadd.f32 %v2687, %v2706
          %2708 = vdwg.mxu0
          %2709 = vmatpush.msra.mxu0 %v2634
          %2710 = vmatpush.msra.mxu0 %v2633
          %2711 = vmatpush.msra.mxu0 %v2632
          %2712 = vmatpush.msra.mxu0 %v2631
          %2713 = vmatpush.msra.mxu0 %v2630
          %2714 = vmatpush.msra.mxu0 %v2629
          %2715 = vmatpush.msra.mxu0 %v2628
          %2716 = vmatpush.msra.mxu0 %v2627
          %2717 = vmatpush.msra.mxu0 %v2626
          %2718 = vmatpush.msra.mxu0 %v2625
          %2719 = vmatpush.msra.mxu0 %v2624
          %2720 = vmatpush.msra.mxu0 %v2623
          %2721 = vmatpush.msra.mxu0 %v2622
          %2722 = vmatpush.msra.mxu0 %v2621
          %2723 = vmatpush.msra.mxu0 %v2620
          %2724 = vmatpush.msra.mxu0 %v2619
          %2725 = vmatmul.f32.gmra.mxu0 %v2644
          %v2726 = vpop.f32.mrf.mxu0
          %v2727 = vadd.f32 %v2707, %v2726
          %2728 = vdwg.mxu0
          %v2729 = vsub.f32 0.0, %v2727
          %v2730 = vmul.f32 %v2729, 1.442695
          %v2731 = vpow.pop %v2730
          %v2732 = vadd.f32 %v2731, 1.0
          %v2733 = vrcp.pop %v2732
          %v2734 = vmul.f32 %v2732, %v2733
          %v2735 = vsub.f32 1.0, %v2734
          %v2736 = vmul.f32 %v2733, %v2735
          %v2737 = vadd.f32 %v2733, %v2736
          %vm2738 = vweird.f32 %v2732
          %vm2739 = vweird.f32 %v2733
          %vm2740 = vmor %vm2738, %vm2739
          %v2741 = vsel %vm2740, %v2733, %v2737
          %v2742 = vand.u32 2147483647, %v2732
          %vm2743 = vcmp.eq.f32.partialorder %v2742, 8.507059e+37
          %v2744 = vand.u32 %v2732, 2147483648
          %v2745 = vor.u32 1.1754944e-38, %v2744
          %v2746 = vsel %vm2743, %v2745, %v2741
          %v2747 = vmul.f32 1.0, %v2746
          %vm2748 = vcmask 1024
          %2749 = vst.msk [vmem:[%s308] sm:$0x3] %vm2748, %v2747
        $region56: #{chatgpt_forward.3} parent=39 // pred_fallthru
          _
        %p2750 = scmp.lt.s32.totalorder %s26, 0
        %s2751 = scalar_select %p2750, %s26, 0
        %s2752 = smul.addr %s2751, 2
        %s2753 = scalar_lea.vmem %s5, %s2752
        // Predicated region
        $region57: #{chatgpt_forward.3} parent=39 // pred_check
          %p2754 = pneg %p169
        $region58: #{chatgpt_forward.3} parent=39 // pred_check_branch
          %2756 = sbr.rel (%p2754) target = $region60
        $region59: #{chatgpt_forward.3} parent=39 // pred_region
          _
        $region60: #{chatgpt_forward.3} parent=39 // pred_fallthru
          _
        // Predicated region
        $region61: #{chatgpt_forward.3} parent=39 // pred_check
          %p2757 = pneg %p169
        $region62: #{chatgpt_forward.3} parent=39 // pred_check_branch
          %2759 = sbr.rel (%p2757) target = $region64
        $region63: #{chatgpt_forward.3} parent=39 // pred_region
          %p2760 = scmp.lt.s32.totalorder %s26, 0
          %s2761 = scalar_select %p2760, %s26, 0
          %s2762 = smul.addr %s2761, 2
          %s2763 = scalar_lea.vmem %s5, %s2762
        $region64: #{chatgpt_forward.3} parent=39 // pred_fallthru
          _
      $region40: #{chatgpt_forward.3} parent=5 // pred_fallthru
        _
      %p2764 = scmp.le.s32.totalorder 2, %s17
      // Predicated region
      $region65: #{chatgpt_forward.3} parent=5 // pred_check
        %p2765 = pneg %p2764
      $region66: #{chatgpt_forward.3} parent=5 // pred_check_branch
        %2767 = sbr.rel (%p2765) target = $region68
      $region67: #{chatgpt_forward.3} parent=5 // pred_region
        %s2768 = ssub.s32 %s17, 2
      $region68: #{chatgpt_forward.3} parent=5 // pred_fallthru
        _
    $region6: #{chatgpt_forward.3} parent=1 // loop_footer
      %s21 = sadd.s32 1, %s17
    $region7: #{chatgpt_forward.3} parent=1 // loop_footer_branch
      %16 = sbr.rel target = $region3
    $region8: #{chatgpt_forward.3} parent=1 // loop_exit
      _
    %2769 = vsyncpa [#allocation5], 1
    %s2770 = scalar_lea.sflag [#allocation5], 1
    %2771 = vsyncpa %s2770, 1
    %2772 = vsyncpa [#allocation7], 1

// kernel: chatgpt_forward.2
$region0: #{chatgpt_forward.2}
  #allocation0 [shape = 'u32[]', space=smem, size = 0x4, offset = 0x4, fixed_abs, tag = 'smem constant byte address 0x4 - core index']
  #allocation1 [shape = 'u32[72,128]{1,0:T(1,128)}', space=vmem, size = 0x9000, scoped, tag = 'internal scratch']
  #allocation2 [shape = 'f32[24,48,32]{2,1,0:T(8,128)}', space=vmem, size = 0x90000, scoped, tag = 'scratch operand']
  #allocation3 [shape = 'f32[26,26,32]{2,1,0:T(8,128)}', space=vmem, size = 0x68000, scoped, tag = 'scratch operand']
  #allocation4 [shape = 'f32[12,24,64]{2,1,0:T(8,128)}', space=vmem, size = 0x24000, scoped, tag = 'scratch operand']
  %s0 = inlined_call_operand.vmem [shape: f32[2,2304,9], index: 0, kind: input, shape index: {}]
  %s1 = inlined_call_operand.hbm [shape: f32[9,32], index: 1, kind: input, shape index: {}]
  %s2 = inlined_call_operand.hbm [shape: f32[1,32], index: 2, kind: input, shape index: {}]
  %s3 = inlined_call_operand.vmem [shape: f32[288,64], index: 3, kind: input, shape index: {}]
  %s4 = inlined_call_operand.hbm [shape: f32[1,64], index: 4, kind: input, shape index: {}]
  %s5 = inlined_call_operand.vmem [shape: bf16[2,12,12,64], index: 5, kind: output, shape index: {}]
  %s6 = sld [smem:[#allocation0]]
  $region65: #{chatgpt_forward.2} parent=0
    _
  %s8 = ssub.s32 1, %s6
  %s9 = scalar_select 0, %s8, %s6
  $region1: #{chatgpt_forward.2} parent=0
    #allocation5 [shape = 'u8[8192]{0}', space=vmem, size = 0x2000, scoped, tag = 'input window, operand 1, single buffered']
    #allocation6 [shape = 's32[2]{0}', space=sflag, size = 0x8, scoped, tag = 'scoped memory for chatgpt_forward.2']
    #allocation7 [shape = 'u8[512]{0}', space=vmem, size = 0x400, scoped, tag = 'input window, operand 2, single buffered']
    #allocation8 [shape = 's32[1]{0}', space=sflag, size = 0x4, scoped, tag = 'scoped memory for chatgpt_forward.2']
    #allocation9 [shape = 'u8[512]{0}', space=vmem, size = 0x400, scoped, tag = 'input window, operand 4, single buffered']
    %10 = vsyncpa [#allocation6], 0
    %11 = vsyncpa [#allocation8], 0
    loop: start=0, step=1, limit=4
    $region2: #{chatgpt_forward.2} parent=1 // loop_pre_header
      _
    $region3: #{chatgpt_forward.2} parent=1 // loop_header
      %s13 = sphi 0, %s17
      %p14 = scmp.ge.s32.totalorder %s13, 4
      %s23 = sphi 0, %s25
      %s26 = sphi 0, %s23
      %s27 = sphi 0, %s26
      %s43 = sphi 0, %s27
      %s47 = sphi 0, %s47
      %s49 = sphi 0, %s47
      %s50 = sphi 0, %s49
      %s64 = sphi 0, %s50
      %s68 = sphi 0, %s68
      %s70 = sphi 0, %s68
      %s71 = sphi 0, %s70
      %s85 = sphi 0, %s71
      %s89 = sphi 0, %s89
      %s91 = sphi 0, %s89
      %s92 = sphi 0, %s91
      %s106 = sphi 0, %s92
      %s110 = sphi 0, %s110
      %s112 = sphi 0, %s110
      %s113 = sphi 0, %s112
      %s127 = sphi 0, %s113
      %s133 = sphi 0, %s135
      %s136 = sphi 0, %s133
      %s137 = sphi 0, %s136
      %s153 = sphi 0, %s137
    $region4: #{chatgpt_forward.2} parent=1 // loop_header_branch
      %16 = sbr.rel (%p14) target = $region8
    $region5: #{chatgpt_forward.2} parent=1 // loop_body
      %s18 = ssub.s32 %s13, 1
      %s19 = ssub.s32 %s13, 2
      %s20 = sadd.s32 %s13, 1
      %s21 = ssub.s32 %s13, %s20
      %p22 = scmp.eq.s32.totalorder %s21, 0
      %s24 = sadd.s32 %s23, 1
      %s25 = scalar_select %p22, %s23, %s24
      %p28 = pneg %p22
      %p29 = scmp.eq.s32.totalorder %s13, 1
      %p30 = por %p28, %p29
      %p31 = scmp.ne.s32.totalorder %s23, %s26
      %p32 = scmp.eq.s32.totalorder %s13, 0
      %p33 = por %p31, %p32
      %p34 = scmp.ne.s32.totalorder %s23, %s26
      %p35 = scmp.eq.s32.totalorder %s18, 1
      %p36 = por %p34, %p35
      %p37 = scmp.ne.s32.totalorder %s26, %s27
      %p38 = scmp.eq.s32.totalorder %s18, 0
      %p39 = por %p37, %p38
      %p40 = scmp.ne.s32.totalorder %s26, %s27
      %p41 = scmp.eq.s32.totalorder %s19, 1
      %p42 = por %p40, %p41
      %p44 = scmp.ne.s32.totalorder %s27, %s43
      %p45 = scmp.eq.s32.totalorder %s19, 0
      %p46 = por %p44, %p45
      %s48 = sadd.s32 %s47, 1
      %p51 = scmp.eq.s32.totalorder %s13, 1
      %p52 = scmp.ne.s32.totalorder %s47, %s49
      %p53 = scmp.eq.s32.totalorder %s13, 0
      %p54 = por %p52, %p53
      %p55 = scmp.ne.s32.totalorder %s47, %s49
      %p56 = scmp.eq.s32.totalorder %s18, 1
      %p57 = por %p55, %p56
      %p58 = scmp.ne.s32.totalorder %s49, %s50
      %p59 = scmp.eq.s32.totalorder %s18, 0
      %p60 = por %p58, %p59
      %p61 = scmp.ne.s32.totalorder %s49, %s50
      %p62 = scmp.eq.s32.totalorder %s19, 1
      %p63 = por %p61, %p62
      %p65 = scmp.ne.s32.totalorder %s50, %s64
      %p66 = scmp.eq.s32.totalorder %s19, 0
      %p67 = por %p65, %p66
      %s69 = sadd.s32 %s68, 1
      %p72 = scmp.eq.s32.totalorder %s13, 1
      %p73 = scmp.ne.s32.totalorder %s68, %s70
      %p74 = scmp.eq.s32.totalorder %s13, 0
      %p75 = por %p73, %p74
      %p76 = scmp.ne.s32.totalorder %s68, %s70
      %p77 = scmp.eq.s32.totalorder %s18, 1
      %p78 = por %p76, %p77
      %p79 = scmp.ne.s32.totalorder %s70, %s71
      %p80 = scmp.eq.s32.totalorder %s18, 0
      %p81 = por %p79, %p80
      %p82 = scmp.ne.s32.totalorder %s70, %s71
      %p83 = scmp.eq.s32.totalorder %s19, 1
      %p84 = por %p82, %p83
      %p86 = scmp.ne.s32.totalorder %s71, %s85
      %p87 = scmp.eq.s32.totalorder %s19, 0
      %p88 = por %p86, %p87
      %s90 = sadd.s32 %s89, 1
      %p93 = scmp.eq.s32.totalorder %s13, 1
      %p94 = scmp.ne.s32.totalorder %s89, %s91
      %p95 = scmp.eq.s32.totalorder %s13, 0
      %p96 = por %p94, %p95
      %p97 = scmp.ne.s32.totalorder %s89, %s91
      %p98 = scmp.eq.s32.totalorder %s18, 1
      %p99 = por %p97, %p98
      %p100 = scmp.ne.s32.totalorder %s91, %s92
      %p101 = scmp.eq.s32.totalorder %s18, 0
      %p102 = por %p100, %p101
      %p103 = scmp.ne.s32.totalorder %s91, %s92
      %p104 = scmp.eq.s32.totalorder %s19, 1
      %p105 = por %p103, %p104
      %p107 = scmp.ne.s32.totalorder %s92, %s106
      %p108 = scmp.eq.s32.totalorder %s19, 0
      %p109 = por %p107, %p108
      %s111 = sadd.s32 %s110, 1
      %p114 = scmp.eq.s32.totalorder %s13, 1
      %p115 = scmp.ne.s32.totalorder %s110, %s112
      %p116 = scmp.eq.s32.totalorder %s13, 0
      %p117 = por %p115, %p116
      %p118 = scmp.ne.s32.totalorder %s110, %s112
      %p119 = scmp.eq.s32.totalorder %s18, 1
      %p120 = por %p118, %p119
      %p121 = scmp.ne.s32.totalorder %s112, %s113
      %p122 = scmp.eq.s32.totalorder %s18, 0
      %p123 = por %p121, %p122
      %p124 = scmp.ne.s32.totalorder %s112, %s113
      %p125 = scmp.eq.s32.totalorder %s19, 1
      %p126 = por %p124, %p125
      %p128 = scmp.ne.s32.totalorder %s113, %s127
      %p129 = scmp.eq.s32.totalorder %s19, 0
      %p130 = por %p128, %p129
      %s131 = ssub.s32 %s13, %s20
      %p132 = scmp.eq.s32.totalorder %s131, 0
      %s134 = sadd.s32 %s133, 1
      %s135 = scalar_select %p132, %s133, %s134
      %p138 = pneg %p132
      %p139 = scmp.eq.s32.totalorder %s13, 1
      %p140 = por %p138, %p139
      %p141 = scmp.ne.s32.totalorder %s133, %s136
      %p142 = scmp.eq.s32.totalorder %s13, 0
      %p143 = por %p141, %p142
      %p144 = scmp.ne.s32.totalorder %s133, %s136
      %p145 = scmp.eq.s32.totalorder %s18, 1
      %p146 = por %p144, %p145
      %p147 = scmp.ne.s32.totalorder %s136, %s137
      %p148 = scmp.eq.s32.totalorder %s18, 0
      %p149 = por %p147, %p148
      %p150 = scmp.ne.s32.totalorder %s136, %s137
      %p151 = scmp.eq.s32.totalorder %s19, 1
      %p152 = por %p150, %p151
      %p154 = scmp.ne.s32.totalorder %s137, %s153
      %p155 = scmp.eq.s32.totalorder %s19, 0
      %p156 = por %p154, %p155
      %p157 = scmp.le.s32.totalorder 1, %s13
      %p158 = scmp.lt.s32.totalorder %s13, 3
      %p159 = pnand %p157, %p158
      %p160 = pneg %p159
      // Predicated region
      $region9: #{chatgpt_forward.2} parent=5 // pred_check
        _
      $region10: #{chatgpt_forward.2} parent=5 // pred_check_branch
        %162 = sbr.rel (%p159) target = $region12
      $region11: #{chatgpt_forward.2} parent=5 // pred_region
        %s163 = ssub.s32 %s13, 1
        // Predicated region
        $region13: #{chatgpt_forward.2} parent=11 // pred_check
          %p164 = pneg %p60
        $region14: #{chatgpt_forward.2} parent=11 // pred_check_branch
          %166 = sbr.rel (%p164) target = $region16
        $region15: #{chatgpt_forward.2} parent=11 // pred_region
          %168 = vsyncadd [#allocation6], 0
          %s169 = sshll.u32 %s1, 4
          %s170 = int_to_ptr.hbm [resolvable:$true] %s169
          %s171 = sshll.u32 [#allocation5], 4
          %s172 = int_to_ptr.vmem [resolvable:$true] %s171
          %177 = dma.hbm_to_vmem [thread:$0]  %s170, 256, %s172, [#allocation6], 128, 128, 8
        $region16: #{chatgpt_forward.2} parent=11 // pred_fallthru
          _
        // Predicated region
        $region17: #{chatgpt_forward.2} parent=11 // pred_check
          %p178 = pneg %p81
        $region18: #{chatgpt_forward.2} parent=11 // pred_check_branch
          %180 = sbr.rel (%p178) target = $region20
        $region19: #{chatgpt_forward.2} parent=11 // pred_region
          %182 = vsyncadd [#allocation8], 0
          %s184 = sshll.u32 %s2, 4
          %s185 = int_to_ptr.hbm [resolvable:$true] %s184
          %s186 = sshll.u32 [#allocation7], 4
          %s187 = int_to_ptr.vmem [resolvable:$true] %s186
          %189 = dma.hbm_to_vmem [thread:$0]  %s185, 16, %s187, [#allocation8]
        $region20: #{chatgpt_forward.2} parent=11 // pred_fallthru
          _
        // Predicated region
        $region21: #{chatgpt_forward.2} parent=11 // pred_check
          %p190 = pneg %p102
        $region22: #{chatgpt_forward.2} parent=11 // pred_check_branch
          %192 = sbr.rel (%p190) target = $region24
        $region23: #{chatgpt_forward.2} parent=11 // pred_region
          _
        $region24: #{chatgpt_forward.2} parent=11 // pred_fallthru
          _
        // Predicated region
        $region25: #{chatgpt_forward.2} parent=11 // pred_check
          %p193 = pneg %p123
        $region26: #{chatgpt_forward.2} parent=11 // pred_check_branch
          %195 = sbr.rel (%p193) target = $region28
        $region27: #{chatgpt_forward.2} parent=11 // pred_region
          %197 = vsyncadd [#allocation8], 0
          %s199 = sshll.u32 %s4, 4
          %s200 = int_to_ptr.hbm [resolvable:$true] %s199
          %s201 = sshll.u32 [#allocation9], 4
          %s202 = int_to_ptr.vmem [resolvable:$true] %s201
          %204 = dma.hbm_to_vmem [thread:$0]  %s200, 16, %s202, [#allocation8]
        $region28: #{chatgpt_forward.2} parent=11 // pred_fallthru
          _
      $region12: #{chatgpt_forward.2} parent=5 // pred_fallthru
        _
      %p205 = scmp.lt.s32.totalorder %s13, 2
      // Predicated region
      $region29: #{chatgpt_forward.2} parent=5 // pred_check
        %p206 = pneg %p205
      $region30: #{chatgpt_forward.2} parent=5 // pred_check_branch
        %208 = sbr.rel (%p206) target = $region32
      $region31: #{chatgpt_forward.2} parent=5 // pred_region
        // Predicated region
        $region33: #{chatgpt_forward.2} parent=31 // pred_check
          %p209 = pneg %p33
        $region34: #{chatgpt_forward.2} parent=31 // pred_check_branch
          %211 = sbr.rel (%p209) target = $region36
        $region35: #{chatgpt_forward.2} parent=31 // pred_region
          %p212 = scmp.lt.s32.totalorder %s13, 1
          %s213 = scalar_select %p212, %s13, 1
          %s214 = smul.addr %s213, 288
          %s215 = smul.addr %s214, 8
          %s216 = scalar_lea.vmem %s0, %s215
        $region36: #{chatgpt_forward.2} parent=31 // pred_fallthru
          _
      $region32: #{chatgpt_forward.2} parent=5 // pred_fallthru
        _
      %p217 = scmp.le.s32.totalorder 1, %s13
      %p218 = scmp.lt.s32.totalorder %s13, 3
      %p219 = pnand %p217, %p218
      %p220 = pneg %p219
      // Predicated region
      $region37: #{chatgpt_forward.2} parent=5 // pred_check
        _
      $region38: #{chatgpt_forward.2} parent=5 // pred_check_branch
        %222 = sbr.rel (%p219) target = $region40
      $region39: #{chatgpt_forward.2} parent=5 // pred_region
        %s223 = ssub.s32 %s13, 1
        // Predicated region
        $region41: #{chatgpt_forward.2} parent=39 // pred_check
          %p224 = pneg %p60
        $region42: #{chatgpt_forward.2} parent=39 // pred_check_branch
          %226 = sbr.rel (%p224) target = $region44
        $region43: #{chatgpt_forward.2} parent=39 // pred_region
          %228 = dma.done [#allocation6], 256
        $region44: #{chatgpt_forward.2} parent=39 // pred_fallthru
          _
        // Predicated region
        $region45: #{chatgpt_forward.2} parent=39 // pred_check
          %p229 = pneg %p81
        $region46: #{chatgpt_forward.2} parent=39 // pred_check_branch
          %231 = sbr.rel (%p229) target = $region48
        $region47: #{chatgpt_forward.2} parent=39 // pred_region
          %233 = dma.done [#allocation8], 16
        $region48: #{chatgpt_forward.2} parent=39 // pred_fallthru
          _
        // Predicated region
        $region49: #{chatgpt_forward.2} parent=39 // pred_check
          %p234 = pneg %p123
        $region50: #{chatgpt_forward.2} parent=39 // pred_check_branch
          %236 = sbr.rel (%p234) target = $region52
        $region51: #{chatgpt_forward.2} parent=39 // pred_region
          %238 = dma.done [#allocation8], 16
        $region52: #{chatgpt_forward.2} parent=39 // pred_fallthru
          _
        %p239 = scmp.lt.s32.totalorder %s18, 1
        %s240 = scalar_select %p239, %s18, 1
        %s241 = smul.addr %s240, 288
        %s242 = smul.addr %s241, 8
        %s243 = scalar_lea.vmem %s0, %s242
        %p244 = pneg %p39
        %p245 = pneg %p36
        %p246 = pneg %p60
        %p247 = pneg %p57
        %p248 = pneg %p81
        %p249 = pneg %p78
        %p250 = pneg %p102
        %p251 = pneg %p99
        %p252 = pneg %p123
        %p253 = pneg %p120
        %p254 = pneg %p149
        %p255 = pneg %p146
        %p256 = scmp.lt.s32.totalorder %s18, 1
        %s257 = scalar_select %p256, %s18, 1
        %s258 = smul.addr %s257, 24
        %s259 = smul.addr %s258, 4
        %s260 = scalar_lea.vmem %s5, %s259
        %p261 = scmp.lt.s32.totalorder %s18, 1
        %s262 = scalar_select %p261, %s18, 1
        %s263 = smul.addr %s262, 288
        %s264 = smul.addr %s263, 8
        %s265 = scalar_lea.vmem %s0, %s264
        %p266 = scmp.lt.s32.totalorder %s18, 1
        %s267 = scalar_select %p266, %s18, 1
        %s268 = smul.addr %s267, 24
        %s269 = smul.addr %s268, 4
        %s270 = scalar_lea.vmem %s5, %s269
        %v271 = vld [vmem:[%s265] sm:$0xff]
        %v272 = vld [vmem:[%s265 + $0x8] sm:$0xff]
        %v273 = vld [vmem:[%s265 + $0x10] sm:$0xff]
        %v274 = vld [vmem:[%s265 + $0x18] sm:$0xff]
        %v275 = vld [vmem:[%s265 + $0x20] sm:$0xff]
        %v276 = vld [vmem:[%s265 + $0x28] sm:$0xff]
        %v277 = vld [vmem:[%s265 + $0x30] sm:$0xff]
        %v278 = vld [vmem:[%s265 + $0x38] sm:$0xff]
        %v279 = vld [vmem:[%s265 + $0x40] sm:$0xff]
        %v280 = vld [vmem:[%s265 + $0x48] sm:$0xff]
        %v281 = vld [vmem:[%s265 + $0x50] sm:$0xff]
        %v282 = vld [vmem:[%s265 + $0x58] sm:$0xff]
        %v283 = vld [vmem:[%s265 + $0x60] sm:$0xff]
        %v284 = vld [vmem:[%s265 + $0x68] sm:$0xff]
        %v285 = vld [vmem:[%s265 + $0x70] sm:$0xff]
        %v286 = vld [vmem:[%s265 + $0x78] sm:$0xff]
        %v287 = vld [vmem:[%s265 + $0x80] sm:$0xff]
        %v288 = vld [vmem:[%s265 + $0x88] sm:$0xff]
        %v289 = vld [vmem:[%s265 + $0x90] sm:$0xff]
        %v290 = vld [vmem:[%s265 + $0x98] sm:$0xff]
        %v291 = vld [vmem:[%s265 + $0xa0] sm:$0xff]
        %v292 = vld [vmem:[%s265 + $0xa8] sm:$0xff]
        %v293 = vld [vmem:[%s265 + $0xb0] sm:$0xff]
        %v294 = vld [vmem:[%s265 + $0xb8] sm:$0xff]
        %v295 = vld [vmem:[%s265 + $0xc0] sm:$0xff]
        %v296 = vld [vmem:[%s265 + $0xc8] sm:$0xff]
        %v297 = vld [vmem:[%s265 + $0xd0] sm:$0xff]
        %v298 = vld [vmem:[%s265 + $0xd8] sm:$0xff]
        %v299 = vld [vmem:[%s265 + $0xe0] sm:$0xff]
        %v300 = vld [vmem:[%s265 + $0xe8] sm:$0xff]
        %v301 = vld [vmem:[%s265 + $0xf0] sm:$0xff]
        %v302 = vld [vmem:[%s265 + $0xf8] sm:$0xff]
        %v303 = vld [vmem:[%s265 + $0x100] sm:$0xff]
        %v304 = vld [vmem:[%s265 + $0x108] sm:$0xff]
        %v305 = vld [vmem:[%s265 + $0x110] sm:$0xff]
        %v306 = vld [vmem:[%s265 + $0x118] sm:$0xff]
        %v307 = vld [vmem:[%s265 + $0x120] sm:$0xff]
        %v308 = vld [vmem:[%s265 + $0x128] sm:$0xff]
        %v309 = vld [vmem:[%s265 + $0x130] sm:$0xff]
        %v310 = vld [vmem:[%s265 + $0x138] sm:$0xff]
        %v311 = vld [vmem:[%s265 + $0x140] sm:$0xff]
        %v312 = vld [vmem:[%s265 + $0x148] sm:$0xff]
        %v313 = vld [vmem:[%s265 + $0x150] sm:$0xff]
        %v314 = vld [vmem:[%s265 + $0x158] sm:$0xff]
        %v315 = vld [vmem:[%s265 + $0x160] sm:$0xff]
        %v316 = vld [vmem:[%s265 + $0x168] sm:$0xff]
        %v317 = vld [vmem:[%s265 + $0x170] sm:$0xff]
        %v318 = vld [vmem:[%s265 + $0x178] sm:$0xff]
        %v319 = vld [vmem:[%s265 + $0x180] sm:$0xff]
        %v320 = vld [vmem:[%s265 + $0x188] sm:$0xff]
        %v321 = vld [vmem:[%s265 + $0x190] sm:$0xff]
        %v322 = vld [vmem:[%s265 + $0x198] sm:$0xff]
        %v323 = vld [vmem:[%s265 + $0x1a0] sm:$0xff]
        %v324 = vld [vmem:[%s265 + $0x1a8] sm:$0xff]
        %v325 = vld [vmem:[%s265 + $0x1b0] sm:$0xff]
        %v326 = vld [vmem:[%s265 + $0x1b8] sm:$0xff]
        %v327 = vld [vmem:[%s265 + $0x1c0] sm:$0xff]
        %v328 = vld [vmem:[%s265 + $0x1c8] sm:$0xff]
        %v329 = vld [vmem:[%s265 + $0x1d0] sm:$0xff]
        %v330 = vld [vmem:[%s265 + $0x1d8] sm:$0xff]
        %v331 = vld [vmem:[%s265 + $0x1e0] sm:$0xff]
        %v332 = vld [vmem:[%s265 + $0x1e8] sm:$0xff]
        %v333 = vld [vmem:[%s265 + $0x1f0] sm:$0xff]
        %v334 = vld [vmem:[%s265 + $0x1f8] sm:$0xff]
        %v335 = vld [vmem:[%s265 + $0x200] sm:$0xff]
        %v336 = vld [vmem:[%s265 + $0x208] sm:$0xff]
        %v337 = vld [vmem:[%s265 + $0x210] sm:$0xff]
        %v338 = vld [vmem:[%s265 + $0x218] sm:$0xff]
        %v339 = vld [vmem:[%s265 + $0x220] sm:$0xff]
        %v340 = vld [vmem:[%s265 + $0x228] sm:$0xff]
        %v341 = vld [vmem:[%s265 + $0x230] sm:$0xff]
        %v342 = vld [vmem:[%s265 + $0x238] sm:$0xff]
        %v343 = vld [vmem:[%s265 + $0x240] sm:$0xff]
        %v344 = vld [vmem:[%s265 + $0x248] sm:$0xff]
        %v345 = vld [vmem:[%s265 + $0x250] sm:$0xff]
        %v346 = vld [vmem:[%s265 + $0x258] sm:$0xff]
        %v347 = vld [vmem:[%s265 + $0x260] sm:$0xff]
        %v348 = vld [vmem:[%s265 + $0x268] sm:$0xff]
        %v349 = vld [vmem:[%s265 + $0x270] sm:$0xff]
        %v350 = vld [vmem:[%s265 + $0x278] sm:$0xff]
        %v351 = vld [vmem:[%s265 + $0x280] sm:$0xff]
        %v352 = vld [vmem:[%s265 + $0x288] sm:$0xff]
        %v353 = vld [vmem:[%s265 + $0x290] sm:$0xff]
        %v354 = vld [vmem:[%s265 + $0x298] sm:$0xff]
        %v355 = vld [vmem:[%s265 + $0x2a0] sm:$0xff]
        %v356 = vld [vmem:[%s265 + $0x2a8] sm:$0xff]
        %v357 = vld [vmem:[%s265 + $0x2b0] sm:$0xff]
        %v358 = vld [vmem:[%s265 + $0x2b8] sm:$0xff]
        %v359 = vld [vmem:[%s265 + $0x2c0] sm:$0xff]
        %v360 = vld [vmem:[%s265 + $0x2c8] sm:$0xff]
        %v361 = vld [vmem:[%s265 + $0x2d0] sm:$0xff]
        %v362 = vld [vmem:[%s265 + $0x2d8] sm:$0xff]
        %v363 = vld [vmem:[%s265 + $0x2e0] sm:$0xff]
        %v364 = vld [vmem:[%s265 + $0x2e8] sm:$0xff]
        %v365 = vld [vmem:[%s265 + $0x2f0] sm:$0xff]
        %v366 = vld [vmem:[%s265 + $0x2f8] sm:$0xff]
        %v367 = vld [vmem:[%s265 + $0x300] sm:$0xff]
        %v368 = vld [vmem:[%s265 + $0x308] sm:$0xff]
        %v369 = vld [vmem:[%s265 + $0x310] sm:$0xff]
        %v370 = vld [vmem:[%s265 + $0x318] sm:$0xff]
        %v371 = vld [vmem:[%s265 + $0x320] sm:$0xff]
        %v372 = vld [vmem:[%s265 + $0x328] sm:$0xff]
        %v373 = vld [vmem:[%s265 + $0x330] sm:$0xff]
        %v374 = vld [vmem:[%s265 + $0x338] sm:$0xff]
        %v375 = vld [vmem:[%s265 + $0x340] sm:$0xff]
        %v376 = vld [vmem:[%s265 + $0x348] sm:$0xff]
        %v377 = vld [vmem:[%s265 + $0x350] sm:$0xff]
        %v378 = vld [vmem:[%s265 + $0x358] sm:$0xff]
        %v379 = vld [vmem:[%s265 + $0x360] sm:$0xff]
        %v380 = vld [vmem:[%s265 + $0x368] sm:$0xff]
        %v381 = vld [vmem:[%s265 + $0x370] sm:$0xff]
        %v382 = vld [vmem:[%s265 + $0x378] sm:$0xff]
        %v383 = vld [vmem:[%s265 + $0x380] sm:$0xff]
        %v384 = vld [vmem:[%s265 + $0x388] sm:$0xff]
        %v385 = vld [vmem:[%s265 + $0x390] sm:$0xff]
        %v386 = vld [vmem:[%s265 + $0x398] sm:$0xff]
        %v387 = vld [vmem:[%s265 + $0x3a0] sm:$0xff]
        %v388 = vld [vmem:[%s265 + $0x3a8] sm:$0xff]
        %v389 = vld [vmem:[%s265 + $0x3b0] sm:$0xff]
        %v390 = vld [vmem:[%s265 + $0x3b8] sm:$0xff]
        %v391 = vld [vmem:[%s265 + $0x3c0] sm:$0xff]
        %v392 = vld [vmem:[%s265 + $0x3c8] sm:$0xff]
        %v393 = vld [vmem:[%s265 + $0x3d0] sm:$0xff]
        %v394 = vld [vmem:[%s265 + $0x3d8] sm:$0xff]
        %v395 = vld [vmem:[%s265 + $0x3e0] sm:$0xff]
        %v396 = vld [vmem:[%s265 + $0x3e8] sm:$0xff]
        %v397 = vld [vmem:[%s265 + $0x3f0] sm:$0xff]
        %v398 = vld [vmem:[%s265 + $0x3f8] sm:$0xff]
        %v399 = vld [vmem:[%s265 + $0x400] sm:$0xff]
        %v400 = vld [vmem:[%s265 + $0x408] sm:$0xff]
        %v401 = vld [vmem:[%s265 + $0x410] sm:$0xff]
        %v402 = vld [vmem:[%s265 + $0x418] sm:$0xff]
        %v403 = vld [vmem:[%s265 + $0x420] sm:$0xff]
        %v404 = vld [vmem:[%s265 + $0x428] sm:$0xff]
        %v405 = vld [vmem:[%s265 + $0x430] sm:$0xff]
        %v406 = vld [vmem:[%s265 + $0x438] sm:$0xff]
        %v407 = vld [vmem:[%s265 + $0x440] sm:$0xff]
        %v408 = vld [vmem:[%s265 + $0x448] sm:$0xff]
        %v409 = vld [vmem:[%s265 + $0x450] sm:$0xff]
        %v410 = vld [vmem:[%s265 + $0x458] sm:$0xff]
        %v411 = vld [vmem:[%s265 + $0x460] sm:$0xff]
        %v412 = vld [vmem:[%s265 + $0x468] sm:$0xff]
        %v413 = vld [vmem:[%s265 + $0x470] sm:$0xff]
        %v414 = vld [vmem:[%s265 + $0x478] sm:$0xff]
        %v415 = vld [vmem:[%s265 + $0x480] sm:$0xff]
        %v416 = vld [vmem:[%s265 + $0x488] sm:$0xff]
        %v417 = vld [vmem:[%s265 + $0x490] sm:$0xff]
        %v418 = vld [vmem:[%s265 + $0x498] sm:$0xff]
        %v419 = vld [vmem:[%s265 + $0x4a0] sm:$0xff]
        %v420 = vld [vmem:[%s265 + $0x4a8] sm:$0xff]
        %v421 = vld [vmem:[%s265 + $0x4b0] sm:$0xff]
        %v422 = vld [vmem:[%s265 + $0x4b8] sm:$0xff]
        %v423 = vld [vmem:[%s265 + $0x4c0] sm:$0xff]
        %v424 = vld [vmem:[%s265 + $0x4c8] sm:$0xff]
        %v425 = vld [vmem:[%s265 + $0x4d0] sm:$0xff]
        %v426 = vld [vmem:[%s265 + $0x4d8] sm:$0xff]
        %v427 = vld [vmem:[%s265 + $0x4e0] sm:$0xff]
        %v428 = vld [vmem:[%s265 + $0x4e8] sm:$0xff]
        %v429 = vld [vmem:[%s265 + $0x4f0] sm:$0xff]
        %v430 = vld [vmem:[%s265 + $0x4f8] sm:$0xff]
        %v431 = vld [vmem:[%s265 + $0x500] sm:$0xff]
        %v432 = vld [vmem:[%s265 + $0x508] sm:$0xff]
        %v433 = vld [vmem:[%s265 + $0x510] sm:$0xff]
        %v434 = vld [vmem:[%s265 + $0x518] sm:$0xff]
        %v435 = vld [vmem:[%s265 + $0x520] sm:$0xff]
        %v436 = vld [vmem:[%s265 + $0x528] sm:$0xff]
        %v437 = vld [vmem:[%s265 + $0x530] sm:$0xff]
        %v438 = vld [vmem:[%s265 + $0x538] sm:$0xff]
        %v439 = vld [vmem:[%s265 + $0x540] sm:$0xff]
        %v440 = vld [vmem:[%s265 + $0x548] sm:$0xff]
        %v441 = vld [vmem:[%s265 + $0x550] sm:$0xff]
        %v442 = vld [vmem:[%s265 + $0x558] sm:$0xff]
        %v443 = vld [vmem:[%s265 + $0x560] sm:$0xff]
        %v444 = vld [vmem:[%s265 + $0x568] sm:$0xff]
        %v445 = vld [vmem:[%s265 + $0x570] sm:$0xff]
        %v446 = vld [vmem:[%s265 + $0x578] sm:$0xff]
        %v447 = vld [vmem:[%s265 + $0x580] sm:$0xff]
        %v448 = vld [vmem:[%s265 + $0x588] sm:$0xff]
        %v449 = vld [vmem:[%s265 + $0x590] sm:$0xff]
        %v450 = vld [vmem:[%s265 + $0x598] sm:$0xff]
        %v451 = vld [vmem:[%s265 + $0x5a0] sm:$0xff]
        %v452 = vld [vmem:[%s265 + $0x5a8] sm:$0xff]
        %v453 = vld [vmem:[%s265 + $0x5b0] sm:$0xff]
        %v454 = vld [vmem:[%s265 + $0x5b8] sm:$0xff]
        %v455 = vld [vmem:[%s265 + $0x5c0] sm:$0xff]
        %v456 = vld [vmem:[%s265 + $0x5c8] sm:$0xff]
        %v457 = vld [vmem:[%s265 + $0x5d0] sm:$0xff]
        %v458 = vld [vmem:[%s265 + $0x5d8] sm:$0xff]
        %v459 = vld [vmem:[%s265 + $0x5e0] sm:$0xff]
        %v460 = vld [vmem:[%s265 + $0x5e8] sm:$0xff]
        %v461 = vld [vmem:[%s265 + $0x5f0] sm:$0xff]
        %v462 = vld [vmem:[%s265 + $0x5f8] sm:$0xff]
        %v463 = vld [vmem:[%s265 + $0x600] sm:$0xff]
        %v464 = vld [vmem:[%s265 + $0x608] sm:$0xff]
        %v465 = vld [vmem:[%s265 + $0x610] sm:$0xff]
        %v466 = vld [vmem:[%s265 + $0x618] sm:$0xff]
        %v467 = vld [vmem:[%s265 + $0x620] sm:$0xff]
        %v468 = vld [vmem:[%s265 + $0x628] sm:$0xff]
        %v469 = vld [vmem:[%s265 + $0x630] sm:$0xff]
        %v470 = vld [vmem:[%s265 + $0x638] sm:$0xff]
        %v471 = vld [vmem:[%s265 + $0x640] sm:$0xff]
        %v472 = vld [vmem:[%s265 + $0x648] sm:$0xff]
        %v473 = vld [vmem:[%s265 + $0x650] sm:$0xff]
        %v474 = vld [vmem:[%s265 + $0x658] sm:$0xff]
        %v475 = vld [vmem:[%s265 + $0x660] sm:$0xff]
        %v476 = vld [vmem:[%s265 + $0x668] sm:$0xff]
        %v477 = vld [vmem:[%s265 + $0x670] sm:$0xff]
        %v478 = vld [vmem:[%s265 + $0x678] sm:$0xff]
        %v479 = vld [vmem:[%s265 + $0x680] sm:$0xff]
        %v480 = vld [vmem:[%s265 + $0x688] sm:$0xff]
        %v481 = vld [vmem:[%s265 + $0x690] sm:$0xff]
        %v482 = vld [vmem:[%s265 + $0x698] sm:$0xff]
        %v483 = vld [vmem:[%s265 + $0x6a0] sm:$0xff]
        %v484 = vld [vmem:[%s265 + $0x6a8] sm:$0xff]
        %v485 = vld [vmem:[%s265 + $0x6b0] sm:$0xff]
        %v486 = vld [vmem:[%s265 + $0x6b8] sm:$0xff]
        %v487 = vld [vmem:[%s265 + $0x6c0] sm:$0xff]
        %v488 = vld [vmem:[%s265 + $0x6c8] sm:$0xff]
        %v489 = vld [vmem:[%s265 + $0x6d0] sm:$0xff]
        %v490 = vld [vmem:[%s265 + $0x6d8] sm:$0xff]
        %v491 = vld [vmem:[%s265 + $0x6e0] sm:$0xff]
        %v492 = vld [vmem:[%s265 + $0x6e8] sm:$0xff]
        %v493 = vld [vmem:[%s265 + $0x6f0] sm:$0xff]
        %v494 = vld [vmem:[%s265 + $0x6f8] sm:$0xff]
        %v495 = vld [vmem:[%s265 + $0x700] sm:$0xff]
        %v496 = vld [vmem:[%s265 + $0x708] sm:$0xff]
        %v497 = vld [vmem:[%s265 + $0x710] sm:$0xff]
        %v498 = vld [vmem:[%s265 + $0x718] sm:$0xff]
        %v499 = vld [vmem:[%s265 + $0x720] sm:$0xff]
        %v500 = vld [vmem:[%s265 + $0x728] sm:$0xff]
        %v501 = vld [vmem:[%s265 + $0x730] sm:$0xff]
        %v502 = vld [vmem:[%s265 + $0x738] sm:$0xff]
        %v503 = vld [vmem:[%s265 + $0x740] sm:$0xff]
        %v504 = vld [vmem:[%s265 + $0x748] sm:$0xff]
        %v505 = vld [vmem:[%s265 + $0x750] sm:$0xff]
        %v506 = vld [vmem:[%s265 + $0x758] sm:$0xff]
        %v507 = vld [vmem:[%s265 + $0x760] sm:$0xff]
        %v508 = vld [vmem:[%s265 + $0x768] sm:$0xff]
        %v509 = vld [vmem:[%s265 + $0x770] sm:$0xff]
        %v510 = vld [vmem:[%s265 + $0x778] sm:$0xff]
        %v511 = vld [vmem:[%s265 + $0x780] sm:$0xff]
        %v512 = vld [vmem:[%s265 + $0x788] sm:$0xff]
        %v513 = vld [vmem:[%s265 + $0x790] sm:$0xff]
        %v514 = vld [vmem:[%s265 + $0x798] sm:$0xff]
        %v515 = vld [vmem:[%s265 + $0x7a0] sm:$0xff]
        %v516 = vld [vmem:[%s265 + $0x7a8] sm:$0xff]
        %v517 = vld [vmem:[%s265 + $0x7b0] sm:$0xff]
        %v518 = vld [vmem:[%s265 + $0x7b8] sm:$0xff]
        %v519 = vld [vmem:[%s265 + $0x7c0] sm:$0xff]
        %v520 = vld [vmem:[%s265 + $0x7c8] sm:$0xff]
        %v521 = vld [vmem:[%s265 + $0x7d0] sm:$0xff]
        %v522 = vld [vmem:[%s265 + $0x7d8] sm:$0xff]
        %v523 = vld [vmem:[%s265 + $0x7e0] sm:$0xff]
        %v524 = vld [vmem:[%s265 + $0x7e8] sm:$0xff]
        %v525 = vld [vmem:[%s265 + $0x7f0] sm:$0xff]
        %v526 = vld [vmem:[%s265 + $0x7f8] sm:$0xff]
        %v527 = vld [vmem:[%s265 + $0x800] sm:$0xff]
        %v528 = vld [vmem:[%s265 + $0x808] sm:$0xff]
        %v529 = vld [vmem:[%s265 + $0x810] sm:$0xff]
        %v530 = vld [vmem:[%s265 + $0x818] sm:$0xff]
        %v531 = vld [vmem:[%s265 + $0x820] sm:$0xff]
        %v532 = vld [vmem:[%s265 + $0x828] sm:$0xff]
        %v533 = vld [vmem:[%s265 + $0x830] sm:$0xff]
        %v534 = vld [vmem:[%s265 + $0x838] sm:$0xff]
        %v535 = vld [vmem:[%s265 + $0x840] sm:$0xff]
        %v536 = vld [vmem:[%s265 + $0x848] sm:$0xff]
        %v537 = vld [vmem:[%s265 + $0x850] sm:$0xff]
        %v538 = vld [vmem:[%s265 + $0x858] sm:$0xff]
        %v539 = vld [vmem:[%s265 + $0x860] sm:$0xff]
        %v540 = vld [vmem:[%s265 + $0x868] sm:$0xff]
        %v541 = vld [vmem:[%s265 + $0x870] sm:$0xff]
        %v542 = vld [vmem:[%s265 + $0x878] sm:$0xff]
        %v543 = vld [vmem:[%s265 + $0x880] sm:$0xff]
        %v544 = vld [vmem:[%s265 + $0x888] sm:$0xff]
        %v545 = vld [vmem:[%s265 + $0x890] sm:$0xff]
        %v546 = vld [vmem:[%s265 + $0x898] sm:$0xff]
        %v547 = vld [vmem:[%s265 + $0x8a0] sm:$0xff]
        %v548 = vld [vmem:[%s265 + $0x8a8] sm:$0xff]
        %v549 = vld [vmem:[%s265 + $0x8b0] sm:$0xff]
        %v550 = vld [vmem:[%s265 + $0x8b8] sm:$0xff]
        %v551 = vld [vmem:[%s265 + $0x8c0] sm:$0xff]
        %v552 = vld [vmem:[%s265 + $0x8c8] sm:$0xff]
        %v553 = vld [vmem:[%s265 + $0x8d0] sm:$0xff]
        %v554 = vld [vmem:[%s265 + $0x8d8] sm:$0xff]
        %v555 = vld [vmem:[%s265 + $0x8e0] sm:$0xff]
        %v556 = vld [vmem:[%s265 + $0x8e8] sm:$0xff]
        %v557 = vld [vmem:[%s265 + $0x8f0] sm:$0xff]
        %v558 = vld [vmem:[%s265 + $0x8f8] sm:$0xff]
        %v559 = vld [vmem:[#allocation5] sm:$0xff]
        %v560 = vld [vmem:[#allocation5 + $0x8] sm:$0x1]
        %v561 = vld [vmem:[#allocation7] sm:$0x1]
        %v563 = vperm.slane %v561, 0
        %vm565 = vcmask 72704
        %v567 = vsel %vm565, %v271, 0
        %v570 = vsel %vm565, %v272, 0
        %v573 = vsel %vm565, %v273, 0
        %v576 = vsel %vm565, %v274, 0
        %v579 = vsel %vm565, %v275, 0
        %v582 = vsel %vm565, %v276, 0
        %v585 = vsel %vm565, %v277, 0
        %v588 = vsel %vm565, %v278, 0
        %v591 = vsel %vm565, %v279, 0
        %v594 = vsel %vm565, %v280, 0
        %v597 = vsel %vm565, %v281, 0
        %v600 = vsel %vm565, %v282, 0
        %v603 = vsel %vm565, %v283, 0
        %v606 = vsel %vm565, %v284, 0
        %v609 = vsel %vm565, %v285, 0
        %v612 = vsel %vm565, %v286, 0
        %v615 = vsel %vm565, %v287, 0
        %v618 = vsel %vm565, %v288, 0
        %v621 = vsel %vm565, %v289, 0
        %v624 = vsel %vm565, %v290, 0
        %v627 = vsel %vm565, %v291, 0
        %v630 = vsel %vm565, %v292, 0
        %v633 = vsel %vm565, %v293, 0
        %v636 = vsel %vm565, %v294, 0
        %v639 = vsel %vm565, %v295, 0
        %v642 = vsel %vm565, %v296, 0
        %v645 = vsel %vm565, %v297, 0
        %v648 = vsel %vm565, %v298, 0
        %v651 = vsel %vm565, %v299, 0
        %v654 = vsel %vm565, %v300, 0
        %v657 = vsel %vm565, %v301, 0
        %v660 = vsel %vm565, %v302, 0
        %v663 = vsel %vm565, %v303, 0
        %v666 = vsel %vm565, %v304, 0
        %v669 = vsel %vm565, %v305, 0
        %v672 = vsel %vm565, %v306, 0
        %v675 = vsel %vm565, %v307, 0
        %v678 = vsel %vm565, %v308, 0
        %v681 = vsel %vm565, %v309, 0
        %v684 = vsel %vm565, %v310, 0
        %v687 = vsel %vm565, %v311, 0
        %v690 = vsel %vm565, %v312, 0
        %v693 = vsel %vm565, %v313, 0
        %v696 = vsel %vm565, %v314, 0
        %v699 = vsel %vm565, %v315, 0
        %v702 = vsel %vm565, %v316, 0
        %v705 = vsel %vm565, %v317, 0
        %v708 = vsel %vm565, %v318, 0
        %v711 = vsel %vm565, %v319, 0
        %v714 = vsel %vm565, %v320, 0
        %v717 = vsel %vm565, %v321, 0
        %v720 = vsel %vm565, %v322, 0
        %v723 = vsel %vm565, %v323, 0
        %v726 = vsel %vm565, %v324, 0
        %v729 = vsel %vm565, %v325, 0
        %v732 = vsel %vm565, %v326, 0
        %v735 = vsel %vm565, %v327, 0
        %v738 = vsel %vm565, %v328, 0
        %v741 = vsel %vm565, %v329, 0
        %v744 = vsel %vm565, %v330, 0
        %v747 = vsel %vm565, %v331, 0
        %v750 = vsel %vm565, %v332, 0
        %v753 = vsel %vm565, %v333, 0
        %v756 = vsel %vm565, %v334, 0
        %v759 = vsel %vm565, %v335, 0
        %v762 = vsel %vm565, %v336, 0
        %v765 = vsel %vm565, %v337, 0
        %v768 = vsel %vm565, %v338, 0
        %v771 = vsel %vm565, %v339, 0
        %v774 = vsel %vm565, %v340, 0
        %v777 = vsel %vm565, %v341, 0
        %v780 = vsel %vm565, %v342, 0
        %v783 = vsel %vm565, %v343, 0
        %v786 = vsel %vm565, %v344, 0
        %v789 = vsel %vm565, %v345, 0
        %v792 = vsel %vm565, %v346, 0
        %v795 = vsel %vm565, %v347, 0
        %v798 = vsel %vm565, %v348, 0
        %v801 = vsel %vm565, %v349, 0
        %v804 = vsel %vm565, %v350, 0
        %v807 = vsel %vm565, %v351, 0
        %v810 = vsel %vm565, %v352, 0
        %v813 = vsel %vm565, %v353, 0
        %v816 = vsel %vm565, %v354, 0
        %v819 = vsel %vm565, %v355, 0
        %v822 = vsel %vm565, %v356, 0
        %v825 = vsel %vm565, %v357, 0
        %v828 = vsel %vm565, %v358, 0
        %v831 = vsel %vm565, %v359, 0
        %v834 = vsel %vm565, %v360, 0
        %v837 = vsel %vm565, %v361, 0
        %v840 = vsel %vm565, %v362, 0
        %v843 = vsel %vm565, %v363, 0
        %v846 = vsel %vm565, %v364, 0
        %v849 = vsel %vm565, %v365, 0
        %v852 = vsel %vm565, %v366, 0
        %v855 = vsel %vm565, %v367, 0
        %v858 = vsel %vm565, %v368, 0
        %v861 = vsel %vm565, %v369, 0
        %v864 = vsel %vm565, %v370, 0
        %v867 = vsel %vm565, %v371, 0
        %v870 = vsel %vm565, %v372, 0
        %v873 = vsel %vm565, %v373, 0
        %v876 = vsel %vm565, %v374, 0
        %v879 = vsel %vm565, %v375, 0
        %v882 = vsel %vm565, %v376, 0
        %v885 = vsel %vm565, %v377, 0
        %v888 = vsel %vm565, %v378, 0
        %v891 = vsel %vm565, %v379, 0
        %v894 = vsel %vm565, %v380, 0
        %v897 = vsel %vm565, %v381, 0
        %v900 = vsel %vm565, %v382, 0
        %v903 = vsel %vm565, %v383, 0
        %v906 = vsel %vm565, %v384, 0
        %v909 = vsel %vm565, %v385, 0
        %v912 = vsel %vm565, %v386, 0
        %v915 = vsel %vm565, %v387, 0
        %v918 = vsel %vm565, %v388, 0
        %v921 = vsel %vm565, %v389, 0
        %v924 = vsel %vm565, %v390, 0
        %v927 = vsel %vm565, %v391, 0
        %v930 = vsel %vm565, %v392, 0
        %v933 = vsel %vm565, %v393, 0
        %v936 = vsel %vm565, %v394, 0
        %v939 = vsel %vm565, %v395, 0
        %v942 = vsel %vm565, %v396, 0
        %v945 = vsel %vm565, %v397, 0
        %v948 = vsel %vm565, %v398, 0
        %v951 = vsel %vm565, %v399, 0
        %v954 = vsel %vm565, %v400, 0
        %v957 = vsel %vm565, %v401, 0
        %v960 = vsel %vm565, %v402, 0
        %v963 = vsel %vm565, %v403, 0
        %v966 = vsel %vm565, %v404, 0
        %v969 = vsel %vm565, %v405, 0
        %v972 = vsel %vm565, %v406, 0
        %v975 = vsel %vm565, %v407, 0
        %v978 = vsel %vm565, %v408, 0
        %v981 = vsel %vm565, %v409, 0
        %v984 = vsel %vm565, %v410, 0
        %v987 = vsel %vm565, %v411, 0
        %v990 = vsel %vm565, %v412, 0
        %v993 = vsel %vm565, %v413, 0
        %v996 = vsel %vm565, %v414, 0
        %v999 = vsel %vm565, %v415, 0
        %v1002 = vsel %vm565, %v416, 0
        %v1005 = vsel %vm565, %v417, 0
        %v1008 = vsel %vm565, %v418, 0
        %v1011 = vsel %vm565, %v419, 0
        %v1014 = vsel %vm565, %v420, 0
        %v1017 = vsel %vm565, %v421, 0
        %v1020 = vsel %vm565, %v422, 0
        %v1023 = vsel %vm565, %v423, 0
        %v1026 = vsel %vm565, %v424, 0
        %v1029 = vsel %vm565, %v425, 0
        %v1032 = vsel %vm565, %v426, 0
        %v1035 = vsel %vm565, %v427, 0
        %v1038 = vsel %vm565, %v428, 0
        %v1041 = vsel %vm565, %v429, 0
        %v1044 = vsel %vm565, %v430, 0
        %v1047 = vsel %vm565, %v431, 0
        %v1050 = vsel %vm565, %v432, 0
        %v1053 = vsel %vm565, %v433, 0
        %v1056 = vsel %vm565, %v434, 0
        %v1059 = vsel %vm565, %v435, 0
        %v1062 = vsel %vm565, %v436, 0
        %v1065 = vsel %vm565, %v437, 0
        %v1068 = vsel %vm565, %v438, 0
        %v1071 = vsel %vm565, %v439, 0
        %v1074 = vsel %vm565, %v440, 0
        %v1077 = vsel %vm565, %v441, 0
        %v1080 = vsel %vm565, %v442, 0
        %v1083 = vsel %vm565, %v443, 0
        %v1086 = vsel %vm565, %v444, 0
        %v1089 = vsel %vm565, %v445, 0
        %v1092 = vsel %vm565, %v446, 0
        %v1095 = vsel %vm565, %v447, 0
        %v1098 = vsel %vm565, %v448, 0
        %v1101 = vsel %vm565, %v449, 0
        %v1104 = vsel %vm565, %v450, 0
        %v1107 = vsel %vm565, %v451, 0
        %v1110 = vsel %vm565, %v452, 0
        %v1113 = vsel %vm565, %v453, 0
        %v1116 = vsel %vm565, %v454, 0
        %v1119 = vsel %vm565, %v455, 0
        %v1122 = vsel %vm565, %v456, 0
        %v1125 = vsel %vm565, %v457, 0
        %v1128 = vsel %vm565, %v458, 0
        %v1131 = vsel %vm565, %v459, 0
        %v1134 = vsel %vm565, %v460, 0
        %v1137 = vsel %vm565, %v461, 0
        %v1140 = vsel %vm565, %v462, 0
        %v1143 = vsel %vm565, %v463, 0
        %v1146 = vsel %vm565, %v464, 0
        %v1149 = vsel %vm565, %v465, 0
        %v1152 = vsel %vm565, %v466, 0
        %v1155 = vsel %vm565, %v467, 0
        %v1158 = vsel %vm565, %v468, 0
        %v1161 = vsel %vm565, %v469, 0
        %v1164 = vsel %vm565, %v470, 0
        %v1167 = vsel %vm565, %v471, 0
        %v1170 = vsel %vm565, %v472, 0
        %v1173 = vsel %vm565, %v473, 0
        %v1176 = vsel %vm565, %v474, 0
        %v1179 = vsel %vm565, %v475, 0
        %v1182 = vsel %vm565, %v476, 0
        %v1185 = vsel %vm565, %v477, 0
        %v1188 = vsel %vm565, %v478, 0
        %v1191 = vsel %vm565, %v479, 0
        %v1194 = vsel %vm565, %v480, 0
        %v1197 = vsel %vm565, %v481, 0
        %v1200 = vsel %vm565, %v482, 0
        %v1203 = vsel %vm565, %v483, 0
        %v1206 = vsel %vm565, %v484, 0
        %v1209 = vsel %vm565, %v485, 0
        %v1212 = vsel %vm565, %v486, 0
        %v1215 = vsel %vm565, %v487, 0
        %v1218 = vsel %vm565, %v488, 0
        %v1221 = vsel %vm565, %v489, 0
        %v1224 = vsel %vm565, %v490, 0
        %v1227 = vsel %vm565, %v491, 0
        %v1230 = vsel %vm565, %v492, 0
        %v1233 = vsel %vm565, %v493, 0
        %v1236 = vsel %vm565, %v494, 0
        %v1239 = vsel %vm565, %v495, 0
        %v1242 = vsel %vm565, %v496, 0
        %v1245 = vsel %vm565, %v497, 0
        %v1248 = vsel %vm565, %v498, 0
        %v1251 = vsel %vm565, %v499, 0
        %v1254 = vsel %vm565, %v500, 0
        %v1257 = vsel %vm565, %v501, 0
        %v1260 = vsel %vm565, %v502, 0
        %v1263 = vsel %vm565, %v503, 0
        %v1266 = vsel %vm565, %v504, 0
        %v1269 = vsel %vm565, %v505, 0
        %v1272 = vsel %vm565, %v506, 0
        %v1275 = vsel %vm565, %v507, 0
        %v1278 = vsel %vm565, %v508, 0
        %v1281 = vsel %vm565, %v509, 0
        %v1284 = vsel %vm565, %v510, 0
        %v1287 = vsel %vm565, %v511, 0
        %v1290 = vsel %vm565, %v512, 0
        %v1293 = vsel %vm565, %v513, 0
        %v1296 = vsel %vm565, %v514, 0
        %v1299 = vsel %vm565, %v515, 0
        %v1302 = vsel %vm565, %v516, 0
        %v1305 = vsel %vm565, %v517, 0
        %v1308 = vsel %vm565, %v518, 0
        %v1311 = vsel %vm565, %v519, 0
        %v1314 = vsel %vm565, %v520, 0
        %v1317 = vsel %vm565, %v521, 0
        %v1320 = vsel %vm565, %v522, 0
        %v1323 = vsel %vm565, %v523, 0
        %v1326 = vsel %vm565, %v524, 0
        %v1329 = vsel %vm565, %v525, 0
        %v1332 = vsel %vm565, %v526, 0
        %v1335 = vsel %vm565, %v527, 0
        %v1338 = vsel %vm565, %v528, 0
        %v1341 = vsel %vm565, %v529, 0
        %v1344 = vsel %vm565, %v530, 0
        %v1347 = vsel %vm565, %v531, 0
        %v1350 = vsel %vm565, %v532, 0
        %v1353 = vsel %vm565, %v533, 0
        %v1356 = vsel %vm565, %v534, 0
        %v1359 = vsel %vm565, %v535, 0
        %v1362 = vsel %vm565, %v536, 0
        %v1365 = vsel %vm565, %v537, 0
        %v1368 = vsel %vm565, %v538, 0
        %v1371 = vsel %vm565, %v539, 0
        %v1374 = vsel %vm565, %v540, 0
        %v1377 = vsel %vm565, %v541, 0
        %v1380 = vsel %vm565, %v542, 0
        %v1383 = vsel %vm565, %v543, 0
        %v1386 = vsel %vm565, %v544, 0
        %v1389 = vsel %vm565, %v545, 0
        %v1392 = vsel %vm565, %v546, 0
        %v1395 = vsel %vm565, %v547, 0
        %v1398 = vsel %vm565, %v548, 0
        %v1401 = vsel %vm565, %v549, 0
        %v1404 = vsel %vm565, %v550, 0
        %v1407 = vsel %vm565, %v551, 0
        %v1410 = vsel %vm565, %v552, 0
        %v1413 = vsel %vm565, %v553, 0
        %v1416 = vsel %vm565, %v554, 0
        %v1419 = vsel %vm565, %v555, 0
        %v1422 = vsel %vm565, %v556, 0
        %v1425 = vsel %vm565, %v557, 0
        %v1428 = vsel %vm565, %v558, 0
        %vm1430 = vcmask 1040384
        %v1432 = vsel %vm1430, %v560, 0
        %1434 = vmatpush.msra.mxu0 0.0
        %1435 = vmatpush.msra.mxu0 0.0
        %1436 = vmatpush.msra.mxu0 0.0
        %1437 = vmatpush.msra.mxu0 0.0
        %1438 = vmatpush.msra.mxu0 0.0
        %1439 = vmatpush.msra.mxu0 0.0
        %1440 = vmatpush.msra.mxu0 0.0
        %1441 = vmatpush.msra.mxu0 0.0
        %1442 = vmatpush.msra.mxu0 0.0
        %1443 = vmatpush.msra.mxu0 0.0
        %1444 = vmatpush.msra.mxu0 0.0
        %1445 = vmatpush.msra.mxu0 0.0
        %1446 = vmatpush.msra.mxu0 0.0
        %1447 = vmatpush.msra.mxu0 0.0
        %1448 = vmatpush.msra.mxu0 %v1432
        %1449 = vmatpush.msra.mxu0 %v559
        %1450 = vmatmul.f32.gmra.mxu0 %v567
        %v1451 = vpop.f32.mrf.mxu0
        %v1452 = vadd.f32 %v563, %v1451
        %1453 = vmatmul.f32.gmra.mxu0 %v570
        %v1454 = vpop.f32.mrf.mxu0
        %v1455 = vadd.f32 %v563, %v1454
        %1456 = vmatmul.f32.gmra.mxu0 %v573
        %v1457 = vpop.f32.mrf.mxu0
        %v1458 = vadd.f32 %v563, %v1457
        %1459 = vmatmul.f32.gmra.mxu0 %v576
        %v1460 = vpop.f32.mrf.mxu0
        %v1461 = vadd.f32 %v563, %v1460
        %1462 = vmatmul.f32.gmra.mxu0 %v579
        %v1463 = vpop.f32.mrf.mxu0
        %v1464 = vadd.f32 %v563, %v1463
        %1465 = vmatmul.f32.gmra.mxu0 %v582
        %v1466 = vpop.f32.mrf.mxu0
        %v1467 = vadd.f32 %v563, %v1466
        %1468 = vmatmul.f32.gmra.mxu0 %v585
        %v1469 = vpop.f32.mrf.mxu0
        %v1470 = vadd.f32 %v563, %v1469
        %1471 = vmatmul.f32.gmra.mxu0 %v588
        %v1472 = vpop.f32.mrf.mxu0
        %v1473 = vadd.f32 %v563, %v1472
        %1474 = vmatmul.f32.gmra.mxu0 %v591
        %v1475 = vpop.f32.mrf.mxu0
        %v1476 = vadd.f32 %v563, %v1475
        %1477 = vmatmul.f32.gmra.mxu0 %v594
        %v1478 = vpop.f32.mrf.mxu0
        %v1479 = vadd.f32 %v563, %v1478
        %1480 = vmatmul.f32.gmra.mxu0 %v597
        %v1481 = vpop.f32.mrf.mxu0
        %v1482 = vadd.f32 %v563, %v1481
        %1483 = vmatmul.f32.gmra.mxu0 %v600
        %v1484 = vpop.f32.mrf.mxu0
        %v1485 = vadd.f32 %v563, %v1484
        %1486 = vmatmul.f32.gmra.mxu0 %v603
        %v1487 = vpop.f32.mrf.mxu0
        %v1488 = vadd.f32 %v563, %v1487
        %1489 = vmatmul.f32.gmra.mxu0 %v606
        %v1490 = vpop.f32.mrf.mxu0
        %v1491 = vadd.f32 %v563, %v1490
        %1492 = vmatmul.f32.gmra.mxu0 %v609
        %v1493 = vpop.f32.mrf.mxu0
        %v1494 = vadd.f32 %v563, %v1493
        %1495 = vmatmul.f32.gmra.mxu0 %v612
        %v1496 = vpop.f32.mrf.mxu0
        %v1497 = vadd.f32 %v563, %v1496
        %1498 = vmatmul.f32.gmra.mxu0 %v615
        %v1499 = vpop.f32.mrf.mxu0
        %v1500 = vadd.f32 %v563, %v1499
        %1501 = vmatmul.f32.gmra.mxu0 %v618
        %v1502 = vpop.f32.mrf.mxu0
        %v1503 = vadd.f32 %v563, %v1502
        %1504 = vmatmul.f32.gmra.mxu0 %v621
        %v1505 = vpop.f32.mrf.mxu0
        %v1506 = vadd.f32 %v563, %v1505
        %1507 = vmatmul.f32.gmra.mxu0 %v624
        %v1508 = vpop.f32.mrf.mxu0
        %v1509 = vadd.f32 %v563, %v1508
        %1510 = vmatmul.f32.gmra.mxu0 %v627
        %v1511 = vpop.f32.mrf.mxu0
        %v1512 = vadd.f32 %v563, %v1511
        %1513 = vmatmul.f32.gmra.mxu0 %v630
        %v1514 = vpop.f32.mrf.mxu0
        %v1515 = vadd.f32 %v563, %v1514
        %1516 = vmatmul.f32.gmra.mxu0 %v633
        %v1517 = vpop.f32.mrf.mxu0
        %v1518 = vadd.f32 %v563, %v1517
        %1519 = vmatmul.f32.gmra.mxu0 %v636
        %v1520 = vpop.f32.mrf.mxu0
        %v1521 = vadd.f32 %v563, %v1520
        %1522 = vmatmul.f32.gmra.mxu0 %v639
        %v1523 = vpop.f32.mrf.mxu0
        %v1524 = vadd.f32 %v563, %v1523
        %1525 = vmatmul.f32.gmra.mxu0 %v642
        %v1526 = vpop.f32.mrf.mxu0
        %v1527 = vadd.f32 %v563, %v1526
        %1528 = vmatmul.f32.gmra.mxu0 %v645
        %v1529 = vpop.f32.mrf.mxu0
        %v1530 = vadd.f32 %v563, %v1529
        %1531 = vmatmul.f32.gmra.mxu0 %v648
        %v1532 = vpop.f32.mrf.mxu0
        %v1533 = vadd.f32 %v563, %v1532
        %1534 = vmatmul.f32.gmra.mxu0 %v651
        %v1535 = vpop.f32.mrf.mxu0
        %v1536 = vadd.f32 %v563, %v1535
        %1537 = vmatmul.f32.gmra.mxu0 %v654
        %v1538 = vpop.f32.mrf.mxu0
        %v1539 = vadd.f32 %v563, %v1538
        %1540 = vmatmul.f32.gmra.mxu0 %v657
        %v1541 = vpop.f32.mrf.mxu0
        %v1542 = vadd.f32 %v563, %v1541
        %1543 = vmatmul.f32.gmra.mxu0 %v660
        %v1544 = vpop.f32.mrf.mxu0
        %v1545 = vadd.f32 %v563, %v1544
        %1546 = vmatmul.f32.gmra.mxu0 %v663
        %v1547 = vpop.f32.mrf.mxu0
        %v1548 = vadd.f32 %v563, %v1547
        %1549 = vmatmul.f32.gmra.mxu0 %v666
        %v1550 = vpop.f32.mrf.mxu0
        %v1551 = vadd.f32 %v563, %v1550
        %1552 = vmatmul.f32.gmra.mxu0 %v669
        %v1553 = vpop.f32.mrf.mxu0
        %v1554 = vadd.f32 %v563, %v1553
        %1555 = vmatmul.f32.gmra.mxu0 %v672
        %v1556 = vpop.f32.mrf.mxu0
        %v1557 = vadd.f32 %v563, %v1556
        %1558 = vmatmul.f32.gmra.mxu0 %v675
        %v1559 = vpop.f32.mrf.mxu0
        %v1560 = vadd.f32 %v563, %v1559
        %1561 = vmatmul.f32.gmra.mxu0 %v678
        %v1562 = vpop.f32.mrf.mxu0
        %v1563 = vadd.f32 %v563, %v1562
        %1564 = vmatmul.f32.gmra.mxu0 %v681
        %v1565 = vpop.f32.mrf.mxu0
        %v1566 = vadd.f32 %v563, %v1565
        %1567 = vmatmul.f32.gmra.mxu0 %v684
        %v1568 = vpop.f32.mrf.mxu0
        %v1569 = vadd.f32 %v563, %v1568
        %1570 = vmatmul.f32.gmra.mxu0 %v687
        %v1571 = vpop.f32.mrf.mxu0
        %v1572 = vadd.f32 %v563, %v1571
        %1573 = vmatmul.f32.gmra.mxu0 %v690
        %v1574 = vpop.f32.mrf.mxu0
        %v1575 = vadd.f32 %v563, %v1574
        %1576 = vmatmul.f32.gmra.mxu0 %v693
        %v1577 = vpop.f32.mrf.mxu0
        %v1578 = vadd.f32 %v563, %v1577
        %1579 = vmatmul.f32.gmra.mxu0 %v696
        %v1580 = vpop.f32.mrf.mxu0
        %v1581 = vadd.f32 %v563, %v1580
        %1582 = vmatmul.f32.gmra.mxu0 %v699
        %v1583 = vpop.f32.mrf.mxu0
        %v1584 = vadd.f32 %v563, %v1583
        %1585 = vmatmul.f32.gmra.mxu0 %v702
        %v1586 = vpop.f32.mrf.mxu0
        %v1587 = vadd.f32 %v563, %v1586
        %1588 = vmatmul.f32.gmra.mxu0 %v705
        %v1589 = vpop.f32.mrf.mxu0
        %v1590 = vadd.f32 %v563, %v1589
        %1591 = vmatmul.f32.gmra.mxu0 %v708
        %v1592 = vpop.f32.mrf.mxu0
        %v1593 = vadd.f32 %v563, %v1592
        %1594 = vmatmul.f32.gmra.mxu0 %v711
        %v1595 = vpop.f32.mrf.mxu0
        %v1596 = vadd.f32 %v563, %v1595
        %1597 = vmatmul.f32.gmra.mxu0 %v714
        %v1598 = vpop.f32.mrf.mxu0
        %v1599 = vadd.f32 %v563, %v1598
        %1600 = vmatmul.f32.gmra.mxu0 %v717
        %v1601 = vpop.f32.mrf.mxu0
        %v1602 = vadd.f32 %v563, %v1601
        %1603 = vmatmul.f32.gmra.mxu0 %v720
        %v1604 = vpop.f32.mrf.mxu0
        %v1605 = vadd.f32 %v563, %v1604
        %1606 = vmatmul.f32.gmra.mxu0 %v723
        %v1607 = vpop.f32.mrf.mxu0
        %v1608 = vadd.f32 %v563, %v1607
        %1609 = vmatmul.f32.gmra.mxu0 %v726
        %v1610 = vpop.f32.mrf.mxu0
        %v1611 = vadd.f32 %v563, %v1610
        %1612 = vmatmul.f32.gmra.mxu0 %v729
        %v1613 = vpop.f32.mrf.mxu0
        %v1614 = vadd.f32 %v563, %v1613
        %1615 = vmatmul.f32.gmra.mxu0 %v732
        %v1616 = vpop.f32.mrf.mxu0
        %v1617 = vadd.f32 %v563, %v1616
        %1618 = vmatmul.f32.gmra.mxu0 %v735
        %v1619 = vpop.f32.mrf.mxu0
        %v1620 = vadd.f32 %v563, %v1619
        %1621 = vmatmul.f32.gmra.mxu0 %v738
        %v1622 = vpop.f32.mrf.mxu0
        %v1623 = vadd.f32 %v563, %v1622
        %1624 = vmatmul.f32.gmra.mxu0 %v741
        %v1625 = vpop.f32.mrf.mxu0
        %v1626 = vadd.f32 %v563, %v1625
        %1627 = vmatmul.f32.gmra.mxu0 %v744
        %v1628 = vpop.f32.mrf.mxu0
        %v1629 = vadd.f32 %v563, %v1628
        %1630 = vmatmul.f32.gmra.mxu0 %v747
        %v1631 = vpop.f32.mrf.mxu0
        %v1632 = vadd.f32 %v563, %v1631
        %1633 = vmatmul.f32.gmra.mxu0 %v750
        %v1634 = vpop.f32.mrf.mxu0
        %v1635 = vadd.f32 %v563, %v1634
        %1636 = vmatmul.f32.gmra.mxu0 %v753
        %v1637 = vpop.f32.mrf.mxu0
        %v1638 = vadd.f32 %v563, %v1637
        %1639 = vmatmul.f32.gmra.mxu0 %v756
        %v1640 = vpop.f32.mrf.mxu0
        %v1641 = vadd.f32 %v563, %v1640
        %1642 = vmatmul.f32.gmra.mxu0 %v759
        %v1643 = vpop.f32.mrf.mxu0
        %v1644 = vadd.f32 %v563, %v1643
        %1645 = vmatmul.f32.gmra.mxu0 %v762
        %v1646 = vpop.f32.mrf.mxu0
        %v1647 = vadd.f32 %v563, %v1646
        %1648 = vmatmul.f32.gmra.mxu0 %v765
        %v1649 = vpop.f32.mrf.mxu0
        %v1650 = vadd.f32 %v563, %v1649
        %1651 = vmatmul.f32.gmra.mxu0 %v768
        %v1652 = vpop.f32.mrf.mxu0
        %v1653 = vadd.f32 %v563, %v1652
        %1654 = vmatmul.f32.gmra.mxu0 %v771
        %v1655 = vpop.f32.mrf.mxu0
        %v1656 = vadd.f32 %v563, %v1655
        %1657 = vmatmul.f32.gmra.mxu0 %v774
        %v1658 = vpop.f32.mrf.mxu0
        %v1659 = vadd.f32 %v563, %v1658
        %1660 = vmatmul.f32.gmra.mxu0 %v777
        %v1661 = vpop.f32.mrf.mxu0
        %v1662 = vadd.f32 %v563, %v1661
        %1663 = vmatmul.f32.gmra.mxu0 %v780
        %v1664 = vpop.f32.mrf.mxu0
        %v1665 = vadd.f32 %v563, %v1664
        %1666 = vmatmul.f32.gmra.mxu0 %v783
        %v1667 = vpop.f32.mrf.mxu0
        %v1668 = vadd.f32 %v563, %v1667
        %1669 = vmatmul.f32.gmra.mxu0 %v786
        %v1670 = vpop.f32.mrf.mxu0
        %v1671 = vadd.f32 %v563, %v1670
        %1672 = vmatmul.f32.gmra.mxu0 %v789
        %v1673 = vpop.f32.mrf.mxu0
        %v1674 = vadd.f32 %v563, %v1673
        %1675 = vmatmul.f32.gmra.mxu0 %v792
        %v1676 = vpop.f32.mrf.mxu0
        %v1677 = vadd.f32 %v563, %v1676
        %1678 = vmatmul.f32.gmra.mxu0 %v795
        %v1679 = vpop.f32.mrf.mxu0
        %v1680 = vadd.f32 %v563, %v1679
        %1681 = vmatmul.f32.gmra.mxu0 %v798
        %v1682 = vpop.f32.mrf.mxu0
        %v1683 = vadd.f32 %v563, %v1682
        %1684 = vmatmul.f32.gmra.mxu0 %v801
        %v1685 = vpop.f32.mrf.mxu0
        %v1686 = vadd.f32 %v563, %v1685
        %1687 = vmatmul.f32.gmra.mxu0 %v804
        %v1688 = vpop.f32.mrf.mxu0
        %v1689 = vadd.f32 %v563, %v1688
        %1690 = vmatmul.f32.gmra.mxu0 %v807
        %v1691 = vpop.f32.mrf.mxu0
        %v1692 = vadd.f32 %v563, %v1691
        %1693 = vmatmul.f32.gmra.mxu0 %v810
        %v1694 = vpop.f32.mrf.mxu0
        %v1695 = vadd.f32 %v563, %v1694
        %1696 = vmatmul.f32.gmra.mxu0 %v813
        %v1697 = vpop.f32.mrf.mxu0
        %v1698 = vadd.f32 %v563, %v1697
        %1699 = vmatmul.f32.gmra.mxu0 %v816
        %v1700 = vpop.f32.mrf.mxu0
        %v1701 = vadd.f32 %v563, %v1700
        %1702 = vmatmul.f32.gmra.mxu0 %v819
        %v1703 = vpop.f32.mrf.mxu0
        %v1704 = vadd.f32 %v563, %v1703
        %1705 = vmatmul.f32.gmra.mxu0 %v822
        %v1706 = vpop.f32.mrf.mxu0
        %v1707 = vadd.f32 %v563, %v1706
        %1708 = vmatmul.f32.gmra.mxu0 %v825
        %v1709 = vpop.f32.mrf.mxu0
        %v1710 = vadd.f32 %v563, %v1709
        %1711 = vmatmul.f32.gmra.mxu0 %v828
        %v1712 = vpop.f32.mrf.mxu0
        %v1713 = vadd.f32 %v563, %v1712
        %1714 = vmatmul.f32.gmra.mxu0 %v831
        %v1715 = vpop.f32.mrf.mxu0
        %v1716 = vadd.f32 %v563, %v1715
        %1717 = vmatmul.f32.gmra.mxu0 %v834
        %v1718 = vpop.f32.mrf.mxu0
        %v1719 = vadd.f32 %v563, %v1718
        %1720 = vmatmul.f32.gmra.mxu0 %v837
        %v1721 = vpop.f32.mrf.mxu0
        %v1722 = vadd.f32 %v563, %v1721
        %1723 = vmatmul.f32.gmra.mxu0 %v840
        %v1724 = vpop.f32.mrf.mxu0
        %v1725 = vadd.f32 %v563, %v1724
        %1726 = vmatmul.f32.gmra.mxu0 %v843
        %v1727 = vpop.f32.mrf.mxu0
        %v1728 = vadd.f32 %v563, %v1727
        %1729 = vmatmul.f32.gmra.mxu0 %v846
        %v1730 = vpop.f32.mrf.mxu0
        %v1731 = vadd.f32 %v563, %v1730
        %1732 = vmatmul.f32.gmra.mxu0 %v849
        %v1733 = vpop.f32.mrf.mxu0
        %v1734 = vadd.f32 %v563, %v1733
        %1735 = vmatmul.f32.gmra.mxu0 %v852
        %v1736 = vpop.f32.mrf.mxu0
        %v1737 = vadd.f32 %v563, %v1736
        %1738 = vmatmul.f32.gmra.mxu0 %v855
        %v1739 = vpop.f32.mrf.mxu0
        %v1740 = vadd.f32 %v563, %v1739
        %1741 = vmatmul.f32.gmra.mxu0 %v858
        %v1742 = vpop.f32.mrf.mxu0
        %v1743 = vadd.f32 %v563, %v1742
        %1744 = vmatmul.f32.gmra.mxu0 %v861
        %v1745 = vpop.f32.mrf.mxu0
        %v1746 = vadd.f32 %v563, %v1745
        %1747 = vmatmul.f32.gmra.mxu0 %v864
        %v1748 = vpop.f32.mrf.mxu0
        %v1749 = vadd.f32 %v563, %v1748
        %1750 = vmatmul.f32.gmra.mxu0 %v867
        %v1751 = vpop.f32.mrf.mxu0
        %v1752 = vadd.f32 %v563, %v1751
        %1753 = vmatmul.f32.gmra.mxu0 %v870
        %v1754 = vpop.f32.mrf.mxu0
        %v1755 = vadd.f32 %v563, %v1754
        %1756 = vmatmul.f32.gmra.mxu0 %v873
        %v1757 = vpop.f32.mrf.mxu0
        %v1758 = vadd.f32 %v563, %v1757
        %1759 = vmatmul.f32.gmra.mxu0 %v876
        %v1760 = vpop.f32.mrf.mxu0
        %v1761 = vadd.f32 %v563, %v1760
        %1762 = vmatmul.f32.gmra.mxu0 %v879
        %v1763 = vpop.f32.mrf.mxu0
        %v1764 = vadd.f32 %v563, %v1763
        %1765 = vmatmul.f32.gmra.mxu0 %v882
        %v1766 = vpop.f32.mrf.mxu0
        %v1767 = vadd.f32 %v563, %v1766
        %1768 = vmatmul.f32.gmra.mxu0 %v885
        %v1769 = vpop.f32.mrf.mxu0
        %v1770 = vadd.f32 %v563, %v1769
        %1771 = vmatmul.f32.gmra.mxu0 %v888
        %v1772 = vpop.f32.mrf.mxu0
        %v1773 = vadd.f32 %v563, %v1772
        %1774 = vmatmul.f32.gmra.mxu0 %v891
        %v1775 = vpop.f32.mrf.mxu0
        %v1776 = vadd.f32 %v563, %v1775
        %1777 = vmatmul.f32.gmra.mxu0 %v894
        %v1778 = vpop.f32.mrf.mxu0
        %v1779 = vadd.f32 %v563, %v1778
        %1780 = vmatmul.f32.gmra.mxu0 %v897
        %v1781 = vpop.f32.mrf.mxu0
        %v1782 = vadd.f32 %v563, %v1781
        %1783 = vmatmul.f32.gmra.mxu0 %v900
        %v1784 = vpop.f32.mrf.mxu0
        %v1785 = vadd.f32 %v563, %v1784
        %1786 = vmatmul.f32.gmra.mxu0 %v903
        %v1787 = vpop.f32.mrf.mxu0
        %v1788 = vadd.f32 %v563, %v1787
        %1789 = vmatmul.f32.gmra.mxu0 %v906
        %v1790 = vpop.f32.mrf.mxu0
        %v1791 = vadd.f32 %v563, %v1790
        %1792 = vmatmul.f32.gmra.mxu0 %v909
        %v1793 = vpop.f32.mrf.mxu0
        %v1794 = vadd.f32 %v563, %v1793
        %1795 = vmatmul.f32.gmra.mxu0 %v912
        %v1796 = vpop.f32.mrf.mxu0
        %v1797 = vadd.f32 %v563, %v1796
        %1798 = vmatmul.f32.gmra.mxu0 %v915
        %v1799 = vpop.f32.mrf.mxu0
        %v1800 = vadd.f32 %v563, %v1799
        %1801 = vmatmul.f32.gmra.mxu0 %v918
        %v1802 = vpop.f32.mrf.mxu0
        %v1803 = vadd.f32 %v563, %v1802
        %1804 = vmatmul.f32.gmra.mxu0 %v921
        %v1805 = vpop.f32.mrf.mxu0
        %v1806 = vadd.f32 %v563, %v1805
        %1807 = vmatmul.f32.gmra.mxu0 %v924
        %v1808 = vpop.f32.mrf.mxu0
        %v1809 = vadd.f32 %v563, %v1808
        %1810 = vmatmul.f32.gmra.mxu0 %v927
        %v1811 = vpop.f32.mrf.mxu0
        %v1812 = vadd.f32 %v563, %v1811
        %1813 = vmatmul.f32.gmra.mxu0 %v930
        %v1814 = vpop.f32.mrf.mxu0
        %v1815 = vadd.f32 %v563, %v1814
        %1816 = vmatmul.f32.gmra.mxu0 %v933
        %v1817 = vpop.f32.mrf.mxu0
        %v1818 = vadd.f32 %v563, %v1817
        %1819 = vmatmul.f32.gmra.mxu0 %v936
        %v1820 = vpop.f32.mrf.mxu0
        %v1821 = vadd.f32 %v563, %v1820
        %1822 = vmatmul.f32.gmra.mxu0 %v939
        %v1823 = vpop.f32.mrf.mxu0
        %v1824 = vadd.f32 %v563, %v1823
        %1825 = vmatmul.f32.gmra.mxu0 %v942
        %v1826 = vpop.f32.mrf.mxu0
        %v1827 = vadd.f32 %v563, %v1826
        %1828 = vmatmul.f32.gmra.mxu0 %v945
        %v1829 = vpop.f32.mrf.mxu0
        %v1830 = vadd.f32 %v563, %v1829
        %1831 = vmatmul.f32.gmra.mxu0 %v948
        %v1832 = vpop.f32.mrf.mxu0
        %v1833 = vadd.f32 %v563, %v1832
        %1834 = vmatmul.f32.gmra.mxu0 %v951
        %v1835 = vpop.f32.mrf.mxu0
        %v1836 = vadd.f32 %v563, %v1835
        %1837 = vmatmul.f32.gmra.mxu0 %v954
        %v1838 = vpop.f32.mrf.mxu0
        %v1839 = vadd.f32 %v563, %v1838
        %1840 = vmatmul.f32.gmra.mxu0 %v957
        %v1841 = vpop.f32.mrf.mxu0
        %v1842 = vadd.f32 %v563, %v1841
        %1843 = vmatmul.f32.gmra.mxu0 %v960
        %v1844 = vpop.f32.mrf.mxu0
        %v1845 = vadd.f32 %v563, %v1844
        %1846 = vmatmul.f32.gmra.mxu0 %v963
        %v1847 = vpop.f32.mrf.mxu0
        %v1848 = vadd.f32 %v563, %v1847
        %1849 = vmatmul.f32.gmra.mxu0 %v966
        %v1850 = vpop.f32.mrf.mxu0
        %v1851 = vadd.f32 %v563, %v1850
        %1852 = vmatmul.f32.gmra.mxu0 %v969
        %v1853 = vpop.f32.mrf.mxu0
        %v1854 = vadd.f32 %v563, %v1853
        %1855 = vmatmul.f32.gmra.mxu0 %v972
        %v1856 = vpop.f32.mrf.mxu0
        %v1857 = vadd.f32 %v563, %v1856
        %1858 = vmatmul.f32.gmra.mxu0 %v975
        %v1859 = vpop.f32.mrf.mxu0
        %v1860 = vadd.f32 %v563, %v1859
        %1861 = vmatmul.f32.gmra.mxu0 %v978
        %v1862 = vpop.f32.mrf.mxu0
        %v1863 = vadd.f32 %v563, %v1862
        %1864 = vmatmul.f32.gmra.mxu0 %v981
        %v1865 = vpop.f32.mrf.mxu0
        %v1866 = vadd.f32 %v563, %v1865
        %1867 = vmatmul.f32.gmra.mxu0 %v984
        %v1868 = vpop.f32.mrf.mxu0
        %v1869 = vadd.f32 %v563, %v1868
        %1870 = vmatmul.f32.gmra.mxu0 %v987
        %v1871 = vpop.f32.mrf.mxu0
        %v1872 = vadd.f32 %v563, %v1871
        %1873 = vmatmul.f32.gmra.mxu0 %v990
        %v1874 = vpop.f32.mrf.mxu0
        %v1875 = vadd.f32 %v563, %v1874
        %1876 = vmatmul.f32.gmra.mxu0 %v993
        %v1877 = vpop.f32.mrf.mxu0
        %v1878 = vadd.f32 %v563, %v1877
        %1879 = vmatmul.f32.gmra.mxu0 %v996
        %v1880 = vpop.f32.mrf.mxu0
        %v1881 = vadd.f32 %v563, %v1880
        %1882 = vmatmul.f32.gmra.mxu0 %v999
        %v1883 = vpop.f32.mrf.mxu0
        %v1884 = vadd.f32 %v563, %v1883
        %1885 = vmatmul.f32.gmra.mxu0 %v1002
        %v1886 = vpop.f32.mrf.mxu0
        %v1887 = vadd.f32 %v563, %v1886
        %1888 = vmatmul.f32.gmra.mxu0 %v1005
        %v1889 = vpop.f32.mrf.mxu0
        %v1890 = vadd.f32 %v563, %v1889
        %1891 = vmatmul.f32.gmra.mxu0 %v1008
        %v1892 = vpop.f32.mrf.mxu0
        %v1893 = vadd.f32 %v563, %v1892
        %1894 = vmatmul.f32.gmra.mxu0 %v1011
        %v1895 = vpop.f32.mrf.mxu0
        %v1896 = vadd.f32 %v563, %v1895
        %1897 = vmatmul.f32.gmra.mxu0 %v1014
        %v1898 = vpop.f32.mrf.mxu0
        %v1899 = vadd.f32 %v563, %v1898
        %1900 = vmatmul.f32.gmra.mxu0 %v1017
        %v1901 = vpop.f32.mrf.mxu0
        %v1902 = vadd.f32 %v563, %v1901
        %1903 = vmatmul.f32.gmra.mxu0 %v1020
        %v1904 = vpop.f32.mrf.mxu0
        %v1905 = vadd.f32 %v563, %v1904
        %1906 = vmatmul.f32.gmra.mxu0 %v1023
        %v1907 = vpop.f32.mrf.mxu0
        %v1908 = vadd.f32 %v563, %v1907
        %1909 = vmatmul.f32.gmra.mxu0 %v1026
        %v1910 = vpop.f32.mrf.mxu0
        %v1911 = vadd.f32 %v563, %v1910
        %1912 = vmatmul.f32.gmra.mxu0 %v1029
        %v1913 = vpop.f32.mrf.mxu0
        %v1914 = vadd.f32 %v563, %v1913
        %1915 = vmatmul.f32.gmra.mxu0 %v1032
        %v1916 = vpop.f32.mrf.mxu0
        %v1917 = vadd.f32 %v563, %v1916
        %1918 = vmatmul.f32.gmra.mxu0 %v1035
        %v1919 = vpop.f32.mrf.mxu0
        %v1920 = vadd.f32 %v563, %v1919
        %1921 = vmatmul.f32.gmra.mxu0 %v1038
        %v1922 = vpop.f32.mrf.mxu0
        %v1923 = vadd.f32 %v563, %v1922
        %1924 = vmatmul.f32.gmra.mxu0 %v1041
        %v1925 = vpop.f32.mrf.mxu0
        %v1926 = vadd.f32 %v563, %v1925
        %1927 = vmatmul.f32.gmra.mxu0 %v1044
        %v1928 = vpop.f32.mrf.mxu0
        %v1929 = vadd.f32 %v563, %v1928
        %1930 = vmatmul.f32.gmra.mxu0 %v1047
        %v1931 = vpop.f32.mrf.mxu0
        %v1932 = vadd.f32 %v563, %v1931
        %1933 = vmatmul.f32.gmra.mxu0 %v1050
        %v1934 = vpop.f32.mrf.mxu0
        %v1935 = vadd.f32 %v563, %v1934
        %1936 = vmatmul.f32.gmra.mxu0 %v1053
        %v1937 = vpop.f32.mrf.mxu0
        %v1938 = vadd.f32 %v563, %v1937
        %1939 = vmatmul.f32.gmra.mxu0 %v1056
        %v1940 = vpop.f32.mrf.mxu0
        %v1941 = vadd.f32 %v563, %v1940
        %1942 = vmatmul.f32.gmra.mxu0 %v1059
        %v1943 = vpop.f32.mrf.mxu0
        %v1944 = vadd.f32 %v563, %v1943
        %1945 = vmatmul.f32.gmra.mxu0 %v1062
        %v1946 = vpop.f32.mrf.mxu0
        %v1947 = vadd.f32 %v563, %v1946
        %1948 = vmatmul.f32.gmra.mxu0 %v1065
        %v1949 = vpop.f32.mrf.mxu0
        %v1950 = vadd.f32 %v563, %v1949
        %1951 = vmatmul.f32.gmra.mxu0 %v1068
        %v1952 = vpop.f32.mrf.mxu0
        %v1953 = vadd.f32 %v563, %v1952
        %1954 = vmatmul.f32.gmra.mxu0 %v1071
        %v1955 = vpop.f32.mrf.mxu0
        %v1956 = vadd.f32 %v563, %v1955
        %1957 = vmatmul.f32.gmra.mxu0 %v1074
        %v1958 = vpop.f32.mrf.mxu0
        %v1959 = vadd.f32 %v563, %v1958
        %1960 = vmatmul.f32.gmra.mxu0 %v1077
        %v1961 = vpop.f32.mrf.mxu0
        %v1962 = vadd.f32 %v563, %v1961
        %1963 = vmatmul.f32.gmra.mxu0 %v1080
        %v1964 = vpop.f32.mrf.mxu0
        %v1965 = vadd.f32 %v563, %v1964
        %1966 = vmatmul.f32.gmra.mxu0 %v1083
        %v1967 = vpop.f32.mrf.mxu0
        %v1968 = vadd.f32 %v563, %v1967
        %1969 = vmatmul.f32.gmra.mxu0 %v1086
        %v1970 = vpop.f32.mrf.mxu0
        %v1971 = vadd.f32 %v563, %v1970
        %1972 = vmatmul.f32.gmra.mxu0 %v1089
        %v1973 = vpop.f32.mrf.mxu0
        %v1974 = vadd.f32 %v563, %v1973
        %1975 = vmatmul.f32.gmra.mxu0 %v1092
        %v1976 = vpop.f32.mrf.mxu0
        %v1977 = vadd.f32 %v563, %v1976
        %1978 = vmatmul.f32.gmra.mxu0 %v1095
        %v1979 = vpop.f32.mrf.mxu0
        %v1980 = vadd.f32 %v563, %v1979
        %1981 = vmatmul.f32.gmra.mxu0 %v1098
        %v1982 = vpop.f32.mrf.mxu0
        %v1983 = vadd.f32 %v563, %v1982
        %1984 = vmatmul.f32.gmra.mxu0 %v1101
        %v1985 = vpop.f32.mrf.mxu0
        %v1986 = vadd.f32 %v563, %v1985
        %1987 = vmatmul.f32.gmra.mxu0 %v1104
        %v1988 = vpop.f32.mrf.mxu0
        %v1989 = vadd.f32 %v563, %v1988
        %1990 = vmatmul.f32.gmra.mxu0 %v1107
        %v1991 = vpop.f32.mrf.mxu0
        %v1992 = vadd.f32 %v563, %v1991
        %1993 = vmatmul.f32.gmra.mxu0 %v1110
        %v1994 = vpop.f32.mrf.mxu0
        %v1995 = vadd.f32 %v563, %v1994
        %1996 = vmatmul.f32.gmra.mxu0 %v1113
        %v1997 = vpop.f32.mrf.mxu0
        %v1998 = vadd.f32 %v563, %v1997
        %1999 = vmatmul.f32.gmra.mxu0 %v1116
        %v2000 = vpop.f32.mrf.mxu0
        %v2001 = vadd.f32 %v563, %v2000
        %2002 = vmatmul.f32.gmra.mxu0 %v1119
        %v2003 = vpop.f32.mrf.mxu0
        %v2004 = vadd.f32 %v563, %v2003
        %2005 = vmatmul.f32.gmra.mxu0 %v1122
        %v2006 = vpop.f32.mrf.mxu0
        %v2007 = vadd.f32 %v563, %v2006
        %2008 = vmatmul.f32.gmra.mxu0 %v1125
        %v2009 = vpop.f32.mrf.mxu0
        %v2010 = vadd.f32 %v563, %v2009
        %2011 = vmatmul.f32.gmra.mxu0 %v1128
        %v2012 = vpop.f32.mrf.mxu0
        %v2013 = vadd.f32 %v563, %v2012
        %2014 = vmatmul.f32.gmra.mxu0 %v1131
        %v2015 = vpop.f32.mrf.mxu0
        %v2016 = vadd.f32 %v563, %v2015
        %2017 = vmatmul.f32.gmra.mxu0 %v1134
        %v2018 = vpop.f32.mrf.mxu0
        %v2019 = vadd.f32 %v563, %v2018
        %2020 = vmatmul.f32.gmra.mxu0 %v1137
        %v2021 = vpop.f32.mrf.mxu0
        %v2022 = vadd.f32 %v563, %v2021
        %2023 = vmatmul.f32.gmra.mxu0 %v1140
        %v2024 = vpop.f32.mrf.mxu0
        %v2025 = vadd.f32 %v563, %v2024
        %2026 = vmatmul.f32.gmra.mxu0 %v1143
        %v2027 = vpop.f32.mrf.mxu0
        %v2028 = vadd.f32 %v563, %v2027
        %2029 = vmatmul.f32.gmra.mxu0 %v1146
        %v2030 = vpop.f32.mrf.mxu0
        %v2031 = vadd.f32 %v563, %v2030
        %2032 = vmatmul.f32.gmra.mxu0 %v1149
        %v2033 = vpop.f32.mrf.mxu0
        %v2034 = vadd.f32 %v563, %v2033
        %2035 = vmatmul.f32.gmra.mxu0 %v1152
        %v2036 = vpop.f32.mrf.mxu0
        %v2037 = vadd.f32 %v563, %v2036
        %2038 = vmatmul.f32.gmra.mxu0 %v1155
        %v2039 = vpop.f32.mrf.mxu0
        %v2040 = vadd.f32 %v563, %v2039
        %2041 = vmatmul.f32.gmra.mxu0 %v1158
        %v2042 = vpop.f32.mrf.mxu0
        %v2043 = vadd.f32 %v563, %v2042
        %2044 = vmatmul.f32.gmra.mxu0 %v1161
        %v2045 = vpop.f32.mrf.mxu0
        %v2046 = vadd.f32 %v563, %v2045
        %2047 = vmatmul.f32.gmra.mxu0 %v1164
        %v2048 = vpop.f32.mrf.mxu0
        %v2049 = vadd.f32 %v563, %v2048
        %2050 = vmatmul.f32.gmra.mxu0 %v1167
        %v2051 = vpop.f32.mrf.mxu0
        %v2052 = vadd.f32 %v563, %v2051
        %2053 = vmatmul.f32.gmra.mxu0 %v1170
        %v2054 = vpop.f32.mrf.mxu0
        %v2055 = vadd.f32 %v563, %v2054
        %2056 = vmatmul.f32.gmra.mxu0 %v1173
        %v2057 = vpop.f32.mrf.mxu0
        %v2058 = vadd.f32 %v563, %v2057
        %2059 = vmatmul.f32.gmra.mxu0 %v1176
        %v2060 = vpop.f32.mrf.mxu0
        %v2061 = vadd.f32 %v563, %v2060
        %2062 = vmatmul.f32.gmra.mxu0 %v1179
        %v2063 = vpop.f32.mrf.mxu0
        %v2064 = vadd.f32 %v563, %v2063
        %2065 = vmatmul.f32.gmra.mxu0 %v1182
        %v2066 = vpop.f32.mrf.mxu0
        %v2067 = vadd.f32 %v563, %v2066
        %2068 = vmatmul.f32.gmra.mxu0 %v1185
        %v2069 = vpop.f32.mrf.mxu0
        %v2070 = vadd.f32 %v563, %v2069
        %2071 = vmatmul.f32.gmra.mxu0 %v1188
        %v2072 = vpop.f32.mrf.mxu0
        %v2073 = vadd.f32 %v563, %v2072
        %2074 = vmatmul.f32.gmra.mxu0 %v1191
        %v2075 = vpop.f32.mrf.mxu0
        %v2076 = vadd.f32 %v563, %v2075
        %2077 = vmatmul.f32.gmra.mxu0 %v1194
        %v2078 = vpop.f32.mrf.mxu0
        %v2079 = vadd.f32 %v563, %v2078
        %2080 = vmatmul.f32.gmra.mxu0 %v1197
        %v2081 = vpop.f32.mrf.mxu0
        %v2082 = vadd.f32 %v563, %v2081
        %2083 = vmatmul.f32.gmra.mxu0 %v1200
        %v2084 = vpop.f32.mrf.mxu0
        %v2085 = vadd.f32 %v563, %v2084
        %2086 = vmatmul.f32.gmra.mxu0 %v1203
        %v2087 = vpop.f32.mrf.mxu0
        %v2088 = vadd.f32 %v563, %v2087
        %2089 = vmatmul.f32.gmra.mxu0 %v1206
        %v2090 = vpop.f32.mrf.mxu0
        %v2091 = vadd.f32 %v563, %v2090
        %2092 = vmatmul.f32.gmra.mxu0 %v1209
        %v2093 = vpop.f32.mrf.mxu0
        %v2094 = vadd.f32 %v563, %v2093
        %2095 = vmatmul.f32.gmra.mxu0 %v1212
        %v2096 = vpop.f32.mrf.mxu0
        %v2097 = vadd.f32 %v563, %v2096
        %2098 = vmatmul.f32.gmra.mxu0 %v1215
        %v2099 = vpop.f32.mrf.mxu0
        %v2100 = vadd.f32 %v563, %v2099
        %2101 = vmatmul.f32.gmra.mxu0 %v1218
        %v2102 = vpop.f32.mrf.mxu0
        %v2103 = vadd.f32 %v563, %v2102
        %2104 = vmatmul.f32.gmra.mxu0 %v1221
        %v2105 = vpop.f32.mrf.mxu0
        %v2106 = vadd.f32 %v563, %v2105
        %2107 = vmatmul.f32.gmra.mxu0 %v1224
        %v2108 = vpop.f32.mrf.mxu0
        %v2109 = vadd.f32 %v563, %v2108
        %2110 = vmatmul.f32.gmra.mxu0 %v1227
        %v2111 = vpop.f32.mrf.mxu0
        %v2112 = vadd.f32 %v563, %v2111
        %2113 = vmatmul.f32.gmra.mxu0 %v1230
        %v2114 = vpop.f32.mrf.mxu0
        %v2115 = vadd.f32 %v563, %v2114
        %2116 = vmatmul.f32.gmra.mxu0 %v1233
        %v2117 = vpop.f32.mrf.mxu0
        %v2118 = vadd.f32 %v563, %v2117
        %2119 = vmatmul.f32.gmra.mxu0 %v1236
        %v2120 = vpop.f32.mrf.mxu0
        %v2121 = vadd.f32 %v563, %v2120
        %2122 = vmatmul.f32.gmra.mxu0 %v1239
        %v2123 = vpop.f32.mrf.mxu0
        %v2124 = vadd.f32 %v563, %v2123
        %2125 = vmatmul.f32.gmra.mxu0 %v1242
        %v2126 = vpop.f32.mrf.mxu0
        %v2127 = vadd.f32 %v563, %v2126
        %2128 = vmatmul.f32.gmra.mxu0 %v1245
        %v2129 = vpop.f32.mrf.mxu0
        %v2130 = vadd.f32 %v563, %v2129
        %2131 = vmatmul.f32.gmra.mxu0 %v1248
        %v2132 = vpop.f32.mrf.mxu0
        %v2133 = vadd.f32 %v563, %v2132
        %2134 = vmatmul.f32.gmra.mxu0 %v1251
        %v2135 = vpop.f32.mrf.mxu0
        %v2136 = vadd.f32 %v563, %v2135
        %2137 = vmatmul.f32.gmra.mxu0 %v1254
        %v2138 = vpop.f32.mrf.mxu0
        %v2139 = vadd.f32 %v563, %v2138
        %2140 = vmatmul.f32.gmra.mxu0 %v1257
        %v2141 = vpop.f32.mrf.mxu0
        %v2142 = vadd.f32 %v563, %v2141
        %2143 = vmatmul.f32.gmra.mxu0 %v1260
        %v2144 = vpop.f32.mrf.mxu0
        %v2145 = vadd.f32 %v563, %v2144
        %2146 = vmatmul.f32.gmra.mxu0 %v1263
        %v2147 = vpop.f32.mrf.mxu0
        %v2148 = vadd.f32 %v563, %v2147
        %2149 = vmatmul.f32.gmra.mxu0 %v1266
        %v2150 = vpop.f32.mrf.mxu0
        %v2151 = vadd.f32 %v563, %v2150
        %2152 = vmatmul.f32.gmra.mxu0 %v1269
        %v2153 = vpop.f32.mrf.mxu0
        %v2154 = vadd.f32 %v563, %v2153
        %2155 = vmatmul.f32.gmra.mxu0 %v1272
        %v2156 = vpop.f32.mrf.mxu0
        %v2157 = vadd.f32 %v563, %v2156
        %2158 = vmatmul.f32.gmra.mxu0 %v1275
        %v2159 = vpop.f32.mrf.mxu0
        %v2160 = vadd.f32 %v563, %v2159
        %2161 = vmatmul.f32.gmra.mxu0 %v1278
        %v2162 = vpop.f32.mrf.mxu0
        %v2163 = vadd.f32 %v563, %v2162
        %2164 = vmatmul.f32.gmra.mxu0 %v1281
        %v2165 = vpop.f32.mrf.mxu0
        %v2166 = vadd.f32 %v563, %v2165
        %2167 = vmatmul.f32.gmra.mxu0 %v1284
        %v2168 = vpop.f32.mrf.mxu0
        %v2169 = vadd.f32 %v563, %v2168
        %2170 = vmatmul.f32.gmra.mxu0 %v1287
        %v2171 = vpop.f32.mrf.mxu0
        %v2172 = vadd.f32 %v563, %v2171
        %2173 = vmatmul.f32.gmra.mxu0 %v1290
        %v2174 = vpop.f32.mrf.mxu0
        %v2175 = vadd.f32 %v563, %v2174
        %2176 = vmatmul.f32.gmra.mxu0 %v1293
        %v2177 = vpop.f32.mrf.mxu0
        %v2178 = vadd.f32 %v563, %v2177
        %2179 = vmatmul.f32.gmra.mxu0 %v1296
        %v2180 = vpop.f32.mrf.mxu0
        %v2181 = vadd.f32 %v563, %v2180
        %2182 = vmatmul.f32.gmra.mxu0 %v1299
        %v2183 = vpop.f32.mrf.mxu0
        %v2184 = vadd.f32 %v563, %v2183
        %2185 = vmatmul.f32.gmra.mxu0 %v1302
        %v2186 = vpop.f32.mrf.mxu0
        %v2187 = vadd.f32 %v563, %v2186
        %2188 = vmatmul.f32.gmra.mxu0 %v1305
        %v2189 = vpop.f32.mrf.mxu0
        %v2190 = vadd.f32 %v563, %v2189
        %2191 = vmatmul.f32.gmra.mxu0 %v1308
        %v2192 = vpop.f32.mrf.mxu0
        %v2193 = vadd.f32 %v563, %v2192
        %2194 = vmatmul.f32.gmra.mxu0 %v1311
        %v2195 = vpop.f32.mrf.mxu0
        %v2196 = vadd.f32 %v563, %v2195
        %2197 = vmatmul.f32.gmra.mxu0 %v1314
        %v2198 = vpop.f32.mrf.mxu0
        %v2199 = vadd.f32 %v563, %v2198
        %2200 = vmatmul.f32.gmra.mxu0 %v1317
        %v2201 = vpop.f32.mrf.mxu0
        %v2202 = vadd.f32 %v563, %v2201
        %2203 = vmatmul.f32.gmra.mxu0 %v1320
        %v2204 = vpop.f32.mrf.mxu0
        %v2205 = vadd.f32 %v563, %v2204
        %2206 = vmatmul.f32.gmra.mxu0 %v1323
        %v2207 = vpop.f32.mrf.mxu0
        %v2208 = vadd.f32 %v563, %v2207
        %2209 = vmatmul.f32.gmra.mxu0 %v1326
        %v2210 = vpop.f32.mrf.mxu0
        %v2211 = vadd.f32 %v563, %v2210
        %2212 = vmatmul.f32.gmra.mxu0 %v1329
        %v2213 = vpop.f32.mrf.mxu0
        %v2214 = vadd.f32 %v563, %v2213
        %2215 = vmatmul.f32.gmra.mxu0 %v1332
        %v2216 = vpop.f32.mrf.mxu0
        %v2217 = vadd.f32 %v563, %v2216
        %2218 = vmatmul.f32.gmra.mxu0 %v1335
        %v2219 = vpop.f32.mrf.mxu0
        %v2220 = vadd.f32 %v563, %v2219
        %2221 = vmatmul.f32.gmra.mxu0 %v1338
        %v2222 = vpop.f32.mrf.mxu0
        %v2223 = vadd.f32 %v563, %v2222
        %2224 = vmatmul.f32.gmra.mxu0 %v1341
        %v2225 = vpop.f32.mrf.mxu0
        %v2226 = vadd.f32 %v563, %v2225
        %2227 = vmatmul.f32.gmra.mxu0 %v1344
        %v2228 = vpop.f32.mrf.mxu0
        %v2229 = vadd.f32 %v563, %v2228
        %2230 = vmatmul.f32.gmra.mxu0 %v1347
        %v2231 = vpop.f32.mrf.mxu0
        %v2232 = vadd.f32 %v563, %v2231
        %2233 = vmatmul.f32.gmra.mxu0 %v1350
        %v2234 = vpop.f32.mrf.mxu0
        %v2235 = vadd.f32 %v563, %v2234
        %2236 = vmatmul.f32.gmra.mxu0 %v1353
        %v2237 = vpop.f32.mrf.mxu0
        %v2238 = vadd.f32 %v563, %v2237
        %2239 = vmatmul.f32.gmra.mxu0 %v1356
        %v2240 = vpop.f32.mrf.mxu0
        %v2241 = vadd.f32 %v563, %v2240
        %2242 = vmatmul.f32.gmra.mxu0 %v1359
        %v2243 = vpop.f32.mrf.mxu0
        %v2244 = vadd.f32 %v563, %v2243
        %2245 = vmatmul.f32.gmra.mxu0 %v1362
        %v2246 = vpop.f32.mrf.mxu0
        %v2247 = vadd.f32 %v563, %v2246
        %2248 = vmatmul.f32.gmra.mxu0 %v1365
        %v2249 = vpop.f32.mrf.mxu0
        %v2250 = vadd.f32 %v563, %v2249
        %2251 = vmatmul.f32.gmra.mxu0 %v1368
        %v2252 = vpop.f32.mrf.mxu0
        %v2253 = vadd.f32 %v563, %v2252
        %2254 = vmatmul.f32.gmra.mxu0 %v1371
        %v2255 = vpop.f32.mrf.mxu0
        %v2256 = vadd.f32 %v563, %v2255
        %2257 = vmatmul.f32.gmra.mxu0 %v1374
        %v2258 = vpop.f32.mrf.mxu0
        %v2259 = vadd.f32 %v563, %v2258
        %2260 = vmatmul.f32.gmra.mxu0 %v1377
        %v2261 = vpop.f32.mrf.mxu0
        %v2262 = vadd.f32 %v563, %v2261
        %2263 = vmatmul.f32.gmra.mxu0 %v1380
        %v2264 = vpop.f32.mrf.mxu0
        %v2265 = vadd.f32 %v563, %v2264
        %2266 = vmatmul.f32.gmra.mxu0 %v1383
        %v2267 = vpop.f32.mrf.mxu0
        %v2268 = vadd.f32 %v563, %v2267
        %2269 = vmatmul.f32.gmra.mxu0 %v1386
        %v2270 = vpop.f32.mrf.mxu0
        %v2271 = vadd.f32 %v563, %v2270
        %2272 = vmatmul.f32.gmra.mxu0 %v1389
        %v2273 = vpop.f32.mrf.mxu0
        %v2274 = vadd.f32 %v563, %v2273
        %2275 = vmatmul.f32.gmra.mxu0 %v1392
        %v2276 = vpop.f32.mrf.mxu0
        %v2277 = vadd.f32 %v563, %v2276
        %2278 = vmatmul.f32.gmra.mxu0 %v1395
        %v2279 = vpop.f32.mrf.mxu0
        %v2280 = vadd.f32 %v563, %v2279
        %2281 = vmatmul.f32.gmra.mxu0 %v1398
        %v2282 = vpop.f32.mrf.mxu0
        %v2283 = vadd.f32 %v563, %v2282
        %2284 = vmatmul.f32.gmra.mxu0 %v1401
        %v2285 = vpop.f32.mrf.mxu0
        %v2286 = vadd.f32 %v563, %v2285
        %2287 = vmatmul.f32.gmra.mxu0 %v1404
        %v2288 = vpop.f32.mrf.mxu0
        %v2289 = vadd.f32 %v563, %v2288
        %2290 = vmatmul.f32.gmra.mxu0 %v1407
        %v2291 = vpop.f32.mrf.mxu0
        %v2292 = vadd.f32 %v563, %v2291
        %2293 = vmatmul.f32.gmra.mxu0 %v1410
        %v2294 = vpop.f32.mrf.mxu0
        %v2295 = vadd.f32 %v563, %v2294
        %2296 = vmatmul.f32.gmra.mxu0 %v1413
        %v2297 = vpop.f32.mrf.mxu0
        %v2298 = vadd.f32 %v563, %v2297
        %2299 = vmatmul.f32.gmra.mxu0 %v1416
        %v2300 = vpop.f32.mrf.mxu0
        %v2301 = vadd.f32 %v563, %v2300
        %2302 = vmatmul.f32.gmra.mxu0 %v1419
        %v2303 = vpop.f32.mrf.mxu0
        %v2304 = vadd.f32 %v563, %v2303
        %2305 = vmatmul.f32.gmra.mxu0 %v1422
        %v2306 = vpop.f32.mrf.mxu0
        %v2307 = vadd.f32 %v563, %v2306
        %2308 = vmatmul.f32.gmra.mxu0 %v1425
        %v2309 = vpop.f32.mrf.mxu0
        %v2310 = vadd.f32 %v563, %v2309
        %2311 = vmatmul.f32.gmra.mxu0 %v1428
        %v2312 = vpop.f32.mrf.mxu0
        %v2313 = vadd.f32 %v563, %v2312
        %2314 = vdwg.mxu0
        %v2315 = vmax.f32 %v1452, 0.0
        %v2316 = vmax.f32 %v1455, 0.0
        %v2317 = vmax.f32 %v1458, 0.0
        %v2318 = vmax.f32 %v1461, 0.0
        %v2319 = vmax.f32 %v1464, 0.0
        %v2320 = vmax.f32 %v1467, 0.0
        %v2321 = vmax.f32 %v1470, 0.0
        %v2322 = vmax.f32 %v1473, 0.0
        %v2323 = vmax.f32 %v1476, 0.0
        %v2324 = vmax.f32 %v1479, 0.0
        %v2325 = vmax.f32 %v1482, 0.0
        %v2326 = vmax.f32 %v1485, 0.0
        %v2327 = vmax.f32 %v1488, 0.0
        %v2328 = vmax.f32 %v1491, 0.0
        %v2329 = vmax.f32 %v1494, 0.0
        %v2330 = vmax.f32 %v1497, 0.0
        %v2331 = vmax.f32 %v1500, 0.0
        %v2332 = vmax.f32 %v1503, 0.0
        %v2333 = vmax.f32 %v1506, 0.0
        %v2334 = vmax.f32 %v1509, 0.0
        %v2335 = vmax.f32 %v1512, 0.0
        %v2336 = vmax.f32 %v1515, 0.0
        %v2337 = vmax.f32 %v1518, 0.0
        %v2338 = vmax.f32 %v1521, 0.0
        %v2339 = vmax.f32 %v1524, 0.0
        %v2340 = vmax.f32 %v1527, 0.0
        %v2341 = vmax.f32 %v1530, 0.0
        %v2342 = vmax.f32 %v1533, 0.0
        %v2343 = vmax.f32 %v1536, 0.0
        %v2344 = vmax.f32 %v1539, 0.0
        %v2345 = vmax.f32 %v1542, 0.0
        %v2346 = vmax.f32 %v1545, 0.0
        %v2347 = vmax.f32 %v1548, 0.0
        %v2348 = vmax.f32 %v1551, 0.0
        %v2349 = vmax.f32 %v1554, 0.0
        %v2350 = vmax.f32 %v1557, 0.0
        %v2351 = vmax.f32 %v1560, 0.0
        %v2352 = vmax.f32 %v1563, 0.0
        %v2353 = vmax.f32 %v1566, 0.0
        %v2354 = vmax.f32 %v1569, 0.0
        %v2355 = vmax.f32 %v1572, 0.0
        %v2356 = vmax.f32 %v1575, 0.0
        %v2357 = vmax.f32 %v1578, 0.0
        %v2358 = vmax.f32 %v1581, 0.0
        %v2359 = vmax.f32 %v1584, 0.0
        %v2360 = vmax.f32 %v1587, 0.0
        %v2361 = vmax.f32 %v1590, 0.0
        %v2362 = vmax.f32 %v1593, 0.0
        %v2363 = vmax.f32 %v1596, 0.0
        %v2364 = vmax.f32 %v1599, 0.0
        %v2365 = vmax.f32 %v1602, 0.0
        %v2366 = vmax.f32 %v1605, 0.0
        %v2367 = vmax.f32 %v1608, 0.0
        %v2368 = vmax.f32 %v1611, 0.0
        %v2369 = vmax.f32 %v1614, 0.0
        %v2370 = vmax.f32 %v1617, 0.0
        %v2371 = vmax.f32 %v1620, 0.0
        %v2372 = vmax.f32 %v1623, 0.0
        %v2373 = vmax.f32 %v1626, 0.0
        %v2374 = vmax.f32 %v1629, 0.0
        %v2375 = vmax.f32 %v1632, 0.0
        %v2376 = vmax.f32 %v1635, 0.0
        %v2377 = vmax.f32 %v1638, 0.0
        %v2378 = vmax.f32 %v1641, 0.0
        %v2379 = vmax.f32 %v1644, 0.0
        %v2380 = vmax.f32 %v1647, 0.0
        %v2381 = vmax.f32 %v1650, 0.0
        %v2382 = vmax.f32 %v1653, 0.0
        %v2383 = vmax.f32 %v1656, 0.0
        %v2384 = vmax.f32 %v1659, 0.0
        %v2385 = vmax.f32 %v1662, 0.0
        %v2386 = vmax.f32 %v1665, 0.0
        %v2387 = vmax.f32 %v1668, 0.0
        %v2388 = vmax.f32 %v1671, 0.0
        %v2389 = vmax.f32 %v1674, 0.0
        %v2390 = vmax.f32 %v1677, 0.0
        %v2391 = vmax.f32 %v1680, 0.0
        %v2392 = vmax.f32 %v1683, 0.0
        %v2393 = vmax.f32 %v1686, 0.0
        %v2394 = vmax.f32 %v1689, 0.0
        %v2395 = vmax.f32 %v1692, 0.0
        %v2396 = vmax.f32 %v1695, 0.0
        %v2397 = vmax.f32 %v1698, 0.0
        %v2398 = vmax.f32 %v1701, 0.0
        %v2399 = vmax.f32 %v1704, 0.0
        %v2400 = vmax.f32 %v1707, 0.0
        %v2401 = vmax.f32 %v1710, 0.0
        %v2402 = vmax.f32 %v1713, 0.0
        %v2403 = vmax.f32 %v1716, 0.0
        %v2404 = vmax.f32 %v1719, 0.0
        %v2405 = vmax.f32 %v1722, 0.0
        %v2406 = vmax.f32 %v1725, 0.0
        %v2407 = vmax.f32 %v1728, 0.0
        %v2408 = vmax.f32 %v1731, 0.0
        %v2409 = vmax.f32 %v1734, 0.0
        %v2410 = vmax.f32 %v1737, 0.0
        %v2411 = vmax.f32 %v1740, 0.0
        %v2412 = vmax.f32 %v1743, 0.0
        %v2413 = vmax.f32 %v1746, 0.0
        %v2414 = vmax.f32 %v1749, 0.0
        %v2415 = vmax.f32 %v1752, 0.0
        %v2416 = vmax.f32 %v1755, 0.0
        %v2417 = vmax.f32 %v1758, 0.0
        %v2418 = vmax.f32 %v1761, 0.0
        %v2419 = vmax.f32 %v1764, 0.0
        %v2420 = vmax.f32 %v1767, 0.0
        %v2421 = vmax.f32 %v1770, 0.0
        %v2422 = vmax.f32 %v1773, 0.0
        %v2423 = vmax.f32 %v1776, 0.0
        %v2424 = vmax.f32 %v1779, 0.0
        %v2425 = vmax.f32 %v1782, 0.0
        %v2426 = vmax.f32 %v1785, 0.0
        %v2427 = vmax.f32 %v1788, 0.0
        %v2428 = vmax.f32 %v1791, 0.0
        %v2429 = vmax.f32 %v1794, 0.0
        %v2430 = vmax.f32 %v1797, 0.0
        %v2431 = vmax.f32 %v1800, 0.0
        %v2432 = vmax.f32 %v1803, 0.0
        %v2433 = vmax.f32 %v1806, 0.0
        %v2434 = vmax.f32 %v1809, 0.0
        %v2435 = vmax.f32 %v1812, 0.0
        %v2436 = vmax.f32 %v1815, 0.0
        %v2437 = vmax.f32 %v1818, 0.0
        %v2438 = vmax.f32 %v1821, 0.0
        %v2439 = vmax.f32 %v1824, 0.0
        %v2440 = vmax.f32 %v1827, 0.0
        %v2441 = vmax.f32 %v1830, 0.0
        %v2442 = vmax.f32 %v1833, 0.0
        %v2443 = vmax.f32 %v1836, 0.0
        %v2444 = vmax.f32 %v1839, 0.0
        %v2445 = vmax.f32 %v1842, 0.0
        %v2446 = vmax.f32 %v1845, 0.0
        %v2447 = vmax.f32 %v1848, 0.0
        %v2448 = vmax.f32 %v1851, 0.0
        %v2449 = vmax.f32 %v1854, 0.0
        %v2450 = vmax.f32 %v1857, 0.0
        %v2451 = vmax.f32 %v1860, 0.0
        %v2452 = vmax.f32 %v1863, 0.0
        %v2453 = vmax.f32 %v1866, 0.0
        %v2454 = vmax.f32 %v1869, 0.0
        %v2455 = vmax.f32 %v1872, 0.0
        %v2456 = vmax.f32 %v1875, 0.0
        %v2457 = vmax.f32 %v1878, 0.0
        %v2458 = vmax.f32 %v1881, 0.0
        %v2459 = vmax.f32 %v1884, 0.0
        %v2460 = vmax.f32 %v1887, 0.0
        %v2461 = vmax.f32 %v1890, 0.0
        %v2462 = vmax.f32 %v1893, 0.0
        %v2463 = vmax.f32 %v1896, 0.0
        %v2464 = vmax.f32 %v1899, 0.0
        %v2465 = vmax.f32 %v1902, 0.0
        %v2466 = vmax.f32 %v1905, 0.0
        %v2467 = vmax.f32 %v1908, 0.0
        %v2468 = vmax.f32 %v1911, 0.0
        %v2469 = vmax.f32 %v1914, 0.0
        %v2470 = vmax.f32 %v1917, 0.0
        %v2471 = vmax.f32 %v1920, 0.0
        %v2472 = vmax.f32 %v1923, 0.0
        %v2473 = vmax.f32 %v1926, 0.0
        %v2474 = vmax.f32 %v1929, 0.0
        %v2475 = vmax.f32 %v1932, 0.0
        %v2476 = vmax.f32 %v1935, 0.0
        %v2477 = vmax.f32 %v1938, 0.0
        %v2478 = vmax.f32 %v1941, 0.0
        %v2479 = vmax.f32 %v1944, 0.0
        %v2480 = vmax.f32 %v1947, 0.0
        %v2481 = vmax.f32 %v1950, 0.0
        %v2482 = vmax.f32 %v1953, 0.0
        %v2483 = vmax.f32 %v1956, 0.0
        %v2484 = vmax.f32 %v1959, 0.0
        %v2485 = vmax.f32 %v1962, 0.0
        %v2486 = vmax.f32 %v1965, 0.0
        %v2487 = vmax.f32 %v1968, 0.0
        %v2488 = vmax.f32 %v1971, 0.0
        %v2489 = vmax.f32 %v1974, 0.0
        %v2490 = vmax.f32 %v1977, 0.0
        %v2491 = vmax.f32 %v1980, 0.0
        %v2492 = vmax.f32 %v1983, 0.0
        %v2493 = vmax.f32 %v1986, 0.0
        %v2494 = vmax.f32 %v1989, 0.0
        %v2495 = vmax.f32 %v1992, 0.0
        %v2496 = vmax.f32 %v1995, 0.0
        %v2497 = vmax.f32 %v1998, 0.0
        %v2498 = vmax.f32 %v2001, 0.0
        %v2499 = vmax.f32 %v2004, 0.0
        %v2500 = vmax.f32 %v2007, 0.0
        %v2501 = vmax.f32 %v2010, 0.0
        %v2502 = vmax.f32 %v2013, 0.0
        %v2503 = vmax.f32 %v2016, 0.0
        %v2504 = vmax.f32 %v2019, 0.0
        %v2505 = vmax.f32 %v2022, 0.0
        %v2506 = vmax.f32 %v2025, 0.0
        %v2507 = vmax.f32 %v2028, 0.0
        %v2508 = vmax.f32 %v2031, 0.0
        %v2509 = vmax.f32 %v2034, 0.0
        %v2510 = vmax.f32 %v2037, 0.0
        %v2511 = vmax.f32 %v2040, 0.0
        %v2512 = vmax.f32 %v2043, 0.0
        %v2513 = vmax.f32 %v2046, 0.0
        %v2514 = vmax.f32 %v2049, 0.0
        %v2515 = vmax.f32 %v2052, 0.0
        %v2516 = vmax.f32 %v2055, 0.0
        %v2517 = vmax.f32 %v2058, 0.0
        %v2518 = vmax.f32 %v2061, 0.0
        %v2519 = vmax.f32 %v2064, 0.0
        %v2520 = vmax.f32 %v2067, 0.0
        %v2521 = vmax.f32 %v2070, 0.0
        %v2522 = vmax.f32 %v2073, 0.0
        %v2523 = vmax.f32 %v2076, 0.0
        %v2524 = vmax.f32 %v2079, 0.0
        %v2525 = vmax.f32 %v2082, 0.0
        %v2526 = vmax.f32 %v2085, 0.0
        %v2527 = vmax.f32 %v2088, 0.0
        %v2528 = vmax.f32 %v2091, 0.0
        %v2529 = vmax.f32 %v2094, 0.0
        %v2530 = vmax.f32 %v2097, 0.0
        %v2531 = vmax.f32 %v2100, 0.0
        %v2532 = vmax.f32 %v2103, 0.0
        %v2533 = vmax.f32 %v2106, 0.0
        %v2534 = vmax.f32 %v2109, 0.0
        %v2535 = vmax.f32 %v2112, 0.0
        %v2536 = vmax.f32 %v2115, 0.0
        %v2537 = vmax.f32 %v2118, 0.0
        %v2538 = vmax.f32 %v2121, 0.0
        %v2539 = vmax.f32 %v2124, 0.0
        %v2540 = vmax.f32 %v2127, 0.0
        %v2541 = vmax.f32 %v2130, 0.0
        %v2542 = vmax.f32 %v2133, 0.0
        %v2543 = vmax.f32 %v2136, 0.0
        %v2544 = vmax.f32 %v2139, 0.0
        %v2545 = vmax.f32 %v2142, 0.0
        %v2546 = vmax.f32 %v2145, 0.0
        %v2547 = vmax.f32 %v2148, 0.0
        %v2548 = vmax.f32 %v2151, 0.0
        %v2549 = vmax.f32 %v2154, 0.0
        %v2550 = vmax.f32 %v2157, 0.0
        %v2551 = vmax.f32 %v2160, 0.0
        %v2552 = vmax.f32 %v2163, 0.0
        %v2553 = vmax.f32 %v2166, 0.0
        %v2554 = vmax.f32 %v2169, 0.0
        %v2555 = vmax.f32 %v2172, 0.0
        %v2556 = vmax.f32 %v2175, 0.0
        %v2557 = vmax.f32 %v2178, 0.0
        %v2558 = vmax.f32 %v2181, 0.0
        %v2559 = vmax.f32 %v2184, 0.0
        %v2560 = vmax.f32 %v2187, 0.0
        %v2561 = vmax.f32 %v2190, 0.0
        %v2562 = vmax.f32 %v2193, 0.0
        %v2563 = vmax.f32 %v2196, 0.0
        %v2564 = vmax.f32 %v2199, 0.0
        %v2565 = vmax.f32 %v2202, 0.0
        %v2566 = vmax.f32 %v2205, 0.0
        %v2567 = vmax.f32 %v2208, 0.0
        %v2568 = vmax.f32 %v2211, 0.0
        %v2569 = vmax.f32 %v2214, 0.0
        %v2570 = vmax.f32 %v2217, 0.0
        %v2571 = vmax.f32 %v2220, 0.0
        %v2572 = vmax.f32 %v2223, 0.0
        %v2573 = vmax.f32 %v2226, 0.0
        %v2574 = vmax.f32 %v2229, 0.0
        %v2575 = vmax.f32 %v2232, 0.0
        %v2576 = vmax.f32 %v2235, 0.0
        %v2577 = vmax.f32 %v2238, 0.0
        %v2578 = vmax.f32 %v2241, 0.0
        %v2579 = vmax.f32 %v2244, 0.0
        %v2580 = vmax.f32 %v2247, 0.0
        %v2581 = vmax.f32 %v2250, 0.0
        %v2582 = vmax.f32 %v2253, 0.0
        %v2583 = vmax.f32 %v2256, 0.0
        %v2584 = vmax.f32 %v2259, 0.0
        %v2585 = vmax.f32 %v2262, 0.0
        %v2586 = vmax.f32 %v2265, 0.0
        %v2587 = vmax.f32 %v2268, 0.0
        %v2588 = vmax.f32 %v2271, 0.0
        %v2589 = vmax.f32 %v2274, 0.0
        %v2590 = vmax.f32 %v2277, 0.0
        %v2591 = vmax.f32 %v2280, 0.0
        %v2592 = vmax.f32 %v2283, 0.0
        %v2593 = vmax.f32 %v2286, 0.0
        %v2594 = vmax.f32 %v2289, 0.0
        %v2595 = vmax.f32 %v2292, 0.0
        %v2596 = vmax.f32 %v2295, 0.0
        %v2597 = vmax.f32 %v2298, 0.0
        %v2598 = vmax.f32 %v2301, 0.0
        %v2599 = vmax.f32 %v2304, 0.0
        %v2600 = vmax.f32 %v2307, 0.0
        %v2601 = vmax.f32 %v2310, 0.0
        %v2602 = vmax.f32 %v2313, 0.0
        %v2603 = vmax.f32 %v2315, %v2321
        %v2604 = vmax.f32 %v2316, %v2322
        %v2605 = vmax.f32 %v2317, %v2323
        %v2606 = vmax.f32 %v2318, %v2324
        %v2607 = vmax.f32 %v2319, %v2325
        %v2608 = vmax.f32 %v2320, %v2326
        %v2609 = vmax.f32 %v2327, %v2333
        %v2610 = vmax.f32 %v2328, %v2334
        %v2611 = vmax.f32 %v2329, %v2335
        %v2612 = vmax.f32 %v2330, %v2336
        %v2613 = vmax.f32 %v2331, %v2337
        %v2614 = vmax.f32 %v2332, %v2338
        %v2615 = vmax.f32 %v2339, %v2345
        %v2616 = vmax.f32 %v2340, %v2346
        %v2617 = vmax.f32 %v2341, %v2347
        %v2618 = vmax.f32 %v2342, %v2348
        %v2619 = vmax.f32 %v2343, %v2349
        %v2620 = vmax.f32 %v2344, %v2350
        %v2621 = vmax.f32 %v2351, %v2357
        %v2622 = vmax.f32 %v2352, %v2358
        %v2623 = vmax.f32 %v2353, %v2359
        %v2624 = vmax.f32 %v2354, %v2360
        %v2625 = vmax.f32 %v2355, %v2361
        %v2626 = vmax.f32 %v2356, %v2362
        %v2627 = vmax.f32 %v2363, %v2369
        %v2628 = vmax.f32 %v2364, %v2370
        %v2629 = vmax.f32 %v2365, %v2371
        %v2630 = vmax.f32 %v2366, %v2372
        %v2631 = vmax.f32 %v2367, %v2373
        %v2632 = vmax.f32 %v2368, %v2374
        %v2633 = vmax.f32 %v2375, %v2381
        %v2634 = vmax.f32 %v2376, %v2382
        %v2635 = vmax.f32 %v2377, %v2383
        %v2636 = vmax.f32 %v2378, %v2384
        %v2637 = vmax.f32 %v2379, %v2385
        %v2638 = vmax.f32 %v2380, %v2386
        %v2639 = vmax.f32 %v2387, %v2393
        %v2640 = vmax.f32 %v2388, %v2394
        %v2641 = vmax.f32 %v2389, %v2395
        %v2642 = vmax.f32 %v2390, %v2396
        %v2643 = vmax.f32 %v2391, %v2397
        %v2644 = vmax.f32 %v2392, %v2398
        %v2645 = vmax.f32 %v2399, %v2405
        %v2646 = vmax.f32 %v2400, %v2406
        %v2647 = vmax.f32 %v2401, %v2407
        %v2648 = vmax.f32 %v2402, %v2408
        %v2649 = vmax.f32 %v2403, %v2409
        %v2650 = vmax.f32 %v2404, %v2410
        %v2651 = vmax.f32 %v2411, %v2417
        %v2652 = vmax.f32 %v2412, %v2418
        %v2653 = vmax.f32 %v2413, %v2419
        %v2654 = vmax.f32 %v2414, %v2420
        %v2655 = vmax.f32 %v2415, %v2421
        %v2656 = vmax.f32 %v2416, %v2422
        %v2657 = vmax.f32 %v2423, %v2429
        %v2658 = vmax.f32 %v2424, %v2430
        %v2659 = vmax.f32 %v2425, %v2431
        %v2660 = vmax.f32 %v2426, %v2432
        %v2661 = vmax.f32 %v2427, %v2433
        %v2662 = vmax.f32 %v2428, %v2434
        %v2663 = vmax.f32 %v2435, %v2441
        %v2664 = vmax.f32 %v2436, %v2442
        %v2665 = vmax.f32 %v2437, %v2443
        %v2666 = vmax.f32 %v2438, %v2444
        %v2667 = vmax.f32 %v2439, %v2445
        %v2668 = vmax.f32 %v2440, %v2446
        %v2669 = vmax.f32 %v2447, %v2453
        %v2670 = vmax.f32 %v2448, %v2454
        %v2671 = vmax.f32 %v2449, %v2455
        %v2672 = vmax.f32 %v2450, %v2456
        %v2673 = vmax.f32 %v2451, %v2457
        %v2674 = vmax.f32 %v2452, %v2458
        %v2675 = vmax.f32 %v2459, %v2465
        %v2676 = vmax.f32 %v2460, %v2466
        %v2677 = vmax.f32 %v2461, %v2467
        %v2678 = vmax.f32 %v2462, %v2468
        %v2679 = vmax.f32 %v2463, %v2469
        %v2680 = vmax.f32 %v2464, %v2470
        %v2681 = vmax.f32 %v2471, %v2477
        %v2682 = vmax.f32 %v2472, %v2478
        %v2683 = vmax.f32 %v2473, %v2479
        %v2684 = vmax.f32 %v2474, %v2480
        %v2685 = vmax.f32 %v2475, %v2481
        %v2686 = vmax.f32 %v2476, %v2482
        %v2687 = vmax.f32 %v2483, %v2489
        %v2688 = vmax.f32 %v2484, %v2490
        %v2689 = vmax.f32 %v2485, %v2491
        %v2690 = vmax.f32 %v2486, %v2492
        %v2691 = vmax.f32 %v2487, %v2493
        %v2692 = vmax.f32 %v2488, %v2494
        %v2693 = vmax.f32 %v2495, %v2501
        %v2694 = vmax.f32 %v2496, %v2502
        %v2695 = vmax.f32 %v2497, %v2503
        %v2696 = vmax.f32 %v2498, %v2504
        %v2697 = vmax.f32 %v2499, %v2505
        %v2698 = vmax.f32 %v2500, %v2506
        %v2699 = vmax.f32 %v2507, %v2513
        %v2700 = vmax.f32 %v2508, %v2514
        %v2701 = vmax.f32 %v2509, %v2515
        %v2702 = vmax.f32 %v2510, %v2516
        %v2703 = vmax.f32 %v2511, %v2517
        %v2704 = vmax.f32 %v2512, %v2518
        %v2705 = vmax.f32 %v2519, %v2525
        %v2706 = vmax.f32 %v2520, %v2526
        %v2707 = vmax.f32 %v2521, %v2527
        %v2708 = vmax.f32 %v2522, %v2528
        %v2709 = vmax.f32 %v2523, %v2529
        %v2710 = vmax.f32 %v2524, %v2530
        %v2711 = vmax.f32 %v2531, %v2537
        %v2712 = vmax.f32 %v2532, %v2538
        %v2713 = vmax.f32 %v2533, %v2539
        %v2714 = vmax.f32 %v2534, %v2540
        %v2715 = vmax.f32 %v2535, %v2541
        %v2716 = vmax.f32 %v2536, %v2542
        %v2717 = vmax.f32 %v2543, %v2549
        %v2718 = vmax.f32 %v2544, %v2550
        %v2719 = vmax.f32 %v2545, %v2551
        %v2720 = vmax.f32 %v2546, %v2552
        %v2721 = vmax.f32 %v2547, %v2553
        %v2722 = vmax.f32 %v2548, %v2554
        %v2723 = vmax.f32 %v2555, %v2561
        %v2724 = vmax.f32 %v2556, %v2562
        %v2725 = vmax.f32 %v2557, %v2563
        %v2726 = vmax.f32 %v2558, %v2564
        %v2727 = vmax.f32 %v2559, %v2565
        %v2728 = vmax.f32 %v2560, %v2566
        %v2729 = vmax.f32 %v2567, %v2573
        %v2730 = vmax.f32 %v2568, %v2574
        %v2731 = vmax.f32 %v2569, %v2575
        %v2732 = vmax.f32 %v2570, %v2576
        %v2733 = vmax.f32 %v2571, %v2577
        %v2734 = vmax.f32 %v2572, %v2578
        %v2735 = vmax.f32 %v2579, %v2585
        %v2736 = vmax.f32 %v2580, %v2586
        %v2737 = vmax.f32 %v2581, %v2587
        %v2738 = vmax.f32 %v2582, %v2588
        %v2739 = vmax.f32 %v2583, %v2589
        %v2740 = vmax.f32 %v2584, %v2590
        %v2741 = vmax.f32 %v2591, %v2597
        %v2742 = vmax.f32 %v2592, %v2598
        %v2743 = vmax.f32 %v2593, %v2599
        %v2744 = vmax.f32 %v2594, %v2600
        %v2745 = vmax.f32 %v2595, %v2601
        %v2746 = vmax.f32 %v2596, %v2602
        %vm2747 = vcmask 261120
        %2748 = vst.msk [vmem:[#allocation2] sm:$0xff] %vm2747, %v2603
        %2749 = vst.msk [vmem:[#allocation2 + $0x8] sm:$0xff] %vm2747, %v2604
        %2750 = vst.msk [vmem:[#allocation2 + $0x10] sm:$0xff] %vm2747, %v2605
        %2751 = vst.msk [vmem:[#allocation2 + $0x18] sm:$0xff] %vm2747, %v2606
        %2752 = vst.msk [vmem:[#allocation2 + $0x20] sm:$0xff] %vm2747, %v2607
        %2753 = vst.msk [vmem:[#allocation2 + $0x28] sm:$0xff] %vm2747, %v2608
        %2754 = vst.msk [vmem:[#allocation2 + $0x30] sm:$0xff] %vm2747, %v2609
        %2755 = vst.msk [vmem:[#allocation2 + $0x38] sm:$0xff] %vm2747, %v2610
        %2756 = vst.msk [vmem:[#allocation2 + $0x40] sm:$0xff] %vm2747, %v2611
        %2757 = vst.msk [vmem:[#allocation2 + $0x48] sm:$0xff] %vm2747, %v2612
        %2758 = vst.msk [vmem:[#allocation2 + $0x50] sm:$0xff] %vm2747, %v2613
        %2759 = vst.msk [vmem:[#allocation2 + $0x58] sm:$0xff] %vm2747, %v2614
        %2760 = vst.msk [vmem:[#allocation2 + $0x60] sm:$0xff] %vm2747, %v2615
        %2761 = vst.msk [vmem:[#allocation2 + $0x68] sm:$0xff] %vm2747, %v2616
        %2762 = vst.msk [vmem:[#allocation2 + $0x70] sm:$0xff] %vm2747, %v2617
        %2763 = vst.msk [vmem:[#allocation2 + $0x78] sm:$0xff] %vm2747, %v2618
        %2764 = vst.msk [vmem:[#allocation2 + $0x80] sm:$0xff] %vm2747, %v2619
        %2765 = vst.msk [vmem:[#allocation2 + $0x88] sm:$0xff] %vm2747, %v2620
        %2766 = vst.msk [vmem:[#allocation2 + $0x90] sm:$0xff] %vm2747, %v2621
        %2767 = vst.msk [vmem:[#allocation2 + $0x98] sm:$0xff] %vm2747, %v2622
        %2768 = vst.msk [vmem:[#allocation2 + $0xa0] sm:$0xff] %vm2747, %v2623
        %2769 = vst.msk [vmem:[#allocation2 + $0xa8] sm:$0xff] %vm2747, %v2624
        %2770 = vst.msk [vmem:[#allocation2 + $0xb0] sm:$0xff] %vm2747, %v2625
        %2771 = vst.msk [vmem:[#allocation2 + $0xb8] sm:$0xff] %vm2747, %v2626
        %2772 = vst.msk [vmem:[#allocation2 + $0xc0] sm:$0xff] %vm2747, %v2627
        %2773 = vst.msk [vmem:[#allocation2 + $0xc8] sm:$0xff] %vm2747, %v2628
        %2774 = vst.msk [vmem:[#allocation2 + $0xd0] sm:$0xff] %vm2747, %v2629
        %2775 = vst.msk [vmem:[#allocation2 + $0xd8] sm:$0xff] %vm2747, %v2630
        %2776 = vst.msk [vmem:[#allocation2 + $0xe0] sm:$0xff] %vm2747, %v2631
        %2777 = vst.msk [vmem:[#allocation2 + $0xe8] sm:$0xff] %vm2747, %v2632
        %2778 = vst.msk [vmem:[#allocation2 + $0xf0] sm:$0xff] %vm2747, %v2633
        %2779 = vst.msk [vmem:[#allocation2 + $0xf8] sm:$0xff] %vm2747, %v2634
        %2780 = vst.msk [vmem:[#allocation2 + $0x100] sm:$0xff] %vm2747, %v2635
        %2781 = vst.msk [vmem:[#allocation2 + $0x108] sm:$0xff] %vm2747, %v2636
        %2782 = vst.msk [vmem:[#allocation2 + $0x110] sm:$0xff] %vm2747, %v2637
        %2783 = vst.msk [vmem:[#allocation2 + $0x118] sm:$0xff] %vm2747, %v2638
        %2784 = vst.msk [vmem:[#allocation2 + $0x120] sm:$0xff] %vm2747, %v2639
        %2785 = vst.msk [vmem:[#allocation2 + $0x128] sm:$0xff] %vm2747, %v2640
        %2786 = vst.msk [vmem:[#allocation2 + $0x130] sm:$0xff] %vm2747, %v2641
        %2787 = vst.msk [vmem:[#allocation2 + $0x138] sm:$0xff] %vm2747, %v2642
        %2788 = vst.msk [vmem:[#allocation2 + $0x140] sm:$0xff] %vm2747, %v2643
        %2789 = vst.msk [vmem:[#allocation2 + $0x148] sm:$0xff] %vm2747, %v2644
        %2790 = vst.msk [vmem:[#allocation2 + $0x150] sm:$0xff] %vm2747, %v2645
        %2791 = vst.msk [vmem:[#allocation2 + $0x158] sm:$0xff] %vm2747, %v2646
        %2792 = vst.msk [vmem:[#allocation2 + $0x160] sm:$0xff] %vm2747, %v2647
        %2793 = vst.msk [vmem:[#allocation2 + $0x168] sm:$0xff] %vm2747, %v2648
        %2794 = vst.msk [vmem:[#allocation2 + $0x170] sm:$0xff] %vm2747, %v2649
        %2795 = vst.msk [vmem:[#allocation2 + $0x178] sm:$0xff] %vm2747, %v2650
        %2796 = vst.msk [vmem:[#allocation2 + $0x180] sm:$0xff] %vm2747, %v2651
        %2797 = vst.msk [vmem:[#allocation2 + $0x188] sm:$0xff] %vm2747, %v2652
        %2798 = vst.msk [vmem:[#allocation2 + $0x190] sm:$0xff] %vm2747, %v2653
        %2799 = vst.msk [vmem:[#allocation2 + $0x198] sm:$0xff] %vm2747, %v2654
        %2800 = vst.msk [vmem:[#allocation2 + $0x1a0] sm:$0xff] %vm2747, %v2655
        %2801 = vst.msk [vmem:[#allocation2 + $0x1a8] sm:$0xff] %vm2747, %v2656
        %2802 = vst.msk [vmem:[#allocation2 + $0x1b0] sm:$0xff] %vm2747, %v2657
        %2803 = vst.msk [vmem:[#allocation2 + $0x1b8] sm:$0xff] %vm2747, %v2658
        %2804 = vst.msk [vmem:[#allocation2 + $0x1c0] sm:$0xff] %vm2747, %v2659
        %2805 = vst.msk [vmem:[#allocation2 + $0x1c8] sm:$0xff] %vm2747, %v2660
        %2806 = vst.msk [vmem:[#allocation2 + $0x1d0] sm:$0xff] %vm2747, %v2661
        %2807 = vst.msk [vmem:[#allocation2 + $0x1d8] sm:$0xff] %vm2747, %v2662
        %2808 = vst.msk [vmem:[#allocation2 + $0x1e0] sm:$0xff] %vm2747, %v2663
        %2809 = vst.msk [vmem:[#allocation2 + $0x1e8] sm:$0xff] %vm2747, %v2664
        %2810 = vst.msk [vmem:[#allocation2 + $0x1f0] sm:$0xff] %vm2747, %v2665
        %2811 = vst.msk [vmem:[#allocation2 + $0x1f8] sm:$0xff] %vm2747, %v2666
        %2812 = vst.msk [vmem:[#allocation2 + $0x200] sm:$0xff] %vm2747, %v2667
        %2813 = vst.msk [vmem:[#allocation2 + $0x208] sm:$0xff] %vm2747, %v2668
        %2814 = vst.msk [vmem:[#allocation2 + $0x210] sm:$0xff] %vm2747, %v2669
        %2815 = vst.msk [vmem:[#allocation2 + $0x218] sm:$0xff] %vm2747, %v2670
        %2816 = vst.msk [vmem:[#allocation2 + $0x220] sm:$0xff] %vm2747, %v2671
        %2817 = vst.msk [vmem:[#allocation2 + $0x228] sm:$0xff] %vm2747, %v2672
        %2818 = vst.msk [vmem:[#allocation2 + $0x230] sm:$0xff] %vm2747, %v2673
        %2819 = vst.msk [vmem:[#allocation2 + $0x238] sm:$0xff] %vm2747, %v2674
        %2820 = vst.msk [vmem:[#allocation2 + $0x240] sm:$0xff] %vm2747, %v2675
        %2821 = vst.msk [vmem:[#allocation2 + $0x248] sm:$0xff] %vm2747, %v2676
        %2822 = vst.msk [vmem:[#allocation2 + $0x250] sm:$0xff] %vm2747, %v2677
        %2823 = vst.msk [vmem:[#allocation2 + $0x258] sm:$0xff] %vm2747, %v2678
        %2824 = vst.msk [vmem:[#allocation2 + $0x260] sm:$0xff] %vm2747, %v2679
        %2825 = vst.msk [vmem:[#allocation2 + $0x268] sm:$0xff] %vm2747, %v2680
        %2826 = vst.msk [vmem:[#allocation2 + $0x270] sm:$0xff] %vm2747, %v2681
        %2827 = vst.msk [vmem:[#allocation2 + $0x278] sm:$0xff] %vm2747, %v2682
        %2828 = vst.msk [vmem:[#allocation2 + $0x280] sm:$0xff] %vm2747, %v2683
        %2829 = vst.msk [vmem:[#allocation2 + $0x288] sm:$0xff] %vm2747, %v2684
        %2830 = vst.msk [vmem:[#allocation2 + $0x290] sm:$0xff] %vm2747, %v2685
        %2831 = vst.msk [vmem:[#allocation2 + $0x298] sm:$0xff] %vm2747, %v2686
        %2832 = vst.msk [vmem:[#allocation2 + $0x2a0] sm:$0xff] %vm2747, %v2687
        %2833 = vst.msk [vmem:[#allocation2 + $0x2a8] sm:$0xff] %vm2747, %v2688
        %2834 = vst.msk [vmem:[#allocation2 + $0x2b0] sm:$0xff] %vm2747, %v2689
        %2835 = vst.msk [vmem:[#allocation2 + $0x2b8] sm:$0xff] %vm2747, %v2690
        %2836 = vst.msk [vmem:[#allocation2 + $0x2c0] sm:$0xff] %vm2747, %v2691
        %2837 = vst.msk [vmem:[#allocation2 + $0x2c8] sm:$0xff] %vm2747, %v2692
        %2838 = vst.msk [vmem:[#allocation2 + $0x2d0] sm:$0xff] %vm2747, %v2693
        %2839 = vst.msk [vmem:[#allocation2 + $0x2d8] sm:$0xff] %vm2747, %v2694
        %2840 = vst.msk [vmem:[#allocation2 + $0x2e0] sm:$0xff] %vm2747, %v2695
        %2841 = vst.msk [vmem:[#allocation2 + $0x2e8] sm:$0xff] %vm2747, %v2696
        %2842 = vst.msk [vmem:[#allocation2 + $0x2f0] sm:$0xff] %vm2747, %v2697
        %2843 = vst.msk [vmem:[#allocation2 + $0x2f8] sm:$0xff] %vm2747, %v2698
        %2844 = vst.msk [vmem:[#allocation2 + $0x300] sm:$0xff] %vm2747, %v2699
        %2845 = vst.msk [vmem:[#allocation2 + $0x308] sm:$0xff] %vm2747, %v2700
        %2846 = vst.msk [vmem:[#allocation2 + $0x310] sm:$0xff] %vm2747, %v2701
        %2847 = vst.msk [vmem:[#allocation2 + $0x318] sm:$0xff] %vm2747, %v2702
        %2848 = vst.msk [vmem:[#allocation2 + $0x320] sm:$0xff] %vm2747, %v2703
        %2849 = vst.msk [vmem:[#allocation2 + $0x328] sm:$0xff] %vm2747, %v2704
        %2850 = vst.msk [vmem:[#allocation2 + $0x330] sm:$0xff] %vm2747, %v2705
        %2851 = vst.msk [vmem:[#allocation2 + $0x338] sm:$0xff] %vm2747, %v2706
        %2852 = vst.msk [vmem:[#allocation2 + $0x340] sm:$0xff] %vm2747, %v2707
        %2853 = vst.msk [vmem:[#allocation2 + $0x348] sm:$0xff] %vm2747, %v2708
        %2854 = vst.msk [vmem:[#allocation2 + $0x350] sm:$0xff] %vm2747, %v2709
        %2855 = vst.msk [vmem:[#allocation2 + $0x358] sm:$0xff] %vm2747, %v2710
        %2856 = vst.msk [vmem:[#allocation2 + $0x360] sm:$0xff] %vm2747, %v2711
        %2857 = vst.msk [vmem:[#allocation2 + $0x368] sm:$0xff] %vm2747, %v2712
        %2858 = vst.msk [vmem:[#allocation2 + $0x370] sm:$0xff] %vm2747, %v2713
        %2859 = vst.msk [vmem:[#allocation2 + $0x378] sm:$0xff] %vm2747, %v2714
        %2860 = vst.msk [vmem:[#allocation2 + $0x380] sm:$0xff] %vm2747, %v2715
        %2861 = vst.msk [vmem:[#allocation2 + $0x388] sm:$0xff] %vm2747, %v2716
        %2862 = vst.msk [vmem:[#allocation2 + $0x390] sm:$0xff] %vm2747, %v2717
        %2863 = vst.msk [vmem:[#allocation2 + $0x398] sm:$0xff] %vm2747, %v2718
        %2864 = vst.msk [vmem:[#allocation2 + $0x3a0] sm:$0xff] %vm2747, %v2719
        %2865 = vst.msk [vmem:[#allocation2 + $0x3a8] sm:$0xff] %vm2747, %v2720
        %2866 = vst.msk [vmem:[#allocation2 + $0x3b0] sm:$0xff] %vm2747, %v2721
        %2867 = vst.msk [vmem:[#allocation2 + $0x3b8] sm:$0xff] %vm2747, %v2722
        %2868 = vst.msk [vmem:[#allocation2 + $0x3c0] sm:$0xff] %vm2747, %v2723
        %2869 = vst.msk [vmem:[#allocation2 + $0x3c8] sm:$0xff] %vm2747, %v2724
        %2870 = vst.msk [vmem:[#allocation2 + $0x3d0] sm:$0xff] %vm2747, %v2725
        %2871 = vst.msk [vmem:[#allocation2 + $0x3d8] sm:$0xff] %vm2747, %v2726
        %2872 = vst.msk [vmem:[#allocation2 + $0x3e0] sm:$0xff] %vm2747, %v2727
        %2873 = vst.msk [vmem:[#allocation2 + $0x3e8] sm:$0xff] %vm2747, %v2728
        %2874 = vst.msk [vmem:[#allocation2 + $0x3f0] sm:$0xff] %vm2747, %v2729
        %2875 = vst.msk [vmem:[#allocation2 + $0x3f8] sm:$0xff] %vm2747, %v2730
        %2876 = vst.msk [vmem:[#allocation2 + $0x400] sm:$0xff] %vm2747, %v2731
        %2877 = vst.msk [vmem:[#allocation2 + $0x408] sm:$0xff] %vm2747, %v2732
        %2878 = vst.msk [vmem:[#allocation2 + $0x410] sm:$0xff] %vm2747, %v2733
        %2879 = vst.msk [vmem:[#allocation2 + $0x418] sm:$0xff] %vm2747, %v2734
        %2880 = vst.msk [vmem:[#allocation2 + $0x420] sm:$0xff] %vm2747, %v2735
        %2881 = vst.msk [vmem:[#allocation2 + $0x428] sm:$0xff] %vm2747, %v2736
        %2882 = vst.msk [vmem:[#allocation2 + $0x430] sm:$0xff] %vm2747, %v2737
        %2883 = vst.msk [vmem:[#allocation2 + $0x438] sm:$0xff] %vm2747, %v2738
        %2884 = vst.msk [vmem:[#allocation2 + $0x440] sm:$0xff] %vm2747, %v2739
        %2885 = vst.msk [vmem:[#allocation2 + $0x448] sm:$0xff] %vm2747, %v2740
        %2886 = vst.msk [vmem:[#allocation2 + $0x450] sm:$0xff] %vm2747, %v2741
        %2887 = vst.msk [vmem:[#allocation2 + $0x458] sm:$0xff] %vm2747, %v2742
        %2888 = vst.msk [vmem:[#allocation2 + $0x460] sm:$0xff] %vm2747, %v2743
        %2889 = vst.msk [vmem:[#allocation2 + $0x468] sm:$0xff] %vm2747, %v2744
        %2890 = vst.msk [vmem:[#allocation2 + $0x470] sm:$0xff] %vm2747, %v2745
        %2891 = vst.msk [vmem:[#allocation2 + $0x478] sm:$0xff] %vm2747, %v2746
        %v2892 = vld [vmem:[#allocation2] ss:$2 sm:$0xff]
        %s2893 = scalar_lea.vmem [#allocation2], 16
        %v2894 = vld [vmem:[%s2893] ss:$2 sm:$0xff]
        %s2895 = scalar_lea.vmem [#allocation2], 32
        %v2896 = vld [vmem:[%s2895] ss:$2 sm:$0xff]
        %s2897 = scalar_lea.vmem [#allocation2], 48
        %v2898 = vld [vmem:[%s2897] ss:$2 sm:$0xff]
        %s2899 = scalar_lea.vmem [#allocation2], 64
        %v2900 = vld [vmem:[%s2899] ss:$2 sm:$0xff]
        %s2901 = scalar_lea.vmem [#allocation2], 80
        %v2902 = vld [vmem:[%s2901] ss:$2 sm:$0xff]
        %s2903 = scalar_lea.vmem [#allocation2], 96
        %v2904 = vld [vmem:[%s2903] ss:$2 sm:$0xff]
        %s2905 = scalar_lea.vmem [#allocation2], 112
        %v2906 = vld [vmem:[%s2905] ss:$2 sm:$0xff]
        %s2907 = scalar_lea.vmem [#allocation2], 128
        %v2908 = vld [vmem:[%s2907] ss:$2 sm:$0xff]
        %s2909 = scalar_lea.vmem [#allocation2], 144
        %v2910 = vld [vmem:[%s2909] ss:$2 sm:$0xff]
        %s2911 = scalar_lea.vmem [#allocation2], 160
        %v2912 = vld [vmem:[%s2911] ss:$2 sm:$0xff]
        %s2913 = scalar_lea.vmem [#allocation2], 176
        %v2914 = vld [vmem:[%s2913] ss:$2 sm:$0xff]
        %s2915 = scalar_lea.vmem [#allocation2], 192
        %v2916 = vld [vmem:[%s2915] ss:$2 sm:$0xff]
        %s2917 = scalar_lea.vmem [#allocation2], 208
        %v2918 = vld [vmem:[%s2917] ss:$2 sm:$0xff]
        %s2919 = scalar_lea.vmem [#allocation2], 224
        %v2920 = vld [vmem:[%s2919] ss:$2 sm:$0xff]
        %s2921 = scalar_lea.vmem [#allocation2], 240
        %v2922 = vld [vmem:[%s2921] ss:$2 sm:$0xff]
        %s2923 = scalar_lea.vmem [#allocation2], 256
        %v2924 = vld [vmem:[%s2923] ss:$2 sm:$0xff]
        %s2925 = scalar_lea.vmem [#allocation2], 272
        %v2926 = vld [vmem:[%s2925] ss:$2 sm:$0xff]
        %s2927 = scalar_lea.vmem [#allocation2], 288
        %v2928 = vld [vmem:[%s2927] ss:$2 sm:$0xff]
        %s2929 = scalar_lea.vmem [#allocation2], 304
        %v2930 = vld [vmem:[%s2929] ss:$2 sm:$0xff]
        %s2931 = scalar_lea.vmem [#allocation2], 320
        %v2932 = vld [vmem:[%s2931] ss:$2 sm:$0xff]
        %s2933 = scalar_lea.vmem [#allocation2], 336
        %v2934 = vld [vmem:[%s2933] ss:$2 sm:$0xff]
        %s2935 = scalar_lea.vmem [#allocation2], 352
        %v2936 = vld [vmem:[%s2935] ss:$2 sm:$0xff]
        %s2937 = scalar_lea.vmem [#allocation2], 368
        %v2938 = vld [vmem:[%s2937] ss:$2 sm:$0xff]
        %s2939 = scalar_lea.vmem [#allocation2], 384
        %v2940 = vld [vmem:[%s2939] ss:$2 sm:$0xff]
        %s2941 = scalar_lea.vmem [#allocation2], 400
        %v2942 = vld [vmem:[%s2941] ss:$2 sm:$0xff]
        %s2943 = scalar_lea.vmem [#allocation2], 416
        %v2944 = vld [vmem:[%s2943] ss:$2 sm:$0xff]
        %s2945 = scalar_lea.vmem [#allocation2], 432
        %v2946 = vld [vmem:[%s2945] ss:$2 sm:$0xff]
        %s2947 = scalar_lea.vmem [#allocation2], 448
        %v2948 = vld [vmem:[%s2947] ss:$2 sm:$0xff]
        %s2949 = scalar_lea.vmem [#allocation2], 464
        %v2950 = vld [vmem:[%s2949] ss:$2 sm:$0xff]
        %s2951 = scalar_lea.vmem [#allocation2], 480
        %v2952 = vld [vmem:[%s2951] ss:$2 sm:$0xff]
        %s2953 = scalar_lea.vmem [#allocation2], 496
        %v2954 = vld [vmem:[%s2953] ss:$2 sm:$0xff]
        %s2955 = scalar_lea.vmem [#allocation2], 512
        %v2956 = vld [vmem:[%s2955] ss:$2 sm:$0xff]
        %s2957 = scalar_lea.vmem [#allocation2], 528
        %v2958 = vld [vmem:[%s2957] ss:$2 sm:$0xff]
        %s2959 = scalar_lea.vmem [#allocation2], 544
        %v2960 = vld [vmem:[%s2959] ss:$2 sm:$0xff]
        %s2961 = scalar_lea.vmem [#allocation2], 560
        %v2962 = vld [vmem:[%s2961] ss:$2 sm:$0xff]
        %s2963 = scalar_lea.vmem [#allocation2], 576
        %v2964 = vld [vmem:[%s2963] ss:$2 sm:$0xff]
        %s2965 = scalar_lea.vmem [#allocation2], 592
        %v2966 = vld [vmem:[%s2965] ss:$2 sm:$0xff]
        %s2967 = scalar_lea.vmem [#allocation2], 608
        %v2968 = vld [vmem:[%s2967] ss:$2 sm:$0xff]
        %s2969 = scalar_lea.vmem [#allocation2], 624
        %v2970 = vld [vmem:[%s2969] ss:$2 sm:$0xff]
        %s2971 = scalar_lea.vmem [#allocation2], 640
        %v2972 = vld [vmem:[%s2971] ss:$2 sm:$0xff]
        %s2973 = scalar_lea.vmem [#allocation2], 656
        %v2974 = vld [vmem:[%s2973] ss:$2 sm:$0xff]
        %s2975 = scalar_lea.vmem [#allocation2], 672
        %v2976 = vld [vmem:[%s2975] ss:$2 sm:$0xff]
        %s2977 = scalar_lea.vmem [#allocation2], 688
        %v2978 = vld [vmem:[%s2977] ss:$2 sm:$0xff]
        %s2979 = scalar_lea.vmem [#allocation2], 704
        %v2980 = vld [vmem:[%s2979] ss:$2 sm:$0xff]
        %s2981 = scalar_lea.vmem [#allocation2], 720
        %v2982 = vld [vmem:[%s2981] ss:$2 sm:$0xff]
        %s2983 = scalar_lea.vmem [#allocation2], 736
        %v2984 = vld [vmem:[%s2983] ss:$2 sm:$0xff]
        %s2985 = scalar_lea.vmem [#allocation2], 752
        %v2986 = vld [vmem:[%s2985] ss:$2 sm:$0xff]
        %s2987 = scalar_lea.vmem [#allocation2], 768
        %v2988 = vld [vmem:[%s2987] ss:$2 sm:$0xff]
        %s2989 = scalar_lea.vmem [#allocation2], 784
        %v2990 = vld [vmem:[%s2989] ss:$2 sm:$0xff]
        %s2991 = scalar_lea.vmem [#allocation2], 800
        %v2992 = vld [vmem:[%s2991] ss:$2 sm:$0xff]
        %s2993 = scalar_lea.vmem [#allocation2], 816
        %v2994 = vld [vmem:[%s2993] ss:$2 sm:$0xff]
        %s2995 = scalar_lea.vmem [#allocation2], 832
        %v2996 = vld [vmem:[%s2995] ss:$2 sm:$0xff]
        %s2997 = scalar_lea.vmem [#allocation2], 848
        %v2998 = vld [vmem:[%s2997] ss:$2 sm:$0xff]
        %s2999 = scalar_lea.vmem [#allocation2], 864
        %v3000 = vld [vmem:[%s2999] ss:$2 sm:$0xff]
        %s3001 = scalar_lea.vmem [#allocation2], 880
        %v3002 = vld [vmem:[%s3001] ss:$2 sm:$0xff]
        %s3003 = scalar_lea.vmem [#allocation2], 896
        %v3004 = vld [vmem:[%s3003] ss:$2 sm:$0xff]
        %s3005 = scalar_lea.vmem [#allocation2], 912
        %v3006 = vld [vmem:[%s3005] ss:$2 sm:$0xff]
        %s3007 = scalar_lea.vmem [#allocation2], 928
        %v3008 = vld [vmem:[%s3007] ss:$2 sm:$0xff]
        %s3009 = scalar_lea.vmem [#allocation2], 944
        %v3010 = vld [vmem:[%s3009] ss:$2 sm:$0xff]
        %s3011 = scalar_lea.vmem [#allocation2], 960
        %v3012 = vld [vmem:[%s3011] ss:$2 sm:$0xff]
        %s3013 = scalar_lea.vmem [#allocation2], 976
        %v3014 = vld [vmem:[%s3013] ss:$2 sm:$0xff]
        %s3015 = scalar_lea.vmem [#allocation2], 992
        %v3016 = vld [vmem:[%s3015] ss:$2 sm:$0xff]
        %s3017 = scalar_lea.vmem [#allocation2], 1008
        %v3018 = vld [vmem:[%s3017] ss:$2 sm:$0xff]
        %s3019 = scalar_lea.vmem [#allocation2], 1024
        %v3020 = vld [vmem:[%s3019] ss:$2 sm:$0xff]
        %s3021 = scalar_lea.vmem [#allocation2], 1040
        %v3022 = vld [vmem:[%s3021] ss:$2 sm:$0xff]
        %s3023 = scalar_lea.vmem [#allocation2], 1056
        %v3024 = vld [vmem:[%s3023] ss:$2 sm:$0xff]
        %s3025 = scalar_lea.vmem [#allocation2], 1072
        %v3026 = vld [vmem:[%s3025] ss:$2 sm:$0xff]
        %s3027 = scalar_lea.vmem [#allocation2], 1088
        %v3028 = vld [vmem:[%s3027] ss:$2 sm:$0xff]
        %s3029 = scalar_lea.vmem [#allocation2], 1104
        %v3030 = vld [vmem:[%s3029] ss:$2 sm:$0xff]
        %s3031 = scalar_lea.vmem [#allocation2], 1120
        %v3032 = vld [vmem:[%s3031] ss:$2 sm:$0xff]
        %s3033 = scalar_lea.vmem [#allocation2], 1136
        %v3034 = vld [vmem:[%s3033] ss:$2 sm:$0xff]
        %s3035 = scalar_lea.vmem [#allocation2], 1
        %v3036 = vld [vmem:[%s3035] ss:$2 sm:$0xff]
        %s3037 = scalar_lea.vmem [#allocation2], 17
        %v3038 = vld [vmem:[%s3037] ss:$2 sm:$0xff]
        %s3039 = scalar_lea.vmem [#allocation2], 33
        %v3040 = vld [vmem:[%s3039] ss:$2 sm:$0xff]
        %s3041 = scalar_lea.vmem [#allocation2], 49
        %v3042 = vld [vmem:[%s3041] ss:$2 sm:$0xff]
        %s3043 = scalar_lea.vmem [#allocation2], 65
        %v3044 = vld [vmem:[%s3043] ss:$2 sm:$0xff]
        %s3045 = scalar_lea.vmem [#allocation2], 81
        %v3046 = vld [vmem:[%s3045] ss:$2 sm:$0xff]
        %s3047 = scalar_lea.vmem [#allocation2], 97
        %v3048 = vld [vmem:[%s3047] ss:$2 sm:$0xff]
        %s3049 = scalar_lea.vmem [#allocation2], 113
        %v3050 = vld [vmem:[%s3049] ss:$2 sm:$0xff]
        %s3051 = scalar_lea.vmem [#allocation2], 129
        %v3052 = vld [vmem:[%s3051] ss:$2 sm:$0xff]
        %s3053 = scalar_lea.vmem [#allocation2], 145
        %v3054 = vld [vmem:[%s3053] ss:$2 sm:$0xff]
        %s3055 = scalar_lea.vmem [#allocation2], 161
        %v3056 = vld [vmem:[%s3055] ss:$2 sm:$0xff]
        %s3057 = scalar_lea.vmem [#allocation2], 177
        %v3058 = vld [vmem:[%s3057] ss:$2 sm:$0xff]
        %s3059 = scalar_lea.vmem [#allocation2], 193
        %v3060 = vld [vmem:[%s3059] ss:$2 sm:$0xff]
        %s3061 = scalar_lea.vmem [#allocation2], 209
        %v3062 = vld [vmem:[%s3061] ss:$2 sm:$0xff]
        %s3063 = scalar_lea.vmem [#allocation2], 225
        %v3064 = vld [vmem:[%s3063] ss:$2 sm:$0xff]
        %s3065 = scalar_lea.vmem [#allocation2], 241
        %v3066 = vld [vmem:[%s3065] ss:$2 sm:$0xff]
        %s3067 = scalar_lea.vmem [#allocation2], 257
        %v3068 = vld [vmem:[%s3067] ss:$2 sm:$0xff]
        %s3069 = scalar_lea.vmem [#allocation2], 273
        %v3070 = vld [vmem:[%s3069] ss:$2 sm:$0xff]
        %s3071 = scalar_lea.vmem [#allocation2], 289
        %v3072 = vld [vmem:[%s3071] ss:$2 sm:$0xff]
        %s3073 = scalar_lea.vmem [#allocation2], 305
        %v3074 = vld [vmem:[%s3073] ss:$2 sm:$0xff]
        %s3075 = scalar_lea.vmem [#allocation2], 321
        %v3076 = vld [vmem:[%s3075] ss:$2 sm:$0xff]
        %s3077 = scalar_lea.vmem [#allocation2], 337
        %v3078 = vld [vmem:[%s3077] ss:$2 sm:$0xff]
        %s3079 = scalar_lea.vmem [#allocation2], 353
        %v3080 = vld [vmem:[%s3079] ss:$2 sm:$0xff]
        %s3081 = scalar_lea.vmem [#allocation2], 369
        %v3082 = vld [vmem:[%s3081] ss:$2 sm:$0xff]
        %s3083 = scalar_lea.vmem [#allocation2], 385
        %v3084 = vld [vmem:[%s3083] ss:$2 sm:$0xff]
        %s3085 = scalar_lea.vmem [#allocation2], 401
        %v3086 = vld [vmem:[%s3085] ss:$2 sm:$0xff]
        %s3087 = scalar_lea.vmem [#allocation2], 417
        %v3088 = vld [vmem:[%s3087] ss:$2 sm:$0xff]
        %s3089 = scalar_lea.vmem [#allocation2], 433
        %v3090 = vld [vmem:[%s3089] ss:$2 sm:$0xff]
        %s3091 = scalar_lea.vmem [#allocation2], 449
        %v3092 = vld [vmem:[%s3091] ss:$2 sm:$0xff]
        %s3093 = scalar_lea.vmem [#allocation2], 465
        %v3094 = vld [vmem:[%s3093] ss:$2 sm:$0xff]
        %s3095 = scalar_lea.vmem [#allocation2], 481
        %v3096 = vld [vmem:[%s3095] ss:$2 sm:$0xff]
        %s3097 = scalar_lea.vmem [#allocation2], 497
        %v3098 = vld [vmem:[%s3097] ss:$2 sm:$0xff]
        %s3099 = scalar_lea.vmem [#allocation2], 513
        %v3100 = vld [vmem:[%s3099] ss:$2 sm:$0xff]
        %s3101 = scalar_lea.vmem [#allocation2], 529
        %v3102 = vld [vmem:[%s3101] ss:$2 sm:$0xff]
        %s3103 = scalar_lea.vmem [#allocation2], 545
        %v3104 = vld [vmem:[%s3103] ss:$2 sm:$0xff]
        %s3105 = scalar_lea.vmem [#allocation2], 561
        %v3106 = vld [vmem:[%s3105] ss:$2 sm:$0xff]
        %s3107 = scalar_lea.vmem [#allocation2], 577
        %v3108 = vld [vmem:[%s3107] ss:$2 sm:$0xff]
        %s3109 = scalar_lea.vmem [#allocation2], 593
        %v3110 = vld [vmem:[%s3109] ss:$2 sm:$0xff]
        %s3111 = scalar_lea.vmem [#allocation2], 609
        %v3112 = vld [vmem:[%s3111] ss:$2 sm:$0xff]
        %s3113 = scalar_lea.vmem [#allocation2], 625
        %v3114 = vld [vmem:[%s3113] ss:$2 sm:$0xff]
        %s3115 = scalar_lea.vmem [#allocation2], 641
        %v3116 = vld [vmem:[%s3115] ss:$2 sm:$0xff]
        %s3117 = scalar_lea.vmem [#allocation2], 657
        %v3118 = vld [vmem:[%s3117] ss:$2 sm:$0xff]
        %s3119 = scalar_lea.vmem [#allocation2], 673
        %v3120 = vld [vmem:[%s3119] ss:$2 sm:$0xff]
        %s3121 = scalar_lea.vmem [#allocation2], 689
        %v3122 = vld [vmem:[%s3121] ss:$2 sm:$0xff]
        %s3123 = scalar_lea.vmem [#allocation2], 705
        %v3124 = vld [vmem:[%s3123] ss:$2 sm:$0xff]
        %s3125 = scalar_lea.vmem [#allocation2], 721
        %v3126 = vld [vmem:[%s3125] ss:$2 sm:$0xff]
        %s3127 = scalar_lea.vmem [#allocation2], 737
        %v3128 = vld [vmem:[%s3127] ss:$2 sm:$0xff]
        %s3129 = scalar_lea.vmem [#allocation2], 753
        %v3130 = vld [vmem:[%s3129] ss:$2 sm:$0xff]
        %s3131 = scalar_lea.vmem [#allocation2], 769
        %v3132 = vld [vmem:[%s3131] ss:$2 sm:$0xff]
        %s3133 = scalar_lea.vmem [#allocation2], 785
        %v3134 = vld [vmem:[%s3133] ss:$2 sm:$0xff]
        %s3135 = scalar_lea.vmem [#allocation2], 801
        %v3136 = vld [vmem:[%s3135] ss:$2 sm:$0xff]
        %s3137 = scalar_lea.vmem [#allocation2], 817
        %v3138 = vld [vmem:[%s3137] ss:$2 sm:$0xff]
        %s3139 = scalar_lea.vmem [#allocation2], 833
        %v3140 = vld [vmem:[%s3139] ss:$2 sm:$0xff]
        %s3141 = scalar_lea.vmem [#allocation2], 849
        %v3142 = vld [vmem:[%s3141] ss:$2 sm:$0xff]
        %s3143 = scalar_lea.vmem [#allocation2], 865
        %v3144 = vld [vmem:[%s3143] ss:$2 sm:$0xff]
        %s3145 = scalar_lea.vmem [#allocation2], 881
        %v3146 = vld [vmem:[%s3145] ss:$2 sm:$0xff]
        %s3147 = scalar_lea.vmem [#allocation2], 897
        %v3148 = vld [vmem:[%s3147] ss:$2 sm:$0xff]
        %s3149 = scalar_lea.vmem [#allocation2], 913
        %v3150 = vld [vmem:[%s3149] ss:$2 sm:$0xff]
        %s3151 = scalar_lea.vmem [#allocation2], 929
        %v3152 = vld [vmem:[%s3151] ss:$2 sm:$0xff]
        %s3153 = scalar_lea.vmem [#allocation2], 945
        %v3154 = vld [vmem:[%s3153] ss:$2 sm:$0xff]
        %s3155 = scalar_lea.vmem [#allocation2], 961
        %v3156 = vld [vmem:[%s3155] ss:$2 sm:$0xff]
        %s3157 = scalar_lea.vmem [#allocation2], 977
        %v3158 = vld [vmem:[%s3157] ss:$2 sm:$0xff]
        %s3159 = scalar_lea.vmem [#allocation2], 993
        %v3160 = vld [vmem:[%s3159] ss:$2 sm:$0xff]
        %s3161 = scalar_lea.vmem [#allocation2], 1009
        %v3162 = vld [vmem:[%s3161] ss:$2 sm:$0xff]
        %s3163 = scalar_lea.vmem [#allocation2], 1025
        %v3164 = vld [vmem:[%s3163] ss:$2 sm:$0xff]
        %s3165 = scalar_lea.vmem [#allocation2], 1041
        %v3166 = vld [vmem:[%s3165] ss:$2 sm:$0xff]
        %s3167 = scalar_lea.vmem [#allocation2], 1057
        %v3168 = vld [vmem:[%s3167] ss:$2 sm:$0xff]
        %s3169 = scalar_lea.vmem [#allocation2], 1073
        %v3170 = vld [vmem:[%s3169] ss:$2 sm:$0xff]
        %s3171 = scalar_lea.vmem [#allocation2], 1089
        %v3172 = vld [vmem:[%s3171] ss:$2 sm:$0xff]
        %s3173 = scalar_lea.vmem [#allocation2], 1105
        %v3174 = vld [vmem:[%s3173] ss:$2 sm:$0xff]
        %s3175 = scalar_lea.vmem [#allocation2], 1121
        %v3176 = vld [vmem:[%s3175] ss:$2 sm:$0xff]
        %s3177 = scalar_lea.vmem [#allocation2], 1137
        %v3178 = vld [vmem:[%s3177] ss:$2 sm:$0xff]
        %v3179 = vmax.f32 %v2892, %v3036
        %v3180 = vmax.f32 %v2894, %v3038
        %v3181 = vmax.f32 %v2896, %v3040
        %v3182 = vmax.f32 %v2898, %v3042
        %v3183 = vmax.f32 %v2900, %v3044
        %v3184 = vmax.f32 %v2902, %v3046
        %v3185 = vmax.f32 %v2904, %v3048
        %v3186 = vmax.f32 %v2906, %v3050
        %v3187 = vmax.f32 %v2908, %v3052
        %v3188 = vmax.f32 %v2910, %v3054
        %v3189 = vmax.f32 %v2912, %v3056
        %v3190 = vmax.f32 %v2914, %v3058
        %v3191 = vmax.f32 %v2916, %v3060
        %v3192 = vmax.f32 %v2918, %v3062
        %v3193 = vmax.f32 %v2920, %v3064
        %v3194 = vmax.f32 %v2922, %v3066
        %v3195 = vmax.f32 %v2924, %v3068
        %v3196 = vmax.f32 %v2926, %v3070
        %v3197 = vmax.f32 %v2928, %v3072
        %v3198 = vmax.f32 %v2930, %v3074
        %v3199 = vmax.f32 %v2932, %v3076
        %v3200 = vmax.f32 %v2934, %v3078
        %v3201 = vmax.f32 %v2936, %v3080
        %v3202 = vmax.f32 %v2938, %v3082
        %v3203 = vmax.f32 %v2940, %v3084
        %v3204 = vmax.f32 %v2942, %v3086
        %v3205 = vmax.f32 %v2944, %v3088
        %v3206 = vmax.f32 %v2946, %v3090
        %v3207 = vmax.f32 %v2948, %v3092
        %v3208 = vmax.f32 %v2950, %v3094
        %v3209 = vmax.f32 %v2952, %v3096
        %v3210 = vmax.f32 %v2954, %v3098
        %v3211 = vmax.f32 %v2956, %v3100
        %v3212 = vmax.f32 %v2958, %v3102
        %v3213 = vmax.f32 %v2960, %v3104
        %v3214 = vmax.f32 %v2962, %v3106
        %v3215 = vmax.f32 %v2964, %v3108
        %v3216 = vmax.f32 %v2966, %v3110
        %v3217 = vmax.f32 %v2968, %v3112
        %v3218 = vmax.f32 %v2970, %v3114
        %v3219 = vmax.f32 %v2972, %v3116
        %v3220 = vmax.f32 %v2974, %v3118
        %v3221 = vmax.f32 %v2976, %v3120
        %v3222 = vmax.f32 %v2978, %v3122
        %v3223 = vmax.f32 %v2980, %v3124
        %v3224 = vmax.f32 %v2982, %v3126
        %v3225 = vmax.f32 %v2984, %v3128
        %v3226 = vmax.f32 %v2986, %v3130
        %v3227 = vmax.f32 %v2988, %v3132
        %v3228 = vmax.f32 %v2990, %v3134
        %v3229 = vmax.f32 %v2992, %v3136
        %v3230 = vmax.f32 %v2994, %v3138
        %v3231 = vmax.f32 %v2996, %v3140
        %v3232 = vmax.f32 %v2998, %v3142
        %v3233 = vmax.f32 %v3000, %v3144
        %v3234 = vmax.f32 %v3002, %v3146
        %v3235 = vmax.f32 %v3004, %v3148
        %v3236 = vmax.f32 %v3006, %v3150
        %v3237 = vmax.f32 %v3008, %v3152
        %v3238 = vmax.f32 %v3010, %v3154
        %v3239 = vmax.f32 %v3012, %v3156
        %v3240 = vmax.f32 %v3014, %v3158
        %v3241 = vmax.f32 %v3016, %v3160
        %v3242 = vmax.f32 %v3018, %v3162
        %v3243 = vmax.f32 %v3020, %v3164
        %v3244 = vmax.f32 %v3022, %v3166
        %v3245 = vmax.f32 %v3024, %v3168
        %v3246 = vmax.f32 %v3026, %v3170
        %v3247 = vmax.f32 %v3028, %v3172
        %v3248 = vmax.f32 %v3030, %v3174
        %v3249 = vmax.f32 %v3032, %v3176
        %v3250 = vmax.f32 %v3034, %v3178
        %3251 = vst.msk [vmem:[#allocation3] sm:$0xff] %vm2747, 0.0
        %3252 = vst.msk [vmem:[#allocation3 + $0x8] sm:$0xff] %vm2747, 0.0
        %3253 = vst.msk [vmem:[#allocation3 + $0x10] sm:$0xff] %vm2747, 0.0
        %vm3254 = vcmask 254976
        %3255 = vst.msk [vmem:[#allocation3 + $0x18] sm:$0x3] %vm3254, 0.0
        %3256 = vst.msk [vmem:[#allocation3 + $0x20] sm:$0xff] %vm2747, 0.0
        %3257 = vst.msk [vmem:[#allocation3 + $0x28] sm:$0xff] %vm2747, 0.0
        %3258 = vst.msk [vmem:[#allocation3 + $0x30] sm:$0xff] %vm2747, 0.0
        %3259 = vst.msk [vmem:[#allocation3 + $0x38] sm:$0x3] %vm3254, 0.0
        %3260 = vst.msk [vmem:[#allocation3 + $0x40] sm:$0xff] %vm2747, 0.0
        %3261 = vst.msk [vmem:[#allocation3 + $0x48] sm:$0xff] %vm2747, 0.0
        %3262 = vst.msk [vmem:[#allocation3 + $0x50] sm:$0xff] %vm2747, 0.0
        %3263 = vst.msk [vmem:[#allocation3 + $0x58] sm:$0x3] %vm3254, 0.0
        %3264 = vst.msk [vmem:[#allocation3 + $0x60] sm:$0xff] %vm2747, 0.0
        %3265 = vst.msk [vmem:[#allocation3 + $0x68] sm:$0xff] %vm2747, 0.0
        %3266 = vst.msk [vmem:[#allocation3 + $0x70] sm:$0xff] %vm2747, 0.0
        %3267 = vst.msk [vmem:[#allocation3 + $0x78] sm:$0x3] %vm3254, 0.0
        %3268 = vst.msk [vmem:[#allocation3 + $0x80] sm:$0xff] %vm2747, 0.0
        %3269 = vst.msk [vmem:[#allocation3 + $0x88] sm:$0xff] %vm2747, 0.0
        %3270 = vst.msk [vmem:[#allocation3 + $0x90] sm:$0xff] %vm2747, 0.0
        %3271 = vst.msk [vmem:[#allocation3 + $0x98] sm:$0x3] %vm3254, 0.0
        %3272 = vst.msk [vmem:[#allocation3 + $0xa0] sm:$0xff] %vm2747, 0.0
        %3273 = vst.msk [vmem:[#allocation3 + $0xa8] sm:$0xff] %vm2747, 0.0
        %3274 = vst.msk [vmem:[#allocation3 + $0xb0] sm:$0xff] %vm2747, 0.0
        %3275 = vst.msk [vmem:[#allocation3 + $0xb8] sm:$0x3] %vm3254, 0.0
        %3276 = vst.msk [vmem:[#allocation3 + $0xc0] sm:$0xff] %vm2747, 0.0
        %3277 = vst.msk [vmem:[#allocation3 + $0xc8] sm:$0xff] %vm2747, 0.0
        %3278 = vst.msk [vmem:[#allocation3 + $0xd0] sm:$0xff] %vm2747, 0.0
        %3279 = vst.msk [vmem:[#allocation3 + $0xd8] sm:$0x3] %vm3254, 0.0
        %3280 = vst.msk [vmem:[#allocation3 + $0xe0] sm:$0xff] %vm2747, 0.0
        %3281 = vst.msk [vmem:[#allocation3 + $0xe8] sm:$0xff] %vm2747, 0.0
        %3282 = vst.msk [vmem:[#allocation3 + $0xf0] sm:$0xff] %vm2747, 0.0
        %3283 = vst.msk [vmem:[#allocation3 + $0xf8] sm:$0x3] %vm3254, 0.0
        %3284 = vst.msk [vmem:[#allocation3 + $0x100] sm:$0xff] %vm2747, 0.0
        %3285 = vst.msk [vmem:[#allocation3 + $0x108] sm:$0xff] %vm2747, 0.0
        %3286 = vst.msk [vmem:[#allocation3 + $0x110] sm:$0xff] %vm2747, 0.0
        %3287 = vst.msk [vmem:[#allocation3 + $0x118] sm:$0x3] %vm3254, 0.0
        %3288 = vst.msk [vmem:[#allocation3 + $0x120] sm:$0xff] %vm2747, 0.0
        %3289 = vst.msk [vmem:[#allocation3 + $0x128] sm:$0xff] %vm2747, 0.0
        %3290 = vst.msk [vmem:[#allocation3 + $0x130] sm:$0xff] %vm2747, 0.0
        %3291 = vst.msk [vmem:[#allocation3 + $0x138] sm:$0x3] %vm3254, 0.0
        %3292 = vst.msk [vmem:[#allocation3 + $0x140] sm:$0xff] %vm2747, 0.0
        %3293 = vst.msk [vmem:[#allocation3 + $0x148] sm:$0xff] %vm2747, 0.0
        %3294 = vst.msk [vmem:[#allocation3 + $0x150] sm:$0xff] %vm2747, 0.0
        %3295 = vst.msk [vmem:[#allocation3 + $0x158] sm:$0x3] %vm3254, 0.0
        %3296 = vst.msk [vmem:[#allocation3 + $0x160] sm:$0xff] %vm2747, 0.0
        %3297 = vst.msk [vmem:[#allocation3 + $0x168] sm:$0xff] %vm2747, 0.0
        %3298 = vst.msk [vmem:[#allocation3 + $0x170] sm:$0xff] %vm2747, 0.0
        %3299 = vst.msk [vmem:[#allocation3 + $0x178] sm:$0x3] %vm3254, 0.0
        %3300 = vst.msk [vmem:[#allocation3 + $0x180] sm:$0xff] %vm2747, 0.0
        %3301 = vst.msk [vmem:[#allocation3 + $0x188] sm:$0xff] %vm2747, 0.0
        %3302 = vst.msk [vmem:[#allocation3 + $0x190] sm:$0xff] %vm2747, 0.0
        %3303 = vst.msk [vmem:[#allocation3 + $0x198] sm:$0x3] %vm3254, 0.0
        %3304 = vst.msk [vmem:[#allocation3 + $0x1a0] sm:$0xff] %vm2747, 0.0
        %3305 = vst.msk [vmem:[#allocation3 + $0x1a8] sm:$0xff] %vm2747, 0.0
        %3306 = vst.msk [vmem:[#allocation3 + $0x1b0] sm:$0xff] %vm2747, 0.0
        %3307 = vst.msk [vmem:[#allocation3 + $0x1b8] sm:$0x3] %vm3254, 0.0
        %3308 = vst.msk [vmem:[#allocation3 + $0x1c0] sm:$0xff] %vm2747, 0.0
        %3309 = vst.msk [vmem:[#allocation3 + $0x1c8] sm:$0xff] %vm2747, 0.0
        %3310 = vst.msk [vmem:[#allocation3 + $0x1d0] sm:$0xff] %vm2747, 0.0
        %3311 = vst.msk [vmem:[#allocation3 + $0x1d8] sm:$0x3] %vm3254, 0.0
        %3312 = vst.msk [vmem:[#allocation3 + $0x1e0] sm:$0xff] %vm2747, 0.0
        %3313 = vst.msk [vmem:[#allocation3 + $0x1e8] sm:$0xff] %vm2747, 0.0
        %3314 = vst.msk [vmem:[#allocation3 + $0x1f0] sm:$0xff] %vm2747, 0.0
        %3315 = vst.msk [vmem:[#allocation3 + $0x1f8] sm:$0x3] %vm3254, 0.0
        %3316 = vst.msk [vmem:[#allocation3 + $0x200] sm:$0xff] %vm2747, 0.0
        %3317 = vst.msk [vmem:[#allocation3 + $0x208] sm:$0xff] %vm2747, 0.0
        %3318 = vst.msk [vmem:[#allocation3 + $0x210] sm:$0xff] %vm2747, 0.0
        %3319 = vst.msk [vmem:[#allocation3 + $0x218] sm:$0x3] %vm3254, 0.0
        %3320 = vst.msk [vmem:[#allocation3 + $0x220] sm:$0xff] %vm2747, 0.0
        %3321 = vst.msk [vmem:[#allocation3 + $0x228] sm:$0xff] %vm2747, 0.0
        %3322 = vst.msk [vmem:[#allocation3 + $0x230] sm:$0xff] %vm2747, 0.0
        %3323 = vst.msk [vmem:[#allocation3 + $0x238] sm:$0x3] %vm3254, 0.0
        %3324 = vst.msk [vmem:[#allocation3 + $0x240] sm:$0xff] %vm2747, 0.0
        %3325 = vst.msk [vmem:[#allocation3 + $0x248] sm:$0xff] %vm2747, 0.0
        %3326 = vst.msk [vmem:[#allocation3 + $0x250] sm:$0xff] %vm2747, 0.0
        %3327 = vst.msk [vmem:[#allocation3 + $0x258] sm:$0x3] %vm3254, 0.0
        %3328 = vst.msk [vmem:[#allocation3 + $0x260] sm:$0xff] %vm2747, 0.0
        %3329 = vst.msk [vmem:[#allocation3 + $0x268] sm:$0xff] %vm2747, 0.0
        %3330 = vst.msk [vmem:[#allocation3 + $0x270] sm:$0xff] %vm2747, 0.0
        %3331 = vst.msk [vmem:[#allocation3 + $0x278] sm:$0x3] %vm3254, 0.0
        %3332 = vst.msk [vmem:[#allocation3 + $0x280] sm:$0xff] %vm2747, 0.0
        %3333 = vst.msk [vmem:[#allocation3 + $0x288] sm:$0xff] %vm2747, 0.0
        %3334 = vst.msk [vmem:[#allocation3 + $0x290] sm:$0xff] %vm2747, 0.0
        %3335 = vst.msk [vmem:[#allocation3 + $0x298] sm:$0x3] %vm3254, 0.0
        %3336 = vst.msk [vmem:[#allocation3 + $0x2a0] sm:$0xff] %vm2747, 0.0
        %3337 = vst.msk [vmem:[#allocation3 + $0x2a8] sm:$0xff] %vm2747, 0.0
        %3338 = vst.msk [vmem:[#allocation3 + $0x2b0] sm:$0xff] %vm2747, 0.0
        %3339 = vst.msk [vmem:[#allocation3 + $0x2b8] sm:$0x3] %vm3254, 0.0
        %3340 = vst.msk [vmem:[#allocation3 + $0x2c0] sm:$0xff] %vm2747, 0.0
        %3341 = vst.msk [vmem:[#allocation3 + $0x2c8] sm:$0xff] %vm2747, 0.0
        %3342 = vst.msk [vmem:[#allocation3 + $0x2d0] sm:$0xff] %vm2747, 0.0
        %3343 = vst.msk [vmem:[#allocation3 + $0x2d8] sm:$0x3] %vm3254, 0.0
        %3344 = vst.msk [vmem:[#allocation3 + $0x2e0] sm:$0xff] %vm2747, 0.0
        %3345 = vst.msk [vmem:[#allocation3 + $0x2e8] sm:$0xff] %vm2747, 0.0
        %3346 = vst.msk [vmem:[#allocation3 + $0x2f0] sm:$0xff] %vm2747, 0.0
        %3347 = vst.msk [vmem:[#allocation3 + $0x2f8] sm:$0x3] %vm3254, 0.0
        %3348 = vst.msk [vmem:[#allocation3 + $0x300] sm:$0xff] %vm2747, 0.0
        %3349 = vst.msk [vmem:[#allocation3 + $0x308] sm:$0xff] %vm2747, 0.0
        %3350 = vst.msk [vmem:[#allocation3 + $0x310] sm:$0xff] %vm2747, 0.0
        %3351 = vst.msk [vmem:[#allocation3 + $0x318] sm:$0x3] %vm3254, 0.0
        %3352 = vst.msk [vmem:[#allocation3 + $0x320] sm:$0xff] %vm2747, 0.0
        %3353 = vst.msk [vmem:[#allocation3 + $0x328] sm:$0xff] %vm2747, 0.0
        %3354 = vst.msk [vmem:[#allocation3 + $0x330] sm:$0xff] %vm2747, 0.0
        %3355 = vst.msk [vmem:[#allocation3 + $0x338] sm:$0x3] %vm3254, 0.0
        %s3356 = scalar_lea.vmem [#allocation3], 32
        %3357 = vst.msk [vmem:[%s3356 + $0x1] sm:$0xff] %vm2747, %v3179
        %3358 = vst.msk [vmem:[%s3356 + $0x9] sm:$0xff] %vm2747, %v3180
        %3359 = vst.msk [vmem:[%s3356 + $0x11] sm:$0xff] %vm2747, %v3181
        %3360 = vst.msk [vmem:[%s3356 + $0x21] sm:$0xff] %vm2747, %v3182
        %3361 = vst.msk [vmem:[%s3356 + $0x29] sm:$0xff] %vm2747, %v3183
        %3362 = vst.msk [vmem:[%s3356 + $0x31] sm:$0xff] %vm2747, %v3184
        %3363 = vst.msk [vmem:[%s3356 + $0x41] sm:$0xff] %vm2747, %v3185
        %3364 = vst.msk [vmem:[%s3356 + $0x49] sm:$0xff] %vm2747, %v3186
        %3365 = vst.msk [vmem:[%s3356 + $0x51] sm:$0xff] %vm2747, %v3187
        %3366 = vst.msk [vmem:[%s3356 + $0x61] sm:$0xff] %vm2747, %v3188
        %3367 = vst.msk [vmem:[%s3356 + $0x69] sm:$0xff] %vm2747, %v3189
        %3368 = vst.msk [vmem:[%s3356 + $0x71] sm:$0xff] %vm2747, %v3190
        %3369 = vst.msk [vmem:[%s3356 + $0x81] sm:$0xff] %vm2747, %v3191
        %3370 = vst.msk [vmem:[%s3356 + $0x89] sm:$0xff] %vm2747, %v3192
        %3371 = vst.msk [vmem:[%s3356 + $0x91] sm:$0xff] %vm2747, %v3193
        %3372 = vst.msk [vmem:[%s3356 + $0xa1] sm:$0xff] %vm2747, %v3194
        %3373 = vst.msk [vmem:[%s3356 + $0xa9] sm:$0xff] %vm2747, %v3195
        %3374 = vst.msk [vmem:[%s3356 + $0xb1] sm:$0xff] %vm2747, %v3196
        %3375 = vst.msk [vmem:[%s3356 + $0xc1] sm:$0xff] %vm2747, %v3197
        %3376 = vst.msk [vmem:[%s3356 + $0xc9] sm:$0xff] %vm2747, %v3198
        %3377 = vst.msk [vmem:[%s3356 + $0xd1] sm:$0xff] %vm2747, %v3199
        %3378 = vst.msk [vmem:[%s3356 + $0xe1] sm:$0xff] %vm2747, %v3200
        %3379 = vst.msk [vmem:[%s3356 + $0xe9] sm:$0xff] %vm2747, %v3201
        %3380 = vst.msk [vmem:[%s3356 + $0xf1] sm:$0xff] %vm2747, %v3202
        %3381 = vst.msk [vmem:[%s3356 + $0x101] sm:$0xff] %vm2747, %v3203
        %3382 = vst.msk [vmem:[%s3356 + $0x109] sm:$0xff] %vm2747, %v3204
        %3383 = vst.msk [vmem:[%s3356 + $0x111] sm:$0xff] %vm2747, %v3205
        %3384 = vst.msk [vmem:[%s3356 + $0x121] sm:$0xff] %vm2747, %v3206
        %3385 = vst.msk [vmem:[%s3356 + $0x129] sm:$0xff] %vm2747, %v3207
        %3386 = vst.msk [vmem:[%s3356 + $0x131] sm:$0xff] %vm2747, %v3208
        %3387 = vst.msk [vmem:[%s3356 + $0x141] sm:$0xff] %vm2747, %v3209
        %3388 = vst.msk [vmem:[%s3356 + $0x149] sm:$0xff] %vm2747, %v3210
        %3389 = vst.msk [vmem:[%s3356 + $0x151] sm:$0xff] %vm2747, %v3211
        %3390 = vst.msk [vmem:[%s3356 + $0x161] sm:$0xff] %vm2747, %v3212
        %3391 = vst.msk [vmem:[%s3356 + $0x169] sm:$0xff] %vm2747, %v3213
        %3392 = vst.msk [vmem:[%s3356 + $0x171] sm:$0xff] %vm2747, %v3214
        %3393 = vst.msk [vmem:[%s3356 + $0x181] sm:$0xff] %vm2747, %v3215
        %3394 = vst.msk [vmem:[%s3356 + $0x189] sm:$0xff] %vm2747, %v3216
        %3395 = vst.msk [vmem:[%s3356 + $0x191] sm:$0xff] %vm2747, %v3217
        %3396 = vst.msk [vmem:[%s3356 + $0x1a1] sm:$0xff] %vm2747, %v3218
        %3397 = vst.msk [vmem:[%s3356 + $0x1a9] sm:$0xff] %vm2747, %v3219
        %3398 = vst.msk [vmem:[%s3356 + $0x1b1] sm:$0xff] %vm2747, %v3220
        %3399 = vst.msk [vmem:[%s3356 + $0x1c1] sm:$0xff] %vm2747, %v3221
        %3400 = vst.msk [vmem:[%s3356 + $0x1c9] sm:$0xff] %vm2747, %v3222
        %3401 = vst.msk [vmem:[%s3356 + $0x1d1] sm:$0xff] %vm2747, %v3223
        %3402 = vst.msk [vmem:[%s3356 + $0x1e1] sm:$0xff] %vm2747, %v3224
        %3403 = vst.msk [vmem:[%s3356 + $0x1e9] sm:$0xff] %vm2747, %v3225
        %3404 = vst.msk [vmem:[%s3356 + $0x1f1] sm:$0xff] %vm2747, %v3226
        %3405 = vst.msk [vmem:[%s3356 + $0x201] sm:$0xff] %vm2747, %v3227
        %3406 = vst.msk [vmem:[%s3356 + $0x209] sm:$0xff] %vm2747, %v3228
        %3407 = vst.msk [vmem:[%s3356 + $0x211] sm:$0xff] %vm2747, %v3229
        %3408 = vst.msk [vmem:[%s3356 + $0x221] sm:$0xff] %vm2747, %v3230
        %3409 = vst.msk [vmem:[%s3356 + $0x229] sm:$0xff] %vm2747, %v3231
        %3410 = vst.msk [vmem:[%s3356 + $0x231] sm:$0xff] %vm2747, %v3232
        %3411 = vst.msk [vmem:[%s3356 + $0x241] sm:$0xff] %vm2747, %v3233
        %3412 = vst.msk [vmem:[%s3356 + $0x249] sm:$0xff] %vm2747, %v3234
        %3413 = vst.msk [vmem:[%s3356 + $0x251] sm:$0xff] %vm2747, %v3235
        %3414 = vst.msk [vmem:[%s3356 + $0x261] sm:$0xff] %vm2747, %v3236
        %3415 = vst.msk [vmem:[%s3356 + $0x269] sm:$0xff] %vm2747, %v3237
        %3416 = vst.msk [vmem:[%s3356 + $0x271] sm:$0xff] %vm2747, %v3238
        %3417 = vst.msk [vmem:[%s3356 + $0x281] sm:$0xff] %vm2747, %v3239
        %3418 = vst.msk [vmem:[%s3356 + $0x289] sm:$0xff] %vm2747, %v3240
        %3419 = vst.msk [vmem:[%s3356 + $0x291] sm:$0xff] %vm2747, %v3241
        %3420 = vst.msk [vmem:[%s3356 + $0x2a1] sm:$0xff] %vm2747, %v3242
        %3421 = vst.msk [vmem:[%s3356 + $0x2a9] sm:$0xff] %vm2747, %v3243
        %3422 = vst.msk [vmem:[%s3356 + $0x2b1] sm:$0xff] %vm2747, %v3244
        %3423 = vst.msk [vmem:[%s3356 + $0x2c1] sm:$0xff] %vm2747, %v3245
        %3424 = vst.msk [vmem:[%s3356 + $0x2c9] sm:$0xff] %vm2747, %v3246
        %3425 = vst.msk [vmem:[%s3356 + $0x2d1] sm:$0xff] %vm2747, %v3247
        %3426 = vst.msk [vmem:[%s3356 + $0x2e1] sm:$0xff] %vm2747, %v3248
        %3427 = vst.msk [vmem:[%s3356 + $0x2e9] sm:$0xff] %vm2747, %v3249
        %3428 = vst.msk [vmem:[%s3356 + $0x2f1] sm:$0xff] %vm2747, %v3250
        %v3429 = vld [vmem:[#allocation3] sm:$0xff]
        %v3430 = vld [vmem:[#allocation3 + $0x8] sm:$0xff]
        %v3431 = vld [vmem:[#allocation3 + $0x10] sm:$0xff]
        %v3432 = vld [vmem:[#allocation3 + $0x20] sm:$0xff]
        %v3433 = vld [vmem:[#allocation3 + $0x28] sm:$0xff]
        %v3434 = vld [vmem:[#allocation3 + $0x30] sm:$0xff]
        %v3435 = vld [vmem:[#allocation3 + $0x40] sm:$0xff]
        %v3436 = vld [vmem:[#allocation3 + $0x48] sm:$0xff]
        %v3437 = vld [vmem:[#allocation3 + $0x50] sm:$0xff]
        %v3438 = vld [vmem:[#allocation3 + $0x60] sm:$0xff]
        %v3439 = vld [vmem:[#allocation3 + $0x68] sm:$0xff]
        %v3440 = vld [vmem:[#allocation3 + $0x70] sm:$0xff]
        %v3441 = vld [vmem:[#allocation3 + $0x80] sm:$0xff]
        %v3442 = vld [vmem:[#allocation3 + $0x88] sm:$0xff]
        %v3443 = vld [vmem:[#allocation3 + $0x90] sm:$0xff]
        %v3444 = vld [vmem:[#allocation3 + $0xa0] sm:$0xff]
        %v3445 = vld [vmem:[#allocation3 + $0xa8] sm:$0xff]
        %v3446 = vld [vmem:[#allocation3 + $0xb0] sm:$0xff]
        %v3447 = vld [vmem:[#allocation3 + $0xc0] sm:$0xff]
        %v3448 = vld [vmem:[#allocation3 + $0xc8] sm:$0xff]
        %v3449 = vld [vmem:[#allocation3 + $0xd0] sm:$0xff]
        %v3450 = vld [vmem:[#allocation3 + $0xe0] sm:$0xff]
        %v3451 = vld [vmem:[#allocation3 + $0xe8] sm:$0xff]
        %v3452 = vld [vmem:[#allocation3 + $0xf0] sm:$0xff]
        %v3453 = vld [vmem:[#allocation3 + $0x100] sm:$0xff]
        %v3454 = vld [vmem:[#allocation3 + $0x108] sm:$0xff]
        %v3455 = vld [vmem:[#allocation3 + $0x110] sm:$0xff]
        %v3456 = vld [vmem:[#allocation3 + $0x120] sm:$0xff]
        %v3457 = vld [vmem:[#allocation3 + $0x128] sm:$0xff]
        %v3458 = vld [vmem:[#allocation3 + $0x130] sm:$0xff]
        %v3459 = vld [vmem:[#allocation3 + $0x140] sm:$0xff]
        %v3460 = vld [vmem:[#allocation3 + $0x148] sm:$0xff]
        %v3461 = vld [vmem:[#allocation3 + $0x150] sm:$0xff]
        %v3462 = vld [vmem:[#allocation3 + $0x160] sm:$0xff]
        %v3463 = vld [vmem:[#allocation3 + $0x168] sm:$0xff]
        %v3464 = vld [vmem:[#allocation3 + $0x170] sm:$0xff]
        %v3465 = vld [vmem:[#allocation3 + $0x180] sm:$0xff]
        %v3466 = vld [vmem:[#allocation3 + $0x188] sm:$0xff]
        %v3467 = vld [vmem:[#allocation3 + $0x190] sm:$0xff]
        %v3468 = vld [vmem:[#allocation3 + $0x1a0] sm:$0xff]
        %v3469 = vld [vmem:[#allocation3 + $0x1a8] sm:$0xff]
        %v3470 = vld [vmem:[#allocation3 + $0x1b0] sm:$0xff]
        %v3471 = vld [vmem:[#allocation3 + $0x1c0] sm:$0xff]
        %v3472 = vld [vmem:[#allocation3 + $0x1c8] sm:$0xff]
        %v3473 = vld [vmem:[#allocation3 + $0x1d0] sm:$0xff]
        %v3474 = vld [vmem:[#allocation3 + $0x1e0] sm:$0xff]
        %v3475 = vld [vmem:[#allocation3 + $0x1e8] sm:$0xff]
        %v3476 = vld [vmem:[#allocation3 + $0x1f0] sm:$0xff]
        %v3477 = vld [vmem:[#allocation3 + $0x200] sm:$0xff]
        %v3478 = vld [vmem:[#allocation3 + $0x208] sm:$0xff]
        %v3479 = vld [vmem:[#allocation3 + $0x210] sm:$0xff]
        %v3480 = vld [vmem:[#allocation3 + $0x220] sm:$0xff]
        %v3481 = vld [vmem:[#allocation3 + $0x228] sm:$0xff]
        %v3482 = vld [vmem:[#allocation3 + $0x230] sm:$0xff]
        %v3483 = vld [vmem:[#allocation3 + $0x240] sm:$0xff]
        %v3484 = vld [vmem:[#allocation3 + $0x248] sm:$0xff]
        %v3485 = vld [vmem:[#allocation3 + $0x250] sm:$0xff]
        %v3486 = vld [vmem:[#allocation3 + $0x260] sm:$0xff]
        %v3487 = vld [vmem:[#allocation3 + $0x268] sm:$0xff]
        %v3488 = vld [vmem:[#allocation3 + $0x270] sm:$0xff]
        %v3489 = vld [vmem:[#allocation3 + $0x280] sm:$0xff]
        %v3490 = vld [vmem:[#allocation3 + $0x288] sm:$0xff]
        %v3491 = vld [vmem:[#allocation3 + $0x290] sm:$0xff]
        %v3492 = vld [vmem:[#allocation3 + $0x2a0] sm:$0xff]
        %v3493 = vld [vmem:[#allocation3 + $0x2a8] sm:$0xff]
        %v3494 = vld [vmem:[#allocation3 + $0x2b0] sm:$0xff]
        %v3495 = vld [vmem:[#allocation3 + $0x2c0] sm:$0xff]
        %v3496 = vld [vmem:[#allocation3 + $0x2c8] sm:$0xff]
        %v3497 = vld [vmem:[#allocation3 + $0x2d0] sm:$0xff]
        %v3498 = vld [vmem:[#allocation3 + $0x2e0] sm:$0xff]
        %v3499 = vld [vmem:[#allocation3 + $0x2e8] sm:$0xff]
        %v3500 = vld [vmem:[#allocation3 + $0x2f0] sm:$0xff]
        %v3501 = vld [vmem:[%s3] sm:$0xff]
        %v3502 = vld [vmem:[%s3 + $0x8] sm:$0xff]
        %v3503 = vld [vmem:[%s3 + $0x10] sm:$0xff]
        %v3504 = vld [vmem:[%s3 + $0x18] sm:$0xff]
        %v3505 = vld [vmem:[#allocation3 + $0x1] sm:$0xff]
        %v3506 = vld [vmem:[#allocation3 + $0x9] sm:$0xff]
        %v3507 = vld [vmem:[#allocation3 + $0x11] sm:$0xff]
        %v3508 = vld [vmem:[#allocation3 + $0x21] sm:$0xff]
        %v3509 = vld [vmem:[#allocation3 + $0x29] sm:$0xff]
        %v3510 = vld [vmem:[#allocation3 + $0x31] sm:$0xff]
        %v3511 = vld [vmem:[#allocation3 + $0x41] sm:$0xff]
        %v3512 = vld [vmem:[#allocation3 + $0x49] sm:$0xff]
        %v3513 = vld [vmem:[#allocation3 + $0x51] sm:$0xff]
        %v3514 = vld [vmem:[#allocation3 + $0x61] sm:$0xff]
        %v3515 = vld [vmem:[#allocation3 + $0x69] sm:$0xff]
        %v3516 = vld [vmem:[#allocation3 + $0x71] sm:$0xff]
        %v3517 = vld [vmem:[#allocation3 + $0x81] sm:$0xff]
        %v3518 = vld [vmem:[#allocation3 + $0x89] sm:$0xff]
        %v3519 = vld [vmem:[#allocation3 + $0x91] sm:$0xff]
        %v3520 = vld [vmem:[#allocation3 + $0xa1] sm:$0xff]
        %v3521 = vld [vmem:[#allocation3 + $0xa9] sm:$0xff]
        %v3522 = vld [vmem:[#allocation3 + $0xb1] sm:$0xff]
        %v3523 = vld [vmem:[#allocation3 + $0xc1] sm:$0xff]
        %v3524 = vld [vmem:[#allocation3 + $0xc9] sm:$0xff]
        %v3525 = vld [vmem:[#allocation3 + $0xd1] sm:$0xff]
        %v3526 = vld [vmem:[#allocation3 + $0xe1] sm:$0xff]
        %v3527 = vld [vmem:[#allocation3 + $0xe9] sm:$0xff]
        %v3528 = vld [vmem:[#allocation3 + $0xf1] sm:$0xff]
        %v3529 = vld [vmem:[#allocation3 + $0x101] sm:$0xff]
        %v3530 = vld [vmem:[#allocation3 + $0x109] sm:$0xff]
        %v3531 = vld [vmem:[#allocation3 + $0x111] sm:$0xff]
        %v3532 = vld [vmem:[#allocation3 + $0x121] sm:$0xff]
        %v3533 = vld [vmem:[#allocation3 + $0x129] sm:$0xff]
        %v3534 = vld [vmem:[#allocation3 + $0x131] sm:$0xff]
        %v3535 = vld [vmem:[#allocation3 + $0x141] sm:$0xff]
        %v3536 = vld [vmem:[#allocation3 + $0x149] sm:$0xff]
        %v3537 = vld [vmem:[#allocation3 + $0x151] sm:$0xff]
        %v3538 = vld [vmem:[#allocation3 + $0x161] sm:$0xff]
        %v3539 = vld [vmem:[#allocation3 + $0x169] sm:$0xff]
        %v3540 = vld [vmem:[#allocation3 + $0x171] sm:$0xff]
        %v3541 = vld [vmem:[#allocation3 + $0x181] sm:$0xff]
        %v3542 = vld [vmem:[#allocation3 + $0x189] sm:$0xff]
        %v3543 = vld [vmem:[#allocation3 + $0x191] sm:$0xff]
        %v3544 = vld [vmem:[#allocation3 + $0x1a1] sm:$0xff]
        %v3545 = vld [vmem:[#allocation3 + $0x1a9] sm:$0xff]
        %v3546 = vld [vmem:[#allocation3 + $0x1b1] sm:$0xff]
        %v3547 = vld [vmem:[#allocation3 + $0x1c1] sm:$0xff]
        %v3548 = vld [vmem:[#allocation3 + $0x1c9] sm:$0xff]
        %v3549 = vld [vmem:[#allocation3 + $0x1d1] sm:$0xff]
        %v3550 = vld [vmem:[#allocation3 + $0x1e1] sm:$0xff]
        %v3551 = vld [vmem:[#allocation3 + $0x1e9] sm:$0xff]
        %v3552 = vld [vmem:[#allocation3 + $0x1f1] sm:$0xff]
        %v3553 = vld [vmem:[#allocation3 + $0x201] sm:$0xff]
        %v3554 = vld [vmem:[#allocation3 + $0x209] sm:$0xff]
        %v3555 = vld [vmem:[#allocation3 + $0x211] sm:$0xff]
        %v3556 = vld [vmem:[#allocation3 + $0x221] sm:$0xff]
        %v3557 = vld [vmem:[#allocation3 + $0x229] sm:$0xff]
        %v3558 = vld [vmem:[#allocation3 + $0x231] sm:$0xff]
        %v3559 = vld [vmem:[#allocation3 + $0x241] sm:$0xff]
        %v3560 = vld [vmem:[#allocation3 + $0x249] sm:$0xff]
        %v3561 = vld [vmem:[#allocation3 + $0x251] sm:$0xff]
        %v3562 = vld [vmem:[#allocation3 + $0x261] sm:$0xff]
        %v3563 = vld [vmem:[#allocation3 + $0x269] sm:$0xff]
        %v3564 = vld [vmem:[#allocation3 + $0x271] sm:$0xff]
        %v3565 = vld [vmem:[#allocation3 + $0x281] sm:$0xff]
        %v3566 = vld [vmem:[#allocation3 + $0x289] sm:$0xff]
        %v3567 = vld [vmem:[#allocation3 + $0x291] sm:$0xff]
        %v3568 = vld [vmem:[#allocation3 + $0x2a1] sm:$0xff]
        %v3569 = vld [vmem:[#allocation3 + $0x2a9] sm:$0xff]
        %v3570 = vld [vmem:[#allocation3 + $0x2b1] sm:$0xff]
        %v3571 = vld [vmem:[#allocation3 + $0x2c1] sm:$0xff]
        %v3572 = vld [vmem:[#allocation3 + $0x2c9] sm:$0xff]
        %v3573 = vld [vmem:[#allocation3 + $0x2d1] sm:$0xff]
        %v3574 = vld [vmem:[#allocation3 + $0x2e1] sm:$0xff]
        %v3575 = vld [vmem:[#allocation3 + $0x2e9] sm:$0xff]
        %v3576 = vld [vmem:[#allocation3 + $0x2f1] sm:$0xff]
        %v3577 = vld [vmem:[%s3 + $0x20] sm:$0xff]
        %v3578 = vld [vmem:[%s3 + $0x28] sm:$0xff]
        %v3579 = vld [vmem:[%s3 + $0x30] sm:$0xff]
        %v3580 = vld [vmem:[%s3 + $0x38] sm:$0xff]
        %v3582 = vsel %vm2747, %v3505, 0
        %v3585 = vsel %vm2747, %v3506, 0
        %v3588 = vsel %vm2747, %v3507, 0
        %v3591 = vsel %vm2747, %v3508, 0
        %v3594 = vsel %vm2747, %v3509, 0
        %v3597 = vsel %vm2747, %v3510, 0
        %v3600 = vsel %vm2747, %v3511, 0
        %v3603 = vsel %vm2747, %v3512, 0
        %v3606 = vsel %vm2747, %v3513, 0
        %v3609 = vsel %vm2747, %v3514, 0
        %v3612 = vsel %vm2747, %v3515, 0
        %v3615 = vsel %vm2747, %v3516, 0
        %v3618 = vsel %vm2747, %v3517, 0
        %v3621 = vsel %vm2747, %v3518, 0
        %v3624 = vsel %vm2747, %v3519, 0
        %v3627 = vsel %vm2747, %v3520, 0
        %v3630 = vsel %vm2747, %v3521, 0
        %v3633 = vsel %vm2747, %v3522, 0
        %v3636 = vsel %vm2747, %v3523, 0
        %v3639 = vsel %vm2747, %v3524, 0
        %v3642 = vsel %vm2747, %v3525, 0
        %v3645 = vsel %vm2747, %v3526, 0
        %v3648 = vsel %vm2747, %v3527, 0
        %v3651 = vsel %vm2747, %v3528, 0
        %v3654 = vsel %vm2747, %v3529, 0
        %v3657 = vsel %vm2747, %v3530, 0
        %v3660 = vsel %vm2747, %v3531, 0
        %v3663 = vsel %vm2747, %v3532, 0
        %v3666 = vsel %vm2747, %v3533, 0
        %v3669 = vsel %vm2747, %v3534, 0
        %v3672 = vsel %vm2747, %v3535, 0
        %v3675 = vsel %vm2747, %v3536, 0
        %v3678 = vsel %vm2747, %v3537, 0
        %v3681 = vsel %vm2747, %v3538, 0
        %v3684 = vsel %vm2747, %v3539, 0
        %v3687 = vsel %vm2747, %v3540, 0
        %v3690 = vsel %vm2747, %v3541, 0
        %v3693 = vsel %vm2747, %v3542, 0
        %v3696 = vsel %vm2747, %v3543, 0
        %v3699 = vsel %vm2747, %v3544, 0
        %v3702 = vsel %vm2747, %v3545, 0
        %v3705 = vsel %vm2747, %v3546, 0
        %v3708 = vsel %vm2747, %v3547, 0
        %v3711 = vsel %vm2747, %v3548, 0
        %v3714 = vsel %vm2747, %v3549, 0
        %v3717 = vsel %vm2747, %v3550, 0
        %v3720 = vsel %vm2747, %v3551, 0
        %v3723 = vsel %vm2747, %v3552, 0
        %v3726 = vsel %vm2747, %v3553, 0
        %v3729 = vsel %vm2747, %v3554, 0
        %v3732 = vsel %vm2747, %v3555, 0
        %v3735 = vsel %vm2747, %v3556, 0
        %v3738 = vsel %vm2747, %v3557, 0
        %v3741 = vsel %vm2747, %v3558, 0
        %v3744 = vsel %vm2747, %v3559, 0
        %v3747 = vsel %vm2747, %v3560, 0
        %v3750 = vsel %vm2747, %v3561, 0
        %v3753 = vsel %vm2747, %v3562, 0
        %v3756 = vsel %vm2747, %v3563, 0
        %v3759 = vsel %vm2747, %v3564, 0
        %v3762 = vsel %vm2747, %v3565, 0
        %v3765 = vsel %vm2747, %v3566, 0
        %v3768 = vsel %vm2747, %v3567, 0
        %v3771 = vsel %vm2747, %v3568, 0
        %v3774 = vsel %vm2747, %v3569, 0
        %v3777 = vsel %vm2747, %v3570, 0
        %v3780 = vsel %vm2747, %v3571, 0
        %v3783 = vsel %vm2747, %v3572, 0
        %v3786 = vsel %vm2747, %v3573, 0
        %v3789 = vsel %vm2747, %v3574, 0
        %v3792 = vsel %vm2747, %v3575, 0
        %v3795 = vsel %vm2747, %v3576, 0
        %3797 = vmatpush.msra.mxu0 0.0
        %3798 = vmatpush.msra.mxu0 0.0
        %3799 = vmatpush.msra.mxu0 0.0
        %3800 = vmatpush.msra.mxu0 0.0
        %3801 = vmatpush.msra.mxu0 0.0
        %3802 = vmatpush.msra.mxu0 0.0
        %3803 = vmatpush.msra.mxu0 0.0
        %3804 = vmatpush.msra.mxu0 0.0
        %3805 = vmatpush.msra.mxu0 0.0
        %3806 = vmatpush.msra.mxu0 0.0
        %3807 = vmatpush.msra.mxu0 0.0
        %3808 = vmatpush.msra.mxu0 0.0
        %3809 = vmatpush.msra.mxu0 %v3580
        %3810 = vmatpush.msra.mxu0 %v3579
        %3811 = vmatpush.msra.mxu0 %v3578
        %3812 = vmatpush.msra.mxu0 %v3577
        %3813 = vmatmul.f32.gmra.mxu0 %v3582
        %v3814 = vpop.f32.mrf.mxu0
        %v3815 = vadd.f32 0.0, %v3814
        %3816 = vmatmul.f32.gmra.mxu0 %v3585
        %v3817 = vpop.f32.mrf.mxu0
        %v3818 = vadd.f32 0.0, %v3817
        %3819 = vmatmul.f32.gmra.mxu0 %v3588
        %v3820 = vpop.f32.mrf.mxu0
        %v3821 = vadd.f32 0.0, %v3820
        %3822 = vmatmul.f32.gmra.mxu0 %v3591
        %v3823 = vpop.f32.mrf.mxu0
        %v3824 = vadd.f32 0.0, %v3823
        %3825 = vmatmul.f32.gmra.mxu0 %v3594
        %v3826 = vpop.f32.mrf.mxu0
        %v3827 = vadd.f32 0.0, %v3826
        %3828 = vmatmul.f32.gmra.mxu0 %v3597
        %v3829 = vpop.f32.mrf.mxu0
        %v3830 = vadd.f32 0.0, %v3829
        %3831 = vmatmul.f32.gmra.mxu0 %v3600
        %v3832 = vpop.f32.mrf.mxu0
        %v3833 = vadd.f32 0.0, %v3832
        %3834 = vmatmul.f32.gmra.mxu0 %v3603
        %v3835 = vpop.f32.mrf.mxu0
        %v3836 = vadd.f32 0.0, %v3835
        %3837 = vmatmul.f32.gmra.mxu0 %v3606
        %v3838 = vpop.f32.mrf.mxu0
        %v3839 = vadd.f32 0.0, %v3838
        %3840 = vmatmul.f32.gmra.mxu0 %v3609
        %v3841 = vpop.f32.mrf.mxu0
        %v3842 = vadd.f32 0.0, %v3841
        %3843 = vmatmul.f32.gmra.mxu0 %v3612
        %v3844 = vpop.f32.mrf.mxu0
        %v3845 = vadd.f32 0.0, %v3844
        %3846 = vmatmul.f32.gmra.mxu0 %v3615
        %v3847 = vpop.f32.mrf.mxu0
        %v3848 = vadd.f32 0.0, %v3847
        %3849 = vmatmul.f32.gmra.mxu0 %v3618
        %v3850 = vpop.f32.mrf.mxu0
        %v3851 = vadd.f32 0.0, %v3850
        %3852 = vmatmul.f32.gmra.mxu0 %v3621
        %v3853 = vpop.f32.mrf.mxu0
        %v3854 = vadd.f32 0.0, %v3853
        %3855 = vmatmul.f32.gmra.mxu0 %v3624
        %v3856 = vpop.f32.mrf.mxu0
        %v3857 = vadd.f32 0.0, %v3856
        %3858 = vmatmul.f32.gmra.mxu0 %v3627
        %v3859 = vpop.f32.mrf.mxu0
        %v3860 = vadd.f32 0.0, %v3859
        %3861 = vmatmul.f32.gmra.mxu0 %v3630
        %v3862 = vpop.f32.mrf.mxu0
        %v3863 = vadd.f32 0.0, %v3862
        %3864 = vmatmul.f32.gmra.mxu0 %v3633
        %v3865 = vpop.f32.mrf.mxu0
        %v3866 = vadd.f32 0.0, %v3865
        %3867 = vmatmul.f32.gmra.mxu0 %v3636
        %v3868 = vpop.f32.mrf.mxu0
        %v3869 = vadd.f32 0.0, %v3868
        %3870 = vmatmul.f32.gmra.mxu0 %v3639
        %v3871 = vpop.f32.mrf.mxu0
        %v3872 = vadd.f32 0.0, %v3871
        %3873 = vmatmul.f32.gmra.mxu0 %v3642
        %v3874 = vpop.f32.mrf.mxu0
        %v3875 = vadd.f32 0.0, %v3874
        %3876 = vmatmul.f32.gmra.mxu0 %v3645
        %v3877 = vpop.f32.mrf.mxu0
        %v3878 = vadd.f32 0.0, %v3877
        %3879 = vmatmul.f32.gmra.mxu0 %v3648
        %v3880 = vpop.f32.mrf.mxu0
        %v3881 = vadd.f32 0.0, %v3880
        %3882 = vmatmul.f32.gmra.mxu0 %v3651
        %v3883 = vpop.f32.mrf.mxu0
        %v3884 = vadd.f32 0.0, %v3883
        %3885 = vmatmul.f32.gmra.mxu0 %v3654
        %v3886 = vpop.f32.mrf.mxu0
        %v3887 = vadd.f32 0.0, %v3886
        %3888 = vmatmul.f32.gmra.mxu0 %v3657
        %v3889 = vpop.f32.mrf.mxu0
        %v3890 = vadd.f32 0.0, %v3889
        %3891 = vmatmul.f32.gmra.mxu0 %v3660
        %v3892 = vpop.f32.mrf.mxu0
        %v3893 = vadd.f32 0.0, %v3892
        %3894 = vmatmul.f32.gmra.mxu0 %v3663
        %v3895 = vpop.f32.mrf.mxu0
        %v3896 = vadd.f32 0.0, %v3895
        %3897 = vmatmul.f32.gmra.mxu0 %v3666
        %v3898 = vpop.f32.mrf.mxu0
        %v3899 = vadd.f32 0.0, %v3898
        %3900 = vmatmul.f32.gmra.mxu0 %v3669
        %v3901 = vpop.f32.mrf.mxu0
        %v3902 = vadd.f32 0.0, %v3901
        %3903 = vmatmul.f32.gmra.mxu0 %v3672
        %v3904 = vpop.f32.mrf.mxu0
        %v3905 = vadd.f32 0.0, %v3904
        %3906 = vmatmul.f32.gmra.mxu0 %v3675
        %v3907 = vpop.f32.mrf.mxu0
        %v3908 = vadd.f32 0.0, %v3907
        %3909 = vmatmul.f32.gmra.mxu0 %v3678
        %v3910 = vpop.f32.mrf.mxu0
        %v3911 = vadd.f32 0.0, %v3910
        %3912 = vmatmul.f32.gmra.mxu0 %v3681
        %v3913 = vpop.f32.mrf.mxu0
        %v3914 = vadd.f32 0.0, %v3913
        %3915 = vmatmul.f32.gmra.mxu0 %v3684
        %v3916 = vpop.f32.mrf.mxu0
        %v3917 = vadd.f32 0.0, %v3916
        %3918 = vmatmul.f32.gmra.mxu0 %v3687
        %v3919 = vpop.f32.mrf.mxu0
        %v3920 = vadd.f32 0.0, %v3919
        %3921 = vmatmul.f32.gmra.mxu0 %v3690
        %v3922 = vpop.f32.mrf.mxu0
        %v3923 = vadd.f32 0.0, %v3922
        %3924 = vmatmul.f32.gmra.mxu0 %v3693
        %v3925 = vpop.f32.mrf.mxu0
        %v3926 = vadd.f32 0.0, %v3925
        %3927 = vmatmul.f32.gmra.mxu0 %v3696
        %v3928 = vpop.f32.mrf.mxu0
        %v3929 = vadd.f32 0.0, %v3928
        %3930 = vmatmul.f32.gmra.mxu0 %v3699
        %v3931 = vpop.f32.mrf.mxu0
        %v3932 = vadd.f32 0.0, %v3931
        %3933 = vmatmul.f32.gmra.mxu0 %v3702
        %v3934 = vpop.f32.mrf.mxu0
        %v3935 = vadd.f32 0.0, %v3934
        %3936 = vmatmul.f32.gmra.mxu0 %v3705
        %v3937 = vpop.f32.mrf.mxu0
        %v3938 = vadd.f32 0.0, %v3937
        %3939 = vmatmul.f32.gmra.mxu0 %v3708
        %v3940 = vpop.f32.mrf.mxu0
        %v3941 = vadd.f32 0.0, %v3940
        %3942 = vmatmul.f32.gmra.mxu0 %v3711
        %v3943 = vpop.f32.mrf.mxu0
        %v3944 = vadd.f32 0.0, %v3943
        %3945 = vmatmul.f32.gmra.mxu0 %v3714
        %v3946 = vpop.f32.mrf.mxu0
        %v3947 = vadd.f32 0.0, %v3946
        %3948 = vmatmul.f32.gmra.mxu0 %v3717
        %v3949 = vpop.f32.mrf.mxu0
        %v3950 = vadd.f32 0.0, %v3949
        %3951 = vmatmul.f32.gmra.mxu0 %v3720
        %v3952 = vpop.f32.mrf.mxu0
        %v3953 = vadd.f32 0.0, %v3952
        %3954 = vmatmul.f32.gmra.mxu0 %v3723
        %v3955 = vpop.f32.mrf.mxu0
        %v3956 = vadd.f32 0.0, %v3955
        %3957 = vmatmul.f32.gmra.mxu0 %v3726
        %v3958 = vpop.f32.mrf.mxu0
        %v3959 = vadd.f32 0.0, %v3958
        %3960 = vmatmul.f32.gmra.mxu0 %v3729
        %v3961 = vpop.f32.mrf.mxu0
        %v3962 = vadd.f32 0.0, %v3961
        %3963 = vmatmul.f32.gmra.mxu0 %v3732
        %v3964 = vpop.f32.mrf.mxu0
        %v3965 = vadd.f32 0.0, %v3964
        %3966 = vmatmul.f32.gmra.mxu0 %v3735
        %v3967 = vpop.f32.mrf.mxu0
        %v3968 = vadd.f32 0.0, %v3967
        %3969 = vmatmul.f32.gmra.mxu0 %v3738
        %v3970 = vpop.f32.mrf.mxu0
        %v3971 = vadd.f32 0.0, %v3970
        %3972 = vmatmul.f32.gmra.mxu0 %v3741
        %v3973 = vpop.f32.mrf.mxu0
        %v3974 = vadd.f32 0.0, %v3973
        %3975 = vmatmul.f32.gmra.mxu0 %v3744
        %v3976 = vpop.f32.mrf.mxu0
        %v3977 = vadd.f32 0.0, %v3976
        %3978 = vmatmul.f32.gmra.mxu0 %v3747
        %v3979 = vpop.f32.mrf.mxu0
        %v3980 = vadd.f32 0.0, %v3979
        %3981 = vmatmul.f32.gmra.mxu0 %v3750
        %v3982 = vpop.f32.mrf.mxu0
        %v3983 = vadd.f32 0.0, %v3982
        %3984 = vmatmul.f32.gmra.mxu0 %v3753
        %v3985 = vpop.f32.mrf.mxu0
        %v3986 = vadd.f32 0.0, %v3985
        %3987 = vmatmul.f32.gmra.mxu0 %v3756
        %v3988 = vpop.f32.mrf.mxu0
        %v3989 = vadd.f32 0.0, %v3988
        %3990 = vmatmul.f32.gmra.mxu0 %v3759
        %v3991 = vpop.f32.mrf.mxu0
        %v3992 = vadd.f32 0.0, %v3991
        %3993 = vmatmul.f32.gmra.mxu0 %v3762
        %v3994 = vpop.f32.mrf.mxu0
        %v3995 = vadd.f32 0.0, %v3994
        %3996 = vmatmul.f32.gmra.mxu0 %v3765
        %v3997 = vpop.f32.mrf.mxu0
        %v3998 = vadd.f32 0.0, %v3997
        %3999 = vmatmul.f32.gmra.mxu0 %v3768
        %v4000 = vpop.f32.mrf.mxu0
        %v4001 = vadd.f32 0.0, %v4000
        %4002 = vmatmul.f32.gmra.mxu0 %v3771
        %v4003 = vpop.f32.mrf.mxu0
        %v4004 = vadd.f32 0.0, %v4003
        %4005 = vmatmul.f32.gmra.mxu0 %v3774
        %v4006 = vpop.f32.mrf.mxu0
        %v4007 = vadd.f32 0.0, %v4006
        %4008 = vmatmul.f32.gmra.mxu0 %v3777
        %v4009 = vpop.f32.mrf.mxu0
        %v4010 = vadd.f32 0.0, %v4009
        %4011 = vmatmul.f32.gmra.mxu0 %v3780
        %v4012 = vpop.f32.mrf.mxu0
        %v4013 = vadd.f32 0.0, %v4012
        %4014 = vmatmul.f32.gmra.mxu0 %v3783
        %v4015 = vpop.f32.mrf.mxu0
        %v4016 = vadd.f32 0.0, %v4015
        %4017 = vmatmul.f32.gmra.mxu0 %v3786
        %v4018 = vpop.f32.mrf.mxu0
        %v4019 = vadd.f32 0.0, %v4018
        %4020 = vmatmul.f32.gmra.mxu0 %v3789
        %v4021 = vpop.f32.mrf.mxu0
        %v4022 = vadd.f32 0.0, %v4021
        %4023 = vmatmul.f32.gmra.mxu0 %v3792
        %v4024 = vpop.f32.mrf.mxu0
        %v4025 = vadd.f32 0.0, %v4024
        %4026 = vmatmul.f32.gmra.mxu0 %v3795
        %v4027 = vpop.f32.mrf.mxu0
        %v4028 = vadd.f32 0.0, %v4027
        %4029 = vdwg.mxu0
        %v4031 = vsel %vm2747, %v3429, 0
        %v4034 = vsel %vm2747, %v3430, 0
        %v4037 = vsel %vm2747, %v3431, 0
        %v4040 = vsel %vm2747, %v3432, 0
        %v4043 = vsel %vm2747, %v3433, 0
        %v4046 = vsel %vm2747, %v3434, 0
        %v4049 = vsel %vm2747, %v3435, 0
        %v4052 = vsel %vm2747, %v3436, 0
        %v4055 = vsel %vm2747, %v3437, 0
        %v4058 = vsel %vm2747, %v3438, 0
        %v4061 = vsel %vm2747, %v3439, 0
        %v4064 = vsel %vm2747, %v3440, 0
        %v4067 = vsel %vm2747, %v3441, 0
        %v4070 = vsel %vm2747, %v3442, 0
        %v4073 = vsel %vm2747, %v3443, 0
        %v4076 = vsel %vm2747, %v3444, 0
        %v4079 = vsel %vm2747, %v3445, 0
        %v4082 = vsel %vm2747, %v3446, 0
        %v4085 = vsel %vm2747, %v3447, 0
        %v4088 = vsel %vm2747, %v3448, 0
        %v4091 = vsel %vm2747, %v3449, 0
        %v4094 = vsel %vm2747, %v3450, 0
        %v4097 = vsel %vm2747, %v3451, 0
        %v4100 = vsel %vm2747, %v3452, 0
        %v4103 = vsel %vm2747, %v3453, 0
        %v4106 = vsel %vm2747, %v3454, 0
        %v4109 = vsel %vm2747, %v3455, 0
        %v4112 = vsel %vm2747, %v3456, 0
        %v4115 = vsel %vm2747, %v3457, 0
        %v4118 = vsel %vm2747, %v3458, 0
        %v4121 = vsel %vm2747, %v3459, 0
        %v4124 = vsel %vm2747, %v3460, 0
        %v4127 = vsel %vm2747, %v3461, 0
        %v4130 = vsel %vm2747, %v3462, 0
        %v4133 = vsel %vm2747, %v3463, 0
        %v4136 = vsel %vm2747, %v3464, 0
        %v4139 = vsel %vm2747, %v3465, 0
        %v4142 = vsel %vm2747, %v3466, 0
        %v4145 = vsel %vm2747, %v3467, 0
        %v4148 = vsel %vm2747, %v3468, 0
        %v4151 = vsel %vm2747, %v3469, 0
        %v4154 = vsel %vm2747, %v3470, 0
        %v4157 = vsel %vm2747, %v3471, 0
        %v4160 = vsel %vm2747, %v3472, 0
        %v4163 = vsel %vm2747, %v3473, 0
        %v4166 = vsel %vm2747, %v3474, 0
        %v4169 = vsel %vm2747, %v3475, 0
        %v4172 = vsel %vm2747, %v3476, 0
        %v4175 = vsel %vm2747, %v3477, 0
        %v4178 = vsel %vm2747, %v3478, 0
        %v4181 = vsel %vm2747, %v3479, 0
        %v4184 = vsel %vm2747, %v3480, 0
        %v4187 = vsel %vm2747, %v3481, 0
        %v4190 = vsel %vm2747, %v3482, 0
        %v4193 = vsel %vm2747, %v3483, 0
        %v4196 = vsel %vm2747, %v3484, 0
        %v4199 = vsel %vm2747, %v3485, 0
        %v4202 = vsel %vm2747, %v3486, 0
        %v4205 = vsel %vm2747, %v3487, 0
        %v4208 = vsel %vm2747, %v3488, 0
        %v4211 = vsel %vm2747, %v3489, 0
        %v4214 = vsel %vm2747, %v3490, 0
        %v4217 = vsel %vm2747, %v3491, 0
        %v4220 = vsel %vm2747, %v3492, 0
        %v4223 = vsel %vm2747, %v3493, 0
        %v4226 = vsel %vm2747, %v3494, 0
        %v4229 = vsel %vm2747, %v3495, 0
        %v4232 = vsel %vm2747, %v3496, 0
        %v4235 = vsel %vm2747, %v3497, 0
        %v4238 = vsel %vm2747, %v3498, 0
        %v4241 = vsel %vm2747, %v3499, 0
        %v4244 = vsel %vm2747, %v3500, 0
        %4246 = vmatpush.msra.mxu0 0.0
        %4247 = vmatpush.msra.mxu0 0.0
        %4248 = vmatpush.msra.mxu0 0.0
        %4249 = vmatpush.msra.mxu0 0.0
        %4250 = vmatpush.msra.mxu0 0.0
        %4251 = vmatpush.msra.mxu0 0.0
        %4252 = vmatpush.msra.mxu0 0.0
        %4253 = vmatpush.msra.mxu0 0.0
        %4254 = vmatpush.msra.mxu0 0.0
        %4255 = vmatpush.msra.mxu0 0.0
        %4256 = vmatpush.msra.mxu0 0.0
        %4257 = vmatpush.msra.mxu0 0.0
        %4258 = vmatpush.msra.mxu0 %v3504
        %4259 = vmatpush.msra.mxu0 %v3503
        %4260 = vmatpush.msra.mxu0 %v3502
        %4261 = vmatpush.msra.mxu0 %v3501
        %4262 = vmatmul.f32.gmra.mxu0 %v4031
        %v4263 = vpop.f32.mrf.mxu0
        %v4264 = vadd.f32 %v3815, %v4263
        %4265 = vmatmul.f32.gmra.mxu0 %v4034
        %v4266 = vpop.f32.mrf.mxu0
        %v4267 = vadd.f32 %v3818, %v4266
        %4268 = vmatmul.f32.gmra.mxu0 %v4037
        %v4269 = vpop.f32.mrf.mxu0
        %v4270 = vadd.f32 %v3821, %v4269
        %4271 = vmatmul.f32.gmra.mxu0 %v4040
        %v4272 = vpop.f32.mrf.mxu0
        %v4273 = vadd.f32 %v3824, %v4272
        %4274 = vmatmul.f32.gmra.mxu0 %v4043
        %v4275 = vpop.f32.mrf.mxu0
        %v4276 = vadd.f32 %v3827, %v4275
        %4277 = vmatmul.f32.gmra.mxu0 %v4046
        %v4278 = vpop.f32.mrf.mxu0
        %v4279 = vadd.f32 %v3830, %v4278
        %4280 = vmatmul.f32.gmra.mxu0 %v4049
        %v4281 = vpop.f32.mrf.mxu0
        %v4282 = vadd.f32 %v3833, %v4281
        %4283 = vmatmul.f32.gmra.mxu0 %v4052
        %v4284 = vpop.f32.mrf.mxu0
        %v4285 = vadd.f32 %v3836, %v4284
        %4286 = vmatmul.f32.gmra.mxu0 %v4055
        %v4287 = vpop.f32.mrf.mxu0
        %v4288 = vadd.f32 %v3839, %v4287
        %4289 = vmatmul.f32.gmra.mxu0 %v4058
        %v4290 = vpop.f32.mrf.mxu0
        %v4291 = vadd.f32 %v3842, %v4290
        %4292 = vmatmul.f32.gmra.mxu0 %v4061
        %v4293 = vpop.f32.mrf.mxu0
        %v4294 = vadd.f32 %v3845, %v4293
        %4295 = vmatmul.f32.gmra.mxu0 %v4064
        %v4296 = vpop.f32.mrf.mxu0
        %v4297 = vadd.f32 %v3848, %v4296
        %4298 = vmatmul.f32.gmra.mxu0 %v4067
        %v4299 = vpop.f32.mrf.mxu0
        %v4300 = vadd.f32 %v3851, %v4299
        %4301 = vmatmul.f32.gmra.mxu0 %v4070
        %v4302 = vpop.f32.mrf.mxu0
        %v4303 = vadd.f32 %v3854, %v4302
        %4304 = vmatmul.f32.gmra.mxu0 %v4073
        %v4305 = vpop.f32.mrf.mxu0
        %v4306 = vadd.f32 %v3857, %v4305
        %4307 = vmatmul.f32.gmra.mxu0 %v4076
        %v4308 = vpop.f32.mrf.mxu0
        %v4309 = vadd.f32 %v3860, %v4308
        %4310 = vmatmul.f32.gmra.mxu0 %v4079
        %v4311 = vpop.f32.mrf.mxu0
        %v4312 = vadd.f32 %v3863, %v4311
        %4313 = vmatmul.f32.gmra.mxu0 %v4082
        %v4314 = vpop.f32.mrf.mxu0
        %v4315 = vadd.f32 %v3866, %v4314
        %4316 = vmatmul.f32.gmra.mxu0 %v4085
        %v4317 = vpop.f32.mrf.mxu0
        %v4318 = vadd.f32 %v3869, %v4317
        %4319 = vmatmul.f32.gmra.mxu0 %v4088
        %v4320 = vpop.f32.mrf.mxu0
        %v4321 = vadd.f32 %v3872, %v4320
        %4322 = vmatmul.f32.gmra.mxu0 %v4091
        %v4323 = vpop.f32.mrf.mxu0
        %v4324 = vadd.f32 %v3875, %v4323
        %4325 = vmatmul.f32.gmra.mxu0 %v4094
        %v4326 = vpop.f32.mrf.mxu0
        %v4327 = vadd.f32 %v3878, %v4326
        %4328 = vmatmul.f32.gmra.mxu0 %v4097
        %v4329 = vpop.f32.mrf.mxu0
        %v4330 = vadd.f32 %v3881, %v4329
        %4331 = vmatmul.f32.gmra.mxu0 %v4100
        %v4332 = vpop.f32.mrf.mxu0
        %v4333 = vadd.f32 %v3884, %v4332
        %4334 = vmatmul.f32.gmra.mxu0 %v4103
        %v4335 = vpop.f32.mrf.mxu0
        %v4336 = vadd.f32 %v3887, %v4335
        %4337 = vmatmul.f32.gmra.mxu0 %v4106
        %v4338 = vpop.f32.mrf.mxu0
        %v4339 = vadd.f32 %v3890, %v4338
        %4340 = vmatmul.f32.gmra.mxu0 %v4109
        %v4341 = vpop.f32.mrf.mxu0
        %v4342 = vadd.f32 %v3893, %v4341
        %4343 = vmatmul.f32.gmra.mxu0 %v4112
        %v4344 = vpop.f32.mrf.mxu0
        %v4345 = vadd.f32 %v3896, %v4344
        %4346 = vmatmul.f32.gmra.mxu0 %v4115
        %v4347 = vpop.f32.mrf.mxu0
        %v4348 = vadd.f32 %v3899, %v4347
        %4349 = vmatmul.f32.gmra.mxu0 %v4118
        %v4350 = vpop.f32.mrf.mxu0
        %v4351 = vadd.f32 %v3902, %v4350
        %4352 = vmatmul.f32.gmra.mxu0 %v4121
        %v4353 = vpop.f32.mrf.mxu0
        %v4354 = vadd.f32 %v3905, %v4353
        %4355 = vmatmul.f32.gmra.mxu0 %v4124
        %v4356 = vpop.f32.mrf.mxu0
        %v4357 = vadd.f32 %v3908, %v4356
        %4358 = vmatmul.f32.gmra.mxu0 %v4127
        %v4359 = vpop.f32.mrf.mxu0
        %v4360 = vadd.f32 %v3911, %v4359
        %4361 = vmatmul.f32.gmra.mxu0 %v4130
        %v4362 = vpop.f32.mrf.mxu0
        %v4363 = vadd.f32 %v3914, %v4362
        %4364 = vmatmul.f32.gmra.mxu0 %v4133
        %v4365 = vpop.f32.mrf.mxu0
        %v4366 = vadd.f32 %v3917, %v4365
        %4367 = vmatmul.f32.gmra.mxu0 %v4136
        %v4368 = vpop.f32.mrf.mxu0
        %v4369 = vadd.f32 %v3920, %v4368
        %4370 = vmatmul.f32.gmra.mxu0 %v4139
        %v4371 = vpop.f32.mrf.mxu0
        %v4372 = vadd.f32 %v3923, %v4371
        %4373 = vmatmul.f32.gmra.mxu0 %v4142
        %v4374 = vpop.f32.mrf.mxu0
        %v4375 = vadd.f32 %v3926, %v4374
        %4376 = vmatmul.f32.gmra.mxu0 %v4145
        %v4377 = vpop.f32.mrf.mxu0
        %v4378 = vadd.f32 %v3929, %v4377
        %4379 = vmatmul.f32.gmra.mxu0 %v4148
        %v4380 = vpop.f32.mrf.mxu0
        %v4381 = vadd.f32 %v3932, %v4380
        %4382 = vmatmul.f32.gmra.mxu0 %v4151
        %v4383 = vpop.f32.mrf.mxu0
        %v4384 = vadd.f32 %v3935, %v4383
        %4385 = vmatmul.f32.gmra.mxu0 %v4154
        %v4386 = vpop.f32.mrf.mxu0
        %v4387 = vadd.f32 %v3938, %v4386
        %4388 = vmatmul.f32.gmra.mxu0 %v4157
        %v4389 = vpop.f32.mrf.mxu0
        %v4390 = vadd.f32 %v3941, %v4389
        %4391 = vmatmul.f32.gmra.mxu0 %v4160
        %v4392 = vpop.f32.mrf.mxu0
        %v4393 = vadd.f32 %v3944, %v4392
        %4394 = vmatmul.f32.gmra.mxu0 %v4163
        %v4395 = vpop.f32.mrf.mxu0
        %v4396 = vadd.f32 %v3947, %v4395
        %4397 = vmatmul.f32.gmra.mxu0 %v4166
        %v4398 = vpop.f32.mrf.mxu0
        %v4399 = vadd.f32 %v3950, %v4398
        %4400 = vmatmul.f32.gmra.mxu0 %v4169
        %v4401 = vpop.f32.mrf.mxu0
        %v4402 = vadd.f32 %v3953, %v4401
        %4403 = vmatmul.f32.gmra.mxu0 %v4172
        %v4404 = vpop.f32.mrf.mxu0
        %v4405 = vadd.f32 %v3956, %v4404
        %4406 = vmatmul.f32.gmra.mxu0 %v4175
        %v4407 = vpop.f32.mrf.mxu0
        %v4408 = vadd.f32 %v3959, %v4407
        %4409 = vmatmul.f32.gmra.mxu0 %v4178
        %v4410 = vpop.f32.mrf.mxu0
        %v4411 = vadd.f32 %v3962, %v4410
        %4412 = vmatmul.f32.gmra.mxu0 %v4181
        %v4413 = vpop.f32.mrf.mxu0
        %v4414 = vadd.f32 %v3965, %v4413
        %4415 = vmatmul.f32.gmra.mxu0 %v4184
        %v4416 = vpop.f32.mrf.mxu0
        %v4417 = vadd.f32 %v3968, %v4416
        %4418 = vmatmul.f32.gmra.mxu0 %v4187
        %v4419 = vpop.f32.mrf.mxu0
        %v4420 = vadd.f32 %v3971, %v4419
        %4421 = vmatmul.f32.gmra.mxu0 %v4190
        %v4422 = vpop.f32.mrf.mxu0
        %v4423 = vadd.f32 %v3974, %v4422
        %4424 = vmatmul.f32.gmra.mxu0 %v4193
        %v4425 = vpop.f32.mrf.mxu0
        %v4426 = vadd.f32 %v3977, %v4425
        %4427 = vmatmul.f32.gmra.mxu0 %v4196
        %v4428 = vpop.f32.mrf.mxu0
        %v4429 = vadd.f32 %v3980, %v4428
        %4430 = vmatmul.f32.gmra.mxu0 %v4199
        %v4431 = vpop.f32.mrf.mxu0
        %v4432 = vadd.f32 %v3983, %v4431
        %4433 = vmatmul.f32.gmra.mxu0 %v4202
        %v4434 = vpop.f32.mrf.mxu0
        %v4435 = vadd.f32 %v3986, %v4434
        %4436 = vmatmul.f32.gmra.mxu0 %v4205
        %v4437 = vpop.f32.mrf.mxu0
        %v4438 = vadd.f32 %v3989, %v4437
        %4439 = vmatmul.f32.gmra.mxu0 %v4208
        %v4440 = vpop.f32.mrf.mxu0
        %v4441 = vadd.f32 %v3992, %v4440
        %4442 = vmatmul.f32.gmra.mxu0 %v4211
        %v4443 = vpop.f32.mrf.mxu0
        %v4444 = vadd.f32 %v3995, %v4443
        %4445 = vmatmul.f32.gmra.mxu0 %v4214
        %v4446 = vpop.f32.mrf.mxu0
        %v4447 = vadd.f32 %v3998, %v4446
        %4448 = vmatmul.f32.gmra.mxu0 %v4217
        %v4449 = vpop.f32.mrf.mxu0
        %v4450 = vadd.f32 %v4001, %v4449
        %4451 = vmatmul.f32.gmra.mxu0 %v4220
        %v4452 = vpop.f32.mrf.mxu0
        %v4453 = vadd.f32 %v4004, %v4452
        %4454 = vmatmul.f32.gmra.mxu0 %v4223
        %v4455 = vpop.f32.mrf.mxu0
        %v4456 = vadd.f32 %v4007, %v4455
        %4457 = vmatmul.f32.gmra.mxu0 %v4226
        %v4458 = vpop.f32.mrf.mxu0
        %v4459 = vadd.f32 %v4010, %v4458
        %4460 = vmatmul.f32.gmra.mxu0 %v4229
        %v4461 = vpop.f32.mrf.mxu0
        %v4462 = vadd.f32 %v4013, %v4461
        %4463 = vmatmul.f32.gmra.mxu0 %v4232
        %v4464 = vpop.f32.mrf.mxu0
        %v4465 = vadd.f32 %v4016, %v4464
        %4466 = vmatmul.f32.gmra.mxu0 %v4235
        %v4467 = vpop.f32.mrf.mxu0
        %v4468 = vadd.f32 %v4019, %v4467
        %4469 = vmatmul.f32.gmra.mxu0 %v4238
        %v4470 = vpop.f32.mrf.mxu0
        %v4471 = vadd.f32 %v4022, %v4470
        %4472 = vmatmul.f32.gmra.mxu0 %v4241
        %v4473 = vpop.f32.mrf.mxu0
        %v4474 = vadd.f32 %v4025, %v4473
        %4475 = vmatmul.f32.gmra.mxu0 %v4244
        %v4476 = vpop.f32.mrf.mxu0
        %v4477 = vadd.f32 %v4028, %v4476
        %4478 = vdwg.mxu0
        %v4479 = vld [vmem:[#allocation3 + $0x2] sm:$0xff]
        %v4480 = vld [vmem:[#allocation3 + $0xa] sm:$0xff]
        %v4481 = vld [vmem:[#allocation3 + $0x12] sm:$0xff]
        %v4482 = vld [vmem:[#allocation3 + $0x22] sm:$0xff]
        %v4483 = vld [vmem:[#allocation3 + $0x2a] sm:$0xff]
        %v4484 = vld [vmem:[#allocation3 + $0x32] sm:$0xff]
        %v4485 = vld [vmem:[#allocation3 + $0x42] sm:$0xff]
        %v4486 = vld [vmem:[#allocation3 + $0x4a] sm:$0xff]
        %v4487 = vld [vmem:[#allocation3 + $0x52] sm:$0xff]
        %v4488 = vld [vmem:[#allocation3 + $0x62] sm:$0xff]
        %v4489 = vld [vmem:[#allocation3 + $0x6a] sm:$0xff]
        %v4490 = vld [vmem:[#allocation3 + $0x72] sm:$0xff]
        %v4491 = vld [vmem:[#allocation3 + $0x82] sm:$0xff]
        %v4492 = vld [vmem:[#allocation3 + $0x8a] sm:$0xff]
        %v4493 = vld [vmem:[#allocation3 + $0x92] sm:$0xff]
        %v4494 = vld [vmem:[#allocation3 + $0xa2] sm:$0xff]
        %v4495 = vld [vmem:[#allocation3 + $0xaa] sm:$0xff]
        %v4496 = vld [vmem:[#allocation3 + $0xb2] sm:$0xff]
        %v4497 = vld [vmem:[#allocation3 + $0xc2] sm:$0xff]
        %v4498 = vld [vmem:[#allocation3 + $0xca] sm:$0xff]
        %v4499 = vld [vmem:[#allocation3 + $0xd2] sm:$0xff]
        %v4500 = vld [vmem:[#allocation3 + $0xe2] sm:$0xff]
        %v4501 = vld [vmem:[#allocation3 + $0xea] sm:$0xff]
        %v4502 = vld [vmem:[#allocation3 + $0xf2] sm:$0xff]
        %v4503 = vld [vmem:[#allocation3 + $0x102] sm:$0xff]
        %v4504 = vld [vmem:[#allocation3 + $0x10a] sm:$0xff]
        %v4505 = vld [vmem:[#allocation3 + $0x112] sm:$0xff]
        %v4506 = vld [vmem:[#allocation3 + $0x122] sm:$0xff]
        %v4507 = vld [vmem:[#allocation3 + $0x12a] sm:$0xff]
        %v4508 = vld [vmem:[#allocation3 + $0x132] sm:$0xff]
        %v4509 = vld [vmem:[#allocation3 + $0x142] sm:$0xff]
        %v4510 = vld [vmem:[#allocation3 + $0x14a] sm:$0xff]
        %v4511 = vld [vmem:[#allocation3 + $0x152] sm:$0xff]
        %v4512 = vld [vmem:[#allocation3 + $0x162] sm:$0xff]
        %v4513 = vld [vmem:[#allocation3 + $0x16a] sm:$0xff]
        %v4514 = vld [vmem:[#allocation3 + $0x172] sm:$0xff]
        %v4515 = vld [vmem:[#allocation3 + $0x182] sm:$0xff]
        %v4516 = vld [vmem:[#allocation3 + $0x18a] sm:$0xff]
        %v4517 = vld [vmem:[#allocation3 + $0x192] sm:$0xff]
        %v4518 = vld [vmem:[#allocation3 + $0x1a2] sm:$0xff]
        %v4519 = vld [vmem:[#allocation3 + $0x1aa] sm:$0xff]
        %v4520 = vld [vmem:[#allocation3 + $0x1b2] sm:$0xff]
        %v4521 = vld [vmem:[#allocation3 + $0x1c2] sm:$0xff]
        %v4522 = vld [vmem:[#allocation3 + $0x1ca] sm:$0xff]
        %v4523 = vld [vmem:[#allocation3 + $0x1d2] sm:$0xff]
        %v4524 = vld [vmem:[#allocation3 + $0x1e2] sm:$0xff]
        %v4525 = vld [vmem:[#allocation3 + $0x1ea] sm:$0xff]
        %v4526 = vld [vmem:[#allocation3 + $0x1f2] sm:$0xff]
        %v4527 = vld [vmem:[#allocation3 + $0x202] sm:$0xff]
        %v4528 = vld [vmem:[#allocation3 + $0x20a] sm:$0xff]
        %v4529 = vld [vmem:[#allocation3 + $0x212] sm:$0xff]
        %v4530 = vld [vmem:[#allocation3 + $0x222] sm:$0xff]
        %v4531 = vld [vmem:[#allocation3 + $0x22a] sm:$0xff]
        %v4532 = vld [vmem:[#allocation3 + $0x232] sm:$0xff]
        %v4533 = vld [vmem:[#allocation3 + $0x242] sm:$0xff]
        %v4534 = vld [vmem:[#allocation3 + $0x24a] sm:$0xff]
        %v4535 = vld [vmem:[#allocation3 + $0x252] sm:$0xff]
        %v4536 = vld [vmem:[#allocation3 + $0x262] sm:$0xff]
        %v4537 = vld [vmem:[#allocation3 + $0x26a] sm:$0xff]
        %v4538 = vld [vmem:[#allocation3 + $0x272] sm:$0xff]
        %v4539 = vld [vmem:[#allocation3 + $0x282] sm:$0xff]
        %v4540 = vld [vmem:[#allocation3 + $0x28a] sm:$0xff]
        %v4541 = vld [vmem:[#allocation3 + $0x292] sm:$0xff]
        %v4542 = vld [vmem:[#allocation3 + $0x2a2] sm:$0xff]
        %v4543 = vld [vmem:[#allocation3 + $0x2aa] sm:$0xff]
        %v4544 = vld [vmem:[#allocation3 + $0x2b2] sm:$0xff]
        %v4545 = vld [vmem:[#allocation3 + $0x2c2] sm:$0xff]
        %v4546 = vld [vmem:[#allocation3 + $0x2ca] sm:$0xff]
        %v4547 = vld [vmem:[#allocation3 + $0x2d2] sm:$0xff]
        %v4548 = vld [vmem:[#allocation3 + $0x2e2] sm:$0xff]
        %v4549 = vld [vmem:[#allocation3 + $0x2ea] sm:$0xff]
        %v4550 = vld [vmem:[#allocation3 + $0x2f2] sm:$0xff]
        %v4551 = vld [vmem:[%s3 + $0x40] sm:$0xff]
        %v4552 = vld [vmem:[%s3 + $0x48] sm:$0xff]
        %v4553 = vld [vmem:[%s3 + $0x50] sm:$0xff]
        %v4554 = vld [vmem:[%s3 + $0x58] sm:$0xff]
        %v4556 = vsel %vm2747, %v4479, 0
        %v4559 = vsel %vm2747, %v4480, 0
        %v4562 = vsel %vm2747, %v4481, 0
        %v4565 = vsel %vm2747, %v4482, 0
        %v4568 = vsel %vm2747, %v4483, 0
        %v4571 = vsel %vm2747, %v4484, 0
        %v4574 = vsel %vm2747, %v4485, 0
        %v4577 = vsel %vm2747, %v4486, 0
        %v4580 = vsel %vm2747, %v4487, 0
        %v4583 = vsel %vm2747, %v4488, 0
        %v4586 = vsel %vm2747, %v4489, 0
        %v4589 = vsel %vm2747, %v4490, 0
        %v4592 = vsel %vm2747, %v4491, 0
        %v4595 = vsel %vm2747, %v4492, 0
        %v4598 = vsel %vm2747, %v4493, 0
        %v4601 = vsel %vm2747, %v4494, 0
        %v4604 = vsel %vm2747, %v4495, 0
        %v4607 = vsel %vm2747, %v4496, 0
        %v4610 = vsel %vm2747, %v4497, 0
        %v4613 = vsel %vm2747, %v4498, 0
        %v4616 = vsel %vm2747, %v4499, 0
        %v4619 = vsel %vm2747, %v4500, 0
        %v4622 = vsel %vm2747, %v4501, 0
        %v4625 = vsel %vm2747, %v4502, 0
        %v4628 = vsel %vm2747, %v4503, 0
        %v4631 = vsel %vm2747, %v4504, 0
        %v4634 = vsel %vm2747, %v4505, 0
        %v4637 = vsel %vm2747, %v4506, 0
        %v4640 = vsel %vm2747, %v4507, 0
        %v4643 = vsel %vm2747, %v4508, 0
        %v4646 = vsel %vm2747, %v4509, 0
        %v4649 = vsel %vm2747, %v4510, 0
        %v4652 = vsel %vm2747, %v4511, 0
        %v4655 = vsel %vm2747, %v4512, 0
        %v4658 = vsel %vm2747, %v4513, 0
        %v4661 = vsel %vm2747, %v4514, 0
        %v4664 = vsel %vm2747, %v4515, 0
        %v4667 = vsel %vm2747, %v4516, 0
        %v4670 = vsel %vm2747, %v4517, 0
        %v4673 = vsel %vm2747, %v4518, 0
        %v4676 = vsel %vm2747, %v4519, 0
        %v4679 = vsel %vm2747, %v4520, 0
        %v4682 = vsel %vm2747, %v4521, 0
        %v4685 = vsel %vm2747, %v4522, 0
        %v4688 = vsel %vm2747, %v4523, 0
        %v4691 = vsel %vm2747, %v4524, 0
        %v4694 = vsel %vm2747, %v4525, 0
        %v4697 = vsel %vm2747, %v4526, 0
        %v4700 = vsel %vm2747, %v4527, 0
        %v4703 = vsel %vm2747, %v4528, 0
        %v4706 = vsel %vm2747, %v4529, 0
        %v4709 = vsel %vm2747, %v4530, 0
        %v4712 = vsel %vm2747, %v4531, 0
        %v4715 = vsel %vm2747, %v4532, 0
        %v4718 = vsel %vm2747, %v4533, 0
        %v4721 = vsel %vm2747, %v4534, 0
        %v4724 = vsel %vm2747, %v4535, 0
        %v4727 = vsel %vm2747, %v4536, 0
        %v4730 = vsel %vm2747, %v4537, 0
        %v4733 = vsel %vm2747, %v4538, 0
        %v4736 = vsel %vm2747, %v4539, 0
        %v4739 = vsel %vm2747, %v4540, 0
        %v4742 = vsel %vm2747, %v4541, 0
        %v4745 = vsel %vm2747, %v4542, 0
        %v4748 = vsel %vm2747, %v4543, 0
        %v4751 = vsel %vm2747, %v4544, 0
        %v4754 = vsel %vm2747, %v4545, 0
        %v4757 = vsel %vm2747, %v4546, 0
        %v4760 = vsel %vm2747, %v4547, 0
        %v4763 = vsel %vm2747, %v4548, 0
        %v4766 = vsel %vm2747, %v4549, 0
        %v4769 = vsel %vm2747, %v4550, 0
        %4771 = vmatpush.msra.mxu0 0.0
        %4772 = vmatpush.msra.mxu0 0.0
        %4773 = vmatpush.msra.mxu0 0.0
        %4774 = vmatpush.msra.mxu0 0.0
        %4775 = vmatpush.msra.mxu0 0.0
        %4776 = vmatpush.msra.mxu0 0.0
        %4777 = vmatpush.msra.mxu0 0.0
        %4778 = vmatpush.msra.mxu0 0.0
        %4779 = vmatpush.msra.mxu0 0.0
        %4780 = vmatpush.msra.mxu0 0.0
        %4781 = vmatpush.msra.mxu0 0.0
        %4782 = vmatpush.msra.mxu0 0.0
        %4783 = vmatpush.msra.mxu0 %v4554
        %4784 = vmatpush.msra.mxu0 %v4553
        %4785 = vmatpush.msra.mxu0 %v4552
        %4786 = vmatpush.msra.mxu0 %v4551
        %4787 = vmatmul.f32.gmra.mxu0 %v4556
        %v4788 = vpop.f32.mrf.mxu0
        %v4789 = vadd.f32 0.0, %v4788
        %4790 = vmatmul.f32.gmra.mxu0 %v4559
        %v4791 = vpop.f32.mrf.mxu0
        %v4792 = vadd.f32 0.0, %v4791
        %4793 = vmatmul.f32.gmra.mxu0 %v4562
        %v4794 = vpop.f32.mrf.mxu0
        %v4795 = vadd.f32 0.0, %v4794
        %4796 = vmatmul.f32.gmra.mxu0 %v4565
        %v4797 = vpop.f32.mrf.mxu0
        %v4798 = vadd.f32 0.0, %v4797
        %4799 = vmatmul.f32.gmra.mxu0 %v4568
        %v4800 = vpop.f32.mrf.mxu0
        %v4801 = vadd.f32 0.0, %v4800
        %4802 = vmatmul.f32.gmra.mxu0 %v4571
        %v4803 = vpop.f32.mrf.mxu0
        %v4804 = vadd.f32 0.0, %v4803
        %4805 = vmatmul.f32.gmra.mxu0 %v4574
        %v4806 = vpop.f32.mrf.mxu0
        %v4807 = vadd.f32 0.0, %v4806
        %4808 = vmatmul.f32.gmra.mxu0 %v4577
        %v4809 = vpop.f32.mrf.mxu0
        %v4810 = vadd.f32 0.0, %v4809
        %4811 = vmatmul.f32.gmra.mxu0 %v4580
        %v4812 = vpop.f32.mrf.mxu0
        %v4813 = vadd.f32 0.0, %v4812
        %4814 = vmatmul.f32.gmra.mxu0 %v4583
        %v4815 = vpop.f32.mrf.mxu0
        %v4816 = vadd.f32 0.0, %v4815
        %4817 = vmatmul.f32.gmra.mxu0 %v4586
        %v4818 = vpop.f32.mrf.mxu0
        %v4819 = vadd.f32 0.0, %v4818
        %4820 = vmatmul.f32.gmra.mxu0 %v4589
        %v4821 = vpop.f32.mrf.mxu0
        %v4822 = vadd.f32 0.0, %v4821
        %4823 = vmatmul.f32.gmra.mxu0 %v4592
        %v4824 = vpop.f32.mrf.mxu0
        %v4825 = vadd.f32 0.0, %v4824
        %4826 = vmatmul.f32.gmra.mxu0 %v4595
        %v4827 = vpop.f32.mrf.mxu0
        %v4828 = vadd.f32 0.0, %v4827
        %4829 = vmatmul.f32.gmra.mxu0 %v4598
        %v4830 = vpop.f32.mrf.mxu0
        %v4831 = vadd.f32 0.0, %v4830
        %4832 = vmatmul.f32.gmra.mxu0 %v4601
        %v4833 = vpop.f32.mrf.mxu0
        %v4834 = vadd.f32 0.0, %v4833
        %4835 = vmatmul.f32.gmra.mxu0 %v4604
        %v4836 = vpop.f32.mrf.mxu0
        %v4837 = vadd.f32 0.0, %v4836
        %4838 = vmatmul.f32.gmra.mxu0 %v4607
        %v4839 = vpop.f32.mrf.mxu0
        %v4840 = vadd.f32 0.0, %v4839
        %4841 = vmatmul.f32.gmra.mxu0 %v4610
        %v4842 = vpop.f32.mrf.mxu0
        %v4843 = vadd.f32 0.0, %v4842
        %4844 = vmatmul.f32.gmra.mxu0 %v4613
        %v4845 = vpop.f32.mrf.mxu0
        %v4846 = vadd.f32 0.0, %v4845
        %4847 = vmatmul.f32.gmra.mxu0 %v4616
        %v4848 = vpop.f32.mrf.mxu0
        %v4849 = vadd.f32 0.0, %v4848
        %4850 = vmatmul.f32.gmra.mxu0 %v4619
        %v4851 = vpop.f32.mrf.mxu0
        %v4852 = vadd.f32 0.0, %v4851
        %4853 = vmatmul.f32.gmra.mxu0 %v4622
        %v4854 = vpop.f32.mrf.mxu0
        %v4855 = vadd.f32 0.0, %v4854
        %4856 = vmatmul.f32.gmra.mxu0 %v4625
        %v4857 = vpop.f32.mrf.mxu0
        %v4858 = vadd.f32 0.0, %v4857
        %4859 = vmatmul.f32.gmra.mxu0 %v4628
        %v4860 = vpop.f32.mrf.mxu0
        %v4861 = vadd.f32 0.0, %v4860
        %4862 = vmatmul.f32.gmra.mxu0 %v4631
        %v4863 = vpop.f32.mrf.mxu0
        %v4864 = vadd.f32 0.0, %v4863
        %4865 = vmatmul.f32.gmra.mxu0 %v4634
        %v4866 = vpop.f32.mrf.mxu0
        %v4867 = vadd.f32 0.0, %v4866
        %4868 = vmatmul.f32.gmra.mxu0 %v4637
        %v4869 = vpop.f32.mrf.mxu0
        %v4870 = vadd.f32 0.0, %v4869
        %4871 = vmatmul.f32.gmra.mxu0 %v4640
        %v4872 = vpop.f32.mrf.mxu0
        %v4873 = vadd.f32 0.0, %v4872
        %4874 = vmatmul.f32.gmra.mxu0 %v4643
        %v4875 = vpop.f32.mrf.mxu0
        %v4876 = vadd.f32 0.0, %v4875
        %4877 = vmatmul.f32.gmra.mxu0 %v4646
        %v4878 = vpop.f32.mrf.mxu0
        %v4879 = vadd.f32 0.0, %v4878
        %4880 = vmatmul.f32.gmra.mxu0 %v4649
        %v4881 = vpop.f32.mrf.mxu0
        %v4882 = vadd.f32 0.0, %v4881
        %4883 = vmatmul.f32.gmra.mxu0 %v4652
        %v4884 = vpop.f32.mrf.mxu0
        %v4885 = vadd.f32 0.0, %v4884
        %4886 = vmatmul.f32.gmra.mxu0 %v4655
        %v4887 = vpop.f32.mrf.mxu0
        %v4888 = vadd.f32 0.0, %v4887
        %4889 = vmatmul.f32.gmra.mxu0 %v4658
        %v4890 = vpop.f32.mrf.mxu0
        %v4891 = vadd.f32 0.0, %v4890
        %4892 = vmatmul.f32.gmra.mxu0 %v4661
        %v4893 = vpop.f32.mrf.mxu0
        %v4894 = vadd.f32 0.0, %v4893
        %4895 = vmatmul.f32.gmra.mxu0 %v4664
        %v4896 = vpop.f32.mrf.mxu0
        %v4897 = vadd.f32 0.0, %v4896
        %4898 = vmatmul.f32.gmra.mxu0 %v4667
        %v4899 = vpop.f32.mrf.mxu0
        %v4900 = vadd.f32 0.0, %v4899
        %4901 = vmatmul.f32.gmra.mxu0 %v4670
        %v4902 = vpop.f32.mrf.mxu0
        %v4903 = vadd.f32 0.0, %v4902
        %4904 = vmatmul.f32.gmra.mxu0 %v4673
        %v4905 = vpop.f32.mrf.mxu0
        %v4906 = vadd.f32 0.0, %v4905
        %4907 = vmatmul.f32.gmra.mxu0 %v4676
        %v4908 = vpop.f32.mrf.mxu0
        %v4909 = vadd.f32 0.0, %v4908
        %4910 = vmatmul.f32.gmra.mxu0 %v4679
        %v4911 = vpop.f32.mrf.mxu0
        %v4912 = vadd.f32 0.0, %v4911
        %4913 = vmatmul.f32.gmra.mxu0 %v4682
        %v4914 = vpop.f32.mrf.mxu0
        %v4915 = vadd.f32 0.0, %v4914
        %4916 = vmatmul.f32.gmra.mxu0 %v4685
        %v4917 = vpop.f32.mrf.mxu0
        %v4918 = vadd.f32 0.0, %v4917
        %4919 = vmatmul.f32.gmra.mxu0 %v4688
        %v4920 = vpop.f32.mrf.mxu0
        %v4921 = vadd.f32 0.0, %v4920
        %4922 = vmatmul.f32.gmra.mxu0 %v4691
        %v4923 = vpop.f32.mrf.mxu0
        %v4924 = vadd.f32 0.0, %v4923
        %4925 = vmatmul.f32.gmra.mxu0 %v4694
        %v4926 = vpop.f32.mrf.mxu0
        %v4927 = vadd.f32 0.0, %v4926
        %4928 = vmatmul.f32.gmra.mxu0 %v4697
        %v4929 = vpop.f32.mrf.mxu0
        %v4930 = vadd.f32 0.0, %v4929
        %4931 = vmatmul.f32.gmra.mxu0 %v4700
        %v4932 = vpop.f32.mrf.mxu0
        %v4933 = vadd.f32 0.0, %v4932
        %4934 = vmatmul.f32.gmra.mxu0 %v4703
        %v4935 = vpop.f32.mrf.mxu0
        %v4936 = vadd.f32 0.0, %v4935
        %4937 = vmatmul.f32.gmra.mxu0 %v4706
        %v4938 = vpop.f32.mrf.mxu0
        %v4939 = vadd.f32 0.0, %v4938
        %4940 = vmatmul.f32.gmra.mxu0 %v4709
        %v4941 = vpop.f32.mrf.mxu0
        %v4942 = vadd.f32 0.0, %v4941
        %4943 = vmatmul.f32.gmra.mxu0 %v4712
        %v4944 = vpop.f32.mrf.mxu0
        %v4945 = vadd.f32 0.0, %v4944
        %4946 = vmatmul.f32.gmra.mxu0 %v4715
        %v4947 = vpop.f32.mrf.mxu0
        %v4948 = vadd.f32 0.0, %v4947
        %4949 = vmatmul.f32.gmra.mxu0 %v4718
        %v4950 = vpop.f32.mrf.mxu0
        %v4951 = vadd.f32 0.0, %v4950
        %4952 = vmatmul.f32.gmra.mxu0 %v4721
        %v4953 = vpop.f32.mrf.mxu0
        %v4954 = vadd.f32 0.0, %v4953
        %4955 = vmatmul.f32.gmra.mxu0 %v4724
        %v4956 = vpop.f32.mrf.mxu0
        %v4957 = vadd.f32 0.0, %v4956
        %4958 = vmatmul.f32.gmra.mxu0 %v4727
        %v4959 = vpop.f32.mrf.mxu0
        %v4960 = vadd.f32 0.0, %v4959
        %4961 = vmatmul.f32.gmra.mxu0 %v4730
        %v4962 = vpop.f32.mrf.mxu0
        %v4963 = vadd.f32 0.0, %v4962
        %4964 = vmatmul.f32.gmra.mxu0 %v4733
        %v4965 = vpop.f32.mrf.mxu0
        %v4966 = vadd.f32 0.0, %v4965
        %4967 = vmatmul.f32.gmra.mxu0 %v4736
        %v4968 = vpop.f32.mrf.mxu0
        %v4969 = vadd.f32 0.0, %v4968
        %4970 = vmatmul.f32.gmra.mxu0 %v4739
        %v4971 = vpop.f32.mrf.mxu0
        %v4972 = vadd.f32 0.0, %v4971
        %4973 = vmatmul.f32.gmra.mxu0 %v4742
        %v4974 = vpop.f32.mrf.mxu0
        %v4975 = vadd.f32 0.0, %v4974
        %4976 = vmatmul.f32.gmra.mxu0 %v4745
        %v4977 = vpop.f32.mrf.mxu0
        %v4978 = vadd.f32 0.0, %v4977
        %4979 = vmatmul.f32.gmra.mxu0 %v4748
        %v4980 = vpop.f32.mrf.mxu0
        %v4981 = vadd.f32 0.0, %v4980
        %4982 = vmatmul.f32.gmra.mxu0 %v4751
        %v4983 = vpop.f32.mrf.mxu0
        %v4984 = vadd.f32 0.0, %v4983
        %4985 = vmatmul.f32.gmra.mxu0 %v4754
        %v4986 = vpop.f32.mrf.mxu0
        %v4987 = vadd.f32 0.0, %v4986
        %4988 = vmatmul.f32.gmra.mxu0 %v4757
        %v4989 = vpop.f32.mrf.mxu0
        %v4990 = vadd.f32 0.0, %v4989
        %4991 = vmatmul.f32.gmra.mxu0 %v4760
        %v4992 = vpop.f32.mrf.mxu0
        %v4993 = vadd.f32 0.0, %v4992
        %4994 = vmatmul.f32.gmra.mxu0 %v4763
        %v4995 = vpop.f32.mrf.mxu0
        %v4996 = vadd.f32 0.0, %v4995
        %4997 = vmatmul.f32.gmra.mxu0 %v4766
        %v4998 = vpop.f32.mrf.mxu0
        %v4999 = vadd.f32 0.0, %v4998
        %5000 = vmatmul.f32.gmra.mxu0 %v4769
        %v5001 = vpop.f32.mrf.mxu0
        %v5002 = vadd.f32 0.0, %v5001
        %5003 = vdwg.mxu0
        %v5004 = vadd.f32 %v4264, %v4789
        %v5005 = vadd.f32 %v4267, %v4792
        %v5006 = vadd.f32 %v4270, %v4795
        %v5007 = vadd.f32 %v4273, %v4798
        %v5008 = vadd.f32 %v4276, %v4801
        %v5009 = vadd.f32 %v4279, %v4804
        %v5010 = vadd.f32 %v4282, %v4807
        %v5011 = vadd.f32 %v4285, %v4810
        %v5012 = vadd.f32 %v4288, %v4813
        %v5013 = vadd.f32 %v4291, %v4816
        %v5014 = vadd.f32 %v4294, %v4819
        %v5015 = vadd.f32 %v4297, %v4822
        %v5016 = vadd.f32 %v4300, %v4825
        %v5017 = vadd.f32 %v4303, %v4828
        %v5018 = vadd.f32 %v4306, %v4831
        %v5019 = vadd.f32 %v4309, %v4834
        %v5020 = vadd.f32 %v4312, %v4837
        %v5021 = vadd.f32 %v4315, %v4840
        %v5022 = vadd.f32 %v4318, %v4843
        %v5023 = vadd.f32 %v4321, %v4846
        %v5024 = vadd.f32 %v4324, %v4849
        %v5025 = vadd.f32 %v4327, %v4852
        %v5026 = vadd.f32 %v4330, %v4855
        %v5027 = vadd.f32 %v4333, %v4858
        %v5028 = vadd.f32 %v4336, %v4861
        %v5029 = vadd.f32 %v4339, %v4864
        %v5030 = vadd.f32 %v4342, %v4867
        %v5031 = vadd.f32 %v4345, %v4870
        %v5032 = vadd.f32 %v4348, %v4873
        %v5033 = vadd.f32 %v4351, %v4876
        %v5034 = vadd.f32 %v4354, %v4879
        %v5035 = vadd.f32 %v4357, %v4882
        %v5036 = vadd.f32 %v4360, %v4885
        %v5037 = vadd.f32 %v4363, %v4888
        %v5038 = vadd.f32 %v4366, %v4891
        %v5039 = vadd.f32 %v4369, %v4894
        %v5040 = vadd.f32 %v4372, %v4897
        %v5041 = vadd.f32 %v4375, %v4900
        %v5042 = vadd.f32 %v4378, %v4903
        %v5043 = vadd.f32 %v4381, %v4906
        %v5044 = vadd.f32 %v4384, %v4909
        %v5045 = vadd.f32 %v4387, %v4912
        %v5046 = vadd.f32 %v4390, %v4915
        %v5047 = vadd.f32 %v4393, %v4918
        %v5048 = vadd.f32 %v4396, %v4921
        %v5049 = vadd.f32 %v4399, %v4924
        %v5050 = vadd.f32 %v4402, %v4927
        %v5051 = vadd.f32 %v4405, %v4930
        %v5052 = vadd.f32 %v4408, %v4933
        %v5053 = vadd.f32 %v4411, %v4936
        %v5054 = vadd.f32 %v4414, %v4939
        %v5055 = vadd.f32 %v4417, %v4942
        %v5056 = vadd.f32 %v4420, %v4945
        %v5057 = vadd.f32 %v4423, %v4948
        %v5058 = vadd.f32 %v4426, %v4951
        %v5059 = vadd.f32 %v4429, %v4954
        %v5060 = vadd.f32 %v4432, %v4957
        %v5061 = vadd.f32 %v4435, %v4960
        %v5062 = vadd.f32 %v4438, %v4963
        %v5063 = vadd.f32 %v4441, %v4966
        %v5064 = vadd.f32 %v4444, %v4969
        %v5065 = vadd.f32 %v4447, %v4972
        %v5066 = vadd.f32 %v4450, %v4975
        %v5067 = vadd.f32 %v4453, %v4978
        %v5068 = vadd.f32 %v4456, %v4981
        %v5069 = vadd.f32 %v4459, %v4984
        %v5070 = vadd.f32 %v4462, %v4987
        %v5071 = vadd.f32 %v4465, %v4990
        %v5072 = vadd.f32 %v4468, %v4993
        %v5073 = vadd.f32 %v4471, %v4996
        %v5074 = vadd.f32 %v4474, %v4999
        %v5075 = vadd.f32 %v4477, %v5002
        %v5076 = vld [vmem:[%s3356] sm:$0xff]
        %v5077 = vld [vmem:[%s3356 + $0x8] sm:$0xff]
        %v5078 = vld [vmem:[%s3356 + $0x10] sm:$0xff]
        %v5079 = vld [vmem:[%s3356 + $0x20] sm:$0xff]
        %v5080 = vld [vmem:[%s3356 + $0x28] sm:$0xff]
        %v5081 = vld [vmem:[%s3356 + $0x30] sm:$0xff]
        %v5082 = vld [vmem:[%s3356 + $0x40] sm:$0xff]
        %v5083 = vld [vmem:[%s3356 + $0x48] sm:$0xff]
        %v5084 = vld [vmem:[%s3356 + $0x50] sm:$0xff]
        %v5085 = vld [vmem:[%s3356 + $0x60] sm:$0xff]
        %v5086 = vld [vmem:[%s3356 + $0x68] sm:$0xff]
        %v5087 = vld [vmem:[%s3356 + $0x70] sm:$0xff]
        %v5088 = vld [vmem:[%s3356 + $0x80] sm:$0xff]
        %v5089 = vld [vmem:[%s3356 + $0x88] sm:$0xff]
        %v5090 = vld [vmem:[%s3356 + $0x90] sm:$0xff]
        %v5091 = vld [vmem:[%s3356 + $0xa0] sm:$0xff]
        %v5092 = vld [vmem:[%s3356 + $0xa8] sm:$0xff]
        %v5093 = vld [vmem:[%s3356 + $0xb0] sm:$0xff]
        %v5094 = vld [vmem:[%s3356 + $0xc0] sm:$0xff]
        %v5095 = vld [vmem:[%s3356 + $0xc8] sm:$0xff]
        %v5096 = vld [vmem:[%s3356 + $0xd0] sm:$0xff]
        %v5097 = vld [vmem:[%s3356 + $0xe0] sm:$0xff]
        %v5098 = vld [vmem:[%s3356 + $0xe8] sm:$0xff]
        %v5099 = vld [vmem:[%s3356 + $0xf0] sm:$0xff]
        %v5100 = vld [vmem:[%s3356 + $0x100] sm:$0xff]
        %v5101 = vld [vmem:[%s3356 + $0x108] sm:$0xff]
        %v5102 = vld [vmem:[%s3356 + $0x110] sm:$0xff]
        %v5103 = vld [vmem:[%s3356 + $0x120] sm:$0xff]
        %v5104 = vld [vmem:[%s3356 + $0x128] sm:$0xff]
        %v5105 = vld [vmem:[%s3356 + $0x130] sm:$0xff]
        %v5106 = vld [vmem:[%s3356 + $0x140] sm:$0xff]
        %v5107 = vld [vmem:[%s3356 + $0x148] sm:$0xff]
        %v5108 = vld [vmem:[%s3356 + $0x150] sm:$0xff]
        %v5109 = vld [vmem:[%s3356 + $0x160] sm:$0xff]
        %v5110 = vld [vmem:[%s3356 + $0x168] sm:$0xff]
        %v5111 = vld [vmem:[%s3356 + $0x170] sm:$0xff]
        %v5112 = vld [vmem:[%s3356 + $0x180] sm:$0xff]
        %v5113 = vld [vmem:[%s3356 + $0x188] sm:$0xff]
        %v5114 = vld [vmem:[%s3356 + $0x190] sm:$0xff]
        %v5115 = vld [vmem:[%s3356 + $0x1a0] sm:$0xff]
        %v5116 = vld [vmem:[%s3356 + $0x1a8] sm:$0xff]
        %v5117 = vld [vmem:[%s3356 + $0x1b0] sm:$0xff]
        %v5118 = vld [vmem:[%s3356 + $0x1c0] sm:$0xff]
        %v5119 = vld [vmem:[%s3356 + $0x1c8] sm:$0xff]
        %v5120 = vld [vmem:[%s3356 + $0x1d0] sm:$0xff]
        %v5121 = vld [vmem:[%s3356 + $0x1e0] sm:$0xff]
        %v5122 = vld [vmem:[%s3356 + $0x1e8] sm:$0xff]
        %v5123 = vld [vmem:[%s3356 + $0x1f0] sm:$0xff]
        %v5124 = vld [vmem:[%s3356 + $0x200] sm:$0xff]
        %v5125 = vld [vmem:[%s3356 + $0x208] sm:$0xff]
        %v5126 = vld [vmem:[%s3356 + $0x210] sm:$0xff]
        %v5127 = vld [vmem:[%s3356 + $0x220] sm:$0xff]
        %v5128 = vld [vmem:[%s3356 + $0x228] sm:$0xff]
        %v5129 = vld [vmem:[%s3356 + $0x230] sm:$0xff]
        %v5130 = vld [vmem:[%s3356 + $0x240] sm:$0xff]
        %v5131 = vld [vmem:[%s3356 + $0x248] sm:$0xff]
        %v5132 = vld [vmem:[%s3356 + $0x250] sm:$0xff]
        %v5133 = vld [vmem:[%s3356 + $0x260] sm:$0xff]
        %v5134 = vld [vmem:[%s3356 + $0x268] sm:$0xff]
        %v5135 = vld [vmem:[%s3356 + $0x270] sm:$0xff]
        %v5136 = vld [vmem:[%s3356 + $0x280] sm:$0xff]
        %v5137 = vld [vmem:[%s3356 + $0x288] sm:$0xff]
        %v5138 = vld [vmem:[%s3356 + $0x290] sm:$0xff]
        %v5139 = vld [vmem:[%s3356 + $0x2a0] sm:$0xff]
        %v5140 = vld [vmem:[%s3356 + $0x2a8] sm:$0xff]
        %v5141 = vld [vmem:[%s3356 + $0x2b0] sm:$0xff]
        %v5142 = vld [vmem:[%s3356 + $0x2c0] sm:$0xff]
        %v5143 = vld [vmem:[%s3356 + $0x2c8] sm:$0xff]
        %v5144 = vld [vmem:[%s3356 + $0x2d0] sm:$0xff]
        %v5145 = vld [vmem:[%s3356 + $0x2e0] sm:$0xff]
        %v5146 = vld [vmem:[%s3356 + $0x2e8] sm:$0xff]
        %v5147 = vld [vmem:[%s3356 + $0x2f0] sm:$0xff]
        %v5148 = vld [vmem:[%s3 + $0x60] sm:$0xff]
        %v5149 = vld [vmem:[%s3 + $0x68] sm:$0xff]
        %v5150 = vld [vmem:[%s3 + $0x70] sm:$0xff]
        %v5151 = vld [vmem:[%s3 + $0x78] sm:$0xff]
        %v5153 = vsel %vm2747, %v5076, 0
        %v5156 = vsel %vm2747, %v5077, 0
        %v5159 = vsel %vm2747, %v5078, 0
        %v5162 = vsel %vm2747, %v5079, 0
        %v5165 = vsel %vm2747, %v5080, 0
        %v5168 = vsel %vm2747, %v5081, 0
        %v5171 = vsel %vm2747, %v5082, 0
        %v5174 = vsel %vm2747, %v5083, 0
        %v5177 = vsel %vm2747, %v5084, 0
        %v5180 = vsel %vm2747, %v5085, 0
        %v5183 = vsel %vm2747, %v5086, 0
        %v5186 = vsel %vm2747, %v5087, 0
        %v5189 = vsel %vm2747, %v5088, 0
        %v5192 = vsel %vm2747, %v5089, 0
        %v5195 = vsel %vm2747, %v5090, 0
        %v5198 = vsel %vm2747, %v5091, 0
        %v5201 = vsel %vm2747, %v5092, 0
        %v5204 = vsel %vm2747, %v5093, 0
        %v5207 = vsel %vm2747, %v5094, 0
        %v5210 = vsel %vm2747, %v5095, 0
        %v5213 = vsel %vm2747, %v5096, 0
        %v5216 = vsel %vm2747, %v5097, 0
        %v5219 = vsel %vm2747, %v5098, 0
        %v5222 = vsel %vm2747, %v5099, 0
        %v5225 = vsel %vm2747, %v5100, 0
        %v5228 = vsel %vm2747, %v5101, 0
        %v5231 = vsel %vm2747, %v5102, 0
        %v5234 = vsel %vm2747, %v5103, 0
        %v5237 = vsel %vm2747, %v5104, 0
        %v5240 = vsel %vm2747, %v5105, 0
        %v5243 = vsel %vm2747, %v5106, 0
        %v5246 = vsel %vm2747, %v5107, 0
        %v5249 = vsel %vm2747, %v5108, 0
        %v5252 = vsel %vm2747, %v5109, 0
        %v5255 = vsel %vm2747, %v5110, 0
        %v5258 = vsel %vm2747, %v5111, 0
        %v5261 = vsel %vm2747, %v5112, 0
        %v5264 = vsel %vm2747, %v5113, 0
        %v5267 = vsel %vm2747, %v5114, 0
        %v5270 = vsel %vm2747, %v5115, 0
        %v5273 = vsel %vm2747, %v5116, 0
        %v5276 = vsel %vm2747, %v5117, 0
        %v5279 = vsel %vm2747, %v5118, 0
        %v5282 = vsel %vm2747, %v5119, 0
        %v5285 = vsel %vm2747, %v5120, 0
        %v5288 = vsel %vm2747, %v5121, 0
        %v5291 = vsel %vm2747, %v5122, 0
        %v5294 = vsel %vm2747, %v5123, 0
        %v5297 = vsel %vm2747, %v5124, 0
        %v5300 = vsel %vm2747, %v5125, 0
        %v5303 = vsel %vm2747, %v5126, 0
        %v5306 = vsel %vm2747, %v5127, 0
        %v5309 = vsel %vm2747, %v5128, 0
        %v5312 = vsel %vm2747, %v5129, 0
        %v5315 = vsel %vm2747, %v5130, 0
        %v5318 = vsel %vm2747, %v5131, 0
        %v5321 = vsel %vm2747, %v5132, 0
        %v5324 = vsel %vm2747, %v5133, 0
        %v5327 = vsel %vm2747, %v5134, 0
        %v5330 = vsel %vm2747, %v5135, 0
        %v5333 = vsel %vm2747, %v5136, 0
        %v5336 = vsel %vm2747, %v5137, 0
        %v5339 = vsel %vm2747, %v5138, 0
        %v5342 = vsel %vm2747, %v5139, 0
        %v5345 = vsel %vm2747, %v5140, 0
        %v5348 = vsel %vm2747, %v5141, 0
        %v5351 = vsel %vm2747, %v5142, 0
        %v5354 = vsel %vm2747, %v5143, 0
        %v5357 = vsel %vm2747, %v5144, 0
        %v5360 = vsel %vm2747, %v5145, 0
        %v5363 = vsel %vm2747, %v5146, 0
        %v5366 = vsel %vm2747, %v5147, 0
        %5368 = vmatpush.msra.mxu0 0.0
        %5369 = vmatpush.msra.mxu0 0.0
        %5370 = vmatpush.msra.mxu0 0.0
        %5371 = vmatpush.msra.mxu0 0.0
        %5372 = vmatpush.msra.mxu0 0.0
        %5373 = vmatpush.msra.mxu0 0.0
        %5374 = vmatpush.msra.mxu0 0.0
        %5375 = vmatpush.msra.mxu0 0.0
        %5376 = vmatpush.msra.mxu0 0.0
        %5377 = vmatpush.msra.mxu0 0.0
        %5378 = vmatpush.msra.mxu0 0.0
        %5379 = vmatpush.msra.mxu0 0.0
        %5380 = vmatpush.msra.mxu0 %v5151
        %5381 = vmatpush.msra.mxu0 %v5150
        %5382 = vmatpush.msra.mxu0 %v5149
        %5383 = vmatpush.msra.mxu0 %v5148
        %5384 = vmatmul.f32.gmra.mxu0 %v5153
        %v5385 = vpop.f32.mrf.mxu0
        %v5386 = vadd.f32 0.0, %v5385
        %5387 = vmatmul.f32.gmra.mxu0 %v5156
        %v5388 = vpop.f32.mrf.mxu0
        %v5389 = vadd.f32 0.0, %v5388
        %5390 = vmatmul.f32.gmra.mxu0 %v5159
        %v5391 = vpop.f32.mrf.mxu0
        %v5392 = vadd.f32 0.0, %v5391
        %5393 = vmatmul.f32.gmra.mxu0 %v5162
        %v5394 = vpop.f32.mrf.mxu0
        %v5395 = vadd.f32 0.0, %v5394
        %5396 = vmatmul.f32.gmra.mxu0 %v5165
        %v5397 = vpop.f32.mrf.mxu0
        %v5398 = vadd.f32 0.0, %v5397
        %5399 = vmatmul.f32.gmra.mxu0 %v5168
        %v5400 = vpop.f32.mrf.mxu0
        %v5401 = vadd.f32 0.0, %v5400
        %5402 = vmatmul.f32.gmra.mxu0 %v5171
        %v5403 = vpop.f32.mrf.mxu0
        %v5404 = vadd.f32 0.0, %v5403
        %5405 = vmatmul.f32.gmra.mxu0 %v5174
        %v5406 = vpop.f32.mrf.mxu0
        %v5407 = vadd.f32 0.0, %v5406
        %5408 = vmatmul.f32.gmra.mxu0 %v5177
        %v5409 = vpop.f32.mrf.mxu0
        %v5410 = vadd.f32 0.0, %v5409
        %5411 = vmatmul.f32.gmra.mxu0 %v5180
        %v5412 = vpop.f32.mrf.mxu0
        %v5413 = vadd.f32 0.0, %v5412
        %5414 = vmatmul.f32.gmra.mxu0 %v5183
        %v5415 = vpop.f32.mrf.mxu0
        %v5416 = vadd.f32 0.0, %v5415
        %5417 = vmatmul.f32.gmra.mxu0 %v5186
        %v5418 = vpop.f32.mrf.mxu0
        %v5419 = vadd.f32 0.0, %v5418
        %5420 = vmatmul.f32.gmra.mxu0 %v5189
        %v5421 = vpop.f32.mrf.mxu0
        %v5422 = vadd.f32 0.0, %v5421
        %5423 = vmatmul.f32.gmra.mxu0 %v5192
        %v5424 = vpop.f32.mrf.mxu0
        %v5425 = vadd.f32 0.0, %v5424
        %5426 = vmatmul.f32.gmra.mxu0 %v5195
        %v5427 = vpop.f32.mrf.mxu0
        %v5428 = vadd.f32 0.0, %v5427
        %5429 = vmatmul.f32.gmra.mxu0 %v5198
        %v5430 = vpop.f32.mrf.mxu0
        %v5431 = vadd.f32 0.0, %v5430
        %5432 = vmatmul.f32.gmra.mxu0 %v5201
        %v5433 = vpop.f32.mrf.mxu0
        %v5434 = vadd.f32 0.0, %v5433
        %5435 = vmatmul.f32.gmra.mxu0 %v5204
        %v5436 = vpop.f32.mrf.mxu0
        %v5437 = vadd.f32 0.0, %v5436
        %5438 = vmatmul.f32.gmra.mxu0 %v5207
        %v5439 = vpop.f32.mrf.mxu0
        %v5440 = vadd.f32 0.0, %v5439
        %5441 = vmatmul.f32.gmra.mxu0 %v5210
        %v5442 = vpop.f32.mrf.mxu0
        %v5443 = vadd.f32 0.0, %v5442
        %5444 = vmatmul.f32.gmra.mxu0 %v5213
        %v5445 = vpop.f32.mrf.mxu0
        %v5446 = vadd.f32 0.0, %v5445
        %5447 = vmatmul.f32.gmra.mxu0 %v5216
        %v5448 = vpop.f32.mrf.mxu0
        %v5449 = vadd.f32 0.0, %v5448
        %5450 = vmatmul.f32.gmra.mxu0 %v5219
        %v5451 = vpop.f32.mrf.mxu0
        %v5452 = vadd.f32 0.0, %v5451
        %5453 = vmatmul.f32.gmra.mxu0 %v5222
        %v5454 = vpop.f32.mrf.mxu0
        %v5455 = vadd.f32 0.0, %v5454
        %5456 = vmatmul.f32.gmra.mxu0 %v5225
        %v5457 = vpop.f32.mrf.mxu0
        %v5458 = vadd.f32 0.0, %v5457
        %5459 = vmatmul.f32.gmra.mxu0 %v5228
        %v5460 = vpop.f32.mrf.mxu0
        %v5461 = vadd.f32 0.0, %v5460
        %5462 = vmatmul.f32.gmra.mxu0 %v5231
        %v5463 = vpop.f32.mrf.mxu0
        %v5464 = vadd.f32 0.0, %v5463
        %5465 = vmatmul.f32.gmra.mxu0 %v5234
        %v5466 = vpop.f32.mrf.mxu0
        %v5467 = vadd.f32 0.0, %v5466
        %5468 = vmatmul.f32.gmra.mxu0 %v5237
        %v5469 = vpop.f32.mrf.mxu0
        %v5470 = vadd.f32 0.0, %v5469
        %5471 = vmatmul.f32.gmra.mxu0 %v5240
        %v5472 = vpop.f32.mrf.mxu0
        %v5473 = vadd.f32 0.0, %v5472
        %5474 = vmatmul.f32.gmra.mxu0 %v5243
        %v5475 = vpop.f32.mrf.mxu0
        %v5476 = vadd.f32 0.0, %v5475
        %5477 = vmatmul.f32.gmra.mxu0 %v5246
        %v5478 = vpop.f32.mrf.mxu0
        %v5479 = vadd.f32 0.0, %v5478
        %5480 = vmatmul.f32.gmra.mxu0 %v5249
        %v5481 = vpop.f32.mrf.mxu0
        %v5482 = vadd.f32 0.0, %v5481
        %5483 = vmatmul.f32.gmra.mxu0 %v5252
        %v5484 = vpop.f32.mrf.mxu0
        %v5485 = vadd.f32 0.0, %v5484
        %5486 = vmatmul.f32.gmra.mxu0 %v5255
        %v5487 = vpop.f32.mrf.mxu0
        %v5488 = vadd.f32 0.0, %v5487
        %5489 = vmatmul.f32.gmra.mxu0 %v5258
        %v5490 = vpop.f32.mrf.mxu0
        %v5491 = vadd.f32 0.0, %v5490
        %5492 = vmatmul.f32.gmra.mxu0 %v5261
        %v5493 = vpop.f32.mrf.mxu0
        %v5494 = vadd.f32 0.0, %v5493
        %5495 = vmatmul.f32.gmra.mxu0 %v5264
        %v5496 = vpop.f32.mrf.mxu0
        %v5497 = vadd.f32 0.0, %v5496
        %5498 = vmatmul.f32.gmra.mxu0 %v5267
        %v5499 = vpop.f32.mrf.mxu0
        %v5500 = vadd.f32 0.0, %v5499
        %5501 = vmatmul.f32.gmra.mxu0 %v5270
        %v5502 = vpop.f32.mrf.mxu0
        %v5503 = vadd.f32 0.0, %v5502
        %5504 = vmatmul.f32.gmra.mxu0 %v5273
        %v5505 = vpop.f32.mrf.mxu0
        %v5506 = vadd.f32 0.0, %v5505
        %5507 = vmatmul.f32.gmra.mxu0 %v5276
        %v5508 = vpop.f32.mrf.mxu0
        %v5509 = vadd.f32 0.0, %v5508
        %5510 = vmatmul.f32.gmra.mxu0 %v5279
        %v5511 = vpop.f32.mrf.mxu0
        %v5512 = vadd.f32 0.0, %v5511
        %5513 = vmatmul.f32.gmra.mxu0 %v5282
        %v5514 = vpop.f32.mrf.mxu0
        %v5515 = vadd.f32 0.0, %v5514
        %5516 = vmatmul.f32.gmra.mxu0 %v5285
        %v5517 = vpop.f32.mrf.mxu0
        %v5518 = vadd.f32 0.0, %v5517
        %5519 = vmatmul.f32.gmra.mxu0 %v5288
        %v5520 = vpop.f32.mrf.mxu0
        %v5521 = vadd.f32 0.0, %v5520
        %5522 = vmatmul.f32.gmra.mxu0 %v5291
        %v5523 = vpop.f32.mrf.mxu0
        %v5524 = vadd.f32 0.0, %v5523
        %5525 = vmatmul.f32.gmra.mxu0 %v5294
        %v5526 = vpop.f32.mrf.mxu0
        %v5527 = vadd.f32 0.0, %v5526
        %5528 = vmatmul.f32.gmra.mxu0 %v5297
        %v5529 = vpop.f32.mrf.mxu0
        %v5530 = vadd.f32 0.0, %v5529
        %5531 = vmatmul.f32.gmra.mxu0 %v5300
        %v5532 = vpop.f32.mrf.mxu0
        %v5533 = vadd.f32 0.0, %v5532
        %5534 = vmatmul.f32.gmra.mxu0 %v5303
        %v5535 = vpop.f32.mrf.mxu0
        %v5536 = vadd.f32 0.0, %v5535
        %5537 = vmatmul.f32.gmra.mxu0 %v5306
        %v5538 = vpop.f32.mrf.mxu0
        %v5539 = vadd.f32 0.0, %v5538
        %5540 = vmatmul.f32.gmra.mxu0 %v5309
        %v5541 = vpop.f32.mrf.mxu0
        %v5542 = vadd.f32 0.0, %v5541
        %5543 = vmatmul.f32.gmra.mxu0 %v5312
        %v5544 = vpop.f32.mrf.mxu0
        %v5545 = vadd.f32 0.0, %v5544
        %5546 = vmatmul.f32.gmra.mxu0 %v5315
        %v5547 = vpop.f32.mrf.mxu0
        %v5548 = vadd.f32 0.0, %v5547
        %5549 = vmatmul.f32.gmra.mxu0 %v5318
        %v5550 = vpop.f32.mrf.mxu0
        %v5551 = vadd.f32 0.0, %v5550
        %5552 = vmatmul.f32.gmra.mxu0 %v5321
        %v5553 = vpop.f32.mrf.mxu0
        %v5554 = vadd.f32 0.0, %v5553
        %5555 = vmatmul.f32.gmra.mxu0 %v5324
        %v5556 = vpop.f32.mrf.mxu0
        %v5557 = vadd.f32 0.0, %v5556
        %5558 = vmatmul.f32.gmra.mxu0 %v5327
        %v5559 = vpop.f32.mrf.mxu0
        %v5560 = vadd.f32 0.0, %v5559
        %5561 = vmatmul.f32.gmra.mxu0 %v5330
        %v5562 = vpop.f32.mrf.mxu0
        %v5563 = vadd.f32 0.0, %v5562
        %5564 = vmatmul.f32.gmra.mxu0 %v5333
        %v5565 = vpop.f32.mrf.mxu0
        %v5566 = vadd.f32 0.0, %v5565
        %5567 = vmatmul.f32.gmra.mxu0 %v5336
        %v5568 = vpop.f32.mrf.mxu0
        %v5569 = vadd.f32 0.0, %v5568
        %5570 = vmatmul.f32.gmra.mxu0 %v5339
        %v5571 = vpop.f32.mrf.mxu0
        %v5572 = vadd.f32 0.0, %v5571
        %5573 = vmatmul.f32.gmra.mxu0 %v5342
        %v5574 = vpop.f32.mrf.mxu0
        %v5575 = vadd.f32 0.0, %v5574
        %5576 = vmatmul.f32.gmra.mxu0 %v5345
        %v5577 = vpop.f32.mrf.mxu0
        %v5578 = vadd.f32 0.0, %v5577
        %5579 = vmatmul.f32.gmra.mxu0 %v5348
        %v5580 = vpop.f32.mrf.mxu0
        %v5581 = vadd.f32 0.0, %v5580
        %5582 = vmatmul.f32.gmra.mxu0 %v5351
        %v5583 = vpop.f32.mrf.mxu0
        %v5584 = vadd.f32 0.0, %v5583
        %5585 = vmatmul.f32.gmra.mxu0 %v5354
        %v5586 = vpop.f32.mrf.mxu0
        %v5587 = vadd.f32 0.0, %v5586
        %5588 = vmatmul.f32.gmra.mxu0 %v5357
        %v5589 = vpop.f32.mrf.mxu0
        %v5590 = vadd.f32 0.0, %v5589
        %5591 = vmatmul.f32.gmra.mxu0 %v5360
        %v5592 = vpop.f32.mrf.mxu0
        %v5593 = vadd.f32 0.0, %v5592
        %5594 = vmatmul.f32.gmra.mxu0 %v5363
        %v5595 = vpop.f32.mrf.mxu0
        %v5596 = vadd.f32 0.0, %v5595
        %5597 = vmatmul.f32.gmra.mxu0 %v5366
        %v5598 = vpop.f32.mrf.mxu0
        %v5599 = vadd.f32 0.0, %v5598
        %5600 = vdwg.mxu0
        %v5601 = vadd.f32 %v5004, %v5386
        %v5602 = vadd.f32 %v5005, %v5389
        %v5603 = vadd.f32 %v5006, %v5392
        %v5604 = vadd.f32 %v5007, %v5395
        %v5605 = vadd.f32 %v5008, %v5398
        %v5606 = vadd.f32 %v5009, %v5401
        %v5607 = vadd.f32 %v5010, %v5404
        %v5608 = vadd.f32 %v5011, %v5407
        %v5609 = vadd.f32 %v5012, %v5410
        %v5610 = vadd.f32 %v5013, %v5413
        %v5611 = vadd.f32 %v5014, %v5416
        %v5612 = vadd.f32 %v5015, %v5419
        %v5613 = vadd.f32 %v5016, %v5422
        %v5614 = vadd.f32 %v5017, %v5425
        %v5615 = vadd.f32 %v5018, %v5428
        %v5616 = vadd.f32 %v5019, %v5431
        %v5617 = vadd.f32 %v5020, %v5434
        %v5618 = vadd.f32 %v5021, %v5437
        %v5619 = vadd.f32 %v5022, %v5440
        %v5620 = vadd.f32 %v5023, %v5443
        %v5621 = vadd.f32 %v5024, %v5446
        %v5622 = vadd.f32 %v5025, %v5449
        %v5623 = vadd.f32 %v5026, %v5452
        %v5624 = vadd.f32 %v5027, %v5455
        %v5625 = vadd.f32 %v5028, %v5458
        %v5626 = vadd.f32 %v5029, %v5461
        %v5627 = vadd.f32 %v5030, %v5464
        %v5628 = vadd.f32 %v5031, %v5467
        %v5629 = vadd.f32 %v5032, %v5470
        %v5630 = vadd.f32 %v5033, %v5473
        %v5631 = vadd.f32 %v5034, %v5476
        %v5632 = vadd.f32 %v5035, %v5479
        %v5633 = vadd.f32 %v5036, %v5482
        %v5634 = vadd.f32 %v5037, %v5485
        %v5635 = vadd.f32 %v5038, %v5488
        %v5636 = vadd.f32 %v5039, %v5491
        %v5637 = vadd.f32 %v5040, %v5494
        %v5638 = vadd.f32 %v5041, %v5497
        %v5639 = vadd.f32 %v5042, %v5500
        %v5640 = vadd.f32 %v5043, %v5503
        %v5641 = vadd.f32 %v5044, %v5506
        %v5642 = vadd.f32 %v5045, %v5509
        %v5643 = vadd.f32 %v5046, %v5512
        %v5644 = vadd.f32 %v5047, %v5515
        %v5645 = vadd.f32 %v5048, %v5518
        %v5646 = vadd.f32 %v5049, %v5521
        %v5647 = vadd.f32 %v5050, %v5524
        %v5648 = vadd.f32 %v5051, %v5527
        %v5649 = vadd.f32 %v5052, %v5530
        %v5650 = vadd.f32 %v5053, %v5533
        %v5651 = vadd.f32 %v5054, %v5536
        %v5652 = vadd.f32 %v5055, %v5539
        %v5653 = vadd.f32 %v5056, %v5542
        %v5654 = vadd.f32 %v5057, %v5545
        %v5655 = vadd.f32 %v5058, %v5548
        %v5656 = vadd.f32 %v5059, %v5551
        %v5657 = vadd.f32 %v5060, %v5554
        %v5658 = vadd.f32 %v5061, %v5557
        %v5659 = vadd.f32 %v5062, %v5560
        %v5660 = vadd.f32 %v5063, %v5563
        %v5661 = vadd.f32 %v5064, %v5566
        %v5662 = vadd.f32 %v5065, %v5569
        %v5663 = vadd.f32 %v5066, %v5572
        %v5664 = vadd.f32 %v5067, %v5575
        %v5665 = vadd.f32 %v5068, %v5578
        %v5666 = vadd.f32 %v5069, %v5581
        %v5667 = vadd.f32 %v5070, %v5584
        %v5668 = vadd.f32 %v5071, %v5587
        %v5669 = vadd.f32 %v5072, %v5590
        %v5670 = vadd.f32 %v5073, %v5593
        %v5671 = vadd.f32 %v5074, %v5596
        %v5672 = vadd.f32 %v5075, %v5599
        %v5673 = vld [vmem:[%s3356 + $0x1] sm:$0xff]
        %v5674 = vld [vmem:[%s3356 + $0x9] sm:$0xff]
        %v5675 = vld [vmem:[%s3356 + $0x11] sm:$0xff]
        %v5676 = vld [vmem:[%s3356 + $0x21] sm:$0xff]
        %v5677 = vld [vmem:[%s3356 + $0x29] sm:$0xff]
        %v5678 = vld [vmem:[%s3356 + $0x31] sm:$0xff]
        %v5679 = vld [vmem:[%s3356 + $0x41] sm:$0xff]
        %v5680 = vld [vmem:[%s3356 + $0x49] sm:$0xff]
        %v5681 = vld [vmem:[%s3356 + $0x51] sm:$0xff]
        %v5682 = vld [vmem:[%s3356 + $0x61] sm:$0xff]
        %v5683 = vld [vmem:[%s3356 + $0x69] sm:$0xff]
        %v5684 = vld [vmem:[%s3356 + $0x71] sm:$0xff]
        %v5685 = vld [vmem:[%s3356 + $0x81] sm:$0xff]
        %v5686 = vld [vmem:[%s3356 + $0x89] sm:$0xff]
        %v5687 = vld [vmem:[%s3356 + $0x91] sm:$0xff]
        %v5688 = vld [vmem:[%s3356 + $0xa1] sm:$0xff]
        %v5689 = vld [vmem:[%s3356 + $0xa9] sm:$0xff]
        %v5690 = vld [vmem:[%s3356 + $0xb1] sm:$0xff]
        %v5691 = vld [vmem:[%s3356 + $0xc1] sm:$0xff]
        %v5692 = vld [vmem:[%s3356 + $0xc9] sm:$0xff]
        %v5693 = vld [vmem:[%s3356 + $0xd1] sm:$0xff]
        %v5694 = vld [vmem:[%s3356 + $0xe1] sm:$0xff]
        %v5695 = vld [vmem:[%s3356 + $0xe9] sm:$0xff]
        %v5696 = vld [vmem:[%s3356 + $0xf1] sm:$0xff]
        %v5697 = vld [vmem:[%s3356 + $0x101] sm:$0xff]
        %v5698 = vld [vmem:[%s3356 + $0x109] sm:$0xff]
        %v5699 = vld [vmem:[%s3356 + $0x111] sm:$0xff]
        %v5700 = vld [vmem:[%s3356 + $0x121] sm:$0xff]
        %v5701 = vld [vmem:[%s3356 + $0x129] sm:$0xff]
        %v5702 = vld [vmem:[%s3356 + $0x131] sm:$0xff]
        %v5703 = vld [vmem:[%s3356 + $0x141] sm:$0xff]
        %v5704 = vld [vmem:[%s3356 + $0x149] sm:$0xff]
        %v5705 = vld [vmem:[%s3356 + $0x151] sm:$0xff]
        %v5706 = vld [vmem:[%s3356 + $0x161] sm:$0xff]
        %v5707 = vld [vmem:[%s3356 + $0x169] sm:$0xff]
        %v5708 = vld [vmem:[%s3356 + $0x171] sm:$0xff]
        %v5709 = vld [vmem:[%s3356 + $0x181] sm:$0xff]
        %v5710 = vld [vmem:[%s3356 + $0x189] sm:$0xff]
        %v5711 = vld [vmem:[%s3356 + $0x191] sm:$0xff]
        %v5712 = vld [vmem:[%s3356 + $0x1a1] sm:$0xff]
        %v5713 = vld [vmem:[%s3356 + $0x1a9] sm:$0xff]
        %v5714 = vld [vmem:[%s3356 + $0x1b1] sm:$0xff]
        %v5715 = vld [vmem:[%s3356 + $0x1c1] sm:$0xff]
        %v5716 = vld [vmem:[%s3356 + $0x1c9] sm:$0xff]
        %v5717 = vld [vmem:[%s3356 + $0x1d1] sm:$0xff]
        %v5718 = vld [vmem:[%s3356 + $0x1e1] sm:$0xff]
        %v5719 = vld [vmem:[%s3356 + $0x1e9] sm:$0xff]
        %v5720 = vld [vmem:[%s3356 + $0x1f1] sm:$0xff]
        %v5721 = vld [vmem:[%s3356 + $0x201] sm:$0xff]
        %v5722 = vld [vmem:[%s3356 + $0x209] sm:$0xff]
        %v5723 = vld [vmem:[%s3356 + $0x211] sm:$0xff]
        %v5724 = vld [vmem:[%s3356 + $0x221] sm:$0xff]
        %v5725 = vld [vmem:[%s3356 + $0x229] sm:$0xff]
        %v5726 = vld [vmem:[%s3356 + $0x231] sm:$0xff]
        %v5727 = vld [vmem:[%s3356 + $0x241] sm:$0xff]
        %v5728 = vld [vmem:[%s3356 + $0x249] sm:$0xff]
        %v5729 = vld [vmem:[%s3356 + $0x251] sm:$0xff]
        %v5730 = vld [vmem:[%s3356 + $0x261] sm:$0xff]
        %v5731 = vld [vmem:[%s3356 + $0x269] sm:$0xff]
        %v5732 = vld [vmem:[%s3356 + $0x271] sm:$0xff]
        %v5733 = vld [vmem:[%s3356 + $0x281] sm:$0xff]
        %v5734 = vld [vmem:[%s3356 + $0x289] sm:$0xff]
        %v5735 = vld [vmem:[%s3356 + $0x291] sm:$0xff]
        %v5736 = vld [vmem:[%s3356 + $0x2a1] sm:$0xff]
        %v5737 = vld [vmem:[%s3356 + $0x2a9] sm:$0xff]
        %v5738 = vld [vmem:[%s3356 + $0x2b1] sm:$0xff]
        %v5739 = vld [vmem:[%s3356 + $0x2c1] sm:$0xff]
        %v5740 = vld [vmem:[%s3356 + $0x2c9] sm:$0xff]
        %v5741 = vld [vmem:[%s3356 + $0x2d1] sm:$0xff]
        %v5742 = vld [vmem:[%s3356 + $0x2e1] sm:$0xff]
        %v5743 = vld [vmem:[%s3356 + $0x2e9] sm:$0xff]
        %v5744 = vld [vmem:[%s3356 + $0x2f1] sm:$0xff]
        %v5745 = vld [vmem:[%s3 + $0x80] sm:$0xff]
        %v5746 = vld [vmem:[%s3 + $0x88] sm:$0xff]
        %v5747 = vld [vmem:[%s3 + $0x90] sm:$0xff]
        %v5748 = vld [vmem:[%s3 + $0x98] sm:$0xff]
        %v5750 = vsel %vm2747, %v5673, 0
        %v5753 = vsel %vm2747, %v5674, 0
        %v5756 = vsel %vm2747, %v5675, 0
        %v5759 = vsel %vm2747, %v5676, 0
        %v5762 = vsel %vm2747, %v5677, 0
        %v5765 = vsel %vm2747, %v5678, 0
        %v5768 = vsel %vm2747, %v5679, 0
        %v5771 = vsel %vm2747, %v5680, 0
        %v5774 = vsel %vm2747, %v5681, 0
        %v5777 = vsel %vm2747, %v5682, 0
        %v5780 = vsel %vm2747, %v5683, 0
        %v5783 = vsel %vm2747, %v5684, 0
        %v5786 = vsel %vm2747, %v5685, 0
        %v5789 = vsel %vm2747, %v5686, 0
        %v5792 = vsel %vm2747, %v5687, 0
        %v5795 = vsel %vm2747, %v5688, 0
        %v5798 = vsel %vm2747, %v5689, 0
        %v5801 = vsel %vm2747, %v5690, 0
        %v5804 = vsel %vm2747, %v5691, 0
        %v5807 = vsel %vm2747, %v5692, 0
        %v5810 = vsel %vm2747, %v5693, 0
        %v5813 = vsel %vm2747, %v5694, 0
        %v5816 = vsel %vm2747, %v5695, 0
        %v5819 = vsel %vm2747, %v5696, 0
        %v5822 = vsel %vm2747, %v5697, 0
        %v5825 = vsel %vm2747, %v5698, 0
        %v5828 = vsel %vm2747, %v5699, 0
        %v5831 = vsel %vm2747, %v5700, 0
        %v5834 = vsel %vm2747, %v5701, 0
        %v5837 = vsel %vm2747, %v5702, 0
        %v5840 = vsel %vm2747, %v5703, 0
        %v5843 = vsel %vm2747, %v5704, 0
        %v5846 = vsel %vm2747, %v5705, 0
        %v5849 = vsel %vm2747, %v5706, 0
        %v5852 = vsel %vm2747, %v5707, 0
        %v5855 = vsel %vm2747, %v5708, 0
        %v5858 = vsel %vm2747, %v5709, 0
        %v5861 = vsel %vm2747, %v5710, 0
        %v5864 = vsel %vm2747, %v5711, 0
        %v5867 = vsel %vm2747, %v5712, 0
        %v5870 = vsel %vm2747, %v5713, 0
        %v5873 = vsel %vm2747, %v5714, 0
        %v5876 = vsel %vm2747, %v5715, 0
        %v5879 = vsel %vm2747, %v5716, 0
        %v5882 = vsel %vm2747, %v5717, 0
        %v5885 = vsel %vm2747, %v5718, 0
        %v5888 = vsel %vm2747, %v5719, 0
        %v5891 = vsel %vm2747, %v5720, 0
        %v5894 = vsel %vm2747, %v5721, 0
        %v5897 = vsel %vm2747, %v5722, 0
        %v5900 = vsel %vm2747, %v5723, 0
        %v5903 = vsel %vm2747, %v5724, 0
        %v5906 = vsel %vm2747, %v5725, 0
        %v5909 = vsel %vm2747, %v5726, 0
        %v5912 = vsel %vm2747, %v5727, 0
        %v5915 = vsel %vm2747, %v5728, 0
        %v5918 = vsel %vm2747, %v5729, 0
        %v5921 = vsel %vm2747, %v5730, 0
        %v5924 = vsel %vm2747, %v5731, 0
        %v5927 = vsel %vm2747, %v5732, 0
        %v5930 = vsel %vm2747, %v5733, 0
        %v5933 = vsel %vm2747, %v5734, 0
        %v5936 = vsel %vm2747, %v5735, 0
        %v5939 = vsel %vm2747, %v5736, 0
        %v5942 = vsel %vm2747, %v5737, 0
        %v5945 = vsel %vm2747, %v5738, 0
        %v5948 = vsel %vm2747, %v5739, 0
        %v5951 = vsel %vm2747, %v5740, 0
        %v5954 = vsel %vm2747, %v5741, 0
        %v5957 = vsel %vm2747, %v5742, 0
        %v5960 = vsel %vm2747, %v5743, 0
        %v5963 = vsel %vm2747, %v5744, 0
        %5965 = vmatpush.msra.mxu0 0.0
        %5966 = vmatpush.msra.mxu0 0.0
        %5967 = vmatpush.msra.mxu0 0.0
        %5968 = vmatpush.msra.mxu0 0.0
        %5969 = vmatpush.msra.mxu0 0.0
        %5970 = vmatpush.msra.mxu0 0.0
        %5971 = vmatpush.msra.mxu0 0.0
        %5972 = vmatpush.msra.mxu0 0.0
        %5973 = vmatpush.msra.mxu0 0.0
        %5974 = vmatpush.msra.mxu0 0.0
        %5975 = vmatpush.msra.mxu0 0.0
        %5976 = vmatpush.msra.mxu0 0.0
        %5977 = vmatpush.msra.mxu0 %v5748
        %5978 = vmatpush.msra.mxu0 %v5747
        %5979 = vmatpush.msra.mxu0 %v5746
        %5980 = vmatpush.msra.mxu0 %v5745
        %5981 = vmatmul.f32.gmra.mxu0 %v5750
        %v5982 = vpop.f32.mrf.mxu0
        %v5983 = vadd.f32 0.0, %v5982
        %5984 = vmatmul.f32.gmra.mxu0 %v5753
        %v5985 = vpop.f32.mrf.mxu0
        %v5986 = vadd.f32 0.0, %v5985
        %5987 = vmatmul.f32.gmra.mxu0 %v5756
        %v5988 = vpop.f32.mrf.mxu0
        %v5989 = vadd.f32 0.0, %v5988
        %5990 = vmatmul.f32.gmra.mxu0 %v5759
        %v5991 = vpop.f32.mrf.mxu0
        %v5992 = vadd.f32 0.0, %v5991
        %5993 = vmatmul.f32.gmra.mxu0 %v5762
        %v5994 = vpop.f32.mrf.mxu0
        %v5995 = vadd.f32 0.0, %v5994
        %5996 = vmatmul.f32.gmra.mxu0 %v5765
        %v5997 = vpop.f32.mrf.mxu0
        %v5998 = vadd.f32 0.0, %v5997
        %5999 = vmatmul.f32.gmra.mxu0 %v5768
        %v6000 = vpop.f32.mrf.mxu0
        %v6001 = vadd.f32 0.0, %v6000
        %6002 = vmatmul.f32.gmra.mxu0 %v5771
        %v6003 = vpop.f32.mrf.mxu0
        %v6004 = vadd.f32 0.0, %v6003
        %6005 = vmatmul.f32.gmra.mxu0 %v5774
        %v6006 = vpop.f32.mrf.mxu0
        %v6007 = vadd.f32 0.0, %v6006
        %6008 = vmatmul.f32.gmra.mxu0 %v5777
        %v6009 = vpop.f32.mrf.mxu0
        %v6010 = vadd.f32 0.0, %v6009
        %6011 = vmatmul.f32.gmra.mxu0 %v5780
        %v6012 = vpop.f32.mrf.mxu0
        %v6013 = vadd.f32 0.0, %v6012
        %6014 = vmatmul.f32.gmra.mxu0 %v5783
        %v6015 = vpop.f32.mrf.mxu0
        %v6016 = vadd.f32 0.0, %v6015
        %6017 = vmatmul.f32.gmra.mxu0 %v5786
        %v6018 = vpop.f32.mrf.mxu0
        %v6019 = vadd.f32 0.0, %v6018
        %6020 = vmatmul.f32.gmra.mxu0 %v5789
        %v6021 = vpop.f32.mrf.mxu0
        %v6022 = vadd.f32 0.0, %v6021
        %6023 = vmatmul.f32.gmra.mxu0 %v5792
        %v6024 = vpop.f32.mrf.mxu0
        %v6025 = vadd.f32 0.0, %v6024
        %6026 = vmatmul.f32.gmra.mxu0 %v5795
        %v6027 = vpop.f32.mrf.mxu0
        %v6028 = vadd.f32 0.0, %v6027
        %6029 = vmatmul.f32.gmra.mxu0 %v5798
        %v6030 = vpop.f32.mrf.mxu0
        %v6031 = vadd.f32 0.0, %v6030
        %6032 = vmatmul.f32.gmra.mxu0 %v5801
        %v6033 = vpop.f32.mrf.mxu0
        %v6034 = vadd.f32 0.0, %v6033
        %6035 = vmatmul.f32.gmra.mxu0 %v5804
        %v6036 = vpop.f32.mrf.mxu0
        %v6037 = vadd.f32 0.0, %v6036
        %6038 = vmatmul.f32.gmra.mxu0 %v5807
        %v6039 = vpop.f32.mrf.mxu0
        %v6040 = vadd.f32 0.0, %v6039
        %6041 = vmatmul.f32.gmra.mxu0 %v5810
        %v6042 = vpop.f32.mrf.mxu0
        %v6043 = vadd.f32 0.0, %v6042
        %6044 = vmatmul.f32.gmra.mxu0 %v5813
        %v6045 = vpop.f32.mrf.mxu0
        %v6046 = vadd.f32 0.0, %v6045
        %6047 = vmatmul.f32.gmra.mxu0 %v5816
        %v6048 = vpop.f32.mrf.mxu0
        %v6049 = vadd.f32 0.0, %v6048
        %6050 = vmatmul.f32.gmra.mxu0 %v5819
        %v6051 = vpop.f32.mrf.mxu0
        %v6052 = vadd.f32 0.0, %v6051
        %6053 = vmatmul.f32.gmra.mxu0 %v5822
        %v6054 = vpop.f32.mrf.mxu0
        %v6055 = vadd.f32 0.0, %v6054
        %6056 = vmatmul.f32.gmra.mxu0 %v5825
        %v6057 = vpop.f32.mrf.mxu0
        %v6058 = vadd.f32 0.0, %v6057
        %6059 = vmatmul.f32.gmra.mxu0 %v5828
        %v6060 = vpop.f32.mrf.mxu0
        %v6061 = vadd.f32 0.0, %v6060
        %6062 = vmatmul.f32.gmra.mxu0 %v5831
        %v6063 = vpop.f32.mrf.mxu0
        %v6064 = vadd.f32 0.0, %v6063
        %6065 = vmatmul.f32.gmra.mxu0 %v5834
        %v6066 = vpop.f32.mrf.mxu0
        %v6067 = vadd.f32 0.0, %v6066
        %6068 = vmatmul.f32.gmra.mxu0 %v5837
        %v6069 = vpop.f32.mrf.mxu0
        %v6070 = vadd.f32 0.0, %v6069
        %6071 = vmatmul.f32.gmra.mxu0 %v5840
        %v6072 = vpop.f32.mrf.mxu0
        %v6073 = vadd.f32 0.0, %v6072
        %6074 = vmatmul.f32.gmra.mxu0 %v5843
        %v6075 = vpop.f32.mrf.mxu0
        %v6076 = vadd.f32 0.0, %v6075
        %6077 = vmatmul.f32.gmra.mxu0 %v5846
        %v6078 = vpop.f32.mrf.mxu0
        %v6079 = vadd.f32 0.0, %v6078
        %6080 = vmatmul.f32.gmra.mxu0 %v5849
        %v6081 = vpop.f32.mrf.mxu0
        %v6082 = vadd.f32 0.0, %v6081
        %6083 = vmatmul.f32.gmra.mxu0 %v5852
        %v6084 = vpop.f32.mrf.mxu0
        %v6085 = vadd.f32 0.0, %v6084
        %6086 = vmatmul.f32.gmra.mxu0 %v5855
        %v6087 = vpop.f32.mrf.mxu0
        %v6088 = vadd.f32 0.0, %v6087
        %6089 = vmatmul.f32.gmra.mxu0 %v5858
        %v6090 = vpop.f32.mrf.mxu0
        %v6091 = vadd.f32 0.0, %v6090
        %6092 = vmatmul.f32.gmra.mxu0 %v5861
        %v6093 = vpop.f32.mrf.mxu0
        %v6094 = vadd.f32 0.0, %v6093
        %6095 = vmatmul.f32.gmra.mxu0 %v5864
        %v6096 = vpop.f32.mrf.mxu0
        %v6097 = vadd.f32 0.0, %v6096
        %6098 = vmatmul.f32.gmra.mxu0 %v5867
        %v6099 = vpop.f32.mrf.mxu0
        %v6100 = vadd.f32 0.0, %v6099
        %6101 = vmatmul.f32.gmra.mxu0 %v5870
        %v6102 = vpop.f32.mrf.mxu0
        %v6103 = vadd.f32 0.0, %v6102
        %6104 = vmatmul.f32.gmra.mxu0 %v5873
        %v6105 = vpop.f32.mrf.mxu0
        %v6106 = vadd.f32 0.0, %v6105
        %6107 = vmatmul.f32.gmra.mxu0 %v5876
        %v6108 = vpop.f32.mrf.mxu0
        %v6109 = vadd.f32 0.0, %v6108
        %6110 = vmatmul.f32.gmra.mxu0 %v5879
        %v6111 = vpop.f32.mrf.mxu0
        %v6112 = vadd.f32 0.0, %v6111
        %6113 = vmatmul.f32.gmra.mxu0 %v5882
        %v6114 = vpop.f32.mrf.mxu0
        %v6115 = vadd.f32 0.0, %v6114
        %6116 = vmatmul.f32.gmra.mxu0 %v5885
        %v6117 = vpop.f32.mrf.mxu0
        %v6118 = vadd.f32 0.0, %v6117
        %6119 = vmatmul.f32.gmra.mxu0 %v5888
        %v6120 = vpop.f32.mrf.mxu0
        %v6121 = vadd.f32 0.0, %v6120
        %6122 = vmatmul.f32.gmra.mxu0 %v5891
        %v6123 = vpop.f32.mrf.mxu0
        %v6124 = vadd.f32 0.0, %v6123
        %6125 = vmatmul.f32.gmra.mxu0 %v5894
        %v6126 = vpop.f32.mrf.mxu0
        %v6127 = vadd.f32 0.0, %v6126
        %6128 = vmatmul.f32.gmra.mxu0 %v5897
        %v6129 = vpop.f32.mrf.mxu0
        %v6130 = vadd.f32 0.0, %v6129
        %6131 = vmatmul.f32.gmra.mxu0 %v5900
        %v6132 = vpop.f32.mrf.mxu0
        %v6133 = vadd.f32 0.0, %v6132
        %6134 = vmatmul.f32.gmra.mxu0 %v5903
        %v6135 = vpop.f32.mrf.mxu0
        %v6136 = vadd.f32 0.0, %v6135
        %6137 = vmatmul.f32.gmra.mxu0 %v5906
        %v6138 = vpop.f32.mrf.mxu0
        %v6139 = vadd.f32 0.0, %v6138
        %6140 = vmatmul.f32.gmra.mxu0 %v5909
        %v6141 = vpop.f32.mrf.mxu0
        %v6142 = vadd.f32 0.0, %v6141
        %6143 = vmatmul.f32.gmra.mxu0 %v5912
        %v6144 = vpop.f32.mrf.mxu0
        %v6145 = vadd.f32 0.0, %v6144
        %6146 = vmatmul.f32.gmra.mxu0 %v5915
        %v6147 = vpop.f32.mrf.mxu0
        %v6148 = vadd.f32 0.0, %v6147
        %6149 = vmatmul.f32.gmra.mxu0 %v5918
        %v6150 = vpop.f32.mrf.mxu0
        %v6151 = vadd.f32 0.0, %v6150
        %6152 = vmatmul.f32.gmra.mxu0 %v5921
        %v6153 = vpop.f32.mrf.mxu0
        %v6154 = vadd.f32 0.0, %v6153
        %6155 = vmatmul.f32.gmra.mxu0 %v5924
        %v6156 = vpop.f32.mrf.mxu0
        %v6157 = vadd.f32 0.0, %v6156
        %6158 = vmatmul.f32.gmra.mxu0 %v5927
        %v6159 = vpop.f32.mrf.mxu0
        %v6160 = vadd.f32 0.0, %v6159
        %6161 = vmatmul.f32.gmra.mxu0 %v5930
        %v6162 = vpop.f32.mrf.mxu0
        %v6163 = vadd.f32 0.0, %v6162
        %6164 = vmatmul.f32.gmra.mxu0 %v5933
        %v6165 = vpop.f32.mrf.mxu0
        %v6166 = vadd.f32 0.0, %v6165
        %6167 = vmatmul.f32.gmra.mxu0 %v5936
        %v6168 = vpop.f32.mrf.mxu0
        %v6169 = vadd.f32 0.0, %v6168
        %6170 = vmatmul.f32.gmra.mxu0 %v5939
        %v6171 = vpop.f32.mrf.mxu0
        %v6172 = vadd.f32 0.0, %v6171
        %6173 = vmatmul.f32.gmra.mxu0 %v5942
        %v6174 = vpop.f32.mrf.mxu0
        %v6175 = vadd.f32 0.0, %v6174
        %6176 = vmatmul.f32.gmra.mxu0 %v5945
        %v6177 = vpop.f32.mrf.mxu0
        %v6178 = vadd.f32 0.0, %v6177
        %6179 = vmatmul.f32.gmra.mxu0 %v5948
        %v6180 = vpop.f32.mrf.mxu0
        %v6181 = vadd.f32 0.0, %v6180
        %6182 = vmatmul.f32.gmra.mxu0 %v5951
        %v6183 = vpop.f32.mrf.mxu0
        %v6184 = vadd.f32 0.0, %v6183
        %6185 = vmatmul.f32.gmra.mxu0 %v5954
        %v6186 = vpop.f32.mrf.mxu0
        %v6187 = vadd.f32 0.0, %v6186
        %6188 = vmatmul.f32.gmra.mxu0 %v5957
        %v6189 = vpop.f32.mrf.mxu0
        %v6190 = vadd.f32 0.0, %v6189
        %6191 = vmatmul.f32.gmra.mxu0 %v5960
        %v6192 = vpop.f32.mrf.mxu0
        %v6193 = vadd.f32 0.0, %v6192
        %6194 = vmatmul.f32.gmra.mxu0 %v5963
        %v6195 = vpop.f32.mrf.mxu0
        %v6196 = vadd.f32 0.0, %v6195
        %6197 = vdwg.mxu0
        %v6198 = vadd.f32 %v5601, %v5983
        %v6199 = vadd.f32 %v5602, %v5986
        %v6200 = vadd.f32 %v5603, %v5989
        %v6201 = vadd.f32 %v5604, %v5992
        %v6202 = vadd.f32 %v5605, %v5995
        %v6203 = vadd.f32 %v5606, %v5998
        %v6204 = vadd.f32 %v5607, %v6001
        %v6205 = vadd.f32 %v5608, %v6004
        %v6206 = vadd.f32 %v5609, %v6007
        %v6207 = vadd.f32 %v5610, %v6010
        %v6208 = vadd.f32 %v5611, %v6013
        %v6209 = vadd.f32 %v5612, %v6016
        %v6210 = vadd.f32 %v5613, %v6019
        %v6211 = vadd.f32 %v5614, %v6022
        %v6212 = vadd.f32 %v5615, %v6025
        %v6213 = vadd.f32 %v5616, %v6028
        %v6214 = vadd.f32 %v5617, %v6031
        %v6215 = vadd.f32 %v5618, %v6034
        %v6216 = vadd.f32 %v5619, %v6037
        %v6217 = vadd.f32 %v5620, %v6040
        %v6218 = vadd.f32 %v5621, %v6043
        %v6219 = vadd.f32 %v5622, %v6046
        %v6220 = vadd.f32 %v5623, %v6049
        %v6221 = vadd.f32 %v5624, %v6052
        %v6222 = vadd.f32 %v5625, %v6055
        %v6223 = vadd.f32 %v5626, %v6058
        %v6224 = vadd.f32 %v5627, %v6061
        %v6225 = vadd.f32 %v5628, %v6064
        %v6226 = vadd.f32 %v5629, %v6067
        %v6227 = vadd.f32 %v5630, %v6070
        %v6228 = vadd.f32 %v5631, %v6073
        %v6229 = vadd.f32 %v5632, %v6076
        %v6230 = vadd.f32 %v5633, %v6079
        %v6231 = vadd.f32 %v5634, %v6082
        %v6232 = vadd.f32 %v5635, %v6085
        %v6233 = vadd.f32 %v5636, %v6088
        %v6234 = vadd.f32 %v5637, %v6091
        %v6235 = vadd.f32 %v5638, %v6094
        %v6236 = vadd.f32 %v5639, %v6097
        %v6237 = vadd.f32 %v5640, %v6100
        %v6238 = vadd.f32 %v5641, %v6103
        %v6239 = vadd.f32 %v5642, %v6106
        %v6240 = vadd.f32 %v5643, %v6109
        %v6241 = vadd.f32 %v5644, %v6112
        %v6242 = vadd.f32 %v5645, %v6115
        %v6243 = vadd.f32 %v5646, %v6118
        %v6244 = vadd.f32 %v5647, %v6121
        %v6245 = vadd.f32 %v5648, %v6124
        %v6246 = vadd.f32 %v5649, %v6127
        %v6247 = vadd.f32 %v5650, %v6130
        %v6248 = vadd.f32 %v5651, %v6133
        %v6249 = vadd.f32 %v5652, %v6136
        %v6250 = vadd.f32 %v5653, %v6139
        %v6251 = vadd.f32 %v5654, %v6142
        %v6252 = vadd.f32 %v5655, %v6145
        %v6253 = vadd.f32 %v5656, %v6148
        %v6254 = vadd.f32 %v5657, %v6151
        %v6255 = vadd.f32 %v5658, %v6154
        %v6256 = vadd.f32 %v5659, %v6157
        %v6257 = vadd.f32 %v5660, %v6160
        %v6258 = vadd.f32 %v5661, %v6163
        %v6259 = vadd.f32 %v5662, %v6166
        %v6260 = vadd.f32 %v5663, %v6169
        %v6261 = vadd.f32 %v5664, %v6172
        %v6262 = vadd.f32 %v5665, %v6175
        %v6263 = vadd.f32 %v5666, %v6178
        %v6264 = vadd.f32 %v5667, %v6181
        %v6265 = vadd.f32 %v5668, %v6184
        %v6266 = vadd.f32 %v5669, %v6187
        %v6267 = vadd.f32 %v5670, %v6190
        %v6268 = vadd.f32 %v5671, %v6193
        %v6269 = vadd.f32 %v5672, %v6196
        %v6270 = vld [vmem:[%s3356 + $0x2] sm:$0xff]
        %v6271 = vld [vmem:[%s3356 + $0xa] sm:$0xff]
        %v6272 = vld [vmem:[%s3356 + $0x12] sm:$0xff]
        %v6273 = vld [vmem:[%s3356 + $0x22] sm:$0xff]
        %v6274 = vld [vmem:[%s3356 + $0x2a] sm:$0xff]
        %v6275 = vld [vmem:[%s3356 + $0x32] sm:$0xff]
        %v6276 = vld [vmem:[%s3356 + $0x42] sm:$0xff]
        %v6277 = vld [vmem:[%s3356 + $0x4a] sm:$0xff]
        %v6278 = vld [vmem:[%s3356 + $0x52] sm:$0xff]
        %v6279 = vld [vmem:[%s3356 + $0x62] sm:$0xff]
        %v6280 = vld [vmem:[%s3356 + $0x6a] sm:$0xff]
        %v6281 = vld [vmem:[%s3356 + $0x72] sm:$0xff]
        %v6282 = vld [vmem:[%s3356 + $0x82] sm:$0xff]
        %v6283 = vld [vmem:[%s3356 + $0x8a] sm:$0xff]
        %v6284 = vld [vmem:[%s3356 + $0x92] sm:$0xff]
        %v6285 = vld [vmem:[%s3356 + $0xa2] sm:$0xff]
        %v6286 = vld [vmem:[%s3356 + $0xaa] sm:$0xff]
        %v6287 = vld [vmem:[%s3356 + $0xb2] sm:$0xff]
        %v6288 = vld [vmem:[%s3356 + $0xc2] sm:$0xff]
        %v6289 = vld [vmem:[%s3356 + $0xca] sm:$0xff]
        %v6290 = vld [vmem:[%s3356 + $0xd2] sm:$0xff]
        %v6291 = vld [vmem:[%s3356 + $0xe2] sm:$0xff]
        %v6292 = vld [vmem:[%s3356 + $0xea] sm:$0xff]
        %v6293 = vld [vmem:[%s3356 + $0xf2] sm:$0xff]
        %v6294 = vld [vmem:[%s3356 + $0x102] sm:$0xff]
        %v6295 = vld [vmem:[%s3356 + $0x10a] sm:$0xff]
        %v6296 = vld [vmem:[%s3356 + $0x112] sm:$0xff]
        %v6297 = vld [vmem:[%s3356 + $0x122] sm:$0xff]
        %v6298 = vld [vmem:[%s3356 + $0x12a] sm:$0xff]
        %v6299 = vld [vmem:[%s3356 + $0x132] sm:$0xff]
        %v6300 = vld [vmem:[%s3356 + $0x142] sm:$0xff]
        %v6301 = vld [vmem:[%s3356 + $0x14a] sm:$0xff]
        %v6302 = vld [vmem:[%s3356 + $0x152] sm:$0xff]
        %v6303 = vld [vmem:[%s3356 + $0x162] sm:$0xff]
        %v6304 = vld [vmem:[%s3356 + $0x16a] sm:$0xff]
        %v6305 = vld [vmem:[%s3356 + $0x172] sm:$0xff]
        %v6306 = vld [vmem:[%s3356 + $0x182] sm:$0xff]
        %v6307 = vld [vmem:[%s3356 + $0x18a] sm:$0xff]
        %v6308 = vld [vmem:[%s3356 + $0x192] sm:$0xff]
        %v6309 = vld [vmem:[%s3356 + $0x1a2] sm:$0xff]
        %v6310 = vld [vmem:[%s3356 + $0x1aa] sm:$0xff]
        %v6311 = vld [vmem:[%s3356 + $0x1b2] sm:$0xff]
        %v6312 = vld [vmem:[%s3356 + $0x1c2] sm:$0xff]
        %v6313 = vld [vmem:[%s3356 + $0x1ca] sm:$0xff]
        %v6314 = vld [vmem:[%s3356 + $0x1d2] sm:$0xff]
        %v6315 = vld [vmem:[%s3356 + $0x1e2] sm:$0xff]
        %v6316 = vld [vmem:[%s3356 + $0x1ea] sm:$0xff]
        %v6317 = vld [vmem:[%s3356 + $0x1f2] sm:$0xff]
        %v6318 = vld [vmem:[%s3356 + $0x202] sm:$0xff]
        %v6319 = vld [vmem:[%s3356 + $0x20a] sm:$0xff]
        %v6320 = vld [vmem:[%s3356 + $0x212] sm:$0xff]
        %v6321 = vld [vmem:[%s3356 + $0x222] sm:$0xff]
        %v6322 = vld [vmem:[%s3356 + $0x22a] sm:$0xff]
        %v6323 = vld [vmem:[%s3356 + $0x232] sm:$0xff]
        %v6324 = vld [vmem:[%s3356 + $0x242] sm:$0xff]
        %v6325 = vld [vmem:[%s3356 + $0x24a] sm:$0xff]
        %v6326 = vld [vmem:[%s3356 + $0x252] sm:$0xff]
        %v6327 = vld [vmem:[%s3356 + $0x262] sm:$0xff]
        %v6328 = vld [vmem:[%s3356 + $0x26a] sm:$0xff]
        %v6329 = vld [vmem:[%s3356 + $0x272] sm:$0xff]
        %v6330 = vld [vmem:[%s3356 + $0x282] sm:$0xff]
        %v6331 = vld [vmem:[%s3356 + $0x28a] sm:$0xff]
        %v6332 = vld [vmem:[%s3356 + $0x292] sm:$0xff]
        %v6333 = vld [vmem:[%s3356 + $0x2a2] sm:$0xff]
        %v6334 = vld [vmem:[%s3356 + $0x2aa] sm:$0xff]
        %v6335 = vld [vmem:[%s3356 + $0x2b2] sm:$0xff]
        %v6336 = vld [vmem:[%s3356 + $0x2c2] sm:$0xff]
        %v6337 = vld [vmem:[%s3356 + $0x2ca] sm:$0xff]
        %v6338 = vld [vmem:[%s3356 + $0x2d2] sm:$0xff]
        %v6339 = vld [vmem:[%s3356 + $0x2e2] sm:$0xff]
        %v6340 = vld [vmem:[%s3356 + $0x2ea] sm:$0xff]
        %v6341 = vld [vmem:[%s3356 + $0x2f2] sm:$0xff]
        %v6342 = vld [vmem:[%s3 + $0xa0] sm:$0xff]
        %v6343 = vld [vmem:[%s3 + $0xa8] sm:$0xff]
        %v6344 = vld [vmem:[%s3 + $0xb0] sm:$0xff]
        %v6345 = vld [vmem:[%s3 + $0xb8] sm:$0xff]
        %v6347 = vsel %vm2747, %v6270, 0
        %v6350 = vsel %vm2747, %v6271, 0
        %v6353 = vsel %vm2747, %v6272, 0
        %v6356 = vsel %vm2747, %v6273, 0
        %v6359 = vsel %vm2747, %v6274, 0
        %v6362 = vsel %vm2747, %v6275, 0
        %v6365 = vsel %vm2747, %v6276, 0
        %v6368 = vsel %vm2747, %v6277, 0
        %v6371 = vsel %vm2747, %v6278, 0
        %v6374 = vsel %vm2747, %v6279, 0
        %v6377 = vsel %vm2747, %v6280, 0
        %v6380 = vsel %vm2747, %v6281, 0
        %v6383 = vsel %vm2747, %v6282, 0
        %v6386 = vsel %vm2747, %v6283, 0
        %v6389 = vsel %vm2747, %v6284, 0
        %v6392 = vsel %vm2747, %v6285, 0
        %v6395 = vsel %vm2747, %v6286, 0
        %v6398 = vsel %vm2747, %v6287, 0
        %v6401 = vsel %vm2747, %v6288, 0
        %v6404 = vsel %vm2747, %v6289, 0
        %v6407 = vsel %vm2747, %v6290, 0
        %v6410 = vsel %vm2747, %v6291, 0
        %v6413 = vsel %vm2747, %v6292, 0
        %v6416 = vsel %vm2747, %v6293, 0
        %v6419 = vsel %vm2747, %v6294, 0
        %v6422 = vsel %vm2747, %v6295, 0
        %v6425 = vsel %vm2747, %v6296, 0
        %v6428 = vsel %vm2747, %v6297, 0
        %v6431 = vsel %vm2747, %v6298, 0
        %v6434 = vsel %vm2747, %v6299, 0
        %v6437 = vsel %vm2747, %v6300, 0
        %v6440 = vsel %vm2747, %v6301, 0
        %v6443 = vsel %vm2747, %v6302, 0
        %v6446 = vsel %vm2747, %v6303, 0
        %v6449 = vsel %vm2747, %v6304, 0
        %v6452 = vsel %vm2747, %v6305, 0
        %v6455 = vsel %vm2747, %v6306, 0
        %v6458 = vsel %vm2747, %v6307, 0
        %v6461 = vsel %vm2747, %v6308, 0
        %v6464 = vsel %vm2747, %v6309, 0
        %v6467 = vsel %vm2747, %v6310, 0
        %v6470 = vsel %vm2747, %v6311, 0
        %v6473 = vsel %vm2747, %v6312, 0
        %v6476 = vsel %vm2747, %v6313, 0
        %v6479 = vsel %vm2747, %v6314, 0
        %v6482 = vsel %vm2747, %v6315, 0
        %v6485 = vsel %vm2747, %v6316, 0
        %v6488 = vsel %vm2747, %v6317, 0
        %v6491 = vsel %vm2747, %v6318, 0
        %v6494 = vsel %vm2747, %v6319, 0
        %v6497 = vsel %vm2747, %v6320, 0
        %v6500 = vsel %vm2747, %v6321, 0
        %v6503 = vsel %vm2747, %v6322, 0
        %v6506 = vsel %vm2747, %v6323, 0
        %v6509 = vsel %vm2747, %v6324, 0
        %v6512 = vsel %vm2747, %v6325, 0
        %v6515 = vsel %vm2747, %v6326, 0
        %v6518 = vsel %vm2747, %v6327, 0
        %v6521 = vsel %vm2747, %v6328, 0
        %v6524 = vsel %vm2747, %v6329, 0
        %v6527 = vsel %vm2747, %v6330, 0
        %v6530 = vsel %vm2747, %v6331, 0
        %v6533 = vsel %vm2747, %v6332, 0
        %v6536 = vsel %vm2747, %v6333, 0
        %v6539 = vsel %vm2747, %v6334, 0
        %v6542 = vsel %vm2747, %v6335, 0
        %v6545 = vsel %vm2747, %v6336, 0
        %v6548 = vsel %vm2747, %v6337, 0
        %v6551 = vsel %vm2747, %v6338, 0
        %v6554 = vsel %vm2747, %v6339, 0
        %v6557 = vsel %vm2747, %v6340, 0
        %v6560 = vsel %vm2747, %v6341, 0
        %6562 = vmatpush.msra.mxu0 0.0
        %6563 = vmatpush.msra.mxu0 0.0
        %6564 = vmatpush.msra.mxu0 0.0
        %6565 = vmatpush.msra.mxu0 0.0
        %6566 = vmatpush.msra.mxu0 0.0
        %6567 = vmatpush.msra.mxu0 0.0
        %6568 = vmatpush.msra.mxu0 0.0
        %6569 = vmatpush.msra.mxu0 0.0
        %6570 = vmatpush.msra.mxu0 0.0
        %6571 = vmatpush.msra.mxu0 0.0
        %6572 = vmatpush.msra.mxu0 0.0
        %6573 = vmatpush.msra.mxu0 0.0
        %6574 = vmatpush.msra.mxu0 %v6345
        %6575 = vmatpush.msra.mxu0 %v6344
        %6576 = vmatpush.msra.mxu0 %v6343
        %6577 = vmatpush.msra.mxu0 %v6342
        %6578 = vmatmul.f32.gmra.mxu0 %v6347
        %v6579 = vpop.f32.mrf.mxu0
        %v6580 = vadd.f32 0.0, %v6579
        %6581 = vmatmul.f32.gmra.mxu0 %v6350
        %v6582 = vpop.f32.mrf.mxu0
        %v6583 = vadd.f32 0.0, %v6582
        %6584 = vmatmul.f32.gmra.mxu0 %v6353
        %v6585 = vpop.f32.mrf.mxu0
        %v6586 = vadd.f32 0.0, %v6585
        %6587 = vmatmul.f32.gmra.mxu0 %v6356
        %v6588 = vpop.f32.mrf.mxu0
        %v6589 = vadd.f32 0.0, %v6588
        %6590 = vmatmul.f32.gmra.mxu0 %v6359
        %v6591 = vpop.f32.mrf.mxu0
        %v6592 = vadd.f32 0.0, %v6591
        %6593 = vmatmul.f32.gmra.mxu0 %v6362
        %v6594 = vpop.f32.mrf.mxu0
        %v6595 = vadd.f32 0.0, %v6594
        %6596 = vmatmul.f32.gmra.mxu0 %v6365
        %v6597 = vpop.f32.mrf.mxu0
        %v6598 = vadd.f32 0.0, %v6597
        %6599 = vmatmul.f32.gmra.mxu0 %v6368
        %v6600 = vpop.f32.mrf.mxu0
        %v6601 = vadd.f32 0.0, %v6600
        %6602 = vmatmul.f32.gmra.mxu0 %v6371
        %v6603 = vpop.f32.mrf.mxu0
        %v6604 = vadd.f32 0.0, %v6603
        %6605 = vmatmul.f32.gmra.mxu0 %v6374
        %v6606 = vpop.f32.mrf.mxu0
        %v6607 = vadd.f32 0.0, %v6606
        %6608 = vmatmul.f32.gmra.mxu0 %v6377
        %v6609 = vpop.f32.mrf.mxu0
        %v6610 = vadd.f32 0.0, %v6609
        %6611 = vmatmul.f32.gmra.mxu0 %v6380
        %v6612 = vpop.f32.mrf.mxu0
        %v6613 = vadd.f32 0.0, %v6612
        %6614 = vmatmul.f32.gmra.mxu0 %v6383
        %v6615 = vpop.f32.mrf.mxu0
        %v6616 = vadd.f32 0.0, %v6615
        %6617 = vmatmul.f32.gmra.mxu0 %v6386
        %v6618 = vpop.f32.mrf.mxu0
        %v6619 = vadd.f32 0.0, %v6618
        %6620 = vmatmul.f32.gmra.mxu0 %v6389
        %v6621 = vpop.f32.mrf.mxu0
        %v6622 = vadd.f32 0.0, %v6621
        %6623 = vmatmul.f32.gmra.mxu0 %v6392
        %v6624 = vpop.f32.mrf.mxu0
        %v6625 = vadd.f32 0.0, %v6624
        %6626 = vmatmul.f32.gmra.mxu0 %v6395
        %v6627 = vpop.f32.mrf.mxu0
        %v6628 = vadd.f32 0.0, %v6627
        %6629 = vmatmul.f32.gmra.mxu0 %v6398
        %v6630 = vpop.f32.mrf.mxu0
        %v6631 = vadd.f32 0.0, %v6630
        %6632 = vmatmul.f32.gmra.mxu0 %v6401
        %v6633 = vpop.f32.mrf.mxu0
        %v6634 = vadd.f32 0.0, %v6633
        %6635 = vmatmul.f32.gmra.mxu0 %v6404
        %v6636 = vpop.f32.mrf.mxu0
        %v6637 = vadd.f32 0.0, %v6636
        %6638 = vmatmul.f32.gmra.mxu0 %v6407
        %v6639 = vpop.f32.mrf.mxu0
        %v6640 = vadd.f32 0.0, %v6639
        %6641 = vmatmul.f32.gmra.mxu0 %v6410
        %v6642 = vpop.f32.mrf.mxu0
        %v6643 = vadd.f32 0.0, %v6642
        %6644 = vmatmul.f32.gmra.mxu0 %v6413
        %v6645 = vpop.f32.mrf.mxu0
        %v6646 = vadd.f32 0.0, %v6645
        %6647 = vmatmul.f32.gmra.mxu0 %v6416
        %v6648 = vpop.f32.mrf.mxu0
        %v6649 = vadd.f32 0.0, %v6648
        %6650 = vmatmul.f32.gmra.mxu0 %v6419
        %v6651 = vpop.f32.mrf.mxu0
        %v6652 = vadd.f32 0.0, %v6651
        %6653 = vmatmul.f32.gmra.mxu0 %v6422
        %v6654 = vpop.f32.mrf.mxu0
        %v6655 = vadd.f32 0.0, %v6654
        %6656 = vmatmul.f32.gmra.mxu0 %v6425
        %v6657 = vpop.f32.mrf.mxu0
        %v6658 = vadd.f32 0.0, %v6657
        %6659 = vmatmul.f32.gmra.mxu0 %v6428
        %v6660 = vpop.f32.mrf.mxu0
        %v6661 = vadd.f32 0.0, %v6660
        %6662 = vmatmul.f32.gmra.mxu0 %v6431
        %v6663 = vpop.f32.mrf.mxu0
        %v6664 = vadd.f32 0.0, %v6663
        %6665 = vmatmul.f32.gmra.mxu0 %v6434
        %v6666 = vpop.f32.mrf.mxu0
        %v6667 = vadd.f32 0.0, %v6666
        %6668 = vmatmul.f32.gmra.mxu0 %v6437
        %v6669 = vpop.f32.mrf.mxu0
        %v6670 = vadd.f32 0.0, %v6669
        %6671 = vmatmul.f32.gmra.mxu0 %v6440
        %v6672 = vpop.f32.mrf.mxu0
        %v6673 = vadd.f32 0.0, %v6672
        %6674 = vmatmul.f32.gmra.mxu0 %v6443
        %v6675 = vpop.f32.mrf.mxu0
        %v6676 = vadd.f32 0.0, %v6675
        %6677 = vmatmul.f32.gmra.mxu0 %v6446
        %v6678 = vpop.f32.mrf.mxu0
        %v6679 = vadd.f32 0.0, %v6678
        %6680 = vmatmul.f32.gmra.mxu0 %v6449
        %v6681 = vpop.f32.mrf.mxu0
        %v6682 = vadd.f32 0.0, %v6681
        %6683 = vmatmul.f32.gmra.mxu0 %v6452
        %v6684 = vpop.f32.mrf.mxu0
        %v6685 = vadd.f32 0.0, %v6684
        %6686 = vmatmul.f32.gmra.mxu0 %v6455
        %v6687 = vpop.f32.mrf.mxu0
        %v6688 = vadd.f32 0.0, %v6687
        %6689 = vmatmul.f32.gmra.mxu0 %v6458
        %v6690 = vpop.f32.mrf.mxu0
        %v6691 = vadd.f32 0.0, %v6690
        %6692 = vmatmul.f32.gmra.mxu0 %v6461
        %v6693 = vpop.f32.mrf.mxu0
        %v6694 = vadd.f32 0.0, %v6693
        %6695 = vmatmul.f32.gmra.mxu0 %v6464
        %v6696 = vpop.f32.mrf.mxu0
        %v6697 = vadd.f32 0.0, %v6696
        %6698 = vmatmul.f32.gmra.mxu0 %v6467
        %v6699 = vpop.f32.mrf.mxu0
        %v6700 = vadd.f32 0.0, %v6699
        %6701 = vmatmul.f32.gmra.mxu0 %v6470
        %v6702 = vpop.f32.mrf.mxu0
        %v6703 = vadd.f32 0.0, %v6702
        %6704 = vmatmul.f32.gmra.mxu0 %v6473
        %v6705 = vpop.f32.mrf.mxu0
        %v6706 = vadd.f32 0.0, %v6705
        %6707 = vmatmul.f32.gmra.mxu0 %v6476
        %v6708 = vpop.f32.mrf.mxu0
        %v6709 = vadd.f32 0.0, %v6708
        %6710 = vmatmul.f32.gmra.mxu0 %v6479
        %v6711 = vpop.f32.mrf.mxu0
        %v6712 = vadd.f32 0.0, %v6711
        %6713 = vmatmul.f32.gmra.mxu0 %v6482
        %v6714 = vpop.f32.mrf.mxu0
        %v6715 = vadd.f32 0.0, %v6714
        %6716 = vmatmul.f32.gmra.mxu0 %v6485
        %v6717 = vpop.f32.mrf.mxu0
        %v6718 = vadd.f32 0.0, %v6717
        %6719 = vmatmul.f32.gmra.mxu0 %v6488
        %v6720 = vpop.f32.mrf.mxu0
        %v6721 = vadd.f32 0.0, %v6720
        %6722 = vmatmul.f32.gmra.mxu0 %v6491
        %v6723 = vpop.f32.mrf.mxu0
        %v6724 = vadd.f32 0.0, %v6723
        %6725 = vmatmul.f32.gmra.mxu0 %v6494
        %v6726 = vpop.f32.mrf.mxu0
        %v6727 = vadd.f32 0.0, %v6726
        %6728 = vmatmul.f32.gmra.mxu0 %v6497
        %v6729 = vpop.f32.mrf.mxu0
        %v6730 = vadd.f32 0.0, %v6729
        %6731 = vmatmul.f32.gmra.mxu0 %v6500
        %v6732 = vpop.f32.mrf.mxu0
        %v6733 = vadd.f32 0.0, %v6732
        %6734 = vmatmul.f32.gmra.mxu0 %v6503
        %v6735 = vpop.f32.mrf.mxu0
        %v6736 = vadd.f32 0.0, %v6735
        %6737 = vmatmul.f32.gmra.mxu0 %v6506
        %v6738 = vpop.f32.mrf.mxu0
        %v6739 = vadd.f32 0.0, %v6738
        %6740 = vmatmul.f32.gmra.mxu0 %v6509
        %v6741 = vpop.f32.mrf.mxu0
        %v6742 = vadd.f32 0.0, %v6741
        %6743 = vmatmul.f32.gmra.mxu0 %v6512
        %v6744 = vpop.f32.mrf.mxu0
        %v6745 = vadd.f32 0.0, %v6744
        %6746 = vmatmul.f32.gmra.mxu0 %v6515
        %v6747 = vpop.f32.mrf.mxu0
        %v6748 = vadd.f32 0.0, %v6747
        %6749 = vmatmul.f32.gmra.mxu0 %v6518
        %v6750 = vpop.f32.mrf.mxu0
        %v6751 = vadd.f32 0.0, %v6750
        %6752 = vmatmul.f32.gmra.mxu0 %v6521
        %v6753 = vpop.f32.mrf.mxu0
        %v6754 = vadd.f32 0.0, %v6753
        %6755 = vmatmul.f32.gmra.mxu0 %v6524
        %v6756 = vpop.f32.mrf.mxu0
        %v6757 = vadd.f32 0.0, %v6756
        %6758 = vmatmul.f32.gmra.mxu0 %v6527
        %v6759 = vpop.f32.mrf.mxu0
        %v6760 = vadd.f32 0.0, %v6759
        %6761 = vmatmul.f32.gmra.mxu0 %v6530
        %v6762 = vpop.f32.mrf.mxu0
        %v6763 = vadd.f32 0.0, %v6762
        %6764 = vmatmul.f32.gmra.mxu0 %v6533
        %v6765 = vpop.f32.mrf.mxu0
        %v6766 = vadd.f32 0.0, %v6765
        %6767 = vmatmul.f32.gmra.mxu0 %v6536
        %v6768 = vpop.f32.mrf.mxu0
        %v6769 = vadd.f32 0.0, %v6768
        %6770 = vmatmul.f32.gmra.mxu0 %v6539
        %v6771 = vpop.f32.mrf.mxu0
        %v6772 = vadd.f32 0.0, %v6771
        %6773 = vmatmul.f32.gmra.mxu0 %v6542
        %v6774 = vpop.f32.mrf.mxu0
        %v6775 = vadd.f32 0.0, %v6774
        %6776 = vmatmul.f32.gmra.mxu0 %v6545
        %v6777 = vpop.f32.mrf.mxu0
        %v6778 = vadd.f32 0.0, %v6777
        %6779 = vmatmul.f32.gmra.mxu0 %v6548
        %v6780 = vpop.f32.mrf.mxu0
        %v6781 = vadd.f32 0.0, %v6780
        %6782 = vmatmul.f32.gmra.mxu0 %v6551
        %v6783 = vpop.f32.mrf.mxu0
        %v6784 = vadd.f32 0.0, %v6783
        %6785 = vmatmul.f32.gmra.mxu0 %v6554
        %v6786 = vpop.f32.mrf.mxu0
        %v6787 = vadd.f32 0.0, %v6786
        %6788 = vmatmul.f32.gmra.mxu0 %v6557
        %v6789 = vpop.f32.mrf.mxu0
        %v6790 = vadd.f32 0.0, %v6789
        %6791 = vmatmul.f32.gmra.mxu0 %v6560
        %v6792 = vpop.f32.mrf.mxu0
        %v6793 = vadd.f32 0.0, %v6792
        %6794 = vdwg.mxu0
        %v6795 = vadd.f32 %v6198, %v6580
        %v6796 = vadd.f32 %v6199, %v6583
        %v6797 = vadd.f32 %v6200, %v6586
        %v6798 = vadd.f32 %v6201, %v6589
        %v6799 = vadd.f32 %v6202, %v6592
        %v6800 = vadd.f32 %v6203, %v6595
        %v6801 = vadd.f32 %v6204, %v6598
        %v6802 = vadd.f32 %v6205, %v6601
        %v6803 = vadd.f32 %v6206, %v6604
        %v6804 = vadd.f32 %v6207, %v6607
        %v6805 = vadd.f32 %v6208, %v6610
        %v6806 = vadd.f32 %v6209, %v6613
        %v6807 = vadd.f32 %v6210, %v6616
        %v6808 = vadd.f32 %v6211, %v6619
        %v6809 = vadd.f32 %v6212, %v6622
        %v6810 = vadd.f32 %v6213, %v6625
        %v6811 = vadd.f32 %v6214, %v6628
        %v6812 = vadd.f32 %v6215, %v6631
        %v6813 = vadd.f32 %v6216, %v6634
        %v6814 = vadd.f32 %v6217, %v6637
        %v6815 = vadd.f32 %v6218, %v6640
        %v6816 = vadd.f32 %v6219, %v6643
        %v6817 = vadd.f32 %v6220, %v6646
        %v6818 = vadd.f32 %v6221, %v6649
        %v6819 = vadd.f32 %v6222, %v6652
        %v6820 = vadd.f32 %v6223, %v6655
        %v6821 = vadd.f32 %v6224, %v6658
        %v6822 = vadd.f32 %v6225, %v6661
        %v6823 = vadd.f32 %v6226, %v6664
        %v6824 = vadd.f32 %v6227, %v6667
        %v6825 = vadd.f32 %v6228, %v6670
        %v6826 = vadd.f32 %v6229, %v6673
        %v6827 = vadd.f32 %v6230, %v6676
        %v6828 = vadd.f32 %v6231, %v6679
        %v6829 = vadd.f32 %v6232, %v6682
        %v6830 = vadd.f32 %v6233, %v6685
        %v6831 = vadd.f32 %v6234, %v6688
        %v6832 = vadd.f32 %v6235, %v6691
        %v6833 = vadd.f32 %v6236, %v6694
        %v6834 = vadd.f32 %v6237, %v6697
        %v6835 = vadd.f32 %v6238, %v6700
        %v6836 = vadd.f32 %v6239, %v6703
        %v6837 = vadd.f32 %v6240, %v6706
        %v6838 = vadd.f32 %v6241, %v6709
        %v6839 = vadd.f32 %v6242, %v6712
        %v6840 = vadd.f32 %v6243, %v6715
        %v6841 = vadd.f32 %v6244, %v6718
        %v6842 = vadd.f32 %v6245, %v6721
        %v6843 = vadd.f32 %v6246, %v6724
        %v6844 = vadd.f32 %v6247, %v6727
        %v6845 = vadd.f32 %v6248, %v6730
        %v6846 = vadd.f32 %v6249, %v6733
        %v6847 = vadd.f32 %v6250, %v6736
        %v6848 = vadd.f32 %v6251, %v6739
        %v6849 = vadd.f32 %v6252, %v6742
        %v6850 = vadd.f32 %v6253, %v6745
        %v6851 = vadd.f32 %v6254, %v6748
        %v6852 = vadd.f32 %v6255, %v6751
        %v6853 = vadd.f32 %v6256, %v6754
        %v6854 = vadd.f32 %v6257, %v6757
        %v6855 = vadd.f32 %v6258, %v6760
        %v6856 = vadd.f32 %v6259, %v6763
        %v6857 = vadd.f32 %v6260, %v6766
        %v6858 = vadd.f32 %v6261, %v6769
        %v6859 = vadd.f32 %v6262, %v6772
        %v6860 = vadd.f32 %v6263, %v6775
        %v6861 = vadd.f32 %v6264, %v6778
        %v6862 = vadd.f32 %v6265, %v6781
        %v6863 = vadd.f32 %v6266, %v6784
        %v6864 = vadd.f32 %v6267, %v6787
        %v6865 = vadd.f32 %v6268, %v6790
        %v6866 = vadd.f32 %v6269, %v6793
        %s6867 = scalar_lea.vmem [#allocation3], 64
        %v6868 = vld [vmem:[%s6867] sm:$0xff]
        %v6869 = vld [vmem:[%s6867 + $0x8] sm:$0xff]
        %v6870 = vld [vmem:[%s6867 + $0x10] sm:$0xff]
        %v6871 = vld [vmem:[%s6867 + $0x20] sm:$0xff]
        %v6872 = vld [vmem:[%s6867 + $0x28] sm:$0xff]
        %v6873 = vld [vmem:[%s6867 + $0x30] sm:$0xff]
        %v6874 = vld [vmem:[%s6867 + $0x40] sm:$0xff]
        %v6875 = vld [vmem:[%s6867 + $0x48] sm:$0xff]
        %v6876 = vld [vmem:[%s6867 + $0x50] sm:$0xff]
        %v6877 = vld [vmem:[%s6867 + $0x60] sm:$0xff]
        %v6878 = vld [vmem:[%s6867 + $0x68] sm:$0xff]
        %v6879 = vld [vmem:[%s6867 + $0x70] sm:$0xff]
        %v6880 = vld [vmem:[%s6867 + $0x80] sm:$0xff]
        %v6881 = vld [vmem:[%s6867 + $0x88] sm:$0xff]
        %v6882 = vld [vmem:[%s6867 + $0x90] sm:$0xff]
        %v6883 = vld [vmem:[%s6867 + $0xa0] sm:$0xff]
        %v6884 = vld [vmem:[%s6867 + $0xa8] sm:$0xff]
        %v6885 = vld [vmem:[%s6867 + $0xb0] sm:$0xff]
        %v6886 = vld [vmem:[%s6867 + $0xc0] sm:$0xff]
        %v6887 = vld [vmem:[%s6867 + $0xc8] sm:$0xff]
        %v6888 = vld [vmem:[%s6867 + $0xd0] sm:$0xff]
        %v6889 = vld [vmem:[%s6867 + $0xe0] sm:$0xff]
        %v6890 = vld [vmem:[%s6867 + $0xe8] sm:$0xff]
        %v6891 = vld [vmem:[%s6867 + $0xf0] sm:$0xff]
        %v6892 = vld [vmem:[%s6867 + $0x100] sm:$0xff]
        %v6893 = vld [vmem:[%s6867 + $0x108] sm:$0xff]
        %v6894 = vld [vmem:[%s6867 + $0x110] sm:$0xff]
        %v6895 = vld [vmem:[%s6867 + $0x120] sm:$0xff]
        %v6896 = vld [vmem:[%s6867 + $0x128] sm:$0xff]
        %v6897 = vld [vmem:[%s6867 + $0x130] sm:$0xff]
        %v6898 = vld [vmem:[%s6867 + $0x140] sm:$0xff]
        %v6899 = vld [vmem:[%s6867 + $0x148] sm:$0xff]
        %v6900 = vld [vmem:[%s6867 + $0x150] sm:$0xff]
        %v6901 = vld [vmem:[%s6867 + $0x160] sm:$0xff]
        %v6902 = vld [vmem:[%s6867 + $0x168] sm:$0xff]
        %v6903 = vld [vmem:[%s6867 + $0x170] sm:$0xff]
        %v6904 = vld [vmem:[%s6867 + $0x180] sm:$0xff]
        %v6905 = vld [vmem:[%s6867 + $0x188] sm:$0xff]
        %v6906 = vld [vmem:[%s6867 + $0x190] sm:$0xff]
        %v6907 = vld [vmem:[%s6867 + $0x1a0] sm:$0xff]
        %v6908 = vld [vmem:[%s6867 + $0x1a8] sm:$0xff]
        %v6909 = vld [vmem:[%s6867 + $0x1b0] sm:$0xff]
        %v6910 = vld [vmem:[%s6867 + $0x1c0] sm:$0xff]
        %v6911 = vld [vmem:[%s6867 + $0x1c8] sm:$0xff]
        %v6912 = vld [vmem:[%s6867 + $0x1d0] sm:$0xff]
        %v6913 = vld [vmem:[%s6867 + $0x1e0] sm:$0xff]
        %v6914 = vld [vmem:[%s6867 + $0x1e8] sm:$0xff]
        %v6915 = vld [vmem:[%s6867 + $0x1f0] sm:$0xff]
        %v6916 = vld [vmem:[%s6867 + $0x200] sm:$0xff]
        %v6917 = vld [vmem:[%s6867 + $0x208] sm:$0xff]
        %v6918 = vld [vmem:[%s6867 + $0x210] sm:$0xff]
        %v6919 = vld [vmem:[%s6867 + $0x220] sm:$0xff]
        %v6920 = vld [vmem:[%s6867 + $0x228] sm:$0xff]
        %v6921 = vld [vmem:[%s6867 + $0x230] sm:$0xff]
        %v6922 = vld [vmem:[%s6867 + $0x240] sm:$0xff]
        %v6923 = vld [vmem:[%s6867 + $0x248] sm:$0xff]
        %v6924 = vld [vmem:[%s6867 + $0x250] sm:$0xff]
        %v6925 = vld [vmem:[%s6867 + $0x260] sm:$0xff]
        %v6926 = vld [vmem:[%s6867 + $0x268] sm:$0xff]
        %v6927 = vld [vmem:[%s6867 + $0x270] sm:$0xff]
        %v6928 = vld [vmem:[%s6867 + $0x280] sm:$0xff]
        %v6929 = vld [vmem:[%s6867 + $0x288] sm:$0xff]
        %v6930 = vld [vmem:[%s6867 + $0x290] sm:$0xff]
        %v6931 = vld [vmem:[%s6867 + $0x2a0] sm:$0xff]
        %v6932 = vld [vmem:[%s6867 + $0x2a8] sm:$0xff]
        %v6933 = vld [vmem:[%s6867 + $0x2b0] sm:$0xff]
        %v6934 = vld [vmem:[%s6867 + $0x2c0] sm:$0xff]
        %v6935 = vld [vmem:[%s6867 + $0x2c8] sm:$0xff]
        %v6936 = vld [vmem:[%s6867 + $0x2d0] sm:$0xff]
        %v6937 = vld [vmem:[%s6867 + $0x2e0] sm:$0xff]
        %v6938 = vld [vmem:[%s6867 + $0x2e8] sm:$0xff]
        %v6939 = vld [vmem:[%s6867 + $0x2f0] sm:$0xff]
        %v6940 = vld [vmem:[%s3 + $0xc0] sm:$0xff]
        %v6941 = vld [vmem:[%s3 + $0xc8] sm:$0xff]
        %v6942 = vld [vmem:[%s3 + $0xd0] sm:$0xff]
        %v6943 = vld [vmem:[%s3 + $0xd8] sm:$0xff]
        %v6945 = vsel %vm2747, %v6868, 0
        %v6948 = vsel %vm2747, %v6869, 0
        %v6951 = vsel %vm2747, %v6870, 0
        %v6954 = vsel %vm2747, %v6871, 0
        %v6957 = vsel %vm2747, %v6872, 0
        %v6960 = vsel %vm2747, %v6873, 0
        %v6963 = vsel %vm2747, %v6874, 0
        %v6966 = vsel %vm2747, %v6875, 0
        %v6969 = vsel %vm2747, %v6876, 0
        %v6972 = vsel %vm2747, %v6877, 0
        %v6975 = vsel %vm2747, %v6878, 0
        %v6978 = vsel %vm2747, %v6879, 0
        %v6981 = vsel %vm2747, %v6880, 0
        %v6984 = vsel %vm2747, %v6881, 0
        %v6987 = vsel %vm2747, %v6882, 0
        %v6990 = vsel %vm2747, %v6883, 0
        %v6993 = vsel %vm2747, %v6884, 0
        %v6996 = vsel %vm2747, %v6885, 0
        %v6999 = vsel %vm2747, %v6886, 0
        %v7002 = vsel %vm2747, %v6887, 0
        %v7005 = vsel %vm2747, %v6888, 0
        %v7008 = vsel %vm2747, %v6889, 0
        %v7011 = vsel %vm2747, %v6890, 0
        %v7014 = vsel %vm2747, %v6891, 0
        %v7017 = vsel %vm2747, %v6892, 0
        %v7020 = vsel %vm2747, %v6893, 0
        %v7023 = vsel %vm2747, %v6894, 0
        %v7026 = vsel %vm2747, %v6895, 0
        %v7029 = vsel %vm2747, %v6896, 0
        %v7032 = vsel %vm2747, %v6897, 0
        %v7035 = vsel %vm2747, %v6898, 0
        %v7038 = vsel %vm2747, %v6899, 0
        %v7041 = vsel %vm2747, %v6900, 0
        %v7044 = vsel %vm2747, %v6901, 0
        %v7047 = vsel %vm2747, %v6902, 0
        %v7050 = vsel %vm2747, %v6903, 0
        %v7053 = vsel %vm2747, %v6904, 0
        %v7056 = vsel %vm2747, %v6905, 0
        %v7059 = vsel %vm2747, %v6906, 0
        %v7062 = vsel %vm2747, %v6907, 0
        %v7065 = vsel %vm2747, %v6908, 0
        %v7068 = vsel %vm2747, %v6909, 0
        %v7071 = vsel %vm2747, %v6910, 0
        %v7074 = vsel %vm2747, %v6911, 0
        %v7077 = vsel %vm2747, %v6912, 0
        %v7080 = vsel %vm2747, %v6913, 0
        %v7083 = vsel %vm2747, %v6914, 0
        %v7086 = vsel %vm2747, %v6915, 0
        %v7089 = vsel %vm2747, %v6916, 0
        %v7092 = vsel %vm2747, %v6917, 0
        %v7095 = vsel %vm2747, %v6918, 0
        %v7098 = vsel %vm2747, %v6919, 0
        %v7101 = vsel %vm2747, %v6920, 0
        %v7104 = vsel %vm2747, %v6921, 0
        %v7107 = vsel %vm2747, %v6922, 0
        %v7110 = vsel %vm2747, %v6923, 0
        %v7113 = vsel %vm2747, %v6924, 0
        %v7116 = vsel %vm2747, %v6925, 0
        %v7119 = vsel %vm2747, %v6926, 0
        %v7122 = vsel %vm2747, %v6927, 0
        %v7125 = vsel %vm2747, %v6928, 0
        %v7128 = vsel %vm2747, %v6929, 0
        %v7131 = vsel %vm2747, %v6930, 0
        %v7134 = vsel %vm2747, %v6931, 0
        %v7137 = vsel %vm2747, %v6932, 0
        %v7140 = vsel %vm2747, %v6933, 0
        %v7143 = vsel %vm2747, %v6934, 0
        %v7146 = vsel %vm2747, %v6935, 0
        %v7149 = vsel %vm2747, %v6936, 0
        %v7152 = vsel %vm2747, %v6937, 0
        %v7155 = vsel %vm2747, %v6938, 0
        %v7158 = vsel %vm2747, %v6939, 0
        %7160 = vmatpush.msra.mxu0 0.0
        %7161 = vmatpush.msra.mxu0 0.0
        %7162 = vmatpush.msra.mxu0 0.0
        %7163 = vmatpush.msra.mxu0 0.0
        %7164 = vmatpush.msra.mxu0 0.0
        %7165 = vmatpush.msra.mxu0 0.0
        %7166 = vmatpush.msra.mxu0 0.0
        %7167 = vmatpush.msra.mxu0 0.0
        %7168 = vmatpush.msra.mxu0 0.0
        %7169 = vmatpush.msra.mxu0 0.0
        %7170 = vmatpush.msra.mxu0 0.0
        %7171 = vmatpush.msra.mxu0 0.0
        %7172 = vmatpush.msra.mxu0 %v6943
        %7173 = vmatpush.msra.mxu0 %v6942
        %7174 = vmatpush.msra.mxu0 %v6941
        %7175 = vmatpush.msra.mxu0 %v6940
        %7176 = vmatmul.f32.gmra.mxu0 %v6945
        %v7177 = vpop.f32.mrf.mxu0
        %v7178 = vadd.f32 0.0, %v7177
        %7179 = vmatmul.f32.gmra.mxu0 %v6948
        %v7180 = vpop.f32.mrf.mxu0
        %v7181 = vadd.f32 0.0, %v7180
        %7182 = vmatmul.f32.gmra.mxu0 %v6951
        %v7183 = vpop.f32.mrf.mxu0
        %v7184 = vadd.f32 0.0, %v7183
        %7185 = vmatmul.f32.gmra.mxu0 %v6954
        %v7186 = vpop.f32.mrf.mxu0
        %v7187 = vadd.f32 0.0, %v7186
        %7188 = vmatmul.f32.gmra.mxu0 %v6957
        %v7189 = vpop.f32.mrf.mxu0
        %v7190 = vadd.f32 0.0, %v7189
        %7191 = vmatmul.f32.gmra.mxu0 %v6960
        %v7192 = vpop.f32.mrf.mxu0
        %v7193 = vadd.f32 0.0, %v7192
        %7194 = vmatmul.f32.gmra.mxu0 %v6963
        %v7195 = vpop.f32.mrf.mxu0
        %v7196 = vadd.f32 0.0, %v7195
        %7197 = vmatmul.f32.gmra.mxu0 %v6966
        %v7198 = vpop.f32.mrf.mxu0
        %v7199 = vadd.f32 0.0, %v7198
        %7200 = vmatmul.f32.gmra.mxu0 %v6969
        %v7201 = vpop.f32.mrf.mxu0
        %v7202 = vadd.f32 0.0, %v7201
        %7203 = vmatmul.f32.gmra.mxu0 %v6972
        %v7204 = vpop.f32.mrf.mxu0
        %v7205 = vadd.f32 0.0, %v7204
        %7206 = vmatmul.f32.gmra.mxu0 %v6975
        %v7207 = vpop.f32.mrf.mxu0
        %v7208 = vadd.f32 0.0, %v7207
        %7209 = vmatmul.f32.gmra.mxu0 %v6978
        %v7210 = vpop.f32.mrf.mxu0
        %v7211 = vadd.f32 0.0, %v7210
        %7212 = vmatmul.f32.gmra.mxu0 %v6981
        %v7213 = vpop.f32.mrf.mxu0
        %v7214 = vadd.f32 0.0, %v7213
        %7215 = vmatmul.f32.gmra.mxu0 %v6984
        %v7216 = vpop.f32.mrf.mxu0
        %v7217 = vadd.f32 0.0, %v7216
        %7218 = vmatmul.f32.gmra.mxu0 %v6987
        %v7219 = vpop.f32.mrf.mxu0
        %v7220 = vadd.f32 0.0, %v7219
        %7221 = vmatmul.f32.gmra.mxu0 %v6990
        %v7222 = vpop.f32.mrf.mxu0
        %v7223 = vadd.f32 0.0, %v7222
        %7224 = vmatmul.f32.gmra.mxu0 %v6993
        %v7225 = vpop.f32.mrf.mxu0
        %v7226 = vadd.f32 0.0, %v7225
        %7227 = vmatmul.f32.gmra.mxu0 %v6996
        %v7228 = vpop.f32.mrf.mxu0
        %v7229 = vadd.f32 0.0, %v7228
        %7230 = vmatmul.f32.gmra.mxu0 %v6999
        %v7231 = vpop.f32.mrf.mxu0
        %v7232 = vadd.f32 0.0, %v7231
        %7233 = vmatmul.f32.gmra.mxu0 %v7002
        %v7234 = vpop.f32.mrf.mxu0
        %v7235 = vadd.f32 0.0, %v7234
        %7236 = vmatmul.f32.gmra.mxu0 %v7005
        %v7237 = vpop.f32.mrf.mxu0
        %v7238 = vadd.f32 0.0, %v7237
        %7239 = vmatmul.f32.gmra.mxu0 %v7008
        %v7240 = vpop.f32.mrf.mxu0
        %v7241 = vadd.f32 0.0, %v7240
        %7242 = vmatmul.f32.gmra.mxu0 %v7011
        %v7243 = vpop.f32.mrf.mxu0
        %v7244 = vadd.f32 0.0, %v7243
        %7245 = vmatmul.f32.gmra.mxu0 %v7014
        %v7246 = vpop.f32.mrf.mxu0
        %v7247 = vadd.f32 0.0, %v7246
        %7248 = vmatmul.f32.gmra.mxu0 %v7017
        %v7249 = vpop.f32.mrf.mxu0
        %v7250 = vadd.f32 0.0, %v7249
        %7251 = vmatmul.f32.gmra.mxu0 %v7020
        %v7252 = vpop.f32.mrf.mxu0
        %v7253 = vadd.f32 0.0, %v7252
        %7254 = vmatmul.f32.gmra.mxu0 %v7023
        %v7255 = vpop.f32.mrf.mxu0
        %v7256 = vadd.f32 0.0, %v7255
        %7257 = vmatmul.f32.gmra.mxu0 %v7026
        %v7258 = vpop.f32.mrf.mxu0
        %v7259 = vadd.f32 0.0, %v7258
        %7260 = vmatmul.f32.gmra.mxu0 %v7029
        %v7261 = vpop.f32.mrf.mxu0
        %v7262 = vadd.f32 0.0, %v7261
        %7263 = vmatmul.f32.gmra.mxu0 %v7032
        %v7264 = vpop.f32.mrf.mxu0
        %v7265 = vadd.f32 0.0, %v7264
        %7266 = vmatmul.f32.gmra.mxu0 %v7035
        %v7267 = vpop.f32.mrf.mxu0
        %v7268 = vadd.f32 0.0, %v7267
        %7269 = vmatmul.f32.gmra.mxu0 %v7038
        %v7270 = vpop.f32.mrf.mxu0
        %v7271 = vadd.f32 0.0, %v7270
        %7272 = vmatmul.f32.gmra.mxu0 %v7041
        %v7273 = vpop.f32.mrf.mxu0
        %v7274 = vadd.f32 0.0, %v7273
        %7275 = vmatmul.f32.gmra.mxu0 %v7044
        %v7276 = vpop.f32.mrf.mxu0
        %v7277 = vadd.f32 0.0, %v7276
        %7278 = vmatmul.f32.gmra.mxu0 %v7047
        %v7279 = vpop.f32.mrf.mxu0
        %v7280 = vadd.f32 0.0, %v7279
        %7281 = vmatmul.f32.gmra.mxu0 %v7050
        %v7282 = vpop.f32.mrf.mxu0
        %v7283 = vadd.f32 0.0, %v7282
        %7284 = vmatmul.f32.gmra.mxu0 %v7053
        %v7285 = vpop.f32.mrf.mxu0
        %v7286 = vadd.f32 0.0, %v7285
        %7287 = vmatmul.f32.gmra.mxu0 %v7056
        %v7288 = vpop.f32.mrf.mxu0
        %v7289 = vadd.f32 0.0, %v7288
        %7290 = vmatmul.f32.gmra.mxu0 %v7059
        %v7291 = vpop.f32.mrf.mxu0
        %v7292 = vadd.f32 0.0, %v7291
        %7293 = vmatmul.f32.gmra.mxu0 %v7062
        %v7294 = vpop.f32.mrf.mxu0
        %v7295 = vadd.f32 0.0, %v7294
        %7296 = vmatmul.f32.gmra.mxu0 %v7065
        %v7297 = vpop.f32.mrf.mxu0
        %v7298 = vadd.f32 0.0, %v7297
        %7299 = vmatmul.f32.gmra.mxu0 %v7068
        %v7300 = vpop.f32.mrf.mxu0
        %v7301 = vadd.f32 0.0, %v7300
        %7302 = vmatmul.f32.gmra.mxu0 %v7071
        %v7303 = vpop.f32.mrf.mxu0
        %v7304 = vadd.f32 0.0, %v7303
        %7305 = vmatmul.f32.gmra.mxu0 %v7074
        %v7306 = vpop.f32.mrf.mxu0
        %v7307 = vadd.f32 0.0, %v7306
        %7308 = vmatmul.f32.gmra.mxu0 %v7077
        %v7309 = vpop.f32.mrf.mxu0
        %v7310 = vadd.f32 0.0, %v7309
        %7311 = vmatmul.f32.gmra.mxu0 %v7080
        %v7312 = vpop.f32.mrf.mxu0
        %v7313 = vadd.f32 0.0, %v7312
        %7314 = vmatmul.f32.gmra.mxu0 %v7083
        %v7315 = vpop.f32.mrf.mxu0
        %v7316 = vadd.f32 0.0, %v7315
        %7317 = vmatmul.f32.gmra.mxu0 %v7086
        %v7318 = vpop.f32.mrf.mxu0
        %v7319 = vadd.f32 0.0, %v7318
        %7320 = vmatmul.f32.gmra.mxu0 %v7089
        %v7321 = vpop.f32.mrf.mxu0
        %v7322 = vadd.f32 0.0, %v7321
        %7323 = vmatmul.f32.gmra.mxu0 %v7092
        %v7324 = vpop.f32.mrf.mxu0
        %v7325 = vadd.f32 0.0, %v7324
        %7326 = vmatmul.f32.gmra.mxu0 %v7095
        %v7327 = vpop.f32.mrf.mxu0
        %v7328 = vadd.f32 0.0, %v7327
        %7329 = vmatmul.f32.gmra.mxu0 %v7098
        %v7330 = vpop.f32.mrf.mxu0
        %v7331 = vadd.f32 0.0, %v7330
        %7332 = vmatmul.f32.gmra.mxu0 %v7101
        %v7333 = vpop.f32.mrf.mxu0
        %v7334 = vadd.f32 0.0, %v7333
        %7335 = vmatmul.f32.gmra.mxu0 %v7104
        %v7336 = vpop.f32.mrf.mxu0
        %v7337 = vadd.f32 0.0, %v7336
        %7338 = vmatmul.f32.gmra.mxu0 %v7107
        %v7339 = vpop.f32.mrf.mxu0
        %v7340 = vadd.f32 0.0, %v7339
        %7341 = vmatmul.f32.gmra.mxu0 %v7110
        %v7342 = vpop.f32.mrf.mxu0
        %v7343 = vadd.f32 0.0, %v7342
        %7344 = vmatmul.f32.gmra.mxu0 %v7113
        %v7345 = vpop.f32.mrf.mxu0
        %v7346 = vadd.f32 0.0, %v7345
        %7347 = vmatmul.f32.gmra.mxu0 %v7116
        %v7348 = vpop.f32.mrf.mxu0
        %v7349 = vadd.f32 0.0, %v7348
        %7350 = vmatmul.f32.gmra.mxu0 %v7119
        %v7351 = vpop.f32.mrf.mxu0
        %v7352 = vadd.f32 0.0, %v7351
        %7353 = vmatmul.f32.gmra.mxu0 %v7122
        %v7354 = vpop.f32.mrf.mxu0
        %v7355 = vadd.f32 0.0, %v7354
        %7356 = vmatmul.f32.gmra.mxu0 %v7125
        %v7357 = vpop.f32.mrf.mxu0
        %v7358 = vadd.f32 0.0, %v7357
        %7359 = vmatmul.f32.gmra.mxu0 %v7128
        %v7360 = vpop.f32.mrf.mxu0
        %v7361 = vadd.f32 0.0, %v7360
        %7362 = vmatmul.f32.gmra.mxu0 %v7131
        %v7363 = vpop.f32.mrf.mxu0
        %v7364 = vadd.f32 0.0, %v7363
        %7365 = vmatmul.f32.gmra.mxu0 %v7134
        %v7366 = vpop.f32.mrf.mxu0
        %v7367 = vadd.f32 0.0, %v7366
        %7368 = vmatmul.f32.gmra.mxu0 %v7137
        %v7369 = vpop.f32.mrf.mxu0
        %v7370 = vadd.f32 0.0, %v7369
        %7371 = vmatmul.f32.gmra.mxu0 %v7140
        %v7372 = vpop.f32.mrf.mxu0
        %v7373 = vadd.f32 0.0, %v7372
        %7374 = vmatmul.f32.gmra.mxu0 %v7143
        %v7375 = vpop.f32.mrf.mxu0
        %v7376 = vadd.f32 0.0, %v7375
        %7377 = vmatmul.f32.gmra.mxu0 %v7146
        %v7378 = vpop.f32.mrf.mxu0
        %v7379 = vadd.f32 0.0, %v7378
        %7380 = vmatmul.f32.gmra.mxu0 %v7149
        %v7381 = vpop.f32.mrf.mxu0
        %v7382 = vadd.f32 0.0, %v7381
        %7383 = vmatmul.f32.gmra.mxu0 %v7152
        %v7384 = vpop.f32.mrf.mxu0
        %v7385 = vadd.f32 0.0, %v7384
        %7386 = vmatmul.f32.gmra.mxu0 %v7155
        %v7387 = vpop.f32.mrf.mxu0
        %v7388 = vadd.f32 0.0, %v7387
        %7389 = vmatmul.f32.gmra.mxu0 %v7158
        %v7390 = vpop.f32.mrf.mxu0
        %v7391 = vadd.f32 0.0, %v7390
        %7392 = vdwg.mxu0
        %v7393 = vadd.f32 %v6795, %v7178
        %v7394 = vadd.f32 %v6796, %v7181
        %v7395 = vadd.f32 %v6797, %v7184
        %v7396 = vadd.f32 %v6798, %v7187
        %v7397 = vadd.f32 %v6799, %v7190
        %v7398 = vadd.f32 %v6800, %v7193
        %v7399 = vadd.f32 %v6801, %v7196
        %v7400 = vadd.f32 %v6802, %v7199
        %v7401 = vadd.f32 %v6803, %v7202
        %v7402 = vadd.f32 %v6804, %v7205
        %v7403 = vadd.f32 %v6805, %v7208
        %v7404 = vadd.f32 %v6806, %v7211
        %v7405 = vadd.f32 %v6807, %v7214
        %v7406 = vadd.f32 %v6808, %v7217
        %v7407 = vadd.f32 %v6809, %v7220
        %v7408 = vadd.f32 %v6810, %v7223
        %v7409 = vadd.f32 %v6811, %v7226
        %v7410 = vadd.f32 %v6812, %v7229
        %v7411 = vadd.f32 %v6813, %v7232
        %v7412 = vadd.f32 %v6814, %v7235
        %v7413 = vadd.f32 %v6815, %v7238
        %v7414 = vadd.f32 %v6816, %v7241
        %v7415 = vadd.f32 %v6817, %v7244
        %v7416 = vadd.f32 %v6818, %v7247
        %v7417 = vadd.f32 %v6819, %v7250
        %v7418 = vadd.f32 %v6820, %v7253
        %v7419 = vadd.f32 %v6821, %v7256
        %v7420 = vadd.f32 %v6822, %v7259
        %v7421 = vadd.f32 %v6823, %v7262
        %v7422 = vadd.f32 %v6824, %v7265
        %v7423 = vadd.f32 %v6825, %v7268
        %v7424 = vadd.f32 %v6826, %v7271
        %v7425 = vadd.f32 %v6827, %v7274
        %v7426 = vadd.f32 %v6828, %v7277
        %v7427 = vadd.f32 %v6829, %v7280
        %v7428 = vadd.f32 %v6830, %v7283
        %v7429 = vadd.f32 %v6831, %v7286
        %v7430 = vadd.f32 %v6832, %v7289
        %v7431 = vadd.f32 %v6833, %v7292
        %v7432 = vadd.f32 %v6834, %v7295
        %v7433 = vadd.f32 %v6835, %v7298
        %v7434 = vadd.f32 %v6836, %v7301
        %v7435 = vadd.f32 %v6837, %v7304
        %v7436 = vadd.f32 %v6838, %v7307
        %v7437 = vadd.f32 %v6839, %v7310
        %v7438 = vadd.f32 %v6840, %v7313
        %v7439 = vadd.f32 %v6841, %v7316
        %v7440 = vadd.f32 %v6842, %v7319
        %v7441 = vadd.f32 %v6843, %v7322
        %v7442 = vadd.f32 %v6844, %v7325
        %v7443 = vadd.f32 %v6845, %v7328
        %v7444 = vadd.f32 %v6846, %v7331
        %v7445 = vadd.f32 %v6847, %v7334
        %v7446 = vadd.f32 %v6848, %v7337
        %v7447 = vadd.f32 %v6849, %v7340
        %v7448 = vadd.f32 %v6850, %v7343
        %v7449 = vadd.f32 %v6851, %v7346
        %v7450 = vadd.f32 %v6852, %v7349
        %v7451 = vadd.f32 %v6853, %v7352
        %v7452 = vadd.f32 %v6854, %v7355
        %v7453 = vadd.f32 %v6855, %v7358
        %v7454 = vadd.f32 %v6856, %v7361
        %v7455 = vadd.f32 %v6857, %v7364
        %v7456 = vadd.f32 %v6858, %v7367
        %v7457 = vadd.f32 %v6859, %v7370
        %v7458 = vadd.f32 %v6860, %v7373
        %v7459 = vadd.f32 %v6861, %v7376
        %v7460 = vadd.f32 %v6862, %v7379
        %v7461 = vadd.f32 %v6863, %v7382
        %v7462 = vadd.f32 %v6864, %v7385
        %v7463 = vadd.f32 %v6865, %v7388
        %v7464 = vadd.f32 %v6866, %v7391
        %v7465 = vld [vmem:[%s6867 + $0x1] sm:$0xff]
        %v7466 = vld [vmem:[%s6867 + $0x9] sm:$0xff]
        %v7467 = vld [vmem:[%s6867 + $0x11] sm:$0xff]
        %v7468 = vld [vmem:[%s6867 + $0x21] sm:$0xff]
        %v7469 = vld [vmem:[%s6867 + $0x29] sm:$0xff]
        %v7470 = vld [vmem:[%s6867 + $0x31] sm:$0xff]
        %v7471 = vld [vmem:[%s6867 + $0x41] sm:$0xff]
        %v7472 = vld [vmem:[%s6867 + $0x49] sm:$0xff]
        %v7473 = vld [vmem:[%s6867 + $0x51] sm:$0xff]
        %v7474 = vld [vmem:[%s6867 + $0x61] sm:$0xff]
        %v7475 = vld [vmem:[%s6867 + $0x69] sm:$0xff]
        %v7476 = vld [vmem:[%s6867 + $0x71] sm:$0xff]
        %v7477 = vld [vmem:[%s6867 + $0x81] sm:$0xff]
        %v7478 = vld [vmem:[%s6867 + $0x89] sm:$0xff]
        %v7479 = vld [vmem:[%s6867 + $0x91] sm:$0xff]
        %v7480 = vld [vmem:[%s6867 + $0xa1] sm:$0xff]
        %v7481 = vld [vmem:[%s6867 + $0xa9] sm:$0xff]
        %v7482 = vld [vmem:[%s6867 + $0xb1] sm:$0xff]
        %v7483 = vld [vmem:[%s6867 + $0xc1] sm:$0xff]
        %v7484 = vld [vmem:[%s6867 + $0xc9] sm:$0xff]
        %v7485 = vld [vmem:[%s6867 + $0xd1] sm:$0xff]
        %v7486 = vld [vmem:[%s6867 + $0xe1] sm:$0xff]
        %v7487 = vld [vmem:[%s6867 + $0xe9] sm:$0xff]
        %v7488 = vld [vmem:[%s6867 + $0xf1] sm:$0xff]
        %v7489 = vld [vmem:[%s6867 + $0x101] sm:$0xff]
        %v7490 = vld [vmem:[%s6867 + $0x109] sm:$0xff]
        %v7491 = vld [vmem:[%s6867 + $0x111] sm:$0xff]
        %v7492 = vld [vmem:[%s6867 + $0x121] sm:$0xff]
        %v7493 = vld [vmem:[%s6867 + $0x129] sm:$0xff]
        %v7494 = vld [vmem:[%s6867 + $0x131] sm:$0xff]
        %v7495 = vld [vmem:[%s6867 + $0x141] sm:$0xff]
        %v7496 = vld [vmem:[%s6867 + $0x149] sm:$0xff]
        %v7497 = vld [vmem:[%s6867 + $0x151] sm:$0xff]
        %v7498 = vld [vmem:[%s6867 + $0x161] sm:$0xff]
        %v7499 = vld [vmem:[%s6867 + $0x169] sm:$0xff]
        %v7500 = vld [vmem:[%s6867 + $0x171] sm:$0xff]
        %v7501 = vld [vmem:[%s6867 + $0x181] sm:$0xff]
        %v7502 = vld [vmem:[%s6867 + $0x189] sm:$0xff]
        %v7503 = vld [vmem:[%s6867 + $0x191] sm:$0xff]
        %v7504 = vld [vmem:[%s6867 + $0x1a1] sm:$0xff]
        %v7505 = vld [vmem:[%s6867 + $0x1a9] sm:$0xff]
        %v7506 = vld [vmem:[%s6867 + $0x1b1] sm:$0xff]
        %v7507 = vld [vmem:[%s6867 + $0x1c1] sm:$0xff]
        %v7508 = vld [vmem:[%s6867 + $0x1c9] sm:$0xff]
        %v7509 = vld [vmem:[%s6867 + $0x1d1] sm:$0xff]
        %v7510 = vld [vmem:[%s6867 + $0x1e1] sm:$0xff]
        %v7511 = vld [vmem:[%s6867 + $0x1e9] sm:$0xff]
        %v7512 = vld [vmem:[%s6867 + $0x1f1] sm:$0xff]
        %v7513 = vld [vmem:[%s6867 + $0x201] sm:$0xff]
        %v7514 = vld [vmem:[%s6867 + $0x209] sm:$0xff]
        %v7515 = vld [vmem:[%s6867 + $0x211] sm:$0xff]
        %v7516 = vld [vmem:[%s6867 + $0x221] sm:$0xff]
        %v7517 = vld [vmem:[%s6867 + $0x229] sm:$0xff]
        %v7518 = vld [vmem:[%s6867 + $0x231] sm:$0xff]
        %v7519 = vld [vmem:[%s6867 + $0x241] sm:$0xff]
        %v7520 = vld [vmem:[%s6867 + $0x249] sm:$0xff]
        %v7521 = vld [vmem:[%s6867 + $0x251] sm:$0xff]
        %v7522 = vld [vmem:[%s6867 + $0x261] sm:$0xff]
        %v7523 = vld [vmem:[%s6867 + $0x269] sm:$0xff]
        %v7524 = vld [vmem:[%s6867 + $0x271] sm:$0xff]
        %v7525 = vld [vmem:[%s6867 + $0x281] sm:$0xff]
        %v7526 = vld [vmem:[%s6867 + $0x289] sm:$0xff]
        %v7527 = vld [vmem:[%s6867 + $0x291] sm:$0xff]
        %v7528 = vld [vmem:[%s6867 + $0x2a1] sm:$0xff]
        %v7529 = vld [vmem:[%s6867 + $0x2a9] sm:$0xff]
        %v7530 = vld [vmem:[%s6867 + $0x2b1] sm:$0xff]
        %v7531 = vld [vmem:[%s6867 + $0x2c1] sm:$0xff]
        %v7532 = vld [vmem:[%s6867 + $0x2c9] sm:$0xff]
        %v7533 = vld [vmem:[%s6867 + $0x2d1] sm:$0xff]
        %v7534 = vld [vmem:[%s6867 + $0x2e1] sm:$0xff]
        %v7535 = vld [vmem:[%s6867 + $0x2e9] sm:$0xff]
        %v7536 = vld [vmem:[%s6867 + $0x2f1] sm:$0xff]
        %v7537 = vld [vmem:[%s3 + $0xe0] sm:$0xff]
        %v7538 = vld [vmem:[%s3 + $0xe8] sm:$0xff]
        %v7539 = vld [vmem:[%s3 + $0xf0] sm:$0xff]
        %v7540 = vld [vmem:[%s3 + $0xf8] sm:$0xff]
        %v7542 = vsel %vm2747, %v7465, 0
        %v7545 = vsel %vm2747, %v7466, 0
        %v7548 = vsel %vm2747, %v7467, 0
        %v7551 = vsel %vm2747, %v7468, 0
        %v7554 = vsel %vm2747, %v7469, 0
        %v7557 = vsel %vm2747, %v7470, 0
        %v7560 = vsel %vm2747, %v7471, 0
        %v7563 = vsel %vm2747, %v7472, 0
        %v7566 = vsel %vm2747, %v7473, 0
        %v7569 = vsel %vm2747, %v7474, 0
        %v7572 = vsel %vm2747, %v7475, 0
        %v7575 = vsel %vm2747, %v7476, 0
        %v7578 = vsel %vm2747, %v7477, 0
        %v7581 = vsel %vm2747, %v7478, 0
        %v7584 = vsel %vm2747, %v7479, 0
        %v7587 = vsel %vm2747, %v7480, 0
        %v7590 = vsel %vm2747, %v7481, 0
        %v7593 = vsel %vm2747, %v7482, 0
        %v7596 = vsel %vm2747, %v7483, 0
        %v7599 = vsel %vm2747, %v7484, 0
        %v7602 = vsel %vm2747, %v7485, 0
        %v7605 = vsel %vm2747, %v7486, 0
        %v7608 = vsel %vm2747, %v7487, 0
        %v7611 = vsel %vm2747, %v7488, 0
        %v7614 = vsel %vm2747, %v7489, 0
        %v7617 = vsel %vm2747, %v7490, 0
        %v7620 = vsel %vm2747, %v7491, 0
        %v7623 = vsel %vm2747, %v7492, 0
        %v7626 = vsel %vm2747, %v7493, 0
        %v7629 = vsel %vm2747, %v7494, 0
        %v7632 = vsel %vm2747, %v7495, 0
        %v7635 = vsel %vm2747, %v7496, 0
        %v7638 = vsel %vm2747, %v7497, 0
        %v7641 = vsel %vm2747, %v7498, 0
        %v7644 = vsel %vm2747, %v7499, 0
        %v7647 = vsel %vm2747, %v7500, 0
        %v7650 = vsel %vm2747, %v7501, 0
        %v7653 = vsel %vm2747, %v7502, 0
        %v7656 = vsel %vm2747, %v7503, 0
        %v7659 = vsel %vm2747, %v7504, 0
        %v7662 = vsel %vm2747, %v7505, 0
        %v7665 = vsel %vm2747, %v7506, 0
        %v7668 = vsel %vm2747, %v7507, 0
        %v7671 = vsel %vm2747, %v7508, 0
        %v7674 = vsel %vm2747, %v7509, 0
        %v7677 = vsel %vm2747, %v7510, 0
        %v7680 = vsel %vm2747, %v7511, 0
        %v7683 = vsel %vm2747, %v7512, 0
        %v7686 = vsel %vm2747, %v7513, 0
        %v7689 = vsel %vm2747, %v7514, 0
        %v7692 = vsel %vm2747, %v7515, 0
        %v7695 = vsel %vm2747, %v7516, 0
        %v7698 = vsel %vm2747, %v7517, 0
        %v7701 = vsel %vm2747, %v7518, 0
        %v7704 = vsel %vm2747, %v7519, 0
        %v7707 = vsel %vm2747, %v7520, 0
        %v7710 = vsel %vm2747, %v7521, 0
        %v7713 = vsel %vm2747, %v7522, 0
        %v7716 = vsel %vm2747, %v7523, 0
        %v7719 = vsel %vm2747, %v7524, 0
        %v7722 = vsel %vm2747, %v7525, 0
        %v7725 = vsel %vm2747, %v7526, 0
        %v7728 = vsel %vm2747, %v7527, 0
        %v7731 = vsel %vm2747, %v7528, 0
        %v7734 = vsel %vm2747, %v7529, 0
        %v7737 = vsel %vm2747, %v7530, 0
        %v7740 = vsel %vm2747, %v7531, 0
        %v7743 = vsel %vm2747, %v7532, 0
        %v7746 = vsel %vm2747, %v7533, 0
        %v7749 = vsel %vm2747, %v7534, 0
        %v7752 = vsel %vm2747, %v7535, 0
        %v7755 = vsel %vm2747, %v7536, 0
        %7757 = vmatpush.msra.mxu0 0.0
        %7758 = vmatpush.msra.mxu0 0.0
        %7759 = vmatpush.msra.mxu0 0.0
        %7760 = vmatpush.msra.mxu0 0.0
        %7761 = vmatpush.msra.mxu0 0.0
        %7762 = vmatpush.msra.mxu0 0.0
        %7763 = vmatpush.msra.mxu0 0.0
        %7764 = vmatpush.msra.mxu0 0.0
        %7765 = vmatpush.msra.mxu0 0.0
        %7766 = vmatpush.msra.mxu0 0.0
        %7767 = vmatpush.msra.mxu0 0.0
        %7768 = vmatpush.msra.mxu0 0.0
        %7769 = vmatpush.msra.mxu0 %v7540
        %7770 = vmatpush.msra.mxu0 %v7539
        %7771 = vmatpush.msra.mxu0 %v7538
        %7772 = vmatpush.msra.mxu0 %v7537
        %7773 = vmatmul.f32.gmra.mxu0 %v7542
        %v7774 = vpop.f32.mrf.mxu0
        %v7775 = vadd.f32 0.0, %v7774
        %7776 = vmatmul.f32.gmra.mxu0 %v7545
        %v7777 = vpop.f32.mrf.mxu0
        %v7778 = vadd.f32 0.0, %v7777
        %7779 = vmatmul.f32.gmra.mxu0 %v7548
        %v7780 = vpop.f32.mrf.mxu0
        %v7781 = vadd.f32 0.0, %v7780
        %7782 = vmatmul.f32.gmra.mxu0 %v7551
        %v7783 = vpop.f32.mrf.mxu0
        %v7784 = vadd.f32 0.0, %v7783
        %7785 = vmatmul.f32.gmra.mxu0 %v7554
        %v7786 = vpop.f32.mrf.mxu0
        %v7787 = vadd.f32 0.0, %v7786
        %7788 = vmatmul.f32.gmra.mxu0 %v7557
        %v7789 = vpop.f32.mrf.mxu0
        %v7790 = vadd.f32 0.0, %v7789
        %7791 = vmatmul.f32.gmra.mxu0 %v7560
        %v7792 = vpop.f32.mrf.mxu0
        %v7793 = vadd.f32 0.0, %v7792
        %7794 = vmatmul.f32.gmra.mxu0 %v7563
        %v7795 = vpop.f32.mrf.mxu0
        %v7796 = vadd.f32 0.0, %v7795
        %7797 = vmatmul.f32.gmra.mxu0 %v7566
        %v7798 = vpop.f32.mrf.mxu0
        %v7799 = vadd.f32 0.0, %v7798
        %7800 = vmatmul.f32.gmra.mxu0 %v7569
        %v7801 = vpop.f32.mrf.mxu0
        %v7802 = vadd.f32 0.0, %v7801
        %7803 = vmatmul.f32.gmra.mxu0 %v7572
        %v7804 = vpop.f32.mrf.mxu0
        %v7805 = vadd.f32 0.0, %v7804
        %7806 = vmatmul.f32.gmra.mxu0 %v7575
        %v7807 = vpop.f32.mrf.mxu0
        %v7808 = vadd.f32 0.0, %v7807
        %7809 = vmatmul.f32.gmra.mxu0 %v7578
        %v7810 = vpop.f32.mrf.mxu0
        %v7811 = vadd.f32 0.0, %v7810
        %7812 = vmatmul.f32.gmra.mxu0 %v7581
        %v7813 = vpop.f32.mrf.mxu0
        %v7814 = vadd.f32 0.0, %v7813
        %7815 = vmatmul.f32.gmra.mxu0 %v7584
        %v7816 = vpop.f32.mrf.mxu0
        %v7817 = vadd.f32 0.0, %v7816
        %7818 = vmatmul.f32.gmra.mxu0 %v7587
        %v7819 = vpop.f32.mrf.mxu0
        %v7820 = vadd.f32 0.0, %v7819
        %7821 = vmatmul.f32.gmra.mxu0 %v7590
        %v7822 = vpop.f32.mrf.mxu0
        %v7823 = vadd.f32 0.0, %v7822
        %7824 = vmatmul.f32.gmra.mxu0 %v7593
        %v7825 = vpop.f32.mrf.mxu0
        %v7826 = vadd.f32 0.0, %v7825
        %7827 = vmatmul.f32.gmra.mxu0 %v7596
        %v7828 = vpop.f32.mrf.mxu0
        %v7829 = vadd.f32 0.0, %v7828
        %7830 = vmatmul.f32.gmra.mxu0 %v7599
        %v7831 = vpop.f32.mrf.mxu0
        %v7832 = vadd.f32 0.0, %v7831
        %7833 = vmatmul.f32.gmra.mxu0 %v7602
        %v7834 = vpop.f32.mrf.mxu0
        %v7835 = vadd.f32 0.0, %v7834
        %7836 = vmatmul.f32.gmra.mxu0 %v7605
        %v7837 = vpop.f32.mrf.mxu0
        %v7838 = vadd.f32 0.0, %v7837
        %7839 = vmatmul.f32.gmra.mxu0 %v7608
        %v7840 = vpop.f32.mrf.mxu0
        %v7841 = vadd.f32 0.0, %v7840
        %7842 = vmatmul.f32.gmra.mxu0 %v7611
        %v7843 = vpop.f32.mrf.mxu0
        %v7844 = vadd.f32 0.0, %v7843
        %7845 = vmatmul.f32.gmra.mxu0 %v7614
        %v7846 = vpop.f32.mrf.mxu0
        %v7847 = vadd.f32 0.0, %v7846
        %7848 = vmatmul.f32.gmra.mxu0 %v7617
        %v7849 = vpop.f32.mrf.mxu0
        %v7850 = vadd.f32 0.0, %v7849
        %7851 = vmatmul.f32.gmra.mxu0 %v7620
        %v7852 = vpop.f32.mrf.mxu0
        %v7853 = vadd.f32 0.0, %v7852
        %7854 = vmatmul.f32.gmra.mxu0 %v7623
        %v7855 = vpop.f32.mrf.mxu0
        %v7856 = vadd.f32 0.0, %v7855
        %7857 = vmatmul.f32.gmra.mxu0 %v7626
        %v7858 = vpop.f32.mrf.mxu0
        %v7859 = vadd.f32 0.0, %v7858
        %7860 = vmatmul.f32.gmra.mxu0 %v7629
        %v7861 = vpop.f32.mrf.mxu0
        %v7862 = vadd.f32 0.0, %v7861
        %7863 = vmatmul.f32.gmra.mxu0 %v7632
        %v7864 = vpop.f32.mrf.mxu0
        %v7865 = vadd.f32 0.0, %v7864
        %7866 = vmatmul.f32.gmra.mxu0 %v7635
        %v7867 = vpop.f32.mrf.mxu0
        %v7868 = vadd.f32 0.0, %v7867
        %7869 = vmatmul.f32.gmra.mxu0 %v7638
        %v7870 = vpop.f32.mrf.mxu0
        %v7871 = vadd.f32 0.0, %v7870
        %7872 = vmatmul.f32.gmra.mxu0 %v7641
        %v7873 = vpop.f32.mrf.mxu0
        %v7874 = vadd.f32 0.0, %v7873
        %7875 = vmatmul.f32.gmra.mxu0 %v7644
        %v7876 = vpop.f32.mrf.mxu0
        %v7877 = vadd.f32 0.0, %v7876
        %7878 = vmatmul.f32.gmra.mxu0 %v7647
        %v7879 = vpop.f32.mrf.mxu0
        %v7880 = vadd.f32 0.0, %v7879
        %7881 = vmatmul.f32.gmra.mxu0 %v7650
        %v7882 = vpop.f32.mrf.mxu0
        %v7883 = vadd.f32 0.0, %v7882
        %7884 = vmatmul.f32.gmra.mxu0 %v7653
        %v7885 = vpop.f32.mrf.mxu0
        %v7886 = vadd.f32 0.0, %v7885
        %7887 = vmatmul.f32.gmra.mxu0 %v7656
        %v7888 = vpop.f32.mrf.mxu0
        %v7889 = vadd.f32 0.0, %v7888
        %7890 = vmatmul.f32.gmra.mxu0 %v7659
        %v7891 = vpop.f32.mrf.mxu0
        %v7892 = vadd.f32 0.0, %v7891
        %7893 = vmatmul.f32.gmra.mxu0 %v7662
        %v7894 = vpop.f32.mrf.mxu0
        %v7895 = vadd.f32 0.0, %v7894
        %7896 = vmatmul.f32.gmra.mxu0 %v7665
        %v7897 = vpop.f32.mrf.mxu0
        %v7898 = vadd.f32 0.0, %v7897
        %7899 = vmatmul.f32.gmra.mxu0 %v7668
        %v7900 = vpop.f32.mrf.mxu0
        %v7901 = vadd.f32 0.0, %v7900
        %7902 = vmatmul.f32.gmra.mxu0 %v7671
        %v7903 = vpop.f32.mrf.mxu0
        %v7904 = vadd.f32 0.0, %v7903
        %7905 = vmatmul.f32.gmra.mxu0 %v7674
        %v7906 = vpop.f32.mrf.mxu0
        %v7907 = vadd.f32 0.0, %v7906
        %7908 = vmatmul.f32.gmra.mxu0 %v7677
        %v7909 = vpop.f32.mrf.mxu0
        %v7910 = vadd.f32 0.0, %v7909
        %7911 = vmatmul.f32.gmra.mxu0 %v7680
        %v7912 = vpop.f32.mrf.mxu0
        %v7913 = vadd.f32 0.0, %v7912
        %7914 = vmatmul.f32.gmra.mxu0 %v7683
        %v7915 = vpop.f32.mrf.mxu0
        %v7916 = vadd.f32 0.0, %v7915
        %7917 = vmatmul.f32.gmra.mxu0 %v7686
        %v7918 = vpop.f32.mrf.mxu0
        %v7919 = vadd.f32 0.0, %v7918
        %7920 = vmatmul.f32.gmra.mxu0 %v7689
        %v7921 = vpop.f32.mrf.mxu0
        %v7922 = vadd.f32 0.0, %v7921
        %7923 = vmatmul.f32.gmra.mxu0 %v7692
        %v7924 = vpop.f32.mrf.mxu0
        %v7925 = vadd.f32 0.0, %v7924
        %7926 = vmatmul.f32.gmra.mxu0 %v7695
        %v7927 = vpop.f32.mrf.mxu0
        %v7928 = vadd.f32 0.0, %v7927
        %7929 = vmatmul.f32.gmra.mxu0 %v7698
        %v7930 = vpop.f32.mrf.mxu0
        %v7931 = vadd.f32 0.0, %v7930
        %7932 = vmatmul.f32.gmra.mxu0 %v7701
        %v7933 = vpop.f32.mrf.mxu0
        %v7934 = vadd.f32 0.0, %v7933
        %7935 = vmatmul.f32.gmra.mxu0 %v7704
        %v7936 = vpop.f32.mrf.mxu0
        %v7937 = vadd.f32 0.0, %v7936
        %7938 = vmatmul.f32.gmra.mxu0 %v7707
        %v7939 = vpop.f32.mrf.mxu0
        %v7940 = vadd.f32 0.0, %v7939
        %7941 = vmatmul.f32.gmra.mxu0 %v7710
        %v7942 = vpop.f32.mrf.mxu0
        %v7943 = vadd.f32 0.0, %v7942
        %7944 = vmatmul.f32.gmra.mxu0 %v7713
        %v7945 = vpop.f32.mrf.mxu0
        %v7946 = vadd.f32 0.0, %v7945
        %7947 = vmatmul.f32.gmra.mxu0 %v7716
        %v7948 = vpop.f32.mrf.mxu0
        %v7949 = vadd.f32 0.0, %v7948
        %7950 = vmatmul.f32.gmra.mxu0 %v7719
        %v7951 = vpop.f32.mrf.mxu0
        %v7952 = vadd.f32 0.0, %v7951
        %7953 = vmatmul.f32.gmra.mxu0 %v7722
        %v7954 = vpop.f32.mrf.mxu0
        %v7955 = vadd.f32 0.0, %v7954
        %7956 = vmatmul.f32.gmra.mxu0 %v7725
        %v7957 = vpop.f32.mrf.mxu0
        %v7958 = vadd.f32 0.0, %v7957
        %7959 = vmatmul.f32.gmra.mxu0 %v7728
        %v7960 = vpop.f32.mrf.mxu0
        %v7961 = vadd.f32 0.0, %v7960
        %7962 = vmatmul.f32.gmra.mxu0 %v7731
        %v7963 = vpop.f32.mrf.mxu0
        %v7964 = vadd.f32 0.0, %v7963
        %7965 = vmatmul.f32.gmra.mxu0 %v7734
        %v7966 = vpop.f32.mrf.mxu0
        %v7967 = vadd.f32 0.0, %v7966
        %7968 = vmatmul.f32.gmra.mxu0 %v7737
        %v7969 = vpop.f32.mrf.mxu0
        %v7970 = vadd.f32 0.0, %v7969
        %7971 = vmatmul.f32.gmra.mxu0 %v7740
        %v7972 = vpop.f32.mrf.mxu0
        %v7973 = vadd.f32 0.0, %v7972
        %7974 = vmatmul.f32.gmra.mxu0 %v7743
        %v7975 = vpop.f32.mrf.mxu0
        %v7976 = vadd.f32 0.0, %v7975
        %7977 = vmatmul.f32.gmra.mxu0 %v7746
        %v7978 = vpop.f32.mrf.mxu0
        %v7979 = vadd.f32 0.0, %v7978
        %7980 = vmatmul.f32.gmra.mxu0 %v7749
        %v7981 = vpop.f32.mrf.mxu0
        %v7982 = vadd.f32 0.0, %v7981
        %7983 = vmatmul.f32.gmra.mxu0 %v7752
        %v7984 = vpop.f32.mrf.mxu0
        %v7985 = vadd.f32 0.0, %v7984
        %7986 = vmatmul.f32.gmra.mxu0 %v7755
        %v7987 = vpop.f32.mrf.mxu0
        %v7988 = vadd.f32 0.0, %v7987
        %7989 = vdwg.mxu0
        %v7990 = vadd.f32 %v7393, %v7775
        %v7991 = vadd.f32 %v7394, %v7778
        %v7992 = vadd.f32 %v7395, %v7781
        %v7993 = vadd.f32 %v7396, %v7784
        %v7994 = vadd.f32 %v7397, %v7787
        %v7995 = vadd.f32 %v7398, %v7790
        %v7996 = vadd.f32 %v7399, %v7793
        %v7997 = vadd.f32 %v7400, %v7796
        %v7998 = vadd.f32 %v7401, %v7799
        %v7999 = vadd.f32 %v7402, %v7802
        %v8000 = vadd.f32 %v7403, %v7805
        %v8001 = vadd.f32 %v7404, %v7808
        %v8002 = vadd.f32 %v7405, %v7811
        %v8003 = vadd.f32 %v7406, %v7814
        %v8004 = vadd.f32 %v7407, %v7817
        %v8005 = vadd.f32 %v7408, %v7820
        %v8006 = vadd.f32 %v7409, %v7823
        %v8007 = vadd.f32 %v7410, %v7826
        %v8008 = vadd.f32 %v7411, %v7829
        %v8009 = vadd.f32 %v7412, %v7832
        %v8010 = vadd.f32 %v7413, %v7835
        %v8011 = vadd.f32 %v7414, %v7838
        %v8012 = vadd.f32 %v7415, %v7841
        %v8013 = vadd.f32 %v7416, %v7844
        %v8014 = vadd.f32 %v7417, %v7847
        %v8015 = vadd.f32 %v7418, %v7850
        %v8016 = vadd.f32 %v7419, %v7853
        %v8017 = vadd.f32 %v7420, %v7856
        %v8018 = vadd.f32 %v7421, %v7859
        %v8019 = vadd.f32 %v7422, %v7862
        %v8020 = vadd.f32 %v7423, %v7865
        %v8021 = vadd.f32 %v7424, %v7868
        %v8022 = vadd.f32 %v7425, %v7871
        %v8023 = vadd.f32 %v7426, %v7874
        %v8024 = vadd.f32 %v7427, %v7877
        %v8025 = vadd.f32 %v7428, %v7880
        %v8026 = vadd.f32 %v7429, %v7883
        %v8027 = vadd.f32 %v7430, %v7886
        %v8028 = vadd.f32 %v7431, %v7889
        %v8029 = vadd.f32 %v7432, %v7892
        %v8030 = vadd.f32 %v7433, %v7895
        %v8031 = vadd.f32 %v7434, %v7898
        %v8032 = vadd.f32 %v7435, %v7901
        %v8033 = vadd.f32 %v7436, %v7904
        %v8034 = vadd.f32 %v7437, %v7907
        %v8035 = vadd.f32 %v7438, %v7910
        %v8036 = vadd.f32 %v7439, %v7913
        %v8037 = vadd.f32 %v7440, %v7916
        %v8038 = vadd.f32 %v7441, %v7919
        %v8039 = vadd.f32 %v7442, %v7922
        %v8040 = vadd.f32 %v7443, %v7925
        %v8041 = vadd.f32 %v7444, %v7928
        %v8042 = vadd.f32 %v7445, %v7931
        %v8043 = vadd.f32 %v7446, %v7934
        %v8044 = vadd.f32 %v7447, %v7937
        %v8045 = vadd.f32 %v7448, %v7940
        %v8046 = vadd.f32 %v7449, %v7943
        %v8047 = vadd.f32 %v7450, %v7946
        %v8048 = vadd.f32 %v7451, %v7949
        %v8049 = vadd.f32 %v7452, %v7952
        %v8050 = vadd.f32 %v7453, %v7955
        %v8051 = vadd.f32 %v7454, %v7958
        %v8052 = vadd.f32 %v7455, %v7961
        %v8053 = vadd.f32 %v7456, %v7964
        %v8054 = vadd.f32 %v7457, %v7967
        %v8055 = vadd.f32 %v7458, %v7970
        %v8056 = vadd.f32 %v7459, %v7973
        %v8057 = vadd.f32 %v7460, %v7976
        %v8058 = vadd.f32 %v7461, %v7979
        %v8059 = vadd.f32 %v7462, %v7982
        %v8060 = vadd.f32 %v7463, %v7985
        %v8061 = vadd.f32 %v7464, %v7988
        %v8062 = vld [vmem:[%s6867 + $0x2] sm:$0xff]
        %v8063 = vld [vmem:[%s6867 + $0xa] sm:$0xff]
        %v8064 = vld [vmem:[%s6867 + $0x12] sm:$0xff]
        %v8065 = vld [vmem:[%s6867 + $0x22] sm:$0xff]
        %v8066 = vld [vmem:[%s6867 + $0x2a] sm:$0xff]
        %v8067 = vld [vmem:[%s6867 + $0x32] sm:$0xff]
        %v8068 = vld [vmem:[%s6867 + $0x42] sm:$0xff]
        %v8069 = vld [vmem:[%s6867 + $0x4a] sm:$0xff]
        %v8070 = vld [vmem:[%s6867 + $0x52] sm:$0xff]
        %v8071 = vld [vmem:[%s6867 + $0x62] sm:$0xff]
        %v8072 = vld [vmem:[%s6867 + $0x6a] sm:$0xff]
        %v8073 = vld [vmem:[%s6867 + $0x72] sm:$0xff]
        %v8074 = vld [vmem:[%s6867 + $0x82] sm:$0xff]
        %v8075 = vld [vmem:[%s6867 + $0x8a] sm:$0xff]
        %v8076 = vld [vmem:[%s6867 + $0x92] sm:$0xff]
        %v8077 = vld [vmem:[%s6867 + $0xa2] sm:$0xff]
        %v8078 = vld [vmem:[%s6867 + $0xaa] sm:$0xff]
        %v8079 = vld [vmem:[%s6867 + $0xb2] sm:$0xff]
        %v8080 = vld [vmem:[%s6867 + $0xc2] sm:$0xff]
        %v8081 = vld [vmem:[%s6867 + $0xca] sm:$0xff]
        %v8082 = vld [vmem:[%s6867 + $0xd2] sm:$0xff]
        %v8083 = vld [vmem:[%s6867 + $0xe2] sm:$0xff]
        %v8084 = vld [vmem:[%s6867 + $0xea] sm:$0xff]
        %v8085 = vld [vmem:[%s6867 + $0xf2] sm:$0xff]
        %v8086 = vld [vmem:[%s6867 + $0x102] sm:$0xff]
        %v8087 = vld [vmem:[%s6867 + $0x10a] sm:$0xff]
        %v8088 = vld [vmem:[%s6867 + $0x112] sm:$0xff]
        %v8089 = vld [vmem:[%s6867 + $0x122] sm:$0xff]
        %v8090 = vld [vmem:[%s6867 + $0x12a] sm:$0xff]
        %v8091 = vld [vmem:[%s6867 + $0x132] sm:$0xff]
        %v8092 = vld [vmem:[%s6867 + $0x142] sm:$0xff]
        %v8093 = vld [vmem:[%s6867 + $0x14a] sm:$0xff]
        %v8094 = vld [vmem:[%s6867 + $0x152] sm:$0xff]
        %v8095 = vld [vmem:[%s6867 + $0x162] sm:$0xff]
        %v8096 = vld [vmem:[%s6867 + $0x16a] sm:$0xff]
        %v8097 = vld [vmem:[%s6867 + $0x172] sm:$0xff]
        %v8098 = vld [vmem:[%s6867 + $0x182] sm:$0xff]
        %v8099 = vld [vmem:[%s6867 + $0x18a] sm:$0xff]
        %v8100 = vld [vmem:[%s6867 + $0x192] sm:$0xff]
        %v8101 = vld [vmem:[%s6867 + $0x1a2] sm:$0xff]
        %v8102 = vld [vmem:[%s6867 + $0x1aa] sm:$0xff]
        %v8103 = vld [vmem:[%s6867 + $0x1b2] sm:$0xff]
        %v8104 = vld [vmem:[%s6867 + $0x1c2] sm:$0xff]
        %v8105 = vld [vmem:[%s6867 + $0x1ca] sm:$0xff]
        %v8106 = vld [vmem:[%s6867 + $0x1d2] sm:$0xff]
        %v8107 = vld [vmem:[%s6867 + $0x1e2] sm:$0xff]
        %v8108 = vld [vmem:[%s6867 + $0x1ea] sm:$0xff]
        %v8109 = vld [vmem:[%s6867 + $0x1f2] sm:$0xff]
        %v8110 = vld [vmem:[%s6867 + $0x202] sm:$0xff]
        %v8111 = vld [vmem:[%s6867 + $0x20a] sm:$0xff]
        %v8112 = vld [vmem:[%s6867 + $0x212] sm:$0xff]
        %v8113 = vld [vmem:[%s6867 + $0x222] sm:$0xff]
        %v8114 = vld [vmem:[%s6867 + $0x22a] sm:$0xff]
        %v8115 = vld [vmem:[%s6867 + $0x232] sm:$0xff]
        %v8116 = vld [vmem:[%s6867 + $0x242] sm:$0xff]
        %v8117 = vld [vmem:[%s6867 + $0x24a] sm:$0xff]
        %v8118 = vld [vmem:[%s6867 + $0x252] sm:$0xff]
        %v8119 = vld [vmem:[%s6867 + $0x262] sm:$0xff]
        %v8120 = vld [vmem:[%s6867 + $0x26a] sm:$0xff]
        %v8121 = vld [vmem:[%s6867 + $0x272] sm:$0xff]
        %v8122 = vld [vmem:[%s6867 + $0x282] sm:$0xff]
        %v8123 = vld [vmem:[%s6867 + $0x28a] sm:$0xff]
        %v8124 = vld [vmem:[%s6867 + $0x292] sm:$0xff]
        %v8125 = vld [vmem:[%s6867 + $0x2a2] sm:$0xff]
        %v8126 = vld [vmem:[%s6867 + $0x2aa] sm:$0xff]
        %v8127 = vld [vmem:[%s6867 + $0x2b2] sm:$0xff]
        %v8128 = vld [vmem:[%s6867 + $0x2c2] sm:$0xff]
        %v8129 = vld [vmem:[%s6867 + $0x2ca] sm:$0xff]
        %v8130 = vld [vmem:[%s6867 + $0x2d2] sm:$0xff]
        %v8131 = vld [vmem:[%s6867 + $0x2e2] sm:$0xff]
        %v8132 = vld [vmem:[%s6867 + $0x2ea] sm:$0xff]
        %v8133 = vld [vmem:[%s6867 + $0x2f2] sm:$0xff]
        %v8134 = vld [vmem:[%s3 + $0x100] sm:$0xff]
        %v8135 = vld [vmem:[%s3 + $0x108] sm:$0xff]
        %v8136 = vld [vmem:[%s3 + $0x110] sm:$0xff]
        %v8137 = vld [vmem:[%s3 + $0x118] sm:$0xff]
        %v8139 = vsel %vm2747, %v8062, 0
        %v8142 = vsel %vm2747, %v8063, 0
        %v8145 = vsel %vm2747, %v8064, 0
        %v8148 = vsel %vm2747, %v8065, 0
        %v8151 = vsel %vm2747, %v8066, 0
        %v8154 = vsel %vm2747, %v8067, 0
        %v8157 = vsel %vm2747, %v8068, 0
        %v8160 = vsel %vm2747, %v8069, 0
        %v8163 = vsel %vm2747, %v8070, 0
        %v8166 = vsel %vm2747, %v8071, 0
        %v8169 = vsel %vm2747, %v8072, 0
        %v8172 = vsel %vm2747, %v8073, 0
        %v8175 = vsel %vm2747, %v8074, 0
        %v8178 = vsel %vm2747, %v8075, 0
        %v8181 = vsel %vm2747, %v8076, 0
        %v8184 = vsel %vm2747, %v8077, 0
        %v8187 = vsel %vm2747, %v8078, 0
        %v8190 = vsel %vm2747, %v8079, 0
        %v8193 = vsel %vm2747, %v8080, 0
        %v8196 = vsel %vm2747, %v8081, 0
        %v8199 = vsel %vm2747, %v8082, 0
        %v8202 = vsel %vm2747, %v8083, 0
        %v8205 = vsel %vm2747, %v8084, 0
        %v8208 = vsel %vm2747, %v8085, 0
        %v8211 = vsel %vm2747, %v8086, 0
        %v8214 = vsel %vm2747, %v8087, 0
        %v8217 = vsel %vm2747, %v8088, 0
        %v8220 = vsel %vm2747, %v8089, 0
        %v8223 = vsel %vm2747, %v8090, 0
        %v8226 = vsel %vm2747, %v8091, 0
        %v8229 = vsel %vm2747, %v8092, 0
        %v8232 = vsel %vm2747, %v8093, 0
        %v8235 = vsel %vm2747, %v8094, 0
        %v8238 = vsel %vm2747, %v8095, 0
        %v8241 = vsel %vm2747, %v8096, 0
        %v8244 = vsel %vm2747, %v8097, 0
        %v8247 = vsel %vm2747, %v8098, 0
        %v8250 = vsel %vm2747, %v8099, 0
        %v8253 = vsel %vm2747, %v8100, 0
        %v8256 = vsel %vm2747, %v8101, 0
        %v8259 = vsel %vm2747, %v8102, 0
        %v8262 = vsel %vm2747, %v8103, 0
        %v8265 = vsel %vm2747, %v8104, 0
        %v8268 = vsel %vm2747, %v8105, 0
        %v8271 = vsel %vm2747, %v8106, 0
        %v8274 = vsel %vm2747, %v8107, 0
        %v8277 = vsel %vm2747, %v8108, 0
        %v8280 = vsel %vm2747, %v8109, 0
        %v8283 = vsel %vm2747, %v8110, 0
        %v8286 = vsel %vm2747, %v8111, 0
        %v8289 = vsel %vm2747, %v8112, 0
        %v8292 = vsel %vm2747, %v8113, 0
        %v8295 = vsel %vm2747, %v8114, 0
        %v8298 = vsel %vm2747, %v8115, 0
        %v8301 = vsel %vm2747, %v8116, 0
        %v8304 = vsel %vm2747, %v8117, 0
        %v8307 = vsel %vm2747, %v8118, 0
        %v8310 = vsel %vm2747, %v8119, 0
        %v8313 = vsel %vm2747, %v8120, 0
        %v8316 = vsel %vm2747, %v8121, 0
        %v8319 = vsel %vm2747, %v8122, 0
        %v8322 = vsel %vm2747, %v8123, 0
        %v8325 = vsel %vm2747, %v8124, 0
        %v8328 = vsel %vm2747, %v8125, 0
        %v8331 = vsel %vm2747, %v8126, 0
        %v8334 = vsel %vm2747, %v8127, 0
        %v8337 = vsel %vm2747, %v8128, 0
        %v8340 = vsel %vm2747, %v8129, 0
        %v8343 = vsel %vm2747, %v8130, 0
        %v8346 = vsel %vm2747, %v8131, 0
        %v8349 = vsel %vm2747, %v8132, 0
        %v8352 = vsel %vm2747, %v8133, 0
        %8354 = vmatpush.msra.mxu0 0.0
        %8355 = vmatpush.msra.mxu0 0.0
        %8356 = vmatpush.msra.mxu0 0.0
        %8357 = vmatpush.msra.mxu0 0.0
        %8358 = vmatpush.msra.mxu0 0.0
        %8359 = vmatpush.msra.mxu0 0.0
        %8360 = vmatpush.msra.mxu0 0.0
        %8361 = vmatpush.msra.mxu0 0.0
        %8362 = vmatpush.msra.mxu0 0.0
        %8363 = vmatpush.msra.mxu0 0.0
        %8364 = vmatpush.msra.mxu0 0.0
        %8365 = vmatpush.msra.mxu0 0.0
        %8366 = vmatpush.msra.mxu0 %v8137
        %8367 = vmatpush.msra.mxu0 %v8136
        %8368 = vmatpush.msra.mxu0 %v8135
        %8369 = vmatpush.msra.mxu0 %v8134
        %8370 = vmatmul.f32.gmra.mxu0 %v8139
        %v8371 = vpop.f32.mrf.mxu0
        %v8372 = vadd.f32 0.0, %v8371
        %8373 = vmatmul.f32.gmra.mxu0 %v8142
        %v8374 = vpop.f32.mrf.mxu0
        %v8375 = vadd.f32 0.0, %v8374
        %8376 = vmatmul.f32.gmra.mxu0 %v8145
        %v8377 = vpop.f32.mrf.mxu0
        %v8378 = vadd.f32 0.0, %v8377
        %8379 = vmatmul.f32.gmra.mxu0 %v8148
        %v8380 = vpop.f32.mrf.mxu0
        %v8381 = vadd.f32 0.0, %v8380
        %8382 = vmatmul.f32.gmra.mxu0 %v8151
        %v8383 = vpop.f32.mrf.mxu0
        %v8384 = vadd.f32 0.0, %v8383
        %8385 = vmatmul.f32.gmra.mxu0 %v8154
        %v8386 = vpop.f32.mrf.mxu0
        %v8387 = vadd.f32 0.0, %v8386
        %8388 = vmatmul.f32.gmra.mxu0 %v8157
        %v8389 = vpop.f32.mrf.mxu0
        %v8390 = vadd.f32 0.0, %v8389
        %8391 = vmatmul.f32.gmra.mxu0 %v8160
        %v8392 = vpop.f32.mrf.mxu0
        %v8393 = vadd.f32 0.0, %v8392
        %8394 = vmatmul.f32.gmra.mxu0 %v8163
        %v8395 = vpop.f32.mrf.mxu0
        %v8396 = vadd.f32 0.0, %v8395
        %8397 = vmatmul.f32.gmra.mxu0 %v8166
        %v8398 = vpop.f32.mrf.mxu0
        %v8399 = vadd.f32 0.0, %v8398
        %8400 = vmatmul.f32.gmra.mxu0 %v8169
        %v8401 = vpop.f32.mrf.mxu0
        %v8402 = vadd.f32 0.0, %v8401
        %8403 = vmatmul.f32.gmra.mxu0 %v8172
        %v8404 = vpop.f32.mrf.mxu0
        %v8405 = vadd.f32 0.0, %v8404
        %8406 = vmatmul.f32.gmra.mxu0 %v8175
        %v8407 = vpop.f32.mrf.mxu0
        %v8408 = vadd.f32 0.0, %v8407
        %8409 = vmatmul.f32.gmra.mxu0 %v8178
        %v8410 = vpop.f32.mrf.mxu0
        %v8411 = vadd.f32 0.0, %v8410
        %8412 = vmatmul.f32.gmra.mxu0 %v8181
        %v8413 = vpop.f32.mrf.mxu0
        %v8414 = vadd.f32 0.0, %v8413
        %8415 = vmatmul.f32.gmra.mxu0 %v8184
        %v8416 = vpop.f32.mrf.mxu0
        %v8417 = vadd.f32 0.0, %v8416
        %8418 = vmatmul.f32.gmra.mxu0 %v8187
        %v8419 = vpop.f32.mrf.mxu0
        %v8420 = vadd.f32 0.0, %v8419
        %8421 = vmatmul.f32.gmra.mxu0 %v8190
        %v8422 = vpop.f32.mrf.mxu0
        %v8423 = vadd.f32 0.0, %v8422
        %8424 = vmatmul.f32.gmra.mxu0 %v8193
        %v8425 = vpop.f32.mrf.mxu0
        %v8426 = vadd.f32 0.0, %v8425
        %8427 = vmatmul.f32.gmra.mxu0 %v8196
        %v8428 = vpop.f32.mrf.mxu0
        %v8429 = vadd.f32 0.0, %v8428
        %8430 = vmatmul.f32.gmra.mxu0 %v8199
        %v8431 = vpop.f32.mrf.mxu0
        %v8432 = vadd.f32 0.0, %v8431
        %8433 = vmatmul.f32.gmra.mxu0 %v8202
        %v8434 = vpop.f32.mrf.mxu0
        %v8435 = vadd.f32 0.0, %v8434
        %8436 = vmatmul.f32.gmra.mxu0 %v8205
        %v8437 = vpop.f32.mrf.mxu0
        %v8438 = vadd.f32 0.0, %v8437
        %8439 = vmatmul.f32.gmra.mxu0 %v8208
        %v8440 = vpop.f32.mrf.mxu0
        %v8441 = vadd.f32 0.0, %v8440
        %8442 = vmatmul.f32.gmra.mxu0 %v8211
        %v8443 = vpop.f32.mrf.mxu0
        %v8444 = vadd.f32 0.0, %v8443
        %8445 = vmatmul.f32.gmra.mxu0 %v8214
        %v8446 = vpop.f32.mrf.mxu0
        %v8447 = vadd.f32 0.0, %v8446
        %8448 = vmatmul.f32.gmra.mxu0 %v8217
        %v8449 = vpop.f32.mrf.mxu0
        %v8450 = vadd.f32 0.0, %v8449
        %8451 = vmatmul.f32.gmra.mxu0 %v8220
        %v8452 = vpop.f32.mrf.mxu0
        %v8453 = vadd.f32 0.0, %v8452
        %8454 = vmatmul.f32.gmra.mxu0 %v8223
        %v8455 = vpop.f32.mrf.mxu0
        %v8456 = vadd.f32 0.0, %v8455
        %8457 = vmatmul.f32.gmra.mxu0 %v8226
        %v8458 = vpop.f32.mrf.mxu0
        %v8459 = vadd.f32 0.0, %v8458
        %8460 = vmatmul.f32.gmra.mxu0 %v8229
        %v8461 = vpop.f32.mrf.mxu0
        %v8462 = vadd.f32 0.0, %v8461
        %8463 = vmatmul.f32.gmra.mxu0 %v8232
        %v8464 = vpop.f32.mrf.mxu0
        %v8465 = vadd.f32 0.0, %v8464
        %8466 = vmatmul.f32.gmra.mxu0 %v8235
        %v8467 = vpop.f32.mrf.mxu0
        %v8468 = vadd.f32 0.0, %v8467
        %8469 = vmatmul.f32.gmra.mxu0 %v8238
        %v8470 = vpop.f32.mrf.mxu0
        %v8471 = vadd.f32 0.0, %v8470
        %8472 = vmatmul.f32.gmra.mxu0 %v8241
        %v8473 = vpop.f32.mrf.mxu0
        %v8474 = vadd.f32 0.0, %v8473
        %8475 = vmatmul.f32.gmra.mxu0 %v8244
        %v8476 = vpop.f32.mrf.mxu0
        %v8477 = vadd.f32 0.0, %v8476
        %8478 = vmatmul.f32.gmra.mxu0 %v8247
        %v8479 = vpop.f32.mrf.mxu0
        %v8480 = vadd.f32 0.0, %v8479
        %8481 = vmatmul.f32.gmra.mxu0 %v8250
        %v8482 = vpop.f32.mrf.mxu0
        %v8483 = vadd.f32 0.0, %v8482
        %8484 = vmatmul.f32.gmra.mxu0 %v8253
        %v8485 = vpop.f32.mrf.mxu0
        %v8486 = vadd.f32 0.0, %v8485
        %8487 = vmatmul.f32.gmra.mxu0 %v8256
        %v8488 = vpop.f32.mrf.mxu0
        %v8489 = vadd.f32 0.0, %v8488
        %8490 = vmatmul.f32.gmra.mxu0 %v8259
        %v8491 = vpop.f32.mrf.mxu0
        %v8492 = vadd.f32 0.0, %v8491
        %8493 = vmatmul.f32.gmra.mxu0 %v8262
        %v8494 = vpop.f32.mrf.mxu0
        %v8495 = vadd.f32 0.0, %v8494
        %8496 = vmatmul.f32.gmra.mxu0 %v8265
        %v8497 = vpop.f32.mrf.mxu0
        %v8498 = vadd.f32 0.0, %v8497
        %8499 = vmatmul.f32.gmra.mxu0 %v8268
        %v8500 = vpop.f32.mrf.mxu0
        %v8501 = vadd.f32 0.0, %v8500
        %8502 = vmatmul.f32.gmra.mxu0 %v8271
        %v8503 = vpop.f32.mrf.mxu0
        %v8504 = vadd.f32 0.0, %v8503
        %8505 = vmatmul.f32.gmra.mxu0 %v8274
        %v8506 = vpop.f32.mrf.mxu0
        %v8507 = vadd.f32 0.0, %v8506
        %8508 = vmatmul.f32.gmra.mxu0 %v8277
        %v8509 = vpop.f32.mrf.mxu0
        %v8510 = vadd.f32 0.0, %v8509
        %8511 = vmatmul.f32.gmra.mxu0 %v8280
        %v8512 = vpop.f32.mrf.mxu0
        %v8513 = vadd.f32 0.0, %v8512
        %8514 = vmatmul.f32.gmra.mxu0 %v8283
        %v8515 = vpop.f32.mrf.mxu0
        %v8516 = vadd.f32 0.0, %v8515
        %8517 = vmatmul.f32.gmra.mxu0 %v8286
        %v8518 = vpop.f32.mrf.mxu0
        %v8519 = vadd.f32 0.0, %v8518
        %8520 = vmatmul.f32.gmra.mxu0 %v8289
        %v8521 = vpop.f32.mrf.mxu0
        %v8522 = vadd.f32 0.0, %v8521
        %8523 = vmatmul.f32.gmra.mxu0 %v8292
        %v8524 = vpop.f32.mrf.mxu0
        %v8525 = vadd.f32 0.0, %v8524
        %8526 = vmatmul.f32.gmra.mxu0 %v8295
        %v8527 = vpop.f32.mrf.mxu0
        %v8528 = vadd.f32 0.0, %v8527
        %8529 = vmatmul.f32.gmra.mxu0 %v8298
        %v8530 = vpop.f32.mrf.mxu0
        %v8531 = vadd.f32 0.0, %v8530
        %8532 = vmatmul.f32.gmra.mxu0 %v8301
        %v8533 = vpop.f32.mrf.mxu0
        %v8534 = vadd.f32 0.0, %v8533
        %8535 = vmatmul.f32.gmra.mxu0 %v8304
        %v8536 = vpop.f32.mrf.mxu0
        %v8537 = vadd.f32 0.0, %v8536
        %8538 = vmatmul.f32.gmra.mxu0 %v8307
        %v8539 = vpop.f32.mrf.mxu0
        %v8540 = vadd.f32 0.0, %v8539
        %8541 = vmatmul.f32.gmra.mxu0 %v8310
        %v8542 = vpop.f32.mrf.mxu0
        %v8543 = vadd.f32 0.0, %v8542
        %8544 = vmatmul.f32.gmra.mxu0 %v8313
        %v8545 = vpop.f32.mrf.mxu0
        %v8546 = vadd.f32 0.0, %v8545
        %8547 = vmatmul.f32.gmra.mxu0 %v8316
        %v8548 = vpop.f32.mrf.mxu0
        %v8549 = vadd.f32 0.0, %v8548
        %8550 = vmatmul.f32.gmra.mxu0 %v8319
        %v8551 = vpop.f32.mrf.mxu0
        %v8552 = vadd.f32 0.0, %v8551
        %8553 = vmatmul.f32.gmra.mxu0 %v8322
        %v8554 = vpop.f32.mrf.mxu0
        %v8555 = vadd.f32 0.0, %v8554
        %8556 = vmatmul.f32.gmra.mxu0 %v8325
        %v8557 = vpop.f32.mrf.mxu0
        %v8558 = vadd.f32 0.0, %v8557
        %8559 = vmatmul.f32.gmra.mxu0 %v8328
        %v8560 = vpop.f32.mrf.mxu0
        %v8561 = vadd.f32 0.0, %v8560
        %8562 = vmatmul.f32.gmra.mxu0 %v8331
        %v8563 = vpop.f32.mrf.mxu0
        %v8564 = vadd.f32 0.0, %v8563
        %8565 = vmatmul.f32.gmra.mxu0 %v8334
        %v8566 = vpop.f32.mrf.mxu0
        %v8567 = vadd.f32 0.0, %v8566
        %8568 = vmatmul.f32.gmra.mxu0 %v8337
        %v8569 = vpop.f32.mrf.mxu0
        %v8570 = vadd.f32 0.0, %v8569
        %8571 = vmatmul.f32.gmra.mxu0 %v8340
        %v8572 = vpop.f32.mrf.mxu0
        %v8573 = vadd.f32 0.0, %v8572
        %8574 = vmatmul.f32.gmra.mxu0 %v8343
        %v8575 = vpop.f32.mrf.mxu0
        %v8576 = vadd.f32 0.0, %v8575
        %8577 = vmatmul.f32.gmra.mxu0 %v8346
        %v8578 = vpop.f32.mrf.mxu0
        %v8579 = vadd.f32 0.0, %v8578
        %8580 = vmatmul.f32.gmra.mxu0 %v8349
        %v8581 = vpop.f32.mrf.mxu0
        %v8582 = vadd.f32 0.0, %v8581
        %8583 = vmatmul.f32.gmra.mxu0 %v8352
        %v8584 = vpop.f32.mrf.mxu0
        %v8585 = vadd.f32 0.0, %v8584
        %8586 = vdwg.mxu0
        %v8587 = vadd.f32 %v7990, %v8372
        %v8588 = vadd.f32 %v7991, %v8375
        %v8589 = vadd.f32 %v7992, %v8378
        %v8590 = vadd.f32 %v7993, %v8381
        %v8591 = vadd.f32 %v7994, %v8384
        %v8592 = vadd.f32 %v7995, %v8387
        %v8593 = vadd.f32 %v7996, %v8390
        %v8594 = vadd.f32 %v7997, %v8393
        %v8595 = vadd.f32 %v7998, %v8396
        %v8596 = vadd.f32 %v7999, %v8399
        %v8597 = vadd.f32 %v8000, %v8402
        %v8598 = vadd.f32 %v8001, %v8405
        %v8599 = vadd.f32 %v8002, %v8408
        %v8600 = vadd.f32 %v8003, %v8411
        %v8601 = vadd.f32 %v8004, %v8414
        %v8602 = vadd.f32 %v8005, %v8417
        %v8603 = vadd.f32 %v8006, %v8420
        %v8604 = vadd.f32 %v8007, %v8423
        %v8605 = vadd.f32 %v8008, %v8426
        %v8606 = vadd.f32 %v8009, %v8429
        %v8607 = vadd.f32 %v8010, %v8432
        %v8608 = vadd.f32 %v8011, %v8435
        %v8609 = vadd.f32 %v8012, %v8438
        %v8610 = vadd.f32 %v8013, %v8441
        %v8611 = vadd.f32 %v8014, %v8444
        %v8612 = vadd.f32 %v8015, %v8447
        %v8613 = vadd.f32 %v8016, %v8450
        %v8614 = vadd.f32 %v8017, %v8453
        %v8615 = vadd.f32 %v8018, %v8456
        %v8616 = vadd.f32 %v8019, %v8459
        %v8617 = vadd.f32 %v8020, %v8462
        %v8618 = vadd.f32 %v8021, %v8465
        %v8619 = vadd.f32 %v8022, %v8468
        %v8620 = vadd.f32 %v8023, %v8471
        %v8621 = vadd.f32 %v8024, %v8474
        %v8622 = vadd.f32 %v8025, %v8477
        %v8623 = vadd.f32 %v8026, %v8480
        %v8624 = vadd.f32 %v8027, %v8483
        %v8625 = vadd.f32 %v8028, %v8486
        %v8626 = vadd.f32 %v8029, %v8489
        %v8627 = vadd.f32 %v8030, %v8492
        %v8628 = vadd.f32 %v8031, %v8495
        %v8629 = vadd.f32 %v8032, %v8498
        %v8630 = vadd.f32 %v8033, %v8501
        %v8631 = vadd.f32 %v8034, %v8504
        %v8632 = vadd.f32 %v8035, %v8507
        %v8633 = vadd.f32 %v8036, %v8510
        %v8634 = vadd.f32 %v8037, %v8513
        %v8635 = vadd.f32 %v8038, %v8516
        %v8636 = vadd.f32 %v8039, %v8519
        %v8637 = vadd.f32 %v8040, %v8522
        %v8638 = vadd.f32 %v8041, %v8525
        %v8639 = vadd.f32 %v8042, %v8528
        %v8640 = vadd.f32 %v8043, %v8531
        %v8641 = vadd.f32 %v8044, %v8534
        %v8642 = vadd.f32 %v8045, %v8537
        %v8643 = vadd.f32 %v8046, %v8540
        %v8644 = vadd.f32 %v8047, %v8543
        %v8645 = vadd.f32 %v8048, %v8546
        %v8646 = vadd.f32 %v8049, %v8549
        %v8647 = vadd.f32 %v8050, %v8552
        %v8648 = vadd.f32 %v8051, %v8555
        %v8649 = vadd.f32 %v8052, %v8558
        %v8650 = vadd.f32 %v8053, %v8561
        %v8651 = vadd.f32 %v8054, %v8564
        %v8652 = vadd.f32 %v8055, %v8567
        %v8653 = vadd.f32 %v8056, %v8570
        %v8654 = vadd.f32 %v8057, %v8573
        %v8655 = vadd.f32 %v8058, %v8576
        %v8656 = vadd.f32 %v8059, %v8579
        %v8657 = vadd.f32 %v8060, %v8582
        %v8658 = vadd.f32 %v8061, %v8585
        %v8659 = vld [vmem:[#allocation9] sm:$0x1]
        %v8661 = vperm.slane %v8659, 0
        %v8663 = vadd.f32 %v8587, %v8661
        %v8664 = vadd.f32 %v8588, %v8661
        %v8665 = vadd.f32 %v8589, %v8661
        %v8666 = vadd.f32 %v8590, %v8661
        %v8667 = vadd.f32 %v8591, %v8661
        %v8668 = vadd.f32 %v8592, %v8661
        %v8669 = vadd.f32 %v8593, %v8661
        %v8670 = vadd.f32 %v8594, %v8661
        %v8671 = vadd.f32 %v8595, %v8661
        %v8672 = vadd.f32 %v8596, %v8661
        %v8673 = vadd.f32 %v8597, %v8661
        %v8674 = vadd.f32 %v8598, %v8661
        %v8675 = vadd.f32 %v8599, %v8661
        %v8676 = vadd.f32 %v8600, %v8661
        %v8677 = vadd.f32 %v8601, %v8661
        %v8678 = vadd.f32 %v8602, %v8661
        %v8679 = vadd.f32 %v8603, %v8661
        %v8680 = vadd.f32 %v8604, %v8661
        %v8681 = vadd.f32 %v8605, %v8661
        %v8682 = vadd.f32 %v8606, %v8661
        %v8683 = vadd.f32 %v8607, %v8661
        %v8684 = vadd.f32 %v8608, %v8661
        %v8685 = vadd.f32 %v8609, %v8661
        %v8686 = vadd.f32 %v8610, %v8661
        %v8687 = vadd.f32 %v8611, %v8661
        %v8688 = vadd.f32 %v8612, %v8661
        %v8689 = vadd.f32 %v8613, %v8661
        %v8690 = vadd.f32 %v8614, %v8661
        %v8691 = vadd.f32 %v8615, %v8661
        %v8692 = vadd.f32 %v8616, %v8661
        %v8693 = vadd.f32 %v8617, %v8661
        %v8694 = vadd.f32 %v8618, %v8661
        %v8695 = vadd.f32 %v8619, %v8661
        %v8696 = vadd.f32 %v8620, %v8661
        %v8697 = vadd.f32 %v8621, %v8661
        %v8698 = vadd.f32 %v8622, %v8661
        %v8699 = vadd.f32 %v8623, %v8661
        %v8700 = vadd.f32 %v8624, %v8661
        %v8701 = vadd.f32 %v8625, %v8661
        %v8702 = vadd.f32 %v8626, %v8661
        %v8703 = vadd.f32 %v8627, %v8661
        %v8704 = vadd.f32 %v8628, %v8661
        %v8705 = vadd.f32 %v8629, %v8661
        %v8706 = vadd.f32 %v8630, %v8661
        %v8707 = vadd.f32 %v8631, %v8661
        %v8708 = vadd.f32 %v8632, %v8661
        %v8709 = vadd.f32 %v8633, %v8661
        %v8710 = vadd.f32 %v8634, %v8661
        %v8711 = vadd.f32 %v8635, %v8661
        %v8712 = vadd.f32 %v8636, %v8661
        %v8713 = vadd.f32 %v8637, %v8661
        %v8714 = vadd.f32 %v8638, %v8661
        %v8715 = vadd.f32 %v8639, %v8661
        %v8716 = vadd.f32 %v8640, %v8661
        %v8717 = vadd.f32 %v8641, %v8661
        %v8718 = vadd.f32 %v8642, %v8661
        %v8719 = vadd.f32 %v8643, %v8661
        %v8720 = vadd.f32 %v8644, %v8661
        %v8721 = vadd.f32 %v8645, %v8661
        %v8722 = vadd.f32 %v8646, %v8661
        %v8723 = vadd.f32 %v8647, %v8661
        %v8724 = vadd.f32 %v8648, %v8661
        %v8725 = vadd.f32 %v8649, %v8661
        %v8726 = vadd.f32 %v8650, %v8661
        %v8727 = vadd.f32 %v8651, %v8661
        %v8728 = vadd.f32 %v8652, %v8661
        %v8729 = vadd.f32 %v8653, %v8661
        %v8730 = vadd.f32 %v8654, %v8661
        %v8731 = vadd.f32 %v8655, %v8661
        %v8732 = vadd.f32 %v8656, %v8661
        %v8733 = vadd.f32 %v8657, %v8661
        %v8734 = vadd.f32 %v8658, %v8661
        %v8735 = vmax.f32 %v8663, 0.0
        %v8736 = vmax.f32 %v8664, 0.0
        %v8737 = vmax.f32 %v8665, 0.0
        %v8738 = vmax.f32 %v8666, 0.0
        %v8739 = vmax.f32 %v8667, 0.0
        %v8740 = vmax.f32 %v8668, 0.0
        %v8741 = vmax.f32 %v8669, 0.0
        %v8742 = vmax.f32 %v8670, 0.0
        %v8743 = vmax.f32 %v8671, 0.0
        %v8744 = vmax.f32 %v8672, 0.0
        %v8745 = vmax.f32 %v8673, 0.0
        %v8746 = vmax.f32 %v8674, 0.0
        %v8747 = vmax.f32 %v8675, 0.0
        %v8748 = vmax.f32 %v8676, 0.0
        %v8749 = vmax.f32 %v8677, 0.0
        %v8750 = vmax.f32 %v8678, 0.0
        %v8751 = vmax.f32 %v8679, 0.0
        %v8752 = vmax.f32 %v8680, 0.0
        %v8753 = vmax.f32 %v8681, 0.0
        %v8754 = vmax.f32 %v8682, 0.0
        %v8755 = vmax.f32 %v8683, 0.0
        %v8756 = vmax.f32 %v8684, 0.0
        %v8757 = vmax.f32 %v8685, 0.0
        %v8758 = vmax.f32 %v8686, 0.0
        %v8759 = vmax.f32 %v8687, 0.0
        %v8760 = vmax.f32 %v8688, 0.0
        %v8761 = vmax.f32 %v8689, 0.0
        %v8762 = vmax.f32 %v8690, 0.0
        %v8763 = vmax.f32 %v8691, 0.0
        %v8764 = vmax.f32 %v8692, 0.0
        %v8765 = vmax.f32 %v8693, 0.0
        %v8766 = vmax.f32 %v8694, 0.0
        %v8767 = vmax.f32 %v8695, 0.0
        %v8768 = vmax.f32 %v8696, 0.0
        %v8769 = vmax.f32 %v8697, 0.0
        %v8770 = vmax.f32 %v8698, 0.0
        %v8771 = vmax.f32 %v8699, 0.0
        %v8772 = vmax.f32 %v8700, 0.0
        %v8773 = vmax.f32 %v8701, 0.0
        %v8774 = vmax.f32 %v8702, 0.0
        %v8775 = vmax.f32 %v8703, 0.0
        %v8776 = vmax.f32 %v8704, 0.0
        %v8777 = vmax.f32 %v8705, 0.0
        %v8778 = vmax.f32 %v8706, 0.0
        %v8779 = vmax.f32 %v8707, 0.0
        %v8780 = vmax.f32 %v8708, 0.0
        %v8781 = vmax.f32 %v8709, 0.0
        %v8782 = vmax.f32 %v8710, 0.0
        %v8783 = vmax.f32 %v8711, 0.0
        %v8784 = vmax.f32 %v8712, 0.0
        %v8785 = vmax.f32 %v8713, 0.0
        %v8786 = vmax.f32 %v8714, 0.0
        %v8787 = vmax.f32 %v8715, 0.0
        %v8788 = vmax.f32 %v8716, 0.0
        %v8789 = vmax.f32 %v8717, 0.0
        %v8790 = vmax.f32 %v8718, 0.0
        %v8791 = vmax.f32 %v8719, 0.0
        %v8792 = vmax.f32 %v8720, 0.0
        %v8793 = vmax.f32 %v8721, 0.0
        %v8794 = vmax.f32 %v8722, 0.0
        %v8795 = vmax.f32 %v8723, 0.0
        %v8796 = vmax.f32 %v8724, 0.0
        %v8797 = vmax.f32 %v8725, 0.0
        %v8798 = vmax.f32 %v8726, 0.0
        %v8799 = vmax.f32 %v8727, 0.0
        %v8800 = vmax.f32 %v8728, 0.0
        %v8801 = vmax.f32 %v8729, 0.0
        %v8802 = vmax.f32 %v8730, 0.0
        %v8803 = vmax.f32 %v8731, 0.0
        %v8804 = vmax.f32 %v8732, 0.0
        %v8805 = vmax.f32 %v8733, 0.0
        %v8806 = vmax.f32 %v8734, 0.0
        %v8807 = vmax.f32 %v8735, %v8738
        %v8808 = vmax.f32 %v8736, %v8739
        %v8809 = vmax.f32 %v8737, %v8740
        %v8810 = vmax.f32 %v8741, %v8744
        %v8811 = vmax.f32 %v8742, %v8745
        %v8812 = vmax.f32 %v8743, %v8746
        %v8813 = vmax.f32 %v8747, %v8750
        %v8814 = vmax.f32 %v8748, %v8751
        %v8815 = vmax.f32 %v8749, %v8752
        %v8816 = vmax.f32 %v8753, %v8756
        %v8817 = vmax.f32 %v8754, %v8757
        %v8818 = vmax.f32 %v8755, %v8758
        %v8819 = vmax.f32 %v8759, %v8762
        %v8820 = vmax.f32 %v8760, %v8763
        %v8821 = vmax.f32 %v8761, %v8764
        %v8822 = vmax.f32 %v8765, %v8768
        %v8823 = vmax.f32 %v8766, %v8769
        %v8824 = vmax.f32 %v8767, %v8770
        %v8825 = vmax.f32 %v8771, %v8774
        %v8826 = vmax.f32 %v8772, %v8775
        %v8827 = vmax.f32 %v8773, %v8776
        %v8828 = vmax.f32 %v8777, %v8780
        %v8829 = vmax.f32 %v8778, %v8781
        %v8830 = vmax.f32 %v8779, %v8782
        %v8831 = vmax.f32 %v8783, %v8786
        %v8832 = vmax.f32 %v8784, %v8787
        %v8833 = vmax.f32 %v8785, %v8788
        %v8834 = vmax.f32 %v8789, %v8792
        %v8835 = vmax.f32 %v8790, %v8793
        %v8836 = vmax.f32 %v8791, %v8794
        %v8837 = vmax.f32 %v8795, %v8798
        %v8838 = vmax.f32 %v8796, %v8799
        %v8839 = vmax.f32 %v8797, %v8800
        %v8840 = vmax.f32 %v8801, %v8804
        %v8841 = vmax.f32 %v8802, %v8805
        %v8842 = vmax.f32 %v8803, %v8806
        %vm8843 = vcmask 523264
        %8844 = vst.msk [vmem:[#allocation4] sm:$0xff] %vm8843, %v8807
        %8845 = vst.msk [vmem:[#allocation4 + $0x8] sm:$0xff] %vm8843, %v8808
        %8846 = vst.msk [vmem:[#allocation4 + $0x10] sm:$0xff] %vm8843, %v8809
        %8847 = vst.msk [vmem:[#allocation4 + $0x18] sm:$0xff] %vm8843, %v8810
        %8848 = vst.msk [vmem:[#allocation4 + $0x20] sm:$0xff] %vm8843, %v8811
        %8849 = vst.msk [vmem:[#allocation4 + $0x28] sm:$0xff] %vm8843, %v8812
        %8850 = vst.msk [vmem:[#allocation4 + $0x30] sm:$0xff] %vm8843, %v8813
        %8851 = vst.msk [vmem:[#allocation4 + $0x38] sm:$0xff] %vm8843, %v8814
        %8852 = vst.msk [vmem:[#allocation4 + $0x40] sm:$0xff] %vm8843, %v8815
        %8853 = vst.msk [vmem:[#allocation4 + $0x48] sm:$0xff] %vm8843, %v8816
        %8854 = vst.msk [vmem:[#allocation4 + $0x50] sm:$0xff] %vm8843, %v8817
        %8855 = vst.msk [vmem:[#allocation4 + $0x58] sm:$0xff] %vm8843, %v8818
        %8856 = vst.msk [vmem:[#allocation4 + $0x60] sm:$0xff] %vm8843, %v8819
        %8857 = vst.msk [vmem:[#allocation4 + $0x68] sm:$0xff] %vm8843, %v8820
        %8858 = vst.msk [vmem:[#allocation4 + $0x70] sm:$0xff] %vm8843, %v8821
        %8859 = vst.msk [vmem:[#allocation4 + $0x78] sm:$0xff] %vm8843, %v8822
        %8860 = vst.msk [vmem:[#allocation4 + $0x80] sm:$0xff] %vm8843, %v8823
        %8861 = vst.msk [vmem:[#allocation4 + $0x88] sm:$0xff] %vm8843, %v8824
        %8862 = vst.msk [vmem:[#allocation4 + $0x90] sm:$0xff] %vm8843, %v8825
        %8863 = vst.msk [vmem:[#allocation4 + $0x98] sm:$0xff] %vm8843, %v8826
        %8864 = vst.msk [vmem:[#allocation4 + $0xa0] sm:$0xff] %vm8843, %v8827
        %8865 = vst.msk [vmem:[#allocation4 + $0xa8] sm:$0xff] %vm8843, %v8828
        %8866 = vst.msk [vmem:[#allocation4 + $0xb0] sm:$0xff] %vm8843, %v8829
        %8867 = vst.msk [vmem:[#allocation4 + $0xb8] sm:$0xff] %vm8843, %v8830
        %8868 = vst.msk [vmem:[#allocation4 + $0xc0] sm:$0xff] %vm8843, %v8831
        %8869 = vst.msk [vmem:[#allocation4 + $0xc8] sm:$0xff] %vm8843, %v8832
        %8870 = vst.msk [vmem:[#allocation4 + $0xd0] sm:$0xff] %vm8843, %v8833
        %8871 = vst.msk [vmem:[#allocation4 + $0xd8] sm:$0xff] %vm8843, %v8834
        %8872 = vst.msk [vmem:[#allocation4 + $0xe0] sm:$0xff] %vm8843, %v8835
        %8873 = vst.msk [vmem:[#allocation4 + $0xe8] sm:$0xff] %vm8843, %v8836
        %8874 = vst.msk [vmem:[#allocation4 + $0xf0] sm:$0xff] %vm8843, %v8837
        %8875 = vst.msk [vmem:[#allocation4 + $0xf8] sm:$0xff] %vm8843, %v8838
        %8876 = vst.msk [vmem:[#allocation4 + $0x100] sm:$0xff] %vm8843, %v8839
        %8877 = vst.msk [vmem:[#allocation4 + $0x108] sm:$0xff] %vm8843, %v8840
        %8878 = vst.msk [vmem:[#allocation4 + $0x110] sm:$0xff] %vm8843, %v8841
        %8879 = vst.msk [vmem:[#allocation4 + $0x118] sm:$0xff] %vm8843, %v8842
        %v8880 = vld [vmem:[#allocation4] ss:$2 sm:$0xff]
        %s8881 = scalar_lea.vmem [#allocation4], 16
        %v8882 = vld [vmem:[%s8881] ss:$2 sm:$0xf]
        %s8883 = scalar_lea.vmem [#allocation4], 24
        %v8884 = vld [vmem:[%s8883] ss:$2 sm:$0xff]
        %s8885 = scalar_lea.vmem [#allocation4], 40
        %v8886 = vld [vmem:[%s8885] ss:$2 sm:$0xf]
        %s8887 = scalar_lea.vmem [#allocation4], 48
        %v8888 = vld [vmem:[%s8887] ss:$2 sm:$0xff]
        %s8889 = scalar_lea.vmem [#allocation4], 64
        %v8890 = vld [vmem:[%s8889] ss:$2 sm:$0xf]
        %s8891 = scalar_lea.vmem [#allocation4], 72
        %v8892 = vld [vmem:[%s8891] ss:$2 sm:$0xff]
        %s8893 = scalar_lea.vmem [#allocation4], 88
        %v8894 = vld [vmem:[%s8893] ss:$2 sm:$0xf]
        %s8895 = scalar_lea.vmem [#allocation4], 96
        %v8896 = vld [vmem:[%s8895] ss:$2 sm:$0xff]
        %s8897 = scalar_lea.vmem [#allocation4], 112
        %v8898 = vld [vmem:[%s8897] ss:$2 sm:$0xf]
        %s8899 = scalar_lea.vmem [#allocation4], 120
        %v8900 = vld [vmem:[%s8899] ss:$2 sm:$0xff]
        %s8901 = scalar_lea.vmem [#allocation4], 136
        %v8902 = vld [vmem:[%s8901] ss:$2 sm:$0xf]
        %s8903 = scalar_lea.vmem [#allocation4], 144
        %v8904 = vld [vmem:[%s8903] ss:$2 sm:$0xff]
        %s8905 = scalar_lea.vmem [#allocation4], 160
        %v8906 = vld [vmem:[%s8905] ss:$2 sm:$0xf]
        %s8907 = scalar_lea.vmem [#allocation4], 168
        %v8908 = vld [vmem:[%s8907] ss:$2 sm:$0xff]
        %s8909 = scalar_lea.vmem [#allocation4], 184
        %v8910 = vld [vmem:[%s8909] ss:$2 sm:$0xf]
        %s8911 = scalar_lea.vmem [#allocation4], 192
        %v8912 = vld [vmem:[%s8911] ss:$2 sm:$0xff]
        %s8913 = scalar_lea.vmem [#allocation4], 208
        %v8914 = vld [vmem:[%s8913] ss:$2 sm:$0xf]
        %s8915 = scalar_lea.vmem [#allocation4], 216
        %v8916 = vld [vmem:[%s8915] ss:$2 sm:$0xff]
        %s8917 = scalar_lea.vmem [#allocation4], 232
        %v8918 = vld [vmem:[%s8917] ss:$2 sm:$0xf]
        %s8919 = scalar_lea.vmem [#allocation4], 240
        %v8920 = vld [vmem:[%s8919] ss:$2 sm:$0xff]
        %s8921 = scalar_lea.vmem [#allocation4], 256
        %v8922 = vld [vmem:[%s8921] ss:$2 sm:$0xf]
        %s8923 = scalar_lea.vmem [#allocation4], 264
        %v8924 = vld [vmem:[%s8923] ss:$2 sm:$0xff]
        %s8925 = scalar_lea.vmem [#allocation4], 280
        %v8926 = vld [vmem:[%s8925] ss:$2 sm:$0xf]
        %s8927 = scalar_lea.vmem [#allocation4], 1
        %v8928 = vld [vmem:[%s8927] ss:$2 sm:$0xff]
        %s8929 = scalar_lea.vmem [#allocation4], 17
        %v8930 = vld [vmem:[%s8929] ss:$2 sm:$0xf]
        %s8931 = scalar_lea.vmem [#allocation4], 25
        %v8932 = vld [vmem:[%s8931] ss:$2 sm:$0xff]
        %s8933 = scalar_lea.vmem [#allocation4], 41
        %v8934 = vld [vmem:[%s8933] ss:$2 sm:$0xf]
        %s8935 = scalar_lea.vmem [#allocation4], 49
        %v8936 = vld [vmem:[%s8935] ss:$2 sm:$0xff]
        %s8937 = scalar_lea.vmem [#allocation4], 65
        %v8938 = vld [vmem:[%s8937] ss:$2 sm:$0xf]
        %s8939 = scalar_lea.vmem [#allocation4], 73
        %v8940 = vld [vmem:[%s8939] ss:$2 sm:$0xff]
        %s8941 = scalar_lea.vmem [#allocation4], 89
        %v8942 = vld [vmem:[%s8941] ss:$2 sm:$0xf]
        %s8943 = scalar_lea.vmem [#allocation4], 97
        %v8944 = vld [vmem:[%s8943] ss:$2 sm:$0xff]
        %s8945 = scalar_lea.vmem [#allocation4], 113
        %v8946 = vld [vmem:[%s8945] ss:$2 sm:$0xf]
        %s8947 = scalar_lea.vmem [#allocation4], 121
        %v8948 = vld [vmem:[%s8947] ss:$2 sm:$0xff]
        %s8949 = scalar_lea.vmem [#allocation4], 137
        %v8950 = vld [vmem:[%s8949] ss:$2 sm:$0xf]
        %s8951 = scalar_lea.vmem [#allocation4], 145
        %v8952 = vld [vmem:[%s8951] ss:$2 sm:$0xff]
        %s8953 = scalar_lea.vmem [#allocation4], 161
        %v8954 = vld [vmem:[%s8953] ss:$2 sm:$0xf]
        %s8955 = scalar_lea.vmem [#allocation4], 169
        %v8956 = vld [vmem:[%s8955] ss:$2 sm:$0xff]
        %s8957 = scalar_lea.vmem [#allocation4], 185
        %v8958 = vld [vmem:[%s8957] ss:$2 sm:$0xf]
        %s8959 = scalar_lea.vmem [#allocation4], 193
        %v8960 = vld [vmem:[%s8959] ss:$2 sm:$0xff]
        %s8961 = scalar_lea.vmem [#allocation4], 209
        %v8962 = vld [vmem:[%s8961] ss:$2 sm:$0xf]
        %s8963 = scalar_lea.vmem [#allocation4], 217
        %v8964 = vld [vmem:[%s8963] ss:$2 sm:$0xff]
        %s8965 = scalar_lea.vmem [#allocation4], 233
        %v8966 = vld [vmem:[%s8965] ss:$2 sm:$0xf]
        %s8967 = scalar_lea.vmem [#allocation4], 241
        %v8968 = vld [vmem:[%s8967] ss:$2 sm:$0xff]
        %s8969 = scalar_lea.vmem [#allocation4], 257
        %v8970 = vld [vmem:[%s8969] ss:$2 sm:$0xf]
        %s8971 = scalar_lea.vmem [#allocation4], 265
        %v8972 = vld [vmem:[%s8971] ss:$2 sm:$0xff]
        %s8973 = scalar_lea.vmem [#allocation4], 281
        %v8974 = vld [vmem:[%s8973] ss:$2 sm:$0xf]
        %v8975 = vmax.f32 %v8880, %v8928
        %v8976 = vmax.f32 %v8882, %v8930
        %v8977 = vmax.f32 %v8884, %v8932
        %v8978 = vmax.f32 %v8886, %v8934
        %v8979 = vmax.f32 %v8888, %v8936
        %v8980 = vmax.f32 %v8890, %v8938
        %v8981 = vmax.f32 %v8892, %v8940
        %v8982 = vmax.f32 %v8894, %v8942
        %v8983 = vmax.f32 %v8896, %v8944
        %v8984 = vmax.f32 %v8898, %v8946
        %v8985 = vmax.f32 %v8900, %v8948
        %v8986 = vmax.f32 %v8902, %v8950
        %v8987 = vmax.f32 %v8904, %v8952
        %v8988 = vmax.f32 %v8906, %v8954
        %v8989 = vmax.f32 %v8908, %v8956
        %v8990 = vmax.f32 %v8910, %v8958
        %v8991 = vmax.f32 %v8912, %v8960
        %v8992 = vmax.f32 %v8914, %v8962
        %v8993 = vmax.f32 %v8916, %v8964
        %v8994 = vmax.f32 %v8918, %v8966
        %v8995 = vmax.f32 %v8920, %v8968
        %v8996 = vmax.f32 %v8922, %v8970
        %v8997 = vmax.f32 %v8924, %v8972
        %v8998 = vmax.f32 %v8926, %v8974
        %v8999 = vpack.c.bf16 %v8975, %v8975
        %v9000 = vpack.c.bf16 %v8976, %v8976
        %v9001 = vpack.c.bf16 %v8977, %v8977
        %v9002 = vpack.c.bf16 %v8978, %v8978
        %v9003 = vpack.c.bf16 %v8979, %v8979
        %v9004 = vpack.c.bf16 %v8980, %v8980
        %v9005 = vpack.c.bf16 %v8981, %v8981
        %v9006 = vpack.c.bf16 %v8982, %v8982
        %v9007 = vpack.c.bf16 %v8983, %v8983
        %v9008 = vpack.c.bf16 %v8984, %v8984
        %v9009 = vpack.c.bf16 %v8985, %v8985
        %v9010 = vpack.c.bf16 %v8986, %v8986
        %v9011 = vpack.c.bf16 %v8987, %v8987
        %v9012 = vpack.c.bf16 %v8988, %v8988
        %v9013 = vpack.c.bf16 %v8989, %v8989
        %v9014 = vpack.c.bf16 %v8990, %v8990
        %v9015 = vpack.c.bf16 %v8991, %v8991
        %v9016 = vpack.c.bf16 %v8992, %v8992
        %v9017 = vpack.c.bf16 %v8993, %v8993
        %v9018 = vpack.c.bf16 %v8994, %v8994
        %v9019 = vpack.c.bf16 %v8995, %v8995
        %v9020 = vpack.c.bf16 %v8996, %v8996
        %v9021 = vpack.c.bf16 %v8997, %v8997
        %v9022 = vpack.c.bf16 %v8998, %v8998
        %vm9023 = vcmask 519168
        %9024 = vst.msk [vmem:[%s270] sm:$0xf] %vm9023, %v8999
        %vm9025 = vcmask 517120
        %9026 = vst.msk [vmem:[%s270 + $0x4] sm:$0x3] %vm9025, %v9000
        %9027 = vst.msk [vmem:[%s270 + $0x8] sm:$0xf] %vm9023, %v9001
        %9028 = vst.msk [vmem:[%s270 + $0xc] sm:$0x3] %vm9025, %v9002
        %9029 = vst.msk [vmem:[%s270 + $0x10] sm:$0xf] %vm9023, %v9003
        %9030 = vst.msk [vmem:[%s270 + $0x14] sm:$0x3] %vm9025, %v9004
        %9031 = vst.msk [vmem:[%s270 + $0x18] sm:$0xf] %vm9023, %v9005
        %9032 = vst.msk [vmem:[%s270 + $0x1c] sm:$0x3] %vm9025, %v9006
        %9033 = vst.msk [vmem:[%s270 + $0x20] sm:$0xf] %vm9023, %v9007
        %9034 = vst.msk [vmem:[%s270 + $0x24] sm:$0x3] %vm9025, %v9008
        %9035 = vst.msk [vmem:[%s270 + $0x28] sm:$0xf] %vm9023, %v9009
        %9036 = vst.msk [vmem:[%s270 + $0x2c] sm:$0x3] %vm9025, %v9010
        %9037 = vst.msk [vmem:[%s270 + $0x30] sm:$0xf] %vm9023, %v9011
        %9038 = vst.msk [vmem:[%s270 + $0x34] sm:$0x3] %vm9025, %v9012
        %9039 = vst.msk [vmem:[%s270 + $0x38] sm:$0xf] %vm9023, %v9013
        %9040 = vst.msk [vmem:[%s270 + $0x3c] sm:$0x3] %vm9025, %v9014
        %9041 = vst.msk [vmem:[%s270 + $0x40] sm:$0xf] %vm9023, %v9015
        %9042 = vst.msk [vmem:[%s270 + $0x44] sm:$0x3] %vm9025, %v9016
        %9043 = vst.msk [vmem:[%s270 + $0x48] sm:$0xf] %vm9023, %v9017
        %9044 = vst.msk [vmem:[%s270 + $0x4c] sm:$0x3] %vm9025, %v9018
        %9045 = vst.msk [vmem:[%s270 + $0x50] sm:$0xf] %vm9023, %v9019
        %9046 = vst.msk [vmem:[%s270 + $0x54] sm:$0x3] %vm9025, %v9020
        %9047 = vst.msk [vmem:[%s270 + $0x58] sm:$0xf] %vm9023, %v9021
        %9048 = vst.msk [vmem:[%s270 + $0x5c] sm:$0x3] %vm9025, %v9022
        %p9049 = scmp.lt.s32.totalorder %s18, 1
        %s9050 = scalar_select %p9049, %s18, 1
        %s9051 = smul.addr %s9050, 24
        %s9052 = smul.addr %s9051, 4
        %s9053 = scalar_lea.vmem %s5, %s9052
        // Predicated region
        $region53: #{chatgpt_forward.2} parent=39 // pred_check
          %p9054 = pneg %p146
        $region54: #{chatgpt_forward.2} parent=39 // pred_check_branch
          %9056 = sbr.rel (%p9054) target = $region56
        $region55: #{chatgpt_forward.2} parent=39 // pred_region
          _
        $region56: #{chatgpt_forward.2} parent=39 // pred_fallthru
          _
      $region40: #{chatgpt_forward.2} parent=5 // pred_fallthru
        _
      %p9057 = scmp.le.s32.totalorder 2, %s13
      // Predicated region
      $region57: #{chatgpt_forward.2} parent=5 // pred_check
        %p9058 = pneg %p9057
      $region58: #{chatgpt_forward.2} parent=5 // pred_check_branch
        %9060 = sbr.rel (%p9058) target = $region60
      $region59: #{chatgpt_forward.2} parent=5 // pred_region
        %s9061 = ssub.s32 %s13, 2
        // Predicated region
        $region61: #{chatgpt_forward.2} parent=59 // pred_check
          %p9062 = pneg %p152
        $region62: #{chatgpt_forward.2} parent=59 // pred_check_branch
          %9064 = sbr.rel (%p9062) target = $region64
        $region63: #{chatgpt_forward.2} parent=59 // pred_region
          %p9065 = scmp.lt.s32.totalorder %s19, 1
          %s9066 = scalar_select %p9065, %s19, 1
          %s9067 = smul.addr %s9066, 24
          %s9068 = smul.addr %s9067, 4
          %s9069 = scalar_lea.vmem %s5, %s9068
        $region64: #{chatgpt_forward.2} parent=59 // pred_fallthru
          _
      $region60: #{chatgpt_forward.2} parent=5 // pred_fallthru
        _
    $region6: #{chatgpt_forward.2} parent=1 // loop_footer
      %s17 = sadd.s32 1, %s13
    $region7: #{chatgpt_forward.2} parent=1 // loop_footer_branch
      %12 = sbr.rel target = $region3
    $region8: #{chatgpt_forward.2} parent=1 // loop_exit
      _
    %9070 = vsyncpa [#allocation6], 1
    %s9071 = scalar_lea.sflag [#allocation6], 1
    %9072 = vsyncpa %s9071, 1
    %9073 = vsyncpa [#allocation8], 1

</llo_original>
